<compile_context>
chip_gen: v5e
topology: v5e:2x2
jax: 0.10.0
libtpu: 0.0.40
codegen_flags: <defaults>
</compile_context>

<pallas_src>
import functools

import jax
import jax.numpy as jnp
from jax.experimental import pallas as pl
from jax.experimental.pallas import tpu as pltpu


def _round_up(x, m):
    return (x + m - 1) // m * m


def _conv_block_kernel(x_ref, w1_ref, w2_ref, wsc_ref, sb_ref,
                       sew1_ref, seb1_ref, sew2_ref, seb2_ref,
                       o_ref, y1w_ref, *, H, W, Wp, Cin, Cout, Bt):
    f32 = jnp.float32
    bf16 = jnp.bfloat16
    M = H * Wp          # flat rows per image; (Wp - W) junk cols/row act as L/R zero pad
    base = Wp           # y1 row o lives at scratch row (base + o); base is 8-aligned
    Lw = y1w_ref.shape[0]

    # Lane-broadcastable mask of real (w < W) columns; shared by all images.
    col = jax.lax.broadcasted_iota(jnp.int32, (M, 1), 0) % Wp
    valid = (col < W).astype(f32)

    # Folded (conv bias + BatchNorm) scale / bias rows, packed lane-dense.
    s1, b1 = sb_ref[0:1, :], sb_ref[1:2, :]
    s2, b2 = sb_ref[2:3, :], sb_ref[3:4, :]
    ssc, bsc = sb_ref[4:5, :], sb_ref[5:6, :]
    inv_hw = 1.0 / float(H * W)

    # Zero only the scratch border strips that conv2 reads but the per-image
    # stores below never cover.  Done at the top of every grid step (cheap,
    # ~2 * (Wp+8) rows) so it is correct even when the grid is split across
    # TensorCores; the interior is fully rewritten for every image.
    y1w_ref[0:base + 8, :] = jnp.zeros((base + 8, 3 * Cout), f32)
    y1w_ref[base + M - 8:Lw, :] = jnp.zeros((Lw - (base + M - 8), 3 * Cout), f32)

    for b in range(Bt):
        # ---- conv1 (3x3, pad 1) + bn1 + relu.  kw taps were pre-folded into the
        # channel axis by the wrapper, so this is 3 aligned MXU matmuls (K=3*Cin).
        acc = jnp.zeros((M, Cout), f32)
        for kh in range(3):
            lhs = x_ref[b, kh * Wp:kh * Wp + M, :]
            acc = acc + jnp.dot(lhs, w1_ref[kh], preferred_element_type=f32)
        y1 = jnp.maximum(acc * s1 + b1, 0.0) * valid   # junk cols -> 0 (zero padding)

        # ---- build the kw-widened conv2 operand: lane block k holds the kw=k
        # row-shifted copy of y1, so each kh tap below is ONE aligned (M, 3*Cout)
        # read feeding ONE matmul (K = 3*Cout).
        y1w_ref[base + 1:base + 1 + M, 0:Cout] = y1          # kw = 0
        y1w_ref[base:base + M, Cout:2 * Cout] = y1           # kw = 1
        y1w_ref[base - 1:base - 1 + M, 2 * Cout:3 * Cout] = y1   # kw = 2

        # ---- conv2 (3x3, pad 1, stride 1) + bn2.
        acc = jnp.zeros((M, Cout), f32)
        for kh in range(3):
            lhs = y1w_ref[kh * Wp:kh * Wp + M, :].astype(bf16)
            acc = acc + jnp.dot(lhs, w2_ref[kh], preferred_element_type=f32)
        y2 = (acc * s2 + b2) * valid

        # ---- SE block: global average pool -> fc -> relu -> fc -> sigmoid.
        pooled = jnp.sum(y2, axis=0, keepdims=True) * inv_hw                 # (1, Cout)
        hid = jnp.maximum(
            jnp.dot(pooled, sew1_ref[...], preferred_element_type=f32) + seb1_ref[...],
            0.0)                                                             # (1, Cmid)
        z = jnp.dot(hid, sew2_ref[...], preferred_element_type=f32) + seb2_ref[...]
        gate = 0.5 * (jnp.tanh(0.5 * z) + 1.0)     # numerically stable sigmoid (1, Cout)

        # ---- shortcut: 1x1 conv (+ folded bn).  Identity shortcut is handled by
        # identity weights from the wrapper.  Lane block 1 of x_ref at row offset
        # Wp is the un-shifted padded image interior (8-row-aligned slice).
        res = jnp.dot(x_ref[b, Wp:Wp + M, Cin:2 * Cin], wsc_ref[...],
                      preferred_element_type=f32) * ssc + bsc

        # ---- SE gate * y2 + residual, relu, compact (junk-column-free) NHWC store.
        for h in range(H):
            r0 = h * Wp                                      # multiple of 8
            o_ref[b, h, :, :] = jnp.maximum(
                y2[r0:r0 + W, :] * gate + res[r0:r0 + W, :], 0.0)


def conv_block_forward(x_nhwc, params, *, stride=1, eps=1e-5, batch_tile=None):
    """ConvBlock forward (inference-mode BatchNorm), NHWC layout."""
    if stride != 1:
        # TODO(synk): stride > 1 not implemented in the Pallas kernel (module default stride=1).
        raise NotImplementedError("stride > 1 not supported by this kernel")

    N, H, W, Cin = x_nhwc.shape
    Cout = params["conv1_w"].shape[-1]
    Wp = _round_up(W + 2, 8)        # padded row width (>=1 left, >=1 right), 8-aligned
    M = H * Wp
    Lx = M + 2 * Wp                 # rows of the flattened padded image the kernel reads
    Lp = (H + 3) * Wp               # rows of the fully padded image (1 top, 2 bottom)

    # Batch tile: amortize per-grid-step overhead but keep >= 2 grid steps so a
    # megacore (v7x) can split the "parallel" batch axis across TensorCores.
    bt = batch_tile or max(1, min(8, N // 2))
    while N % bt:
        bt -= 1

    def fold_bn(conv_b, bn):
        scale = bn["gamma"] / jnp.sqrt(bn["var"] + eps)
        bias = (conv_b - bn["mean"]) * scale + bn["beta"]
        return scale, bias

    s1, b1 = fold_bn(params["conv1_b"], params["bn1"])
    s2, b2 = fold_bn(params["conv2_b"], params["bn2"])
    if params.get("sc_w") is not None:                   # projection shortcut
        wsc = params["sc_w"]
        ssc, bsc = fold_bn(params["sc_b"], params["bn_sc"])
    else:                                                # identity shortcut
        assert Cin == Cout, "identity shortcut requires in_channels == out_channels"
        wsc = jnp.eye(Cin, dtype=jnp.float32)
        ssc = jnp.ones((Cout,), jnp.float32)
        bsc = jnp.zeros((Cout,), jnp.float32)
    sb = jnp.stack([s1, b1, s2, b2, ssc, bsc]).astype(jnp.float32)        # (6, Cout)

    # Conv taps with the kw axis folded into the contraction axis: per kh we get
    # a (3*Cin, Cout) / (3*Cout, Cout) weight, cast to bf16 for the MXU.
    w1 = params["conv1_w"].reshape(3, 3 * Cin, Cout).astype(jnp.bfloat16)
    w2 = params["conv2_w"].reshape(3, 3 * Cout, Cout).astype(jnp.bfloat16)
    wsc = wsc.astype(jnp.bfloat16)
    sew1 = params["se_w1"].astype(jnp.float32)                            # (Cout, Cmid)
    seb1 = params["se_b1"].reshape(1, -1).astype(jnp.float32)             # (1, Cmid)
    sew2 = params["se_w2"].astype(jnp.float32)                            # (Cmid, Cout)
    seb2 = params["se_b2"].reshape(1, -1).astype(jnp.float32)             # (1, Cout)
    Cmid = sew1.shape[1]

    # Zero-pad (1 top, 2 bottom, 1 left, Wp-W-1 right), flatten rows, and fold
    # the kw in {0,1,2} shifts into the channel axis (mini im2col along kw).
    x_pad = jnp.pad(x_nhwc, ((0, 0), (1, 2), (1, Wp - W - 1), (0, 0))).astype(jnp.bfloat16)
    xf = x_pad.reshape(N, Lp, Cin)
    x_wide = jnp.concatenate([xf[:, 0:Lx], xf[:, 1:1 + Lx], xf[:, 2:2 + Lx]], axis=-1)

    kernel = functools.partial(_conv_block_kernel, H=H, W=W, Wp=Wp,
                               Cin=Cin, Cout=Cout, Bt=bt)
    out = pl.pallas_call(
        kernel,
        out_shape=jax.ShapeDtypeStruct((N, H, W, Cout), jnp.float32),
        grid=(N // bt,),
        in_specs=[
            pl.BlockSpec((bt, Lx, 3 * Cin), lambda n: (n, 0, 0)),      # widened padded image
            pl.BlockSpec((3, 3 * Cin, Cout), lambda n: (0, 0, 0)),     # conv1 taps (per kh)
            pl.BlockSpec((3, 3 * Cout, Cout), lambda n: (0, 0, 0)),    # conv2 taps (per kh)
            pl.BlockSpec((Cin, Cout), lambda n: (0, 0)),               # shortcut 1x1
            pl.BlockSpec((6, Cout), lambda n: (0, 0)),                 # folded scale/bias
            pl.BlockSpec((Cout, Cmid), lambda n: (0, 0)),              # SE fc1 weight
            pl.BlockSpec((1, Cmid), lambda n: (0, 0)),                 # SE fc1 bias
            pl.BlockSpec((Cmid, Cout), lambda n: (0, 0)),              # SE fc2 weight
            pl.BlockSpec((1, Cout), lambda n: (0, 0)),                 # SE fc2 bias
        ],
        out_specs=pl.BlockSpec((bt, H, W, Cout), lambda n: (n, 0, 0, 0)),
        scratch_shapes=[pltpu.VMEM((Lx, 3 * Cout), jnp.float32)],      # kw-widened y1
        compiler_params=pltpu.CompilerParams(
            dimension_semantics=("parallel",),
            vmem_limit_bytes=32 * 1024 * 1024),
    )(x_wide, w1, w2, wsc, sb, sew1, seb1, sew2, seb2)
    return out


def _conv_block_reference(x, params, *, eps=1e-5):
    """Pure-JAX f32 reference mirroring the PyTorch module (eval-mode BatchNorm)."""
    dn = ("NHWC", "HWIO", "NHWC")

    def conv(v, w, b, k):
        pad = ((1, 1), (1, 1)) if k == 3 else ((0, 0), (0, 0))
        return jax.lax.conv_general_dilated(v, w, (1, 1), pad, dimension_numbers=dn) + b

    def bn(v, p):
        return (v - p["mean"]) / jnp.sqrt(p["var"] + eps) * p["gamma"] + p["beta"]

    out = jax.nn.relu(bn(conv(x, params["conv1_w"], params["conv1_b"], 3), params["bn1"]))
    out = bn(conv(out, params["conv2_w"], params["conv2_b"], 3), params["bn2"])
    pooled = out.mean(axis=(1, 2))
    hid = jax.nn.relu(pooled @ params["se_w1"] + params["se_b1"])
    gate = jax.nn.sigmoid(hid @ params["se_w2"] + params["se_b2"])
    out = out * gate[:, None, None, :]
    if params.get("sc_w") is not None:
        res = bn(conv(x, params["sc_w"][None, None], params["sc_b"], 1), params["bn_sc"])
    else:
        res = x
    return jax.nn.relu(out + res)


if __name__ == "__main__":
    key = jax.random.PRNGKey(0)
    ks = jax.random.split(key, 16)

    N, H, W = 4, 16, 16
    Cin, Cout, reduction = 4, 32, 16
    Cmid = Cout // reduction

    def bn_params(k):
        k1, k2, k3, k4 = jax.random.split(k, 4)
        return dict(gamma=1.0 + 0.1 * jax.random.normal(k1, (Cout,), jnp.float32),
                    beta=0.1 * jax.random.normal(k2, (Cout,), jnp.float32),
                    mean=0.1 * jax.random.normal(k3, (Cout,), jnp.float32),
                    var=jax.random.uniform(k4, (Cout,), jnp.float32, 0.5, 1.5))

    params = dict(
        conv1_w=0.2 * jax.random.normal(ks[0], (3, 3, Cin, Cout), jnp.float32),
        conv1_b=0.1 * jax.random.normal(ks[1], (Cout,), jnp.float32),
        bn1=bn_params(ks[2]),
        conv2_w=0.1 * jax.random.normal(ks[3], (3, 3, Cout, Cout), jnp.float32),
        conv2_b=0.1 * jax.random.normal(ks[4], (Cout,), jnp.float32),
        bn2=bn_params(ks[5]),
        sc_w=0.2 * jax.random.normal(ks[6], (Cin, Cout), jnp.float32),
        sc_b=0.1 * jax.random.normal(ks[7], (Cout,), jnp.float32),
        bn_sc=bn_params(ks[8]),
        se_w1=0.3 * jax.random.normal(ks[9], (Cout, Cmid), jnp.float32),
        se_b1=0.1 * jax.random.normal(ks[10], (Cmid,), jnp.float32),
        se_w2=0.3 * jax.random.normal(ks[11], (Cmid, Cout), jnp.float32),
        se_b2=0.1 * jax.random.normal(ks[12], (Cout,), jnp.float32),
    )
    x = jax.random.normal(ks[13], (N, H, W, Cin), jnp.float32)

    out = jax.block_until_ready(conv_block_forward(x, params))
    ref = jax.block_until_ready(_conv_block_reference(x, params))

    assert out.shape == (N, H, W, Cout), out.shape
    # bf16 MXU operands (f32 accumulation) -> looser-than-f32 tolerance.
    err = float(jnp.max(jnp.abs(out - ref)))
    assert jnp.allclose(out, ref, rtol=5e-2, atol=8e-2), err

    print("KERNEL_OK")
</pallas_src>

<mosaic_0001>
module attributes {stable_mosaic.version = 11 : i64} {
  func.func @_conv_block_kernel(%arg0: i32, %arg1: memref<2x432x12xbf16, #tpu.memory_space<vmem>>, %arg2: memref<3x12x32xbf16, #tpu.memory_space<vmem>>, %arg3: memref<3x96x32xbf16, #tpu.memory_space<vmem>>, %arg4: memref<4x32xbf16, #tpu.memory_space<vmem>>, %arg5: memref<6x32xf32, #tpu.memory_space<vmem>>, %arg6: memref<32x2xf32, #tpu.memory_space<vmem>>, %arg7: memref<1x2xf32, #tpu.memory_space<vmem>>, %arg8: memref<2x32xf32, #tpu.memory_space<vmem>>, %arg9: memref<1x32xf32, #tpu.memory_space<vmem>>, %arg10: memref<2x16x16x32xf32, #tpu.memory_space<vmem>>, %arg11: memref<432x96xf32, #tpu.memory_space<vmem>>) attributes {dimension_semantics = [#tpu.dimension_semantics<parallel>], iteration_bounds = array<i64: 2>, scalar_prefetch = 0 : i64, scratch_operands = 1 : i64, tpu.core_type = #tpu.core_type<tc>, window_params = [{transform_indices = @transform_0, window_bounds = array<i64: 2, 432, 12>}, {pipeline_mode = #tpu.pipeline_mode<synchronous>, transform_indices = @transform_1, window_bounds = array<i64: 3, 12, 32>}, {pipeline_mode = #tpu.pipeline_mode<synchronous>, transform_indices = @transform_2, window_bounds = array<i64: 3, 96, 32>}, {pipeline_mode = #tpu.pipeline_mode<synchronous>, transform_indices = @transform_3, window_bounds = array<i64: 4, 32>}, {pipeline_mode = #tpu.pipeline_mode<synchronous>, transform_indices = @transform_4, window_bounds = array<i64: 6, 32>}, {pipeline_mode = #tpu.pipeline_mode<synchronous>, transform_indices = @transform_5, window_bounds = array<i64: 32, 2>}, {pipeline_mode = #tpu.pipeline_mode<synchronous>, transform_indices = @transform_6, window_bounds = array<i64: 1, 2>}, {pipeline_mode = #tpu.pipeline_mode<synchronous>, transform_indices = @transform_7, window_bounds = array<i64: 2, 32>}, {pipeline_mode = #tpu.pipeline_mode<synchronous>, transform_indices = @transform_8, window_bounds = array<i64: 1, 32>}, {transform_indices = @transform_9, window_bounds = array<i64: 2, 16, 16, 32>}]} {
    %0 = tpu.iota {dimensions = array<i32: 0>} : vector<384x1xi32>
    %c24_i32 = arith.constant 24 : i32
    %c0_i32 = arith.constant 0 : i32
    %1 = arith.cmpi eq, %c24_i32, %c0_i32 : i32
    %c1_i32 = arith.constant 1 : i32
    %2 = arith.select %1, %c1_i32, %c24_i32 : i32
    %3 = vector.broadcast %2 : i32 to vector<384x1xi32>
    %4 = arith.remsi %0, %3 : vector<384x1xi32>
    %c0_i32_0 = arith.constant 0 : i32
    %5 = vector.broadcast %c0_i32_0 : i32 to vector<384x1xi32>
    %6 = arith.cmpi ne, %4, %5 : vector<384x1xi32>
    %c0_i32_1 = arith.constant 0 : i32
    %7 = vector.broadcast %c0_i32_1 : i32 to vector<384x1xi32>
    %8 = arith.cmpi slt, %4, %7 : vector<384x1xi32>
    %c0_i32_2 = arith.constant 0 : i32
    %9 = arith.cmpi slt, %2, %c0_i32_2 : i32
    %10 = vector.broadcast %9 : i1 to vector<384x1xi1>
    %11 = vector.broadcast %10 : vector<384x1xi1> to vector<384x1xi1>
    %12 = arith.xori %8, %11 : vector<384x1xi1>
    %13 = arith.andi %12, %6 : vector<384x1xi1>
    %14 = vector.broadcast %2 : i32 to vector<384x1xi32>
    %15 = arith.addi %4, %14 : vector<384x1xi32>
    %16 = arith.select %13, %15, %4 : vector<384x1xi1>, vector<384x1xi32>
    %c16_i32 = arith.constant 16 : i32
    %17 = vector.broadcast %c16_i32 : i32 to vector<384x1xi32>
    %18 = arith.cmpi slt, %16, %17 : vector<384x1xi32>
    %19 = arith.extui %18 : vector<384x1xi1> to vector<384x1xi32>
    %20 = arith.sitofp %19 : vector<384x1xi32> to vector<384x1xf32>
    %c0 = arith.constant 0 : index
    %c0_3 = arith.constant 0 : index
    %21 = vector.load %arg5[%c0, %c0_3] : memref<6x32xf32, #tpu.memory_space<vmem>>, vector<1x32xf32>
    %c1 = arith.constant 1 : index
    %c0_4 = arith.constant 0 : index
    %22 = vector.load %arg5[%c1, %c0_4] : memref<6x32xf32, #tpu.memory_space<vmem>>, vector<1x32xf32>
    %c2 = arith.constant 2 : index
    %c0_5 = arith.constant 0 : index
    %23 = vector.load %arg5[%c2, %c0_5] : memref<6x32xf32, #tpu.memory_space<vmem>>, vector<1x32xf32>
    %c3 = arith.constant 3 : index
    %c0_6 = arith.constant 0 : index
    %24 = vector.load %arg5[%c3, %c0_6] : memref<6x32xf32, #tpu.memory_space<vmem>>, vector<1x32xf32>
    %c4 = arith.constant 4 : index
    %c0_7 = arith.constant 0 : index
    %25 = vector.load %arg5[%c4, %c0_7] : memref<6x32xf32, #tpu.memory_space<vmem>>, vector<1x32xf32>
    %c5 = arith.constant 5 : index
    %c0_8 = arith.constant 0 : index
    %26 = vector.load %arg5[%c5, %c0_8] : memref<6x32xf32, #tpu.memory_space<vmem>>, vector<1x32xf32>
    %cst = arith.constant 0.000000e+00 : f32
    %27 = vector.broadcast %cst : f32 to vector<32x96xf32>
    %c0_9 = arith.constant 0 : index
    %c0_10 = arith.constant 0 : index
    %28 = vector.load %arg11[%c0_9, %c0_10] : memref<432x96xf32, #tpu.memory_space<vmem>>, vector<32x96xf32>
    tpu.vector_store %arg11[%c0_9, %c0_10], %27 {strides = array<i32>} : memref<432x96xf32, #tpu.memory_space<vmem>>, vector<32x96xf32>,
    %cst_11 = arith.constant 0.000000e+00 : f32
    %29 = vector.broadcast %cst_11 : f32 to vector<32x96xf32>
    %c400 = arith.constant 400 : index
    %c0_12 = arith.constant 0 : index
    %30 = vector.load %arg11[%c400, %c0_12] : memref<432x96xf32, #tpu.memory_space<vmem>>, vector<32x96xf32>
    tpu.vector_store %arg11[%c400, %c0_12], %29 {strides = array<i32>} : memref<432x96xf32, #tpu.memory_space<vmem>>, vector<32x96xf32>,
    %cst_13 = arith.constant 0.000000e+00 : f32
    %31 = vector.broadcast %cst_13 : f32 to vector<384x32xf32>
    %c0_14 = arith.constant 0 : index
    %c0_15 = arith.constant 0 : index
    %c0_16 = arith.constant 0 : index
    %32 = vector.load %arg1[%c0_14, %c0_15, %c0_16] : memref<2x432x12xbf16, #tpu.memory_space<vmem>>, vector<1x384x12xbf16>
    %33 = vector.shape_cast %32 : vector<1x384x12xbf16> to vector<384x12xbf16>
    %c0_17 = arith.constant 0 : index
    %c0_18 = arith.constant 0 : index
    %c0_19 = arith.constant 0 : index
    %34 = vector.load %arg2[%c0_17, %c0_18, %c0_19] : memref<3x12x32xbf16, #tpu.memory_space<vmem>>, vector<1x12x32xbf16>
    %35 = vector.shape_cast %34 : vector<1x12x32xbf16> to vector<12x32xbf16>
    %cst_20 = arith.constant dense<0.000000e+00> : vector<384x32xf32>
    %36 = tpu.matmul %33, %35, %cst_20 {dimension_numbers = #tpu.dot_dimension_numbers<[1], [0], [0], [1], [0, 0, 1, 1], [], []>} : vector<384x12xbf16>, vector<12x32xbf16>, vector<384x32xf32> -> vector<384x32xf32>
    %37 = arith.addf %31, %36 : vector<384x32xf32>
    %c0_21 = arith.constant 0 : index
    %c24 = arith.constant 24 : index
    %c0_22 = arith.constant 0 : index
    %38 = vector.load %arg1[%c0_21, %c24, %c0_22] : memref<2x432x12xbf16, #tpu.memory_space<vmem>>, vector<1x384x12xbf16>
    %39 = vector.shape_cast %38 : vector<1x384x12xbf16> to vector<384x12xbf16>
    %c1_23 = arith.constant 1 : index
    %c0_24 = arith.constant 0 : index
    %c0_25 = arith.constant 0 : index
    %40 = vector.load %arg2[%c1_23, %c0_24, %c0_25] : memref<3x12x32xbf16, #tpu.memory_space<vmem>>, vector<1x12x32xbf16>
    %41 = vector.shape_cast %40 : vector<1x12x32xbf16> to vector<12x32xbf16>
    %cst_26 = arith.constant dense<0.000000e+00> : vector<384x32xf32>
    %42 = tpu.matmul %39, %41, %cst_26 {dimension_numbers = #tpu.dot_dimension_numbers<[1], [0], [0], [1], [0, 0, 1, 1], [], []>} : vector<384x12xbf16>, vector<12x32xbf16>, vector<384x32xf32> -> vector<384x32xf32>
    %43 = arith.addf %37, %42 : vector<384x32xf32>
    %c0_27 = arith.constant 0 : index
    %c48 = arith.constant 48 : index
    %c0_28 = arith.constant 0 : index
    %44 = vector.load %arg1[%c0_27, %c48, %c0_28] : memref<2x432x12xbf16, #tpu.memory_space<vmem>>, vector<1x384x12xbf16>
    %45 = vector.shape_cast %44 : vector<1x384x12xbf16> to vector<384x12xbf16>
    %c2_29 = arith.constant 2 : index
    %c0_30 = arith.constant 0 : index
    %c0_31 = arith.constant 0 : index
    %46 = vector.load %arg2[%c2_29, %c0_30, %c0_31] : memref<3x12x32xbf16, #tpu.memory_space<vmem>>, vector<1x12x32xbf16>
    %47 = vector.shape_cast %46 : vector<1x12x32xbf16> to vector<12x32xbf16>
    %cst_32 = arith.constant dense<0.000000e+00> : vector<384x32xf32>
    %48 = tpu.matmul %45, %47, %cst_32 {dimension_numbers = #tpu.dot_dimension_numbers<[1], [0], [0], [1], [0, 0, 1, 1], [], []>} : vector<384x12xbf16>, vector<12x32xbf16>, vector<384x32xf32> -> vector<384x32xf32>
    %49 = arith.addf %43, %48 : vector<384x32xf32>
    %50 = vector.broadcast %21 : vector<1x32xf32> to vector<384x32xf32>
    %51 = arith.mulf %49, %50 : vector<384x32xf32>
    %52 = vector.broadcast %22 : vector<1x32xf32> to vector<384x32xf32>
    %53 = arith.addf %51, %52 : vector<384x32xf32>
    %cst_33 = arith.constant 0.000000e+00 : f32
    %54 = vector.broadcast %cst_33 : f32 to vector<384x32xf32>
    %55 = arith.maximumf %53, %54 : vector<384x32xf32>
    %56 = vector.broadcast %20 : vector<384x1xf32> to vector<384x32xf32>
    %57 = arith.mulf %55, %56 : vector<384x32xf32>
    %c25 = arith.constant 25 : index
    %c0_34 = arith.constant 0 : index
    %58 = vector.load %arg11[%c25, %c0_34] : memref<432x96xf32, #tpu.memory_space<vmem>>, vector<384x32xf32>
    tpu.vector_store %arg11[%c25, %c0_34], %57 {strides = array<i32>} : memref<432x96xf32, #tpu.memory_space<vmem>>, vector<384x32xf32>,
    %c24_35 = arith.constant 24 : index
    %c32 = arith.constant 32 : index
    %59 = vector.load %arg11[%c24_35, %c32] : memref<432x96xf32, #tpu.memory_space<vmem>>, vector<384x32xf32>
    tpu.vector_store %arg11[%c24_35, %c32], %57 {strides = array<i32>} : memref<432x96xf32, #tpu.memory_space<vmem>>, vector<384x32xf32>,
    %c23 = arith.constant 23 : index
    %c64 = arith.constant 64 : index
    %60 = vector.load %arg11[%c23, %c64] : memref<432x96xf32, #tpu.memory_space<vmem>>, vector<384x32xf32>
    tpu.vector_store %arg11[%c23, %c64], %57 {strides = array<i32>} : memref<432x96xf32, #tpu.memory_space<vmem>>, vector<384x32xf32>,
    %cst_36 = arith.constant 0.000000e+00 : f32
    %61 = vector.broadcast %cst_36 : f32 to vector<384x32xf32>
    %c0_37 = arith.constant 0 : index
    %c0_38 = arith.constant 0 : index
    %62 = vector.load %arg11[%c0_37, %c0_38] : memref<432x96xf32, #tpu.memory_space<vmem>>, vector<384x96xf32>
    %63 = arith.truncf %62 : vector<384x96xf32> to vector<384x96xbf16>
    %c0_39 = arith.constant 0 : index
    %c0_40 = arith.constant 0 : index
    %c0_41 = arith.constant 0 : index
    %64 = vector.load %arg3[%c0_39, %c0_40, %c0_41] : memref<3x96x32xbf16, #tpu.memory_space<vmem>>, vector<1x96x32xbf16>
    %65 = vector.shape_cast %64 : vector<1x96x32xbf16> to vector<96x32xbf16>
    %cst_42 = arith.constant dense<0.000000e+00> : vector<384x32xf32>
    %66 = tpu.matmul %63, %65, %cst_42 {dimension_numbers = #tpu.dot_dimension_numbers<[1], [0], [0], [1], [0, 0, 1, 1], [], []>} : vector<384x96xbf16>, vector<96x32xbf16>, vector<384x32xf32> -> vector<384x32xf32>
    %67 = arith.addf %61, %66 : vector<384x32xf32>
    %c24_43 = arith.constant 24 : index
    %c0_44 = arith.constant 0 : index
    %68 = vector.load %arg11[%c24_43, %c0_44] : memref<432x96xf32, #tpu.memory_space<vmem>>, vector<384x96xf32>
    %69 = arith.truncf %68 : vector<384x96xf32> to vector<384x96xbf16>
    %c1_45 = arith.constant 1 : index
    %c0_46 = arith.constant 0 : index
    %c0_47 = arith.constant 0 : index
    %70 = vector.load %arg3[%c1_45, %c0_46, %c0_47] : memref<3x96x32xbf16, #tpu.memory_space<vmem>>, vector<1x96x32xbf16>
    %71 = vector.shape_cast %70 : vector<1x96x32xbf16> to vector<96x32xbf16>
    %cst_48 = arith.constant dense<0.000000e+00> : vector<384x32xf32>
    %72 = tpu.matmul %69, %71, %cst_48 {dimension_numbers = #tpu.dot_dimension_numbers<[1], [0], [0], [1], [0, 0, 1, 1], [], []>} : vector<384x96xbf16>, vector<96x32xbf16>, vector<384x32xf32> -> vector<384x32xf32>
    %73 = arith.addf %67, %72 : vector<384x32xf32>
    %c48_49 = arith.constant 48 : index
    %c0_50 = arith.constant 0 : index
    %74 = vector.load %arg11[%c48_49, %c0_50] : memref<432x96xf32, #tpu.memory_space<vmem>>, vector<384x96xf32>
    %75 = arith.truncf %74 : vector<384x96xf32> to vector<384x96xbf16>
    %c2_51 = arith.constant 2 : index
    %c0_52 = arith.constant 0 : index
    %c0_53 = arith.constant 0 : index
    %76 = vector.load %arg3[%c2_51, %c0_52, %c0_53] : memref<3x96x32xbf16, #tpu.memory_space<vmem>>, vector<1x96x32xbf16>
    %77 = vector.shape_cast %76 : vector<1x96x32xbf16> to vector<96x32xbf16>
    %cst_54 = arith.constant dense<0.000000e+00> : vector<384x32xf32>
    %78 = tpu.matmul %75, %77, %cst_54 {dimension_numbers = #tpu.dot_dimension_numbers<[1], [0], [0], [1], [0, 0, 1, 1], [], []>} : vector<384x96xbf16>, vector<96x32xbf16>, vector<384x32xf32> -> vector<384x32xf32>
    %79 = arith.addf %73, %78 : vector<384x32xf32>
    %80 = vector.broadcast %23 : vector<1x32xf32> to vector<384x32xf32>
    %81 = arith.mulf %79, %80 : vector<384x32xf32>
    %82 = vector.broadcast %24 : vector<1x32xf32> to vector<384x32xf32>
    %83 = arith.addf %81, %82 : vector<384x32xf32>
    %84 = vector.broadcast %20 : vector<384x1xf32> to vector<384x32xf32>
    %85 = arith.mulf %83, %84 : vector<384x32xf32>
    %cst_55 = arith.constant dense<0.000000e+00> : vector<32xf32>
    %86 = vector.multi_reduction <add>, %85, %cst_55 [0] : vector<384x32xf32> to vector<32xf32>
    %87 = vector.shape_cast %86 : vector<32xf32> to vector<1x32xf32>
    %cst_56 = arith.constant 3.906250e-03 : f32
    %88 = vector.broadcast %cst_56 : f32 to vector<1x32xf32>
    %89 = arith.mulf %87, %88 : vector<1x32xf32>
    %c0_57 = arith.constant 0 : index
    %c0_58 = arith.constant 0 : index
    %90 = vector.load %arg6[%c0_57, %c0_58] : memref<32x2xf32, #tpu.memory_space<vmem>>, vector<32x2xf32>
    %cst_59 = arith.constant dense<0.000000e+00> : vector<1x2xf32>
    %91 = tpu.matmul %89, %90, %cst_59 {dimension_numbers = #tpu.dot_dimension_numbers<[1], [0], [0], [1], [0, 0, 1, 1], [], []>} : vector<1x32xf32>, vector<32x2xf32>, vector<1x2xf32> -> vector<1x2xf32>
    %c0_60 = arith.constant 0 : index
    %c0_61 = arith.constant 0 : index
    %92 = vector.load %arg7[%c0_60, %c0_61] : memref<1x2xf32, #tpu.memory_space<vmem>>, vector<1x2xf32>
    %93 = arith.addf %91, %92 : vector<1x2xf32>
    %cst_62 = arith.constant 0.000000e+00 : f32
    %94 = vector.broadcast %cst_62 : f32 to vector<1x2xf32>
    %95 = arith.maximumf %93, %94 : vector<1x2xf32>
    %c0_63 = arith.constant 0 : index
    %c0_64 = arith.constant 0 : index
    %96 = vector.load %arg8[%c0_63, %c0_64] : memref<2x32xf32, #tpu.memory_space<vmem>>, vector<2x32xf32>
    %cst_65 = arith.constant dense<0.000000e+00> : vector<1x32xf32>
    %97 = tpu.matmul %95, %96, %cst_65 {dimension_numbers = #tpu.dot_dimension_numbers<[1], [0], [0], [1], [0, 0, 1, 1], [], []>} : vector<1x2xf32>, vector<2x32xf32>, vector<1x32xf32> -> vector<1x32xf32>
    %c0_66 = arith.constant 0 : index
    %c0_67 = arith.constant 0 : index
    %98 = vector.load %arg9[%c0_66, %c0_67] : memref<1x32xf32, #tpu.memory_space<vmem>>, vector<1x32xf32>
    %99 = arith.addf %97, %98 : vector<1x32xf32>
    %cst_68 = arith.constant 5.000000e-01 : f32
    %100 = vector.broadcast %cst_68 : f32 to vector<1x32xf32>
    %101 = arith.mulf %100, %99 : vector<1x32xf32>
    %102 = math.tanh %101 : vector<1x32xf32>
    %cst_69 = arith.constant 1.000000e+00 : f32
    %103 = vector.broadcast %cst_69 : f32 to vector<1x32xf32>
    %104 = arith.addf %102, %103 : vector<1x32xf32>
    %cst_70 = arith.constant 5.000000e-01 : f32
    %105 = vector.broadcast %cst_70 : f32 to vector<1x32xf32>
    %106 = arith.mulf %105, %104 : vector<1x32xf32>
    %c0_71 = arith.constant 0 : index
    %c24_72 = arith.constant 24 : index
    %c4_73 = arith.constant 4 : index
    %107 = vector.load %arg1[%c0_71, %c24_72, %c4_73] : memref<2x432x12xbf16, #tpu.memory_space<vmem>>, vector<1x384x4xbf16>
    %108 = vector.shape_cast %107 : vector<1x384x4xbf16> to vector<384x4xbf16>
    %c0_74 = arith.constant 0 : index
    %c0_75 = arith.constant 0 : index
    %109 = vector.load %arg4[%c0_74, %c0_75] : memref<4x32xbf16, #tpu.memory_space<vmem>>, vector<4x32xbf16>
    %cst_76 = arith.constant dense<0.000000e+00> : vector<384x32xf32>
    %110 = tpu.matmul %108, %109, %cst_76 {dimension_numbers = #tpu.dot_dimension_numbers<[1], [0], [0], [1], [0, 0, 1, 1], [], []>} : vector<384x4xbf16>, vector<4x32xbf16>, vector<384x32xf32> -> vector<384x32xf32>
    %111 = vector.broadcast %25 : vector<1x32xf32> to vector<384x32xf32>
    %112 = arith.mulf %110, %111 : vector<384x32xf32>
    %113 = vector.broadcast %26 : vector<1x32xf32> to vector<384x32xf32>
    %114 = arith.addf %112, %113 : vector<384x32xf32>
    %115 = vector.extract_strided_slice %85 {offsets = [0, 0], sizes = [16, 32], strides = [1, 1]} : vector<384x32xf32> to vector<16x32xf32>
    %116 = vector.broadcast %106 : vector<1x32xf32> to vector<16x32xf32>
    %117 = arith.mulf %115, %116 : vector<16x32xf32>
    %118 = vector.extract_strided_slice %114 {offsets = [0, 0], sizes = [16, 32], strides = [1, 1]} : vector<384x32xf32> to vector<16x32xf32>
    %119 = arith.addf %117, %118 : vector<16x32xf32>
    %cst_77 = arith.constant 0.000000e+00 : f32
    %120 = vector.broadcast %cst_77 : f32 to vector<16x32xf32>
    %121 = arith.maximumf %119, %120 : vector<16x32xf32>
    %c0_78 = arith.constant 0 : index
    %c0_79 = arith.constant 0 : index
    %c0_80 = arith.constant 0 : index
    %c0_81 = arith.constant 0 : index
    %122 = vector.load %arg10[%c0_78, %c0_79, %c0_80, %c0_81] : memref<2x16x16x32xf32, #tpu.memory_space<vmem>>, vector<1x1x16x32xf32>
    %123 = vector.shape_cast %122 : vector<1x1x16x32xf32> to vector<16x32xf32>
    %124 = vector.shape_cast %121 : vector<16x32xf32> to vector<1x1x16x32xf32>
    tpu.vector_store %arg10[%c0_78, %c0_79, %c0_80, %c0_81], %124 {strides = array<i32>} : memref<2x16x16x32xf32, #tpu.memory_space<vmem>>, vector<1x1x16x32xf32>,
    %125 = vector.extract_strided_slice %85 {offsets = [24, 0], sizes = [16, 32], strides = [1, 1]} : vector<384x32xf32> to vector<16x32xf32>
    %126 = vector.broadcast %106 : vector<1x32xf32> to vector<16x32xf32>
    %127 = arith.mulf %125, %126 : vector<16x32xf32>
    %128 = vector.extract_strided_slice %114 {offsets = [24, 0], sizes = [16, 32], strides = [1, 1]} : vector<384x32xf32> to vector<16x32xf32>
    %129 = arith.addf %127, %128 : vector<16x32xf32>
    %cst_82 = arith.constant 0.000000e+00 : f32
    %130 = vector.broadcast %cst_82 : f32 to vector<16x32xf32>
    %131 = arith.maximumf %129, %130 : vector<16x32xf32>
    %c0_83 = arith.constant 0 : index
    %c1_84 = arith.constant 1 : index
    %c0_85 = arith.constant 0 : index
    %c0_86 = arith.constant 0 : index
    %132 = vector.load %arg10[%c0_83, %c1_84, %c0_85, %c0_86] : memref<2x16x16x32xf32, #tpu.memory_space<vmem>>, vector<1x1x16x32xf32>
    %133 = vector.shape_cast %132 : vector<1x1x16x32xf32> to vector<16x32xf32>
    %134 = vector.shape_cast %131 : vector<16x32xf32> to vector<1x1x16x32xf32>
    tpu.vector_store %arg10[%c0_83, %c1_84, %c0_85, %c0_86], %134 {strides = array<i32>} : memref<2x16x16x32xf32, #tpu.memory_space<vmem>>, vector<1x1x16x32xf32>,
    %135 = vector.extract_strided_slice %85 {offsets = [48, 0], sizes = [16, 32], strides = [1, 1]} : vector<384x32xf32> to vector<16x32xf32>
    %136 = vector.broadcast %106 : vector<1x32xf32> to vector<16x32xf32>
    %137 = arith.mulf %135, %136 : vector<16x32xf32>
    %138 = vector.extract_strided_slice %114 {offsets = [48, 0], sizes = [16, 32], strides = [1, 1]} : vector<384x32xf32> to vector<16x32xf32>
    %139 = arith.addf %137, %138 : vector<16x32xf32>
    %cst_87 = arith.constant 0.000000e+00 : f32
    %140 = vector.broadcast %cst_87 : f32 to vector<16x32xf32>
    %141 = arith.maximumf %139, %140 : vector<16x32xf32>
    %c0_88 = arith.constant 0 : index
    %c2_89 = arith.constant 2 : index
    %c0_90 = arith.constant 0 : index
    %c0_91 = arith.constant 0 : index
    %142 = vector.load %arg10[%c0_88, %c2_89, %c0_90, %c0_91] : memref<2x16x16x32xf32, #tpu.memory_space<vmem>>, vector<1x1x16x32xf32>
    %143 = vector.shape_cast %142 : vector<1x1x16x32xf32> to vector<16x32xf32>
    %144 = vector.shape_cast %141 : vector<16x32xf32> to vector<1x1x16x32xf32>
    tpu.vector_store %arg10[%c0_88, %c2_89, %c0_90, %c0_91], %144 {strides = array<i32>} : memref<2x16x16x32xf32, #tpu.memory_space<vmem>>, vector<1x1x16x32xf32>,
    %145 = vector.extract_strided_slice %85 {offsets = [72, 0], sizes = [16, 32], strides = [1, 1]} : vector<384x32xf32> to vector<16x32xf32>
    %146 = vector.broadcast %106 : vector<1x32xf32> to vector<16x32xf32>
    %147 = arith.mulf %145, %146 : vector<16x32xf32>
    %148 = vector.extract_strided_slice %114 {offsets = [72, 0], sizes = [16, 32], strides = [1, 1]} : vector<384x32xf32> to vector<16x32xf32>
    %149 = arith.addf %147, %148 : vector<16x32xf32>
    %cst_92 = arith.constant 0.000000e+00 : f32
    %150 = vector.broadcast %cst_92 : f32 to vector<16x32xf32>
    %151 = arith.maximumf %149, %150 : vector<16x32xf32>
    %c0_93 = arith.constant 0 : index
    %c3_94 = arith.constant 3 : index
    %c0_95 = arith.constant 0 : index
    %c0_96 = arith.constant 0 : index
    %152 = vector.load %arg10[%c0_93, %c3_94, %c0_95, %c0_96] : memref<2x16x16x32xf32, #tpu.memory_space<vmem>>, vector<1x1x16x32xf32>
    %153 = vector.shape_cast %152 : vector<1x1x16x32xf32> to vector<16x32xf32>
    %154 = vector.shape_cast %151 : vector<16x32xf32> to vector<1x1x16x32xf32>
    tpu.vector_store %arg10[%c0_93, %c3_94, %c0_95, %c0_96], %154 {strides = array<i32>} : memref<2x16x16x32xf32, #tpu.memory_space<vmem>>, vector<1x1x16x32xf32>,
    %155 = vector.extract_strided_slice %85 {offsets = [96, 0], sizes = [16, 32], strides = [1, 1]} : vector<384x32xf32> to vector<16x32xf32>
    %156 = vector.broadcast %106 : vector<1x32xf32> to vector<16x32xf32>
    %157 = arith.mulf %155, %156 : vector<16x32xf32>
    %158 = vector.extract_strided_slice %114 {offsets = [96, 0], sizes = [16, 32], strides = [1, 1]} : vector<384x32xf32> to vector<16x32xf32>
    %159 = arith.addf %157, %158 : vector<16x32xf32>
    %cst_97 = arith.constant 0.000000e+00 : f32
    %160 = vector.broadcast %cst_97 : f32 to vector<16x32xf32>
    %161 = arith.maximumf %159, %160 : vector<16x32xf32>
    %c0_98 = arith.constant 0 : index
    %c4_99 = arith.constant 4 : index
    %c0_100 = arith.constant 0 : index
    %c0_101 = arith.constant 0 : index
    %162 = vector.load %arg10[%c0_98, %c4_99, %c0_100, %c0_101] : memref<2x16x16x32xf32, #tpu.memory_space<vmem>>, vector<1x1x16x32xf32>
    %163 = vector.shape_cast %162 : vector<1x1x16x32xf32> to vector<16x32xf32>
    %164 = vector.shape_cast %161 : vector<16x32xf32> to vector<1x1x16x32xf32>
    tpu.vector_store %arg10[%c0_98, %c4_99, %c0_100, %c0_101], %164 {strides = array<i32>} : memref<2x16x16x32xf32, #tpu.memory_space<vmem>>, vector<1x1x16x32xf32>,
    %165 = vector.extract_strided_slice %85 {offsets = [120, 0], sizes = [16, 32], strides = [1, 1]} : vector<384x32xf32> to vector<16x32xf32>
    %166 = vector.broadcast %106 : vector<1x32xf32> to vector<16x32xf32>
    %167 = arith.mulf %165, %166 : vector<16x32xf32>
    %168 = vector.extract_strided_slice %114 {offsets = [120, 0], sizes = [16, 32], strides = [1, 1]} : vector<384x32xf32> to vector<16x32xf32>
    %169 = arith.addf %167, %168 : vector<16x32xf32>
    %cst_102 = arith.constant 0.000000e+00 : f32
    %170 = vector.broadcast %cst_102 : f32 to vector<16x32xf32>
    %171 = arith.maximumf %169, %170 : vector<16x32xf32>
    %c0_103 = arith.constant 0 : index
    %c5_104 = arith.constant 5 : index
    %c0_105 = arith.constant 0 : index
    %c0_106 = arith.constant 0 : index
    %172 = vector.load %arg10[%c0_103, %c5_104, %c0_105, %c0_106] : memref<2x16x16x32xf32, #tpu.memory_space<vmem>>, vector<1x1x16x32xf32>
    %173 = vector.shape_cast %172 : vector<1x1x16x32xf32> to vector<16x32xf32>
    %174 = vector.shape_cast %171 : vector<16x32xf32> to vector<1x1x16x32xf32>
    tpu.vector_store %arg10[%c0_103, %c5_104, %c0_105, %c0_106], %174 {strides = array<i32>} : memref<2x16x16x32xf32, #tpu.memory_space<vmem>>, vector<1x1x16x32xf32>,
    %175 = vector.extract_strided_slice %85 {offsets = [144, 0], sizes = [16, 32], strides = [1, 1]} : vector<384x32xf32> to vector<16x32xf32>
    %176 = vector.broadcast %106 : vector<1x32xf32> to vector<16x32xf32>
    %177 = arith.mulf %175, %176 : vector<16x32xf32>
    %178 = vector.extract_strided_slice %114 {offsets = [144, 0], sizes = [16, 32], strides = [1, 1]} : vector<384x32xf32> to vector<16x32xf32>
    %179 = arith.addf %177, %178 : vector<16x32xf32>
    %cst_107 = arith.constant 0.000000e+00 : f32
    %180 = vector.broadcast %cst_107 : f32 to vector<16x32xf32>
    %181 = arith.maximumf %179, %180 : vector<16x32xf32>
    %c0_108 = arith.constant 0 : index
    %c6 = arith.constant 6 : index
    %c0_109 = arith.constant 0 : index
    %c0_110 = arith.constant 0 : index
    %182 = vector.load %arg10[%c0_108, %c6, %c0_109, %c0_110] : memref<2x16x16x32xf32, #tpu.memory_space<vmem>>, vector<1x1x16x32xf32>
    %183 = vector.shape_cast %182 : vector<1x1x16x32xf32> to vector<16x32xf32>
    %184 = vector.shape_cast %181 : vector<16x32xf32> to vector<1x1x16x32xf32>
    tpu.vector_store %arg10[%c0_108, %c6, %c0_109, %c0_110], %184 {strides = array<i32>} : memref<2x16x16x32xf32, #tpu.memory_space<vmem>>, vector<1x1x16x32xf32>,
    %185 = vector.extract_strided_slice %85 {offsets = [168, 0], sizes = [16, 32], strides = [1, 1]} : vector<384x32xf32> to vector<16x32xf32>
    %186 = vector.broadcast %106 : vector<1x32xf32> to vector<16x32xf32>
    %187 = arith.mulf %185, %186 : vector<16x32xf32>
    %188 = vector.extract_strided_slice %114 {offsets = [168, 0], sizes = [16, 32], strides = [1, 1]} : vector<384x32xf32> to vector<16x32xf32>
    %189 = arith.addf %187, %188 : vector<16x32xf32>
    %cst_111 = arith.constant 0.000000e+00 : f32
    %190 = vector.broadcast %cst_111 : f32 to vector<16x32xf32>
    %191 = arith.maximumf %189, %190 : vector<16x32xf32>
    %c0_112 = arith.constant 0 : index
    %c7 = arith.constant 7 : index
    %c0_113 = arith.constant 0 : index
    %c0_114 = arith.constant 0 : index
    %192 = vector.load %arg10[%c0_112, %c7, %c0_113, %c0_114] : memref<2x16x16x32xf32, #tpu.memory_space<vmem>>, vector<1x1x16x32xf32>
    %193 = vector.shape_cast %192 : vector<1x1x16x32xf32> to vector<16x32xf32>
    %194 = vector.shape_cast %191 : vector<16x32xf32> to vector<1x1x16x32xf32>
    tpu.vector_store %arg10[%c0_112, %c7, %c0_113, %c0_114], %194 {strides = array<i32>} : memref<2x16x16x32xf32, #tpu.memory_space<vmem>>, vector<1x1x16x32xf32>,
    %195 = vector.extract_strided_slice %85 {offsets = [192, 0], sizes = [16, 32], strides = [1, 1]} : vector<384x32xf32> to vector<16x32xf32>
    %196 = vector.broadcast %106 : vector<1x32xf32> to vector<16x32xf32>
    %197 = arith.mulf %195, %196 : vector<16x32xf32>
    %198 = vector.extract_strided_slice %114 {offsets = [192, 0], sizes = [16, 32], strides = [1, 1]} : vector<384x32xf32> to vector<16x32xf32>
    %199 = arith.addf %197, %198 : vector<16x32xf32>
    %cst_115 = arith.constant 0.000000e+00 : f32
    %200 = vector.broadcast %cst_115 : f32 to vector<16x32xf32>
    %201 = arith.maximumf %199, %200 : vector<16x32xf32>
    %c0_116 = arith.constant 0 : index
    %c8 = arith.constant 8 : index
    %c0_117 = arith.constant 0 : index
    %c0_118 = arith.constant 0 : index
    %202 = vector.load %arg10[%c0_116, %c8, %c0_117, %c0_118] : memref<2x16x16x32xf32, #tpu.memory_space<vmem>>, vector<1x1x16x32xf32>
    %203 = vector.shape_cast %202 : vector<1x1x16x32xf32> to vector<16x32xf32>
    %204 = vector.shape_cast %201 : vector<16x32xf32> to vector<1x1x16x32xf32>
    tpu.vector_store %arg10[%c0_116, %c8, %c0_117, %c0_118], %204 {strides = array<i32>} : memref<2x16x16x32xf32, #tpu.memory_space<vmem>>, vector<1x1x16x32xf32>,
    %205 = vector.extract_strided_slice %85 {offsets = [216, 0], sizes = [16, 32], strides = [1, 1]} : vector<384x32xf32> to vector<16x32xf32>
    %206 = vector.broadcast %106 : vector<1x32xf32> to vector<16x32xf32>
    %207 = arith.mulf %205, %206 : vector<16x32xf32>
    %208 = vector.extract_strided_slice %114 {offsets = [216, 0], sizes = [16, 32], strides = [1, 1]} : vector<384x32xf32> to vector<16x32xf32>
    %209 = arith.addf %207, %208 : vector<16x32xf32>
    %cst_119 = arith.constant 0.000000e+00 : f32
    %210 = vector.broadcast %cst_119 : f32 to vector<16x32xf32>
    %211 = arith.maximumf %209, %210 : vector<16x32xf32>
    %c0_120 = arith.constant 0 : index
    %c9 = arith.constant 9 : index
    %c0_121 = arith.constant 0 : index
    %c0_122 = arith.constant 0 : index
    %212 = vector.load %arg10[%c0_120, %c9, %c0_121, %c0_122] : memref<2x16x16x32xf32, #tpu.memory_space<vmem>>, vector<1x1x16x32xf32>
    %213 = vector.shape_cast %212 : vector<1x1x16x32xf32> to vector<16x32xf32>
    %214 = vector.shape_cast %211 : vector<16x32xf32> to vector<1x1x16x32xf32>
    tpu.vector_store %arg10[%c0_120, %c9, %c0_121, %c0_122], %214 {strides = array<i32>} : memref<2x16x16x32xf32, #tpu.memory_space<vmem>>, vector<1x1x16x32xf32>,
    %215 = vector.extract_strided_slice %85 {offsets = [240, 0], sizes = [16, 32], strides = [1, 1]} : vector<384x32xf32> to vector<16x32xf32>
    %216 = vector.broadcast %106 : vector<1x32xf32> to vector<16x32xf32>
    %217 = arith.mulf %215, %216 : vector<16x32xf32>
    %218 = vector.extract_strided_slice %114 {offsets = [240, 0], sizes = [16, 32], strides = [1, 1]} : vector<384x32xf32> to vector<16x32xf32>
    %219 = arith.addf %217, %218 : vector<16x32xf32>
    %cst_123 = arith.constant 0.000000e+00 : f32
    %220 = vector.broadcast %cst_123 : f32 to vector<16x32xf32>
    %221 = arith.maximumf %219, %220 : vector<16x32xf32>
    %c0_124 = arith.constant 0 : index
    %c10 = arith.constant 10 : index
    %c0_125 = arith.constant 0 : index
    %c0_126 = arith.constant 0 : index
    %222 = vector.load %arg10[%c0_124, %c10, %c0_125, %c0_126] : memref<2x16x16x32xf32, #tpu.memory_space<vmem>>, vector<1x1x16x32xf32>
    %223 = vector.shape_cast %222 : vector<1x1x16x32xf32> to vector<16x32xf32>
    %224 = vector.shape_cast %221 : vector<16x32xf32> to vector<1x1x16x32xf32>
    tpu.vector_store %arg10[%c0_124, %c10, %c0_125, %c0_126], %224 {strides = array<i32>} : memref<2x16x16x32xf32, #tpu.memory_space<vmem>>, vector<1x1x16x32xf32>,
    %225 = vector.extract_strided_slice %85 {offsets = [264, 0], sizes = [16, 32], strides = [1, 1]} : vector<384x32xf32> to vector<16x32xf32>
    %226 = vector.broadcast %106 : vector<1x32xf32> to vector<16x32xf32>
    %227 = arith.mulf %225, %226 : vector<16x32xf32>
    %228 = vector.extract_strided_slice %114 {offsets = [264, 0], sizes = [16, 32], strides = [1, 1]} : vector<384x32xf32> to vector<16x32xf32>
    %229 = arith.addf %227, %228 : vector<16x32xf32>
    %cst_127 = arith.constant 0.000000e+00 : f32
    %230 = vector.broadcast %cst_127 : f32 to vector<16x32xf32>
    %231 = arith.maximumf %229, %230 : vector<16x32xf32>
    %c0_128 = arith.constant 0 : index
    %c11 = arith.constant 11 : index
    %c0_129 = arith.constant 0 : index
    %c0_130 = arith.constant 0 : index
    %232 = vector.load %arg10[%c0_128, %c11, %c0_129, %c0_130] : memref<2x16x16x32xf32, #tpu.memory_space<vmem>>, vector<1x1x16x32xf32>
    %233 = vector.shape_cast %232 : vector<1x1x16x32xf32> to vector<16x32xf32>
    %234 = vector.shape_cast %231 : vector<16x32xf32> to vector<1x1x16x32xf32>
    tpu.vector_store %arg10[%c0_128, %c11, %c0_129, %c0_130], %234 {strides = array<i32>} : memref<2x16x16x32xf32, #tpu.memory_space<vmem>>, vector<1x1x16x32xf32>,
    %235 = vector.extract_strided_slice %85 {offsets = [288, 0], sizes = [16, 32], strides = [1, 1]} : vector<384x32xf32> to vector<16x32xf32>
    %236 = vector.broadcast %106 : vector<1x32xf32> to vector<16x32xf32>
    %237 = arith.mulf %235, %236 : vector<16x32xf32>
    %238 = vector.extract_strided_slice %114 {offsets = [288, 0], sizes = [16, 32], strides = [1, 1]} : vector<384x32xf32> to vector<16x32xf32>
    %239 = arith.addf %237, %238 : vector<16x32xf32>
    %cst_131 = arith.constant 0.000000e+00 : f32
    %240 = vector.broadcast %cst_131 : f32 to vector<16x32xf32>
    %241 = arith.maximumf %239, %240 : vector<16x32xf32>
    %c0_132 = arith.constant 0 : index
    %c12 = arith.constant 12 : index
    %c0_133 = arith.constant 0 : index
    %c0_134 = arith.constant 0 : index
    %242 = vector.load %arg10[%c0_132, %c12, %c0_133, %c0_134] : memref<2x16x16x32xf32, #tpu.memory_space<vmem>>, vector<1x1x16x32xf32>
    %243 = vector.shape_cast %242 : vector<1x1x16x32xf32> to vector<16x32xf32>
    %244 = vector.shape_cast %241 : vector<16x32xf32> to vector<1x1x16x32xf32>
    tpu.vector_store %arg10[%c0_132, %c12, %c0_133, %c0_134], %244 {strides = array<i32>} : memref<2x16x16x32xf32, #tpu.memory_space<vmem>>, vector<1x1x16x32xf32>,
    %245 = vector.extract_strided_slice %85 {offsets = [312, 0], sizes = [16, 32], strides = [1, 1]} : vector<384x32xf32> to vector<16x32xf32>
    %246 = vector.broadcast %106 : vector<1x32xf32> to vector<16x32xf32>
    %247 = arith.mulf %245, %246 : vector<16x32xf32>
    %248 = vector.extract_strided_slice %114 {offsets = [312, 0], sizes = [16, 32], strides = [1, 1]} : vector<384x32xf32> to vector<16x32xf32>
    %249 = arith.addf %247, %248 : vector<16x32xf32>
    %cst_135 = arith.constant 0.000000e+00 : f32
    %250 = vector.broadcast %cst_135 : f32 to vector<16x32xf32>
    %251 = arith.maximumf %249, %250 : vector<16x32xf32>
    %c0_136 = arith.constant 0 : index
    %c13 = arith.constant 13 : index
    %c0_137 = arith.constant 0 : index
    %c0_138 = arith.constant 0 : index
    %252 = vector.load %arg10[%c0_136, %c13, %c0_137, %c0_138] : memref<2x16x16x32xf32, #tpu.memory_space<vmem>>, vector<1x1x16x32xf32>
    %253 = vector.shape_cast %252 : vector<1x1x16x32xf32> to vector<16x32xf32>
    %254 = vector.shape_cast %251 : vector<16x32xf32> to vector<1x1x16x32xf32>
    tpu.vector_store %arg10[%c0_136, %c13, %c0_137, %c0_138], %254 {strides = array<i32>} : memref<2x16x16x32xf32, #tpu.memory_space<vmem>>, vector<1x1x16x32xf32>,
    %255 = vector.extract_strided_slice %85 {offsets = [336, 0], sizes = [16, 32], strides = [1, 1]} : vector<384x32xf32> to vector<16x32xf32>
    %256 = vector.broadcast %106 : vector<1x32xf32> to vector<16x32xf32>
    %257 = arith.mulf %255, %256 : vector<16x32xf32>
    %258 = vector.extract_strided_slice %114 {offsets = [336, 0], sizes = [16, 32], strides = [1, 1]} : vector<384x32xf32> to vector<16x32xf32>
    %259 = arith.addf %257, %258 : vector<16x32xf32>
    %cst_139 = arith.constant 0.000000e+00 : f32
    %260 = vector.broadcast %cst_139 : f32 to vector<16x32xf32>
    %261 = arith.maximumf %259, %260 : vector<16x32xf32>
    %c0_140 = arith.constant 0 : index
    %c14 = arith.constant 14 : index
    %c0_141 = arith.constant 0 : index
    %c0_142 = arith.constant 0 : index
    %262 = vector.load %arg10[%c0_140, %c14, %c0_141, %c0_142] : memref<2x16x16x32xf32, #tpu.memory_space<vmem>>, vector<1x1x16x32xf32>
    %263 = vector.shape_cast %262 : vector<1x1x16x32xf32> to vector<16x32xf32>
    %264 = vector.shape_cast %261 : vector<16x32xf32> to vector<1x1x16x32xf32>
    tpu.vector_store %arg10[%c0_140, %c14, %c0_141, %c0_142], %264 {strides = array<i32>} : memref<2x16x16x32xf32, #tpu.memory_space<vmem>>, vector<1x1x16x32xf32>,
    %265 = vector.extract_strided_slice %85 {offsets = [360, 0], sizes = [16, 32], strides = [1, 1]} : vector<384x32xf32> to vector<16x32xf32>
    %266 = vector.broadcast %106 : vector<1x32xf32> to vector<16x32xf32>
    %267 = arith.mulf %265, %266 : vector<16x32xf32>
    %268 = vector.extract_strided_slice %114 {offsets = [360, 0], sizes = [16, 32], strides = [1, 1]} : vector<384x32xf32> to vector<16x32xf32>
    %269 = arith.addf %267, %268 : vector<16x32xf32>
    %cst_143 = arith.constant 0.000000e+00 : f32
    %270 = vector.broadcast %cst_143 : f32 to vector<16x32xf32>
    %271 = arith.maximumf %269, %270 : vector<16x32xf32>
    %c0_144 = arith.constant 0 : index
    %c15 = arith.constant 15 : index
    %c0_145 = arith.constant 0 : index
    %c0_146 = arith.constant 0 : index
    %272 = vector.load %arg10[%c0_144, %c15, %c0_145, %c0_146] : memref<2x16x16x32xf32, #tpu.memory_space<vmem>>, vector<1x1x16x32xf32>
    %273 = vector.shape_cast %272 : vector<1x1x16x32xf32> to vector<16x32xf32>
    %274 = vector.shape_cast %271 : vector<16x32xf32> to vector<1x1x16x32xf32>
    tpu.vector_store %arg10[%c0_144, %c15, %c0_145, %c0_146], %274 {strides = array<i32>} : memref<2x16x16x32xf32, #tpu.memory_space<vmem>>, vector<1x1x16x32xf32>,
    %cst_147 = arith.constant 0.000000e+00 : f32
    %275 = vector.broadcast %cst_147 : f32 to vector<384x32xf32>
    %c1_148 = arith.constant 1 : index
    %c0_149 = arith.constant 0 : index
    %c0_150 = arith.constant 0 : index
    %276 = vector.load %arg1[%c1_148, %c0_149, %c0_150] : memref<2x432x12xbf16, #tpu.memory_space<vmem>>, vector<1x384x12xbf16>
    %277 = vector.shape_cast %276 : vector<1x384x12xbf16> to vector<384x12xbf16>
    %c0_151 = arith.constant 0 : index
    %c0_152 = arith.constant 0 : index
    %c0_153 = arith.constant 0 : index
    %278 = vector.load %arg2[%c0_151, %c0_152, %c0_153] : memref<3x12x32xbf16, #tpu.memory_space<vmem>>, vector<1x12x32xbf16>
    %279 = vector.shape_cast %278 : vector<1x12x32xbf16> to vector<12x32xbf16>
    %cst_154 = arith.constant dense<0.000000e+00> : vector<384x32xf32>
    %280 = tpu.matmul %277, %279, %cst_154 {dimension_numbers = #tpu.dot_dimension_numbers<[1], [0], [0], [1], [0, 0, 1, 1], [], []>} : vector<384x12xbf16>, vector<12x32xbf16>, vector<384x32xf32> -> vector<384x32xf32>
    %281 = arith.addf %275, %280 : vector<384x32xf32>
    %c1_155 = arith.constant 1 : index
    %c24_156 = arith.constant 24 : index
    %c0_157 = arith.constant 0 : index
    %282 = vector.load %arg1[%c1_155, %c24_156, %c0_157] : memref<2x432x12xbf16, #tpu.memory_space<vmem>>, vector<1x384x12xbf16>
    %283 = vector.shape_cast %282 : vector<1x384x12xbf16> to vector<384x12xbf16>
    %c1_158 = arith.constant 1 : index
    %c0_159 = arith.constant 0 : index
    %c0_160 = arith.constant 0 : index
    %284 = vector.load %arg2[%c1_158, %c0_159, %c0_160] : memref<3x12x32xbf16, #tpu.memory_space<vmem>>, vector<1x12x32xbf16>
    %285 = vector.shape_cast %284 : vector<1x12x32xbf16> to vector<12x32xbf16>
    %cst_161 = arith.constant dense<0.000000e+00> : vector<384x32xf32>
    %286 = tpu.matmul %283, %285, %cst_161 {dimension_numbers = #tpu.dot_dimension_numbers<[1], [0], [0], [1], [0, 0, 1, 1], [], []>} : vector<384x12xbf16>, vector<12x32xbf16>, vector<384x32xf32> -> vector<384x32xf32>
    %287 = arith.addf %281, %286 : vector<384x32xf32>
    %c1_162 = arith.constant 1 : index
    %c48_163 = arith.constant 48 : index
    %c0_164 = arith.constant 0 : index
    %288 = vector.load %arg1[%c1_162, %c48_163, %c0_164] : memref<2x432x12xbf16, #tpu.memory_space<vmem>>, vector<1x384x12xbf16>
    %289 = vector.shape_cast %288 : vector<1x384x12xbf16> to vector<384x12xbf16>
    %c2_165 = arith.constant 2 : index
    %c0_166 = arith.constant 0 : index
    %c0_167 = arith.constant 0 : index
    %290 = vector.load %arg2[%c2_165, %c0_166, %c0_167] : memref<3x12x32xbf16, #tpu.memory_space<vmem>>, vector<1x12x32xbf16>
    %291 = vector.shape_cast %290 : vector<1x12x32xbf16> to vector<12x32xbf16>
    %cst_168 = arith.constant dense<0.000000e+00> : vector<384x32xf32>
    %292 = tpu.matmul %289, %291, %cst_168 {dimension_numbers = #tpu.dot_dimension_numbers<[1], [0], [0], [1], [0, 0, 1, 1], [], []>} : vector<384x12xbf16>, vector<12x32xbf16>, vector<384x32xf32> -> vector<384x32xf32>
    %293 = arith.addf %287, %292 : vector<384x32xf32>
    %294 = vector.broadcast %21 : vector<1x32xf32> to vector<384x32xf32>
    %295 = arith.mulf %293, %294 : vector<384x32xf32>
    %296 = vector.broadcast %22 : vector<1x32xf32> to vector<384x32xf32>
    %297 = arith.addf %295, %296 : vector<384x32xf32>
    %cst_169 = arith.constant 0.000000e+00 : f32
    %298 = vector.broadcast %cst_169 : f32 to vector<384x32xf32>
    %299 = arith.maximumf %297, %298 : vector<384x32xf32>
    %300 = vector.broadcast %20 : vector<384x1xf32> to vector<384x32xf32>
    %301 = arith.mulf %299, %300 : vector<384x32xf32>
    %c25_170 = arith.constant 25 : index
    %c0_171 = arith.constant 0 : index
    %302 = vector.load %arg11[%c25_170, %c0_171] : memref<432x96xf32, #tpu.memory_space<vmem>>, vector<384x32xf32>
    tpu.vector_store %arg11[%c25_170, %c0_171], %301 {strides = array<i32>} : memref<432x96xf32, #tpu.memory_space<vmem>>, vector<384x32xf32>,
    %c24_172 = arith.constant 24 : index
    %c32_173 = arith.constant 32 : index
    %303 = vector.load %arg11[%c24_172, %c32_173] : memref<432x96xf32, #tpu.memory_space<vmem>>, vector<384x32xf32>
    tpu.vector_store %arg11[%c24_172, %c32_173], %301 {strides = array<i32>} : memref<432x96xf32, #tpu.memory_space<vmem>>, vector<384x32xf32>,
    %c23_174 = arith.constant 23 : index
    %c64_175 = arith.constant 64 : index
    %304 = vector.load %arg11[%c23_174, %c64_175] : memref<432x96xf32, #tpu.memory_space<vmem>>, vector<384x32xf32>
    tpu.vector_store %arg11[%c23_174, %c64_175], %301 {strides = array<i32>} : memref<432x96xf32, #tpu.memory_space<vmem>>, vector<384x32xf32>,
    %cst_176 = arith.constant 0.000000e+00 : f32
    %305 = vector.broadcast %cst_176 : f32 to vector<384x32xf32>
    %c0_177 = arith.constant 0 : index
    %c0_178 = arith.constant 0 : index
    %306 = vector.load %arg11[%c0_177, %c0_178] : memref<432x96xf32, #tpu.memory_space<vmem>>, vector<384x96xf32>
    %307 = arith.truncf %306 : vector<384x96xf32> to vector<384x96xbf16>
    %c0_179 = arith.constant 0 : index
    %c0_180 = arith.constant 0 : index
    %c0_181 = arith.constant 0 : index
    %308 = vector.load %arg3[%c0_179, %c0_180, %c0_181] : memref<3x96x32xbf16, #tpu.memory_space<vmem>>, vector<1x96x32xbf16>
    %309 = vector.shape_cast %308 : vector<1x96x32xbf16> to vector<96x32xbf16>
    %cst_182 = arith.constant dense<0.000000e+00> : vector<384x32xf32>
    %310 = tpu.matmul %307, %309, %cst_182 {dimension_numbers = #tpu.dot_dimension_numbers<[1], [0], [0], [1], [0, 0, 1, 1], [], []>} : vector<384x96xbf16>, vector<96x32xbf16>, vector<384x32xf32> -> vector<384x32xf32>
    %311 = arith.addf %305, %310 : vector<384x32xf32>
    %c24_183 = arith.constant 24 : index
    %c0_184 = arith.constant 0 : index
    %312 = vector.load %arg11[%c24_183, %c0_184] : memref<432x96xf32, #tpu.memory_space<vmem>>, vector<384x96xf32>
    %313 = arith.truncf %312 : vector<384x96xf32> to vector<384x96xbf16>
    %c1_185 = arith.constant 1 : index
    %c0_186 = arith.constant 0 : index
    %c0_187 = arith.constant 0 : index
    %314 = vector.load %arg3[%c1_185, %c0_186, %c0_187] : memref<3x96x32xbf16, #tpu.memory_space<vmem>>, vector<1x96x32xbf16>
    %315 = vector.shape_cast %314 : vector<1x96x32xbf16> to vector<96x32xbf16>
    %cst_188 = arith.constant dense<0.000000e+00> : vector<384x32xf32>
    %316 = tpu.matmul %313, %315, %cst_188 {dimension_numbers = #tpu.dot_dimension_numbers<[1], [0], [0], [1], [0, 0, 1, 1], [], []>} : vector<384x96xbf16>, vector<96x32xbf16>, vector<384x32xf32> -> vector<384x32xf32>
    %317 = arith.addf %311, %316 : vector<384x32xf32>
    %c48_189 = arith.constant 48 : index
    %c0_190 = arith.constant 0 : index
    %318 = vector.load %arg11[%c48_189, %c0_190] : memref<432x96xf32, #tpu.memory_space<vmem>>, vector<384x96xf32>
    %319 = arith.truncf %318 : vector<384x96xf32> to vector<384x96xbf16>
    %c2_191 = arith.constant 2 : index
    %c0_192 = arith.constant 0 : index
    %c0_193 = arith.constant 0 : index
    %320 = vector.load %arg3[%c2_191, %c0_192, %c0_193] : memref<3x96x32xbf16, #tpu.memory_space<vmem>>, vector<1x96x32xbf16>
    %321 = vector.shape_cast %320 : vector<1x96x32xbf16> to vector<96x32xbf16>
    %cst_194 = arith.constant dense<0.000000e+00> : vector<384x32xf32>
    %322 = tpu.matmul %319, %321, %cst_194 {dimension_numbers = #tpu.dot_dimension_numbers<[1], [0], [0], [1], [0, 0, 1, 1], [], []>} : vector<384x96xbf16>, vector<96x32xbf16>, vector<384x32xf32> -> vector<384x32xf32>
    %323 = arith.addf %317, %322 : vector<384x32xf32>
    %324 = vector.broadcast %23 : vector<1x32xf32> to vector<384x32xf32>
    %325 = arith.mulf %323, %324 : vector<384x32xf32>
    %326 = vector.broadcast %24 : vector<1x32xf32> to vector<384x32xf32>
    %327 = arith.addf %325, %326 : vector<384x32xf32>
    %328 = vector.broadcast %20 : vector<384x1xf32> to vector<384x32xf32>
    %329 = arith.mulf %327, %328 : vector<384x32xf32>
    %cst_195 = arith.constant dense<0.000000e+00> : vector<32xf32>
    %330 = vector.multi_reduction <add>, %329, %cst_195 [0] : vector<384x32xf32> to vector<32xf32>
    %331 = vector.shape_cast %330 : vector<32xf32> to vector<1x32xf32>
    %cst_196 = arith.constant 3.906250e-03 : f32
    %332 = vector.broadcast %cst_196 : f32 to vector<1x32xf32>
    %333 = arith.mulf %331, %332 : vector<1x32xf32>
    %c0_197 = arith.constant 0 : index
    %c0_198 = arith.constant 0 : index
    %334 = vector.load %arg6[%c0_197, %c0_198] : memref<32x2xf32, #tpu.memory_space<vmem>>, vector<32x2xf32>
    %cst_199 = arith.constant dense<0.000000e+00> : vector<1x2xf32>
    %335 = tpu.matmul %333, %334, %cst_199 {dimension_numbers = #tpu.dot_dimension_numbers<[1], [0], [0], [1], [0, 0, 1, 1], [], []>} : vector<1x32xf32>, vector<32x2xf32>, vector<1x2xf32> -> vector<1x2xf32>
    %c0_200 = arith.constant 0 : index
    %c0_201 = arith.constant 0 : index
    %336 = vector.load %arg7[%c0_200, %c0_201] : memref<1x2xf32, #tpu.memory_space<vmem>>, vector<1x2xf32>
    %337 = arith.addf %335, %336 : vector<1x2xf32>
    %cst_202 = arith.constant 0.000000e+00 : f32
    %338 = vector.broadcast %cst_202 : f32 to vector<1x2xf32>
    %339 = arith.maximumf %337, %338 : vector<1x2xf32>
    %c0_203 = arith.constant 0 : index
    %c0_204 = arith.constant 0 : index
    %340 = vector.load %arg8[%c0_203, %c0_204] : memref<2x32xf32, #tpu.memory_space<vmem>>, vector<2x32xf32>
    %cst_205 = arith.constant dense<0.000000e+00> : vector<1x32xf32>
    %341 = tpu.matmul %339, %340, %cst_205 {dimension_numbers = #tpu.dot_dimension_numbers<[1], [0], [0], [1], [0, 0, 1, 1], [], []>} : vector<1x2xf32>, vector<2x32xf32>, vector<1x32xf32> -> vector<1x32xf32>
    %c0_206 = arith.constant 0 : index
    %c0_207 = arith.constant 0 : index
    %342 = vector.load %arg9[%c0_206, %c0_207] : memref<1x32xf32, #tpu.memory_space<vmem>>, vector<1x32xf32>
    %343 = arith.addf %341, %342 : vector<1x32xf32>
    %cst_208 = arith.constant 5.000000e-01 : f32
    %344 = vector.broadcast %cst_208 : f32 to vector<1x32xf32>
    %345 = arith.mulf %344, %343 : vector<1x32xf32>
    %346 = math.tanh %345 : vector<1x32xf32>
    %cst_209 = arith.constant 1.000000e+00 : f32
    %347 = vector.broadcast %cst_209 : f32 to vector<1x32xf32>
    %348 = arith.addf %346, %347 : vector<1x32xf32>
    %cst_210 = arith.constant 5.000000e-01 : f32
    %349 = vector.broadcast %cst_210 : f32 to vector<1x32xf32>
    %350 = arith.mulf %349, %348 : vector<1x32xf32>
    %c1_211 = arith.constant 1 : index
    %c24_212 = arith.constant 24 : index
    %c4_213 = arith.constant 4 : index
    %351 = vector.load %arg1[%c1_211, %c24_212, %c4_213] : memref<2x432x12xbf16, #tpu.memory_space<vmem>>, vector<1x384x4xbf16>
    %352 = vector.shape_cast %351 : vector<1x384x4xbf16> to vector<384x4xbf16>
    %c0_214 = arith.constant 0 : index
    %c0_215 = arith.constant 0 : index
    %353 = vector.load %arg4[%c0_214, %c0_215] : memref<4x32xbf16, #tpu.memory_space<vmem>>, vector<4x32xbf16>
    %cst_216 = arith.constant dense<0.000000e+00> : vector<384x32xf32>
    %354 = tpu.matmul %352, %353, %cst_216 {dimension_numbers = #tpu.dot_dimension_numbers<[1], [0], [0], [1], [0, 0, 1, 1], [], []>} : vector<384x4xbf16>, vector<4x32xbf16>, vector<384x32xf32> -> vector<384x32xf32>
    %355 = vector.broadcast %25 : vector<1x32xf32> to vector<384x32xf32>
    %356 = arith.mulf %354, %355 : vector<384x32xf32>
    %357 = vector.broadcast %26 : vector<1x32xf32> to vector<384x32xf32>
    %358 = arith.addf %356, %357 : vector<384x32xf32>
    %359 = vector.extract_strided_slice %329 {offsets = [0, 0], sizes = [16, 32], strides = [1, 1]} : vector<384x32xf32> to vector<16x32xf32>
    %360 = vector.broadcast %350 : vector<1x32xf32> to vector<16x32xf32>
    %361 = arith.mulf %359, %360 : vector<16x32xf32>
    %362 = vector.extract_strided_slice %358 {offsets = [0, 0], sizes = [16, 32], strides = [1, 1]} : vector<384x32xf32> to vector<16x32xf32>
    %363 = arith.addf %361, %362 : vector<16x32xf32>
    %cst_217 = arith.constant 0.000000e+00 : f32
    %364 = vector.broadcast %cst_217 : f32 to vector<16x32xf32>
    %365 = arith.maximumf %363, %364 : vector<16x32xf32>
    %c1_218 = arith.constant 1 : index
    %c0_219 = arith.constant 0 : index
    %c0_220 = arith.constant 0 : index
    %c0_221 = arith.constant 0 : index
    %366 = vector.load %arg10[%c1_218, %c0_219, %c0_220, %c0_221] : memref<2x16x16x32xf32, #tpu.memory_space<vmem>>, vector<1x1x16x32xf32>
    %367 = vector.shape_cast %366 : vector<1x1x16x32xf32> to vector<16x32xf32>
    %368 = vector.shape_cast %365 : vector<16x32xf32> to vector<1x1x16x32xf32>
    tpu.vector_store %arg10[%c1_218, %c0_219, %c0_220, %c0_221], %368 {strides = array<i32>} : memref<2x16x16x32xf32, #tpu.memory_space<vmem>>, vector<1x1x16x32xf32>,
    %369 = vector.extract_strided_slice %329 {offsets = [24, 0], sizes = [16, 32], strides = [1, 1]} : vector<384x32xf32> to vector<16x32xf32>
    %370 = vector.broadcast %350 : vector<1x32xf32> to vector<16x32xf32>
    %371 = arith.mulf %369, %370 : vector<16x32xf32>
    %372 = vector.extract_strided_slice %358 {offsets = [24, 0], sizes = [16, 32], strides = [1, 1]} : vector<384x32xf32> to vector<16x32xf32>
    %373 = arith.addf %371, %372 : vector<16x32xf32>
    %cst_222 = arith.constant 0.000000e+00 : f32
    %374 = vector.broadcast %cst_222 : f32 to vector<16x32xf32>
    %375 = arith.maximumf %373, %374 : vector<16x32xf32>
    %c1_223 = arith.constant 1 : index
    %c1_224 = arith.constant 1 : index
    %c0_225 = arith.constant 0 : index
    %c0_226 = arith.constant 0 : index
    %376 = vector.load %arg10[%c1_223, %c1_224, %c0_225, %c0_226] : memref<2x16x16x32xf32, #tpu.memory_space<vmem>>, vector<1x1x16x32xf32>
    %377 = vector.shape_cast %376 : vector<1x1x16x32xf32> to vector<16x32xf32>
    %378 = vector.shape_cast %375 : vector<16x32xf32> to vector<1x1x16x32xf32>
    tpu.vector_store %arg10[%c1_223, %c1_224, %c0_225, %c0_226], %378 {strides = array<i32>} : memref<2x16x16x32xf32, #tpu.memory_space<vmem>>, vector<1x1x16x32xf32>,
    %379 = vector.extract_strided_slice %329 {offsets = [48, 0], sizes = [16, 32], strides = [1, 1]} : vector<384x32xf32> to vector<16x32xf32>
    %380 = vector.broadcast %350 : vector<1x32xf32> to vector<16x32xf32>
    %381 = arith.mulf %379, %380 : vector<16x32xf32>
    %382 = vector.extract_strided_slice %358 {offsets = [48, 0], sizes = [16, 32], strides = [1, 1]} : vector<384x32xf32> to vector<16x32xf32>
    %383 = arith.addf %381, %382 : vector<16x32xf32>
    %cst_227 = arith.constant 0.000000e+00 : f32
    %384 = vector.broadcast %cst_227 : f32 to vector<16x32xf32>
    %385 = arith.maximumf %383, %384 : vector<16x32xf32>
    %c1_228 = arith.constant 1 : index
    %c2_229 = arith.constant 2 : index
    %c0_230 = arith.constant 0 : index
    %c0_231 = arith.constant 0 : index
    %386 = vector.load %arg10[%c1_228, %c2_229, %c0_230, %c0_231] : memref<2x16x16x32xf32, #tpu.memory_space<vmem>>, vector<1x1x16x32xf32>
    %387 = vector.shape_cast %386 : vector<1x1x16x32xf32> to vector<16x32xf32>
    %388 = vector.shape_cast %385 : vector<16x32xf32> to vector<1x1x16x32xf32>
    tpu.vector_store %arg10[%c1_228, %c2_229, %c0_230, %c0_231], %388 {strides = array<i32>} : memref<2x16x16x32xf32, #tpu.memory_space<vmem>>, vector<1x1x16x32xf32>,
    %389 = vector.extract_strided_slice %329 {offsets = [72, 0], sizes = [16, 32], strides = [1, 1]} : vector<384x32xf32> to vector<16x32xf32>
    %390 = vector.broadcast %350 : vector<1x32xf32> to vector<16x32xf32>
    %391 = arith.mulf %389, %390 : vector<16x32xf32>
    %392 = vector.extract_strided_slice %358 {offsets = [72, 0], sizes = [16, 32], strides = [1, 1]} : vector<384x32xf32> to vector<16x32xf32>
    %393 = arith.addf %391, %392 : vector<16x32xf32>
    %cst_232 = arith.constant 0.000000e+00 : f32
    %394 = vector.broadcast %cst_232 : f32 to vector<16x32xf32>
    %395 = arith.maximumf %393, %394 : vector<16x32xf32>
    %c1_233 = arith.constant 1 : index
    %c3_234 = arith.constant 3 : index
    %c0_235 = arith.constant 0 : index
    %c0_236 = arith.constant 0 : index
    %396 = vector.load %arg10[%c1_233, %c3_234, %c0_235, %c0_236] : memref<2x16x16x32xf32, #tpu.memory_space<vmem>>, vector<1x1x16x32xf32>
    %397 = vector.shape_cast %396 : vector<1x1x16x32xf32> to vector<16x32xf32>
    %398 = vector.shape_cast %395 : vector<16x32xf32> to vector<1x1x16x32xf32>
    tpu.vector_store %arg10[%c1_233, %c3_234, %c0_235, %c0_236], %398 {strides = array<i32>} : memref<2x16x16x32xf32, #tpu.memory_space<vmem>>, vector<1x1x16x32xf32>,
    %399 = vector.extract_strided_slice %329 {offsets = [96, 0], sizes = [16, 32], strides = [1, 1]} : vector<384x32xf32> to vector<16x32xf32>
    %400 = vector.broadcast %350 : vector<1x32xf32> to vector<16x32xf32>
    %401 = arith.mulf %399, %400 : vector<16x32xf32>
    %402 = vector.extract_strided_slice %358 {offsets = [96, 0], sizes = [16, 32], strides = [1, 1]} : vector<384x32xf32> to vector<16x32xf32>
    %403 = arith.addf %401, %402 : vector<16x32xf32>
    %cst_237 = arith.constant 0.000000e+00 : f32
    %404 = vector.broadcast %cst_237 : f32 to vector<16x32xf32>
    %405 = arith.maximumf %403, %404 : vector<16x32xf32>
    %c1_238 = arith.constant 1 : index
    %c4_239 = arith.constant 4 : index
    %c0_240 = arith.constant 0 : index
    %c0_241 = arith.constant 0 : index
    %406 = vector.load %arg10[%c1_238, %c4_239, %c0_240, %c0_241] : memref<2x16x16x32xf32, #tpu.memory_space<vmem>>, vector<1x1x16x32xf32>
    %407 = vector.shape_cast %406 : vector<1x1x16x32xf32> to vector<16x32xf32>
    %408 = vector.shape_cast %405 : vector<16x32xf32> to vector<1x1x16x32xf32>
    tpu.vector_store %arg10[%c1_238, %c4_239, %c0_240, %c0_241], %408 {strides = array<i32>} : memref<2x16x16x32xf32, #tpu.memory_space<vmem>>, vector<1x1x16x32xf32>,
    %409 = vector.extract_strided_slice %329 {offsets = [120, 0], sizes = [16, 32], strides = [1, 1]} : vector<384x32xf32> to vector<16x32xf32>
    %410 = vector.broadcast %350 : vector<1x32xf32> to vector<16x32xf32>
    %411 = arith.mulf %409, %410 : vector<16x32xf32>
    %412 = vector.extract_strided_slice %358 {offsets = [120, 0], sizes = [16, 32], strides = [1, 1]} : vector<384x32xf32> to vector<16x32xf32>
    %413 = arith.addf %411, %412 : vector<16x32xf32>
    %cst_242 = arith.constant 0.000000e+00 : f32
    %414 = vector.broadcast %cst_242 : f32 to vector<16x32xf32>
    %415 = arith.maximumf %413, %414 : vector<16x32xf32>
    %c1_243 = arith.constant 1 : index
    %c5_244 = arith.constant 5 : index
    %c0_245 = arith.constant 0 : index
    %c0_246 = arith.constant 0 : index
    %416 = vector.load %arg10[%c1_243, %c5_244, %c0_245, %c0_246] : memref<2x16x16x32xf32, #tpu.memory_space<vmem>>, vector<1x1x16x32xf32>
    %417 = vector.shape_cast %416 : vector<1x1x16x32xf32> to vector<16x32xf32>
    %418 = vector.shape_cast %415 : vector<16x32xf32> to vector<1x1x16x32xf32>
    tpu.vector_store %arg10[%c1_243, %c5_244, %c0_245, %c0_246], %418 {strides = array<i32>} : memref<2x16x16x32xf32, #tpu.memory_space<vmem>>, vector<1x1x16x32xf32>,
    %419 = vector.extract_strided_slice %329 {offsets = [144, 0], sizes = [16, 32], strides = [1, 1]} : vector<384x32xf32> to vector<16x32xf32>
    %420 = vector.broadcast %350 : vector<1x32xf32> to vector<16x32xf32>
    %421 = arith.mulf %419, %420 : vector<16x32xf32>
    %422 = vector.extract_strided_slice %358 {offsets = [144, 0], sizes = [16, 32], strides = [1, 1]} : vector<384x32xf32> to vector<16x32xf32>
    %423 = arith.addf %421, %422 : vector<16x32xf32>
    %cst_247 = arith.constant 0.000000e+00 : f32
    %424 = vector.broadcast %cst_247 : f32 to vector<16x32xf32>
    %425 = arith.maximumf %423, %424 : vector<16x32xf32>
    %c1_248 = arith.constant 1 : index
    %c6_249 = arith.constant 6 : index
    %c0_250 = arith.constant 0 : index
    %c0_251 = arith.constant 0 : index
    %426 = vector.load %arg10[%c1_248, %c6_249, %c0_250, %c0_251] : memref<2x16x16x32xf32, #tpu.memory_space<vmem>>, vector<1x1x16x32xf32>
    %427 = vector.shape_cast %426 : vector<1x1x16x32xf32> to vector<16x32xf32>
    %428 = vector.shape_cast %425 : vector<16x32xf32> to vector<1x1x16x32xf32>
    tpu.vector_store %arg10[%c1_248, %c6_249, %c0_250, %c0_251], %428 {strides = array<i32>} : memref<2x16x16x32xf32, #tpu.memory_space<vmem>>, vector<1x1x16x32xf32>,
    %429 = vector.extract_strided_slice %329 {offsets = [168, 0], sizes = [16, 32], strides = [1, 1]} : vector<384x32xf32> to vector<16x32xf32>
    %430 = vector.broadcast %350 : vector<1x32xf32> to vector<16x32xf32>
    %431 = arith.mulf %429, %430 : vector<16x32xf32>
    %432 = vector.extract_strided_slice %358 {offsets = [168, 0], sizes = [16, 32], strides = [1, 1]} : vector<384x32xf32> to vector<16x32xf32>
    %433 = arith.addf %431, %432 : vector<16x32xf32>
    %cst_252 = arith.constant 0.000000e+00 : f32
    %434 = vector.broadcast %cst_252 : f32 to vector<16x32xf32>
    %435 = arith.maximumf %433, %434 : vector<16x32xf32>
    %c1_253 = arith.constant 1 : index
    %c7_254 = arith.constant 7 : index
    %c0_255 = arith.constant 0 : index
    %c0_256 = arith.constant 0 : index
    %436 = vector.load %arg10[%c1_253, %c7_254, %c0_255, %c0_256] : memref<2x16x16x32xf32, #tpu.memory_space<vmem>>, vector<1x1x16x32xf32>
    %437 = vector.shape_cast %436 : vector<1x1x16x32xf32> to vector<16x32xf32>
    %438 = vector.shape_cast %435 : vector<16x32xf32> to vector<1x1x16x32xf32>
    tpu.vector_store %arg10[%c1_253, %c7_254, %c0_255, %c0_256], %438 {strides = array<i32>} : memref<2x16x16x32xf32, #tpu.memory_space<vmem>>, vector<1x1x16x32xf32>,
    %439 = vector.extract_strided_slice %329 {offsets = [192, 0], sizes = [16, 32], strides = [1, 1]} : vector<384x32xf32> to vector<16x32xf32>
    %440 = vector.broadcast %350 : vector<1x32xf32> to vector<16x32xf32>
    %441 = arith.mulf %439, %440 : vector<16x32xf32>
    %442 = vector.extract_strided_slice %358 {offsets = [192, 0], sizes = [16, 32], strides = [1, 1]} : vector<384x32xf32> to vector<16x32xf32>
    %443 = arith.addf %441, %442 : vector<16x32xf32>
    %cst_257 = arith.constant 0.000000e+00 : f32
    %444 = vector.broadcast %cst_257 : f32 to vector<16x32xf32>
    %445 = arith.maximumf %443, %444 : vector<16x32xf32>
    %c1_258 = arith.constant 1 : index
    %c8_259 = arith.constant 8 : index
    %c0_260 = arith.constant 0 : index
    %c0_261 = arith.constant 0 : index
    %446 = vector.load %arg10[%c1_258, %c8_259, %c0_260, %c0_261] : memref<2x16x16x32xf32, #tpu.memory_space<vmem>>, vector<1x1x16x32xf32>
    %447 = vector.shape_cast %446 : vector<1x1x16x32xf32> to vector<16x32xf32>
    %448 = vector.shape_cast %445 : vector<16x32xf32> to vector<1x1x16x32xf32>
    tpu.vector_store %arg10[%c1_258, %c8_259, %c0_260, %c0_261], %448 {strides = array<i32>} : memref<2x16x16x32xf32, #tpu.memory_space<vmem>>, vector<1x1x16x32xf32>,
    %449 = vector.extract_strided_slice %329 {offsets = [216, 0], sizes = [16, 32], strides = [1, 1]} : vector<384x32xf32> to vector<16x32xf32>
    %450 = vector.broadcast %350 : vector<1x32xf32> to vector<16x32xf32>
    %451 = arith.mulf %449, %450 : vector<16x32xf32>
    %452 = vector.extract_strided_slice %358 {offsets = [216, 0], sizes = [16, 32], strides = [1, 1]} : vector<384x32xf32> to vector<16x32xf32>
    %453 = arith.addf %451, %452 : vector<16x32xf32>
    %cst_262 = arith.constant 0.000000e+00 : f32
    %454 = vector.broadcast %cst_262 : f32 to vector<16x32xf32>
    %455 = arith.maximumf %453, %454 : vector<16x32xf32>
    %c1_263 = arith.constant 1 : index
    %c9_264 = arith.constant 9 : index
    %c0_265 = arith.constant 0 : index
    %c0_266 = arith.constant 0 : index
    %456 = vector.load %arg10[%c1_263, %c9_264, %c0_265, %c0_266] : memref<2x16x16x32xf32, #tpu.memory_space<vmem>>, vector<1x1x16x32xf32>
    %457 = vector.shape_cast %456 : vector<1x1x16x32xf32> to vector<16x32xf32>
    %458 = vector.shape_cast %455 : vector<16x32xf32> to vector<1x1x16x32xf32>
    tpu.vector_store %arg10[%c1_263, %c9_264, %c0_265, %c0_266], %458 {strides = array<i32>} : memref<2x16x16x32xf32, #tpu.memory_space<vmem>>, vector<1x1x16x32xf32>,
    %459 = vector.extract_strided_slice %329 {offsets = [240, 0], sizes = [16, 32], strides = [1, 1]} : vector<384x32xf32> to vector<16x32xf32>
    %460 = vector.broadcast %350 : vector<1x32xf32> to vector<16x32xf32>
    %461 = arith.mulf %459, %460 : vector<16x32xf32>
    %462 = vector.extract_strided_slice %358 {offsets = [240, 0], sizes = [16, 32], strides = [1, 1]} : vector<384x32xf32> to vector<16x32xf32>
    %463 = arith.addf %461, %462 : vector<16x32xf32>
    %cst_267 = arith.constant 0.000000e+00 : f32
    %464 = vector.broadcast %cst_267 : f32 to vector<16x32xf32>
    %465 = arith.maximumf %463, %464 : vector<16x32xf32>
    %c1_268 = arith.constant 1 : index
    %c10_269 = arith.constant 10 : index
    %c0_270 = arith.constant 0 : index
    %c0_271 = arith.constant 0 : index
    %466 = vector.load %arg10[%c1_268, %c10_269, %c0_270, %c0_271] : memref<2x16x16x32xf32, #tpu.memory_space<vmem>>, vector<1x1x16x32xf32>
    %467 = vector.shape_cast %466 : vector<1x1x16x32xf32> to vector<16x32xf32>
    %468 = vector.shape_cast %465 : vector<16x32xf32> to vector<1x1x16x32xf32>
    tpu.vector_store %arg10[%c1_268, %c10_269, %c0_270, %c0_271], %468 {strides = array<i32>} : memref<2x16x16x32xf32, #tpu.memory_space<vmem>>, vector<1x1x16x32xf32>,
    %469 = vector.extract_strided_slice %329 {offsets = [264, 0], sizes = [16, 32], strides = [1, 1]} : vector<384x32xf32> to vector<16x32xf32>
    %470 = vector.broadcast %350 : vector<1x32xf32> to vector<16x32xf32>
    %471 = arith.mulf %469, %470 : vector<16x32xf32>
    %472 = vector.extract_strided_slice %358 {offsets = [264, 0], sizes = [16, 32], strides = [1, 1]} : vector<384x32xf32> to vector<16x32xf32>
    %473 = arith.addf %471, %472 : vector<16x32xf32>
    %cst_272 = arith.constant 0.000000e+00 : f32
    %474 = vector.broadcast %cst_272 : f32 to vector<16x32xf32>
    %475 = arith.maximumf %473, %474 : vector<16x32xf32>
    %c1_273 = arith.constant 1 : index
    %c11_274 = arith.constant 11 : index
    %c0_275 = arith.constant 0 : index
    %c0_276 = arith.constant 0 : index
    %476 = vector.load %arg10[%c1_273, %c11_274, %c0_275, %c0_276] : memref<2x16x16x32xf32, #tpu.memory_space<vmem>>, vector<1x1x16x32xf32>
    %477 = vector.shape_cast %476 : vector<1x1x16x32xf32> to vector<16x32xf32>
    %478 = vector.shape_cast %475 : vector<16x32xf32> to vector<1x1x16x32xf32>
    tpu.vector_store %arg10[%c1_273, %c11_274, %c0_275, %c0_276], %478 {strides = array<i32>} : memref<2x16x16x32xf32, #tpu.memory_space<vmem>>, vector<1x1x16x32xf32>,
    %479 = vector.extract_strided_slice %329 {offsets = [288, 0], sizes = [16, 32], strides = [1, 1]} : vector<384x32xf32> to vector<16x32xf32>
    %480 = vector.broadcast %350 : vector<1x32xf32> to vector<16x32xf32>
    %481 = arith.mulf %479, %480 : vector<16x32xf32>
    %482 = vector.extract_strided_slice %358 {offsets = [288, 0], sizes = [16, 32], strides = [1, 1]} : vector<384x32xf32> to vector<16x32xf32>
    %483 = arith.addf %481, %482 : vector<16x32xf32>
    %cst_277 = arith.constant 0.000000e+00 : f32
    %484 = vector.broadcast %cst_277 : f32 to vector<16x32xf32>
    %485 = arith.maximumf %483, %484 : vector<16x32xf32>
    %c1_278 = arith.constant 1 : index
    %c12_279 = arith.constant 12 : index
    %c0_280 = arith.constant 0 : index
    %c0_281 = arith.constant 0 : index
    %486 = vector.load %arg10[%c1_278, %c12_279, %c0_280, %c0_281] : memref<2x16x16x32xf32, #tpu.memory_space<vmem>>, vector<1x1x16x32xf32>
    %487 = vector.shape_cast %486 : vector<1x1x16x32xf32> to vector<16x32xf32>
    %488 = vector.shape_cast %485 : vector<16x32xf32> to vector<1x1x16x32xf32>
    tpu.vector_store %arg10[%c1_278, %c12_279, %c0_280, %c0_281], %488 {strides = array<i32>} : memref<2x16x16x32xf32, #tpu.memory_space<vmem>>, vector<1x1x16x32xf32>,
    %489 = vector.extract_strided_slice %329 {offsets = [312, 0], sizes = [16, 32], strides = [1, 1]} : vector<384x32xf32> to vector<16x32xf32>
    %490 = vector.broadcast %350 : vector<1x32xf32> to vector<16x32xf32>
    %491 = arith.mulf %489, %490 : vector<16x32xf32>
    %492 = vector.extract_strided_slice %358 {offsets = [312, 0], sizes = [16, 32], strides = [1, 1]} : vector<384x32xf32> to vector<16x32xf32>
    %493 = arith.addf %491, %492 : vector<16x32xf32>
    %cst_282 = arith.constant 0.000000e+00 : f32
    %494 = vector.broadcast %cst_282 : f32 to vector<16x32xf32>
    %495 = arith.maximumf %493, %494 : vector<16x32xf32>
    %c1_283 = arith.constant 1 : index
    %c13_284 = arith.constant 13 : index
    %c0_285 = arith.constant 0 : index
    %c0_286 = arith.constant 0 : index
    %496 = vector.load %arg10[%c1_283, %c13_284, %c0_285, %c0_286] : memref<2x16x16x32xf32, #tpu.memory_space<vmem>>, vector<1x1x16x32xf32>
    %497 = vector.shape_cast %496 : vector<1x1x16x32xf32> to vector<16x32xf32>
    %498 = vector.shape_cast %495 : vector<16x32xf32> to vector<1x1x16x32xf32>
    tpu.vector_store %arg10[%c1_283, %c13_284, %c0_285, %c0_286], %498 {strides = array<i32>} : memref<2x16x16x32xf32, #tpu.memory_space<vmem>>, vector<1x1x16x32xf32>,
    %499 = vector.extract_strided_slice %329 {offsets = [336, 0], sizes = [16, 32], strides = [1, 1]} : vector<384x32xf32> to vector<16x32xf32>
    %500 = vector.broadcast %350 : vector<1x32xf32> to vector<16x32xf32>
    %501 = arith.mulf %499, %500 : vector<16x32xf32>
    %502 = vector.extract_strided_slice %358 {offsets = [336, 0], sizes = [16, 32], strides = [1, 1]} : vector<384x32xf32> to vector<16x32xf32>
    %503 = arith.addf %501, %502 : vector<16x32xf32>
    %cst_287 = arith.constant 0.000000e+00 : f32
    %504 = vector.broadcast %cst_287 : f32 to vector<16x32xf32>
    %505 = arith.maximumf %503, %504 : vector<16x32xf32>
    %c1_288 = arith.constant 1 : index
    %c14_289 = arith.constant 14 : index
    %c0_290 = arith.constant 0 : index
    %c0_291 = arith.constant 0 : index
    %506 = vector.load %arg10[%c1_288, %c14_289, %c0_290, %c0_291] : memref<2x16x16x32xf32, #tpu.memory_space<vmem>>, vector<1x1x16x32xf32>
    %507 = vector.shape_cast %506 : vector<1x1x16x32xf32> to vector<16x32xf32>
    %508 = vector.shape_cast %505 : vector<16x32xf32> to vector<1x1x16x32xf32>
    tpu.vector_store %arg10[%c1_288, %c14_289, %c0_290, %c0_291], %508 {strides = array<i32>} : memref<2x16x16x32xf32, #tpu.memory_space<vmem>>, vector<1x1x16x32xf32>,
    %509 = vector.extract_strided_slice %329 {offsets = [360, 0], sizes = [16, 32], strides = [1, 1]} : vector<384x32xf32> to vector<16x32xf32>
    %510 = vector.broadcast %350 : vector<1x32xf32> to vector<16x32xf32>
    %511 = arith.mulf %509, %510 : vector<16x32xf32>
    %512 = vector.extract_strided_slice %358 {offsets = [360, 0], sizes = [16, 32], strides = [1, 1]} : vector<384x32xf32> to vector<16x32xf32>
    %513 = arith.addf %511, %512 : vector<16x32xf32>
    %cst_292 = arith.constant 0.000000e+00 : f32
    %514 = vector.broadcast %cst_292 : f32 to vector<16x32xf32>
    %515 = arith.maximumf %513, %514 : vector<16x32xf32>
    %c1_293 = arith.constant 1 : index
    %c15_294 = arith.constant 15 : index
    %c0_295 = arith.constant 0 : index
    %c0_296 = arith.constant 0 : index
    %516 = vector.load %arg10[%c1_293, %c15_294, %c0_295, %c0_296] : memref<2x16x16x32xf32, #tpu.memory_space<vmem>>, vector<1x1x16x32xf32>
    %517 = vector.shape_cast %516 : vector<1x1x16x32xf32> to vector<16x32xf32>
    %518 = vector.shape_cast %515 : vector<16x32xf32> to vector<1x1x16x32xf32>
    tpu.vector_store %arg10[%c1_293, %c15_294, %c0_295, %c0_296], %518 {strides = array<i32>} : memref<2x16x16x32xf32, #tpu.memory_space<vmem>>, vector<1x1x16x32xf32>,
    return
  }
  func.func @transform_0(%arg0: i32) -> (i32, i32, i32) {
    %c0_i32 = arith.constant 0 : i32
    %c0_i32_0 = arith.constant 0 : i32
    %c0_i32_1 = arith.constant 0 : i32
    return %arg0, %c0_i32, %c0_i32_0 : i32, i32, i32
  }
  func.func @transform_1(%arg0: i32) -> (i32, i32, i32) {
    %c0_i32 = arith.constant 0 : i32
    %c0_i32_0 = arith.constant 0 : i32
    %c0_i32_1 = arith.constant 0 : i32
    %c0_i32_2 = arith.constant 0 : i32
    return %c0_i32, %c0_i32_0, %c0_i32_1 : i32, i32, i32
  }
  func.func @transform_2(%arg0: i32) -> (i32, i32, i32) {
    %c0_i32 = arith.constant 0 : i32
    %c0_i32_0 = arith.constant 0 : i32
    %c0_i32_1 = arith.constant 0 : i32
    %c0_i32_2 = arith.constant 0 : i32
    return %c0_i32, %c0_i32_0, %c0_i32_1 : i32, i32, i32
  }
  func.func @transform_3(%arg0: i32) -> (i32, i32) {
    %c0_i32 = arith.constant 0 : i32
    %c0_i32_0 = arith.constant 0 : i32
    %c0_i32_1 = arith.constant 0 : i32
    return %c0_i32, %c0_i32_0 : i32, i32
  }
  func.func @transform_4(%arg0: i32) -> (i32, i32) {
    %c0_i32 = arith.constant 0 : i32
    %c0_i32_0 = arith.constant 0 : i32
    %c0_i32_1 = arith.constant 0 : i32
    return %c0_i32, %c0_i32_0 : i32, i32
  }
  func.func @transform_5(%arg0: i32) -> (i32, i32) {
    %c0_i32 = arith.constant 0 : i32
    %c0_i32_0 = arith.constant 0 : i32
    %c0_i32_1 = arith.constant 0 : i32
    return %c0_i32, %c0_i32_0 : i32, i32
  }
  func.func @transform_6(%arg0: i32) -> (i32, i32) {
    %c0_i32 = arith.constant 0 : i32
    %c0_i32_0 = arith.constant 0 : i32
    %c0_i32_1 = arith.constant 0 : i32
    return %c0_i32, %c0_i32_0 : i32, i32
  }
  func.func @transform_7(%arg0: i32) -> (i32, i32) {
    %c0_i32 = arith.constant 0 : i32
    %c0_i32_0 = arith.constant 0 : i32
    %c0_i32_1 = arith.constant 0 : i32
    return %c0_i32, %c0_i32_0 : i32, i32
  }
  func.func @transform_8(%arg0: i32) -> (i32, i32) {
    %c0_i32 = arith.constant 0 : i32
    %c0_i32_0 = arith.constant 0 : i32
    %c0_i32_1 = arith.constant 0 : i32
    return %c0_i32, %c0_i32_0 : i32, i32
  }
  func.func @transform_9(%arg0: i32) -> (i32, i32, i32, i32) {
    %c0_i32 = arith.constant 0 : i32
    %c0_i32_0 = arith.constant 0 : i32
    %c0_i32_1 = arith.constant 0 : i32
    %c0_i32_2 = arith.constant 0 : i32
    return %arg0, %c0_i32, %c0_i32_0, %c0_i32_1 : i32, i32, i32, i32
  }
}

</mosaic_0001>

<llo_original>
// kernel: tpu_custom_call.1
$region0: #{tpu_custom_call.1}
  #allocation0 [shape = 'u32[]', space=smem, size = 0x4, offset = 0x4, fixed_abs, tag = 'smem constant byte address 0x4 - core index']
  #allocation1 [shape = 'u32[72,128]{1,0:T(1,128)}', space=vmem, size = 0x9000, scoped, tag = 'internal scratch']
  #allocation2 [shape = 'f32[432,96]{1,0:T(8,128)}', space=vmem, size = 0x36000, scoped, tag = 'scratch operand']
  %s0 = inlined_call_operand.vmem [shape: bf16[4,432,12], index: 0, kind: input, shape index: {}]
  %s1 = inlined_call_operand.vmem [shape: bf16[3,12,32], index: 1, kind: input, shape index: {}]
  %s2 = inlined_call_operand.vmem [shape: bf16[3,96,32], index: 2, kind: input, shape index: {}]
  %s3 = inlined_call_operand.vmem [shape: bf16[4,32], index: 3, kind: input, shape index: {}]
  %s4 = inlined_call_operand.vmem [shape: f32[6,32], index: 4, kind: input, shape index: {}]
  %s5 = inlined_call_operand.vmem [shape: f32[32,2], index: 5, kind: input, shape index: {}]
  %s6 = inlined_call_operand.vmem [shape: f32[1,2], index: 6, kind: input, shape index: {}]
  %s7 = inlined_call_operand.vmem [shape: f32[2,32], index: 7, kind: input, shape index: {}]
  %s8 = inlined_call_operand.vmem [shape: f32[1,32], index: 8, kind: input, shape index: {}]
  %s9 = inlined_call_operand.hbm [shape: f32[4,16,16,32], index: 9, kind: output, shape index: {}]
  %s10 = sld [smem:[#allocation0]]
  $region69: #{tpu_custom_call.1} parent=0
    _
  %s12 = ssub.s32 1, %s10
  %s13 = scalar_select 0, %s12, %s10
  $region1: #{tpu_custom_call.1} parent=0
    #allocation3 [shape = 'u8[524288]{0}', space=vmem, size = 0x80000, scoped, tag = 'output window, operand 0']
    #allocation4 [shape = 's32[2]{0}', space=sflag, size = 0x8, scoped, tag = 'scoped memory for tpu_custom_call.1']
    %14 = vsyncpa [#allocation4], 0
    %s15 = scalar_lea.sflag [#allocation4], 1
    %16 = vsyncpa %s15, 0
    loop: start=0, step=1, limit=4
    $region2: #{tpu_custom_call.1} parent=1 // loop_pre_header
      _
    $region3: #{tpu_custom_call.1} parent=1 // loop_header
      %s18 = sphi 0, %s22
      %p19 = scmp.ge.s32.totalorder %s18, 4
      %s28 = sphi 0, %s30
      %s31 = sphi 0, %s28
      %s32 = sphi 0, %s31
      %s48 = sphi 0, %s32
      %s52 = sphi 0, %s52
      %s54 = sphi 0, %s52
      %s55 = sphi 0, %s54
      %s69 = sphi 0, %s55
      %s73 = sphi 0, %s73
      %s75 = sphi 0, %s73
      %s76 = sphi 0, %s75
      %s90 = sphi 0, %s76
      %s94 = sphi 0, %s94
      %s96 = sphi 0, %s94
      %s97 = sphi 0, %s96
      %s111 = sphi 0, %s97
      %s115 = sphi 0, %s115
      %s117 = sphi 0, %s115
      %s118 = sphi 0, %s117
      %s132 = sphi 0, %s118
      %s136 = sphi 0, %s136
      %s138 = sphi 0, %s136
      %s139 = sphi 0, %s138
      %s153 = sphi 0, %s139
      %s157 = sphi 0, %s157
      %s159 = sphi 0, %s157
      %s160 = sphi 0, %s159
      %s174 = sphi 0, %s160
      %s178 = sphi 0, %s178
      %s180 = sphi 0, %s178
      %s181 = sphi 0, %s180
      %s195 = sphi 0, %s181
      %s199 = sphi 0, %s199
      %s201 = sphi 0, %s199
      %s202 = sphi 0, %s201
      %s216 = sphi 0, %s202
      %s222 = sphi 0, %s224
      %s225 = sphi 0, %s222
      %s226 = sphi 0, %s225
      %s242 = sphi 0, %s226
    $region4: #{tpu_custom_call.1} parent=1 // loop_header_branch
      %21 = sbr.rel (%p19) target = $region8
    $region5: #{tpu_custom_call.1} parent=1 // loop_body
      %s23 = ssub.s32 %s18, 1
      %s24 = ssub.s32 %s18, 2
      %s25 = sadd.s32 %s18, 1
      %s26 = ssub.s32 %s18, %s25
      %p27 = scmp.eq.s32.totalorder %s26, 0
      %s29 = sadd.s32 %s28, 1
      %s30 = scalar_select %p27, %s28, %s29
      %p33 = pneg %p27
      %p34 = scmp.eq.s32.totalorder %s18, 1
      %p35 = por %p33, %p34
      %p36 = scmp.ne.s32.totalorder %s28, %s31
      %p37 = scmp.eq.s32.totalorder %s18, 0
      %p38 = por %p36, %p37
      %p39 = scmp.ne.s32.totalorder %s28, %s31
      %p40 = scmp.eq.s32.totalorder %s23, 1
      %p41 = por %p39, %p40
      %p42 = scmp.ne.s32.totalorder %s31, %s32
      %p43 = scmp.eq.s32.totalorder %s23, 0
      %p44 = por %p42, %p43
      %p45 = scmp.ne.s32.totalorder %s31, %s32
      %p46 = scmp.eq.s32.totalorder %s24, 1
      %p47 = por %p45, %p46
      %p49 = scmp.ne.s32.totalorder %s32, %s48
      %p50 = scmp.eq.s32.totalorder %s24, 0
      %p51 = por %p49, %p50
      %s53 = sadd.s32 %s52, 1
      %p56 = scmp.eq.s32.totalorder %s18, 1
      %p57 = scmp.ne.s32.totalorder %s52, %s54
      %p58 = scmp.eq.s32.totalorder %s18, 0
      %p59 = por %p57, %p58
      %p60 = scmp.ne.s32.totalorder %s52, %s54
      %p61 = scmp.eq.s32.totalorder %s23, 1
      %p62 = por %p60, %p61
      %p63 = scmp.ne.s32.totalorder %s54, %s55
      %p64 = scmp.eq.s32.totalorder %s23, 0
      %p65 = por %p63, %p64
      %p66 = scmp.ne.s32.totalorder %s54, %s55
      %p67 = scmp.eq.s32.totalorder %s24, 1
      %p68 = por %p66, %p67
      %p70 = scmp.ne.s32.totalorder %s55, %s69
      %p71 = scmp.eq.s32.totalorder %s24, 0
      %p72 = por %p70, %p71
      %s74 = sadd.s32 %s73, 1
      %p77 = scmp.eq.s32.totalorder %s18, 1
      %p78 = scmp.ne.s32.totalorder %s73, %s75
      %p79 = scmp.eq.s32.totalorder %s18, 0
      %p80 = por %p78, %p79
      %p81 = scmp.ne.s32.totalorder %s73, %s75
      %p82 = scmp.eq.s32.totalorder %s23, 1
      %p83 = por %p81, %p82
      %p84 = scmp.ne.s32.totalorder %s75, %s76
      %p85 = scmp.eq.s32.totalorder %s23, 0
      %p86 = por %p84, %p85
      %p87 = scmp.ne.s32.totalorder %s75, %s76
      %p88 = scmp.eq.s32.totalorder %s24, 1
      %p89 = por %p87, %p88
      %p91 = scmp.ne.s32.totalorder %s76, %s90
      %p92 = scmp.eq.s32.totalorder %s24, 0
      %p93 = por %p91, %p92
      %s95 = sadd.s32 %s94, 1
      %p98 = scmp.eq.s32.totalorder %s18, 1
      %p99 = scmp.ne.s32.totalorder %s94, %s96
      %p100 = scmp.eq.s32.totalorder %s18, 0
      %p101 = por %p99, %p100
      %p102 = scmp.ne.s32.totalorder %s94, %s96
      %p103 = scmp.eq.s32.totalorder %s23, 1
      %p104 = por %p102, %p103
      %p105 = scmp.ne.s32.totalorder %s96, %s97
      %p106 = scmp.eq.s32.totalorder %s23, 0
      %p107 = por %p105, %p106
      %p108 = scmp.ne.s32.totalorder %s96, %s97
      %p109 = scmp.eq.s32.totalorder %s24, 1
      %p110 = por %p108, %p109
      %p112 = scmp.ne.s32.totalorder %s97, %s111
      %p113 = scmp.eq.s32.totalorder %s24, 0
      %p114 = por %p112, %p113
      %s116 = sadd.s32 %s115, 1
      %p119 = scmp.eq.s32.totalorder %s18, 1
      %p120 = scmp.ne.s32.totalorder %s115, %s117
      %p121 = scmp.eq.s32.totalorder %s18, 0
      %p122 = por %p120, %p121
      %p123 = scmp.ne.s32.totalorder %s115, %s117
      %p124 = scmp.eq.s32.totalorder %s23, 1
      %p125 = por %p123, %p124
      %p126 = scmp.ne.s32.totalorder %s117, %s118
      %p127 = scmp.eq.s32.totalorder %s23, 0
      %p128 = por %p126, %p127
      %p129 = scmp.ne.s32.totalorder %s117, %s118
      %p130 = scmp.eq.s32.totalorder %s24, 1
      %p131 = por %p129, %p130
      %p133 = scmp.ne.s32.totalorder %s118, %s132
      %p134 = scmp.eq.s32.totalorder %s24, 0
      %p135 = por %p133, %p134
      %s137 = sadd.s32 %s136, 1
      %p140 = scmp.eq.s32.totalorder %s18, 1
      %p141 = scmp.ne.s32.totalorder %s136, %s138
      %p142 = scmp.eq.s32.totalorder %s18, 0
      %p143 = por %p141, %p142
      %p144 = scmp.ne.s32.totalorder %s136, %s138
      %p145 = scmp.eq.s32.totalorder %s23, 1
      %p146 = por %p144, %p145
      %p147 = scmp.ne.s32.totalorder %s138, %s139
      %p148 = scmp.eq.s32.totalorder %s23, 0
      %p149 = por %p147, %p148
      %p150 = scmp.ne.s32.totalorder %s138, %s139
      %p151 = scmp.eq.s32.totalorder %s24, 1
      %p152 = por %p150, %p151
      %p154 = scmp.ne.s32.totalorder %s139, %s153
      %p155 = scmp.eq.s32.totalorder %s24, 0
      %p156 = por %p154, %p155
      %s158 = sadd.s32 %s157, 1
      %p161 = scmp.eq.s32.totalorder %s18, 1
      %p162 = scmp.ne.s32.totalorder %s157, %s159
      %p163 = scmp.eq.s32.totalorder %s18, 0
      %p164 = por %p162, %p163
      %p165 = scmp.ne.s32.totalorder %s157, %s159
      %p166 = scmp.eq.s32.totalorder %s23, 1
      %p167 = por %p165, %p166
      %p168 = scmp.ne.s32.totalorder %s159, %s160
      %p169 = scmp.eq.s32.totalorder %s23, 0
      %p170 = por %p168, %p169
      %p171 = scmp.ne.s32.totalorder %s159, %s160
      %p172 = scmp.eq.s32.totalorder %s24, 1
      %p173 = por %p171, %p172
      %p175 = scmp.ne.s32.totalorder %s160, %s174
      %p176 = scmp.eq.s32.totalorder %s24, 0
      %p177 = por %p175, %p176
      %s179 = sadd.s32 %s178, 1
      %p182 = scmp.eq.s32.totalorder %s18, 1
      %p183 = scmp.ne.s32.totalorder %s178, %s180
      %p184 = scmp.eq.s32.totalorder %s18, 0
      %p185 = por %p183, %p184
      %p186 = scmp.ne.s32.totalorder %s178, %s180
      %p187 = scmp.eq.s32.totalorder %s23, 1
      %p188 = por %p186, %p187
      %p189 = scmp.ne.s32.totalorder %s180, %s181
      %p190 = scmp.eq.s32.totalorder %s23, 0
      %p191 = por %p189, %p190
      %p192 = scmp.ne.s32.totalorder %s180, %s181
      %p193 = scmp.eq.s32.totalorder %s24, 1
      %p194 = por %p192, %p193
      %p196 = scmp.ne.s32.totalorder %s181, %s195
      %p197 = scmp.eq.s32.totalorder %s24, 0
      %p198 = por %p196, %p197
      %s200 = sadd.s32 %s199, 1
      %p203 = scmp.eq.s32.totalorder %s18, 1
      %p204 = scmp.ne.s32.totalorder %s199, %s201
      %p205 = scmp.eq.s32.totalorder %s18, 0
      %p206 = por %p204, %p205
      %p207 = scmp.ne.s32.totalorder %s199, %s201
      %p208 = scmp.eq.s32.totalorder %s23, 1
      %p209 = por %p207, %p208
      %p210 = scmp.ne.s32.totalorder %s201, %s202
      %p211 = scmp.eq.s32.totalorder %s23, 0
      %p212 = por %p210, %p211
      %p213 = scmp.ne.s32.totalorder %s201, %s202
      %p214 = scmp.eq.s32.totalorder %s24, 1
      %p215 = por %p213, %p214
      %p217 = scmp.ne.s32.totalorder %s202, %s216
      %p218 = scmp.eq.s32.totalorder %s24, 0
      %p219 = por %p217, %p218
      %s220 = ssub.s32 %s18, %s25
      %p221 = scmp.eq.s32.totalorder %s220, 0
      %s223 = sadd.s32 %s222, 1
      %s224 = scalar_select %p221, %s222, %s223
      %p227 = pneg %p221
      %p228 = scmp.eq.s32.totalorder %s18, 1
      %p229 = por %p227, %p228
      %p230 = scmp.ne.s32.totalorder %s222, %s225
      %p231 = scmp.eq.s32.totalorder %s18, 0
      %p232 = por %p230, %p231
      %p233 = scmp.ne.s32.totalorder %s222, %s225
      %p234 = scmp.eq.s32.totalorder %s23, 1
      %p235 = por %p233, %p234
      %p236 = scmp.ne.s32.totalorder %s225, %s226
      %p237 = scmp.eq.s32.totalorder %s23, 0
      %p238 = por %p236, %p237
      %p239 = scmp.ne.s32.totalorder %s225, %s226
      %p240 = scmp.eq.s32.totalorder %s24, 1
      %p241 = por %p239, %p240
      %p243 = scmp.ne.s32.totalorder %s226, %s242
      %p244 = scmp.eq.s32.totalorder %s24, 0
      %p245 = por %p243, %p244
      %p246 = scmp.le.s32.totalorder 1, %s18
      %p247 = scmp.lt.s32.totalorder %s18, 3
      %p248 = pnand %p246, %p247
      %p249 = pneg %p248
      // Predicated region
      $region9: #{tpu_custom_call.1} parent=5 // pred_check
        _
      $region10: #{tpu_custom_call.1} parent=5 // pred_check_branch
        %251 = sbr.rel (%p248) target = $region12
      $region11: #{tpu_custom_call.1} parent=5 // pred_region
        %s252 = ssub.s32 %s18, 1
        // Predicated region
        $region13: #{tpu_custom_call.1} parent=11 // pred_check
          %p253 = pneg %p65
        $region14: #{tpu_custom_call.1} parent=11 // pred_check_branch
          %255 = sbr.rel (%p253) target = $region16
        $region15: #{tpu_custom_call.1} parent=11 // pred_region
          _
        $region16: #{tpu_custom_call.1} parent=11 // pred_fallthru
          _
        // Predicated region
        $region17: #{tpu_custom_call.1} parent=11 // pred_check
          %p256 = pneg %p86
        $region18: #{tpu_custom_call.1} parent=11 // pred_check_branch
          %258 = sbr.rel (%p256) target = $region20
        $region19: #{tpu_custom_call.1} parent=11 // pred_region
          _
        $region20: #{tpu_custom_call.1} parent=11 // pred_fallthru
          _
        // Predicated region
        $region21: #{tpu_custom_call.1} parent=11 // pred_check
          %p259 = pneg %p107
        $region22: #{tpu_custom_call.1} parent=11 // pred_check_branch
          %261 = sbr.rel (%p259) target = $region24
        $region23: #{tpu_custom_call.1} parent=11 // pred_region
          _
        $region24: #{tpu_custom_call.1} parent=11 // pred_fallthru
          _
        // Predicated region
        $region25: #{tpu_custom_call.1} parent=11 // pred_check
          %p262 = pneg %p128
        $region26: #{tpu_custom_call.1} parent=11 // pred_check_branch
          %264 = sbr.rel (%p262) target = $region28
        $region27: #{tpu_custom_call.1} parent=11 // pred_region
          _
        $region28: #{tpu_custom_call.1} parent=11 // pred_fallthru
          _
        // Predicated region
        $region29: #{tpu_custom_call.1} parent=11 // pred_check
          %p265 = pneg %p149
        $region30: #{tpu_custom_call.1} parent=11 // pred_check_branch
          %267 = sbr.rel (%p265) target = $region32
        $region31: #{tpu_custom_call.1} parent=11 // pred_region
          _
        $region32: #{tpu_custom_call.1} parent=11 // pred_fallthru
          _
        // Predicated region
        $region33: #{tpu_custom_call.1} parent=11 // pred_check
          %p268 = pneg %p170
        $region34: #{tpu_custom_call.1} parent=11 // pred_check_branch
          %270 = sbr.rel (%p268) target = $region36
        $region35: #{tpu_custom_call.1} parent=11 // pred_region
          _
        $region36: #{tpu_custom_call.1} parent=11 // pred_fallthru
          _
        // Predicated region
        $region37: #{tpu_custom_call.1} parent=11 // pred_check
          %p271 = pneg %p191
        $region38: #{tpu_custom_call.1} parent=11 // pred_check_branch
          %273 = sbr.rel (%p271) target = $region40
        $region39: #{tpu_custom_call.1} parent=11 // pred_region
          _
        $region40: #{tpu_custom_call.1} parent=11 // pred_fallthru
          _
        // Predicated region
        $region41: #{tpu_custom_call.1} parent=11 // pred_check
          %p274 = pneg %p212
        $region42: #{tpu_custom_call.1} parent=11 // pred_check_branch
          %276 = sbr.rel (%p274) target = $region44
        $region43: #{tpu_custom_call.1} parent=11 // pred_region
          _
        $region44: #{tpu_custom_call.1} parent=11 // pred_fallthru
          _
      $region12: #{tpu_custom_call.1} parent=5 // pred_fallthru
        _
      %p277 = scmp.lt.s32.totalorder %s18, 2
      // Predicated region
      $region45: #{tpu_custom_call.1} parent=5 // pred_check
        %p278 = pneg %p277
      $region46: #{tpu_custom_call.1} parent=5 // pred_check_branch
        %280 = sbr.rel (%p278) target = $region48
      $region47: #{tpu_custom_call.1} parent=5 // pred_region
        // Predicated region
        $region49: #{tpu_custom_call.1} parent=47 // pred_check
          %p281 = pneg %p38
        $region50: #{tpu_custom_call.1} parent=47 // pred_check_branch
          %283 = sbr.rel (%p281) target = $region52
        $region51: #{tpu_custom_call.1} parent=47 // pred_region
          %s284 = smul.u32 2, %s18
          %p285 = scmp.lt.s32.totalorder %s284, 3
          %s286 = scalar_select %p285, %s284, 3
          %s287 = smul.addr %s286, 54
          %s288 = smul.addr %s287, 4
          %s289 = scalar_lea.vmem %s0, %s288
          %s290 = smul.u32 2, %s18
        $region52: #{tpu_custom_call.1} parent=47 // pred_fallthru
          _
      $region48: #{tpu_custom_call.1} parent=5 // pred_fallthru
        _
      %p291 = scmp.le.s32.totalorder 1, %s18
      %p292 = scmp.lt.s32.totalorder %s18, 3
      %p293 = pnand %p291, %p292
      %p294 = pneg %p293
      // Predicated region
      $region53: #{tpu_custom_call.1} parent=5 // pred_check
        _
      $region54: #{tpu_custom_call.1} parent=5 // pred_check_branch
        %296 = sbr.rel (%p293) target = $region56
      $region55: #{tpu_custom_call.1} parent=5 // pred_region
        %s297 = ssub.s32 %s18, 1
        %s298 = smul.u32 2, %s23
        %p299 = scmp.lt.s32.totalorder %s298, 3
        %s300 = scalar_select %p299, %s298, 3
        %s301 = smul.addr %s300, 54
        %s302 = smul.addr %s301, 4
        %s303 = scalar_lea.vmem %s0, %s302
        %p304 = pneg %p44
        %p305 = pneg %p41
        %p306 = pneg %p65
        %p307 = pneg %p62
        %p308 = pneg %p86
        %p309 = pneg %p83
        %p310 = pneg %p107
        %p311 = pneg %p104
        %p312 = pneg %p128
        %p313 = pneg %p125
        %p314 = pneg %p149
        %p315 = pneg %p146
        %p316 = pneg %p170
        %p317 = pneg %p167
        %p318 = pneg %p191
        %p319 = pneg %p188
        %p320 = pneg %p212
        %p321 = pneg %p209
        %p322 = pneg %p238
        %p323 = pneg %p235
        %s324 = sand.u32 %s225, 1
        %s325 = scalar_lea.sflag [#allocation4], %s324
        %s326 = sand.u32 %s225, 1
        %s327 = smul.addr %s326, 512
        %s328 = scalar_lea.vmem [#allocation3], %s327
        %s329 = smul.u32 2, %s23
        %p330 = scmp.lt.s32.totalorder %s329, 3
        %s331 = scalar_select %p330, %s329, 3
        %s332 = smul.addr %s331, 54
        %s333 = smul.addr %s332, 4
        %s334 = scalar_lea.vmem %s0, %s333
        %s335 = smul.u32 2, %s23
        %s336 = smul.u32 2, %s23
        %v338 = vlaneseq
        %v339 = vshrl.u32 %v338, 7
        %v340 = vadd.s32 %v339, 8
        %v341 = vadd.s32 %v339, 16
        %v342 = vadd.s32 %v339, 24
        %v343 = vadd.s32 %v339, 32
        %v344 = vadd.s32 %v339, 40
        %v345 = vadd.s32 %v339, 48
        %v346 = vadd.s32 %v339, 56
        %v347 = vadd.s32 %v339, 64
        %v348 = vadd.s32 %v339, 72
        %v349 = vadd.s32 %v339, 80
        %v350 = vadd.s32 %v339, 88
        %v351 = vadd.s32 %v339, 96
        %v352 = vadd.s32 %v339, 104
        %v353 = vadd.s32 %v339, 112
        %v354 = vadd.s32 %v339, 120
        %v355 = vadd.s32 %v339, 128
        %v356 = vadd.s32 %v339, 136
        %v357 = vadd.s32 %v339, 144
        %v358 = vadd.s32 %v339, 152
        %v359 = vadd.s32 %v339, 160
        %v360 = vadd.s32 %v339, 168
        %v361 = vadd.s32 %v339, 176
        %v362 = vadd.s32 %v339, 184
        %v363 = vadd.s32 %v339, 192
        %v364 = vadd.s32 %v339, 200
        %v365 = vadd.s32 %v339, 208
        %v366 = vadd.s32 %v339, 216
        %v367 = vadd.s32 %v339, 224
        %v368 = vadd.s32 %v339, 232
        %v369 = vadd.s32 %v339, 240
        %v370 = vadd.s32 %v339, 248
        %v371 = vadd.s32 %v339, 256
        %v372 = vadd.s32 %v339, 264
        %v373 = vadd.s32 %v339, 272
        %v374 = vadd.s32 %v339, 280
        %v375 = vadd.s32 %v339, 288
        %v376 = vadd.s32 %v339, 296
        %v377 = vadd.s32 %v339, 304
        %v378 = vadd.s32 %v339, 312
        %v379 = vadd.s32 %v339, 320
        %v380 = vadd.s32 %v339, 328
        %v381 = vadd.s32 %v339, 336
        %v382 = vadd.s32 %v339, 344
        %v383 = vadd.s32 %v339, 352
        %v384 = vadd.s32 %v339, 360
        %v385 = vadd.s32 %v339, 368
        %v386 = vadd.s32 %v339, 376
        %vm387 = vcmp.lt.s32.totalorder %v339, 0
        %v388 = vsub.s32 0, %v339
        %v389 = vsel %vm387, %v388, %v339
        %v390 = vand.u32 %v389, 65535
        %v391 = vshrl.u32 %v389, 16
        %v393 = vmul.u32 %v390, 43691
        %v394 = vmul.u32 %v390, 43690
        %v395 = vmul.u32 %v391, 43691
        %v396 = vmul.u32 %v391, 43690
        %v397 = vshll.u32 %v394, 16
        %v398 = vshrl.u32 %v394, 16
        %v399 = vshll.u32 %v395, 16
        %v400 = vshrl.u32 %v395, 16
        %vm401 = vc.u32 %v393, %v397
        %v402 = vsel %vm401, 1, 0
        %v403 = vadd.s32 %v393, %v397
        %v404 = vadd.s32 %v396, %v402
        %vm405 = vc.u32 %v403, %v399
        %v406 = vsel %vm405, 1, 0
        %v407 = vadd.s32 %v403, %v399
        %v408 = vadd.s32 %v404, %v406
        %v409 = vadd.s32 %v408, %v398
        %v410 = vadd.s32 %v409, %v400
        %v411 = vshrl.u32 %v410, 4
        %v412 = vmul.u32 %v411, 24
        %v413 = vsub.s32 %v389, %v412
        %v414 = vsub.s32 0, %v413
        %v415 = vsel %vm387, %v414, %v413
        %vm416 = vcmp.lt.s32.totalorder %v340, 0
        %v417 = vsub.s32 0, %v340
        %v418 = vsel %vm416, %v417, %v340
        %v419 = vand.u32 %v418, 65535
        %v420 = vshrl.u32 %v418, 16
        %v422 = vmul.u32 %v419, 43691
        %v423 = vmul.u32 %v419, 43690
        %v424 = vmul.u32 %v420, 43691
        %v425 = vmul.u32 %v420, 43690
        %v426 = vshll.u32 %v423, 16
        %v427 = vshrl.u32 %v423, 16
        %v428 = vshll.u32 %v424, 16
        %v429 = vshrl.u32 %v424, 16
        %vm430 = vc.u32 %v422, %v426
        %v431 = vsel %vm430, 1, 0
        %v432 = vadd.s32 %v422, %v426
        %v433 = vadd.s32 %v425, %v431
        %vm434 = vc.u32 %v432, %v428
        %v435 = vsel %vm434, 1, 0
        %v436 = vadd.s32 %v432, %v428
        %v437 = vadd.s32 %v433, %v435
        %v438 = vadd.s32 %v437, %v427
        %v439 = vadd.s32 %v438, %v429
        %v440 = vshrl.u32 %v439, 4
        %v441 = vmul.u32 %v440, 24
        %v442 = vsub.s32 %v418, %v441
        %v443 = vsub.s32 0, %v442
        %v444 = vsel %vm416, %v443, %v442
        %vm445 = vcmp.lt.s32.totalorder %v341, 0
        %v446 = vsub.s32 0, %v341
        %v447 = vsel %vm445, %v446, %v341
        %v448 = vand.u32 %v447, 65535
        %v449 = vshrl.u32 %v447, 16
        %v451 = vmul.u32 %v448, 43691
        %v452 = vmul.u32 %v448, 43690
        %v453 = vmul.u32 %v449, 43691
        %v454 = vmul.u32 %v449, 43690
        %v455 = vshll.u32 %v452, 16
        %v456 = vshrl.u32 %v452, 16
        %v457 = vshll.u32 %v453, 16
        %v458 = vshrl.u32 %v453, 16
        %vm459 = vc.u32 %v451, %v455
        %v460 = vsel %vm459, 1, 0
        %v461 = vadd.s32 %v451, %v455
        %v462 = vadd.s32 %v454, %v460
        %vm463 = vc.u32 %v461, %v457
        %v464 = vsel %vm463, 1, 0
        %v465 = vadd.s32 %v461, %v457
        %v466 = vadd.s32 %v462, %v464
        %v467 = vadd.s32 %v466, %v456
        %v468 = vadd.s32 %v467, %v458
        %v469 = vshrl.u32 %v468, 4
        %v470 = vmul.u32 %v469, 24
        %v471 = vsub.s32 %v447, %v470
        %v472 = vsub.s32 0, %v471
        %v473 = vsel %vm445, %v472, %v471
        %vm474 = vcmp.lt.s32.totalorder %v342, 0
        %v475 = vsub.s32 0, %v342
        %v476 = vsel %vm474, %v475, %v342
        %v477 = vand.u32 %v476, 65535
        %v478 = vshrl.u32 %v476, 16
        %v480 = vmul.u32 %v477, 43691
        %v481 = vmul.u32 %v477, 43690
        %v482 = vmul.u32 %v478, 43691
        %v483 = vmul.u32 %v478, 43690
        %v484 = vshll.u32 %v481, 16
        %v485 = vshrl.u32 %v481, 16
        %v486 = vshll.u32 %v482, 16
        %v487 = vshrl.u32 %v482, 16
        %vm488 = vc.u32 %v480, %v484
        %v489 = vsel %vm488, 1, 0
        %v490 = vadd.s32 %v480, %v484
        %v491 = vadd.s32 %v483, %v489
        %vm492 = vc.u32 %v490, %v486
        %v493 = vsel %vm492, 1, 0
        %v494 = vadd.s32 %v490, %v486
        %v495 = vadd.s32 %v491, %v493
        %v496 = vadd.s32 %v495, %v485
        %v497 = vadd.s32 %v496, %v487
        %v498 = vshrl.u32 %v497, 4
        %v499 = vmul.u32 %v498, 24
        %v500 = vsub.s32 %v476, %v499
        %v501 = vsub.s32 0, %v500
        %v502 = vsel %vm474, %v501, %v500
        %vm503 = vcmp.lt.s32.totalorder %v343, 0
        %v504 = vsub.s32 0, %v343
        %v505 = vsel %vm503, %v504, %v343
        %v506 = vand.u32 %v505, 65535
        %v507 = vshrl.u32 %v505, 16
        %v509 = vmul.u32 %v506, 43691
        %v510 = vmul.u32 %v506, 43690
        %v511 = vmul.u32 %v507, 43691
        %v512 = vmul.u32 %v507, 43690
        %v513 = vshll.u32 %v510, 16
        %v514 = vshrl.u32 %v510, 16
        %v515 = vshll.u32 %v511, 16
        %v516 = vshrl.u32 %v511, 16
        %vm517 = vc.u32 %v509, %v513
        %v518 = vsel %vm517, 1, 0
        %v519 = vadd.s32 %v509, %v513
        %v520 = vadd.s32 %v512, %v518
        %vm521 = vc.u32 %v519, %v515
        %v522 = vsel %vm521, 1, 0
        %v523 = vadd.s32 %v519, %v515
        %v524 = vadd.s32 %v520, %v522
        %v525 = vadd.s32 %v524, %v514
        %v526 = vadd.s32 %v525, %v516
        %v527 = vshrl.u32 %v526, 4
        %v528 = vmul.u32 %v527, 24
        %v529 = vsub.s32 %v505, %v528
        %v530 = vsub.s32 0, %v529
        %v531 = vsel %vm503, %v530, %v529
        %vm532 = vcmp.lt.s32.totalorder %v344, 0
        %v533 = vsub.s32 0, %v344
        %v534 = vsel %vm532, %v533, %v344
        %v535 = vand.u32 %v534, 65535
        %v536 = vshrl.u32 %v534, 16
        %v538 = vmul.u32 %v535, 43691
        %v539 = vmul.u32 %v535, 43690
        %v540 = vmul.u32 %v536, 43691
        %v541 = vmul.u32 %v536, 43690
        %v542 = vshll.u32 %v539, 16
        %v543 = vshrl.u32 %v539, 16
        %v544 = vshll.u32 %v540, 16
        %v545 = vshrl.u32 %v540, 16
        %vm546 = vc.u32 %v538, %v542
        %v547 = vsel %vm546, 1, 0
        %v548 = vadd.s32 %v538, %v542
        %v549 = vadd.s32 %v541, %v547
        %vm550 = vc.u32 %v548, %v544
        %v551 = vsel %vm550, 1, 0
        %v552 = vadd.s32 %v548, %v544
        %v553 = vadd.s32 %v549, %v551
        %v554 = vadd.s32 %v553, %v543
        %v555 = vadd.s32 %v554, %v545
        %v556 = vshrl.u32 %v555, 4
        %v557 = vmul.u32 %v556, 24
        %v558 = vsub.s32 %v534, %v557
        %v559 = vsub.s32 0, %v558
        %v560 = vsel %vm532, %v559, %v558
        %vm561 = vcmp.lt.s32.totalorder %v345, 0
        %v562 = vsub.s32 0, %v345
        %v563 = vsel %vm561, %v562, %v345
        %v564 = vand.u32 %v563, 65535
        %v565 = vshrl.u32 %v563, 16
        %v567 = vmul.u32 %v564, 43691
        %v568 = vmul.u32 %v564, 43690
        %v569 = vmul.u32 %v565, 43691
        %v570 = vmul.u32 %v565, 43690
        %v571 = vshll.u32 %v568, 16
        %v572 = vshrl.u32 %v568, 16
        %v573 = vshll.u32 %v569, 16
        %v574 = vshrl.u32 %v569, 16
        %vm575 = vc.u32 %v567, %v571
        %v576 = vsel %vm575, 1, 0
        %v577 = vadd.s32 %v567, %v571
        %v578 = vadd.s32 %v570, %v576
        %vm579 = vc.u32 %v577, %v573
        %v580 = vsel %vm579, 1, 0
        %v581 = vadd.s32 %v577, %v573
        %v582 = vadd.s32 %v578, %v580
        %v583 = vadd.s32 %v582, %v572
        %v584 = vadd.s32 %v583, %v574
        %v585 = vshrl.u32 %v584, 4
        %v586 = vmul.u32 %v585, 24
        %v587 = vsub.s32 %v563, %v586
        %v588 = vsub.s32 0, %v587
        %v589 = vsel %vm561, %v588, %v587
        %vm590 = vcmp.lt.s32.totalorder %v346, 0
        %v591 = vsub.s32 0, %v346
        %v592 = vsel %vm590, %v591, %v346
        %v593 = vand.u32 %v592, 65535
        %v594 = vshrl.u32 %v592, 16
        %v596 = vmul.u32 %v593, 43691
        %v597 = vmul.u32 %v593, 43690
        %v598 = vmul.u32 %v594, 43691
        %v599 = vmul.u32 %v594, 43690
        %v600 = vshll.u32 %v597, 16
        %v601 = vshrl.u32 %v597, 16
        %v602 = vshll.u32 %v598, 16
        %v603 = vshrl.u32 %v598, 16
        %vm604 = vc.u32 %v596, %v600
        %v605 = vsel %vm604, 1, 0
        %v606 = vadd.s32 %v596, %v600
        %v607 = vadd.s32 %v599, %v605
        %vm608 = vc.u32 %v606, %v602
        %v609 = vsel %vm608, 1, 0
        %v610 = vadd.s32 %v606, %v602
        %v611 = vadd.s32 %v607, %v609
        %v612 = vadd.s32 %v611, %v601
        %v613 = vadd.s32 %v612, %v603
        %v614 = vshrl.u32 %v613, 4
        %v615 = vmul.u32 %v614, 24
        %v616 = vsub.s32 %v592, %v615
        %v617 = vsub.s32 0, %v616
        %v618 = vsel %vm590, %v617, %v616
        %vm619 = vcmp.lt.s32.totalorder %v347, 0
        %v620 = vsub.s32 0, %v347
        %v621 = vsel %vm619, %v620, %v347
        %v622 = vand.u32 %v621, 65535
        %v623 = vshrl.u32 %v621, 16
        %v625 = vmul.u32 %v622, 43691
        %v626 = vmul.u32 %v622, 43690
        %v627 = vmul.u32 %v623, 43691
        %v628 = vmul.u32 %v623, 43690
        %v629 = vshll.u32 %v626, 16
        %v630 = vshrl.u32 %v626, 16
        %v631 = vshll.u32 %v627, 16
        %v632 = vshrl.u32 %v627, 16
        %vm633 = vc.u32 %v625, %v629
        %v634 = vsel %vm633, 1, 0
        %v635 = vadd.s32 %v625, %v629
        %v636 = vadd.s32 %v628, %v634
        %vm637 = vc.u32 %v635, %v631
        %v638 = vsel %vm637, 1, 0
        %v639 = vadd.s32 %v635, %v631
        %v640 = vadd.s32 %v636, %v638
        %v641 = vadd.s32 %v640, %v630
        %v642 = vadd.s32 %v641, %v632
        %v643 = vshrl.u32 %v642, 4
        %v644 = vmul.u32 %v643, 24
        %v645 = vsub.s32 %v621, %v644
        %v646 = vsub.s32 0, %v645
        %v647 = vsel %vm619, %v646, %v645
        %vm648 = vcmp.lt.s32.totalorder %v348, 0
        %v649 = vsub.s32 0, %v348
        %v650 = vsel %vm648, %v649, %v348
        %v651 = vand.u32 %v650, 65535
        %v652 = vshrl.u32 %v650, 16
        %v654 = vmul.u32 %v651, 43691
        %v655 = vmul.u32 %v651, 43690
        %v656 = vmul.u32 %v652, 43691
        %v657 = vmul.u32 %v652, 43690
        %v658 = vshll.u32 %v655, 16
        %v659 = vshrl.u32 %v655, 16
        %v660 = vshll.u32 %v656, 16
        %v661 = vshrl.u32 %v656, 16
        %vm662 = vc.u32 %v654, %v658
        %v663 = vsel %vm662, 1, 0
        %v664 = vadd.s32 %v654, %v658
        %v665 = vadd.s32 %v657, %v663
        %vm666 = vc.u32 %v664, %v660
        %v667 = vsel %vm666, 1, 0
        %v668 = vadd.s32 %v664, %v660
        %v669 = vadd.s32 %v665, %v667
        %v670 = vadd.s32 %v669, %v659
        %v671 = vadd.s32 %v670, %v661
        %v672 = vshrl.u32 %v671, 4
        %v673 = vmul.u32 %v672, 24
        %v674 = vsub.s32 %v650, %v673
        %v675 = vsub.s32 0, %v674
        %v676 = vsel %vm648, %v675, %v674
        %vm677 = vcmp.lt.s32.totalorder %v349, 0
        %v678 = vsub.s32 0, %v349
        %v679 = vsel %vm677, %v678, %v349
        %v680 = vand.u32 %v679, 65535
        %v681 = vshrl.u32 %v679, 16
        %v683 = vmul.u32 %v680, 43691
        %v684 = vmul.u32 %v680, 43690
        %v685 = vmul.u32 %v681, 43691
        %v686 = vmul.u32 %v681, 43690
        %v687 = vshll.u32 %v684, 16
        %v688 = vshrl.u32 %v684, 16
        %v689 = vshll.u32 %v685, 16
        %v690 = vshrl.u32 %v685, 16
        %vm691 = vc.u32 %v683, %v687
        %v692 = vsel %vm691, 1, 0
        %v693 = vadd.s32 %v683, %v687
        %v694 = vadd.s32 %v686, %v692
        %vm695 = vc.u32 %v693, %v689
        %v696 = vsel %vm695, 1, 0
        %v697 = vadd.s32 %v693, %v689
        %v698 = vadd.s32 %v694, %v696
        %v699 = vadd.s32 %v698, %v688
        %v700 = vadd.s32 %v699, %v690
        %v701 = vshrl.u32 %v700, 4
        %v702 = vmul.u32 %v701, 24
        %v703 = vsub.s32 %v679, %v702
        %v704 = vsub.s32 0, %v703
        %v705 = vsel %vm677, %v704, %v703
        %vm706 = vcmp.lt.s32.totalorder %v350, 0
        %v707 = vsub.s32 0, %v350
        %v708 = vsel %vm706, %v707, %v350
        %v709 = vand.u32 %v708, 65535
        %v710 = vshrl.u32 %v708, 16
        %v712 = vmul.u32 %v709, 43691
        %v713 = vmul.u32 %v709, 43690
        %v714 = vmul.u32 %v710, 43691
        %v715 = vmul.u32 %v710, 43690
        %v716 = vshll.u32 %v713, 16
        %v717 = vshrl.u32 %v713, 16
        %v718 = vshll.u32 %v714, 16
        %v719 = vshrl.u32 %v714, 16
        %vm720 = vc.u32 %v712, %v716
        %v721 = vsel %vm720, 1, 0
        %v722 = vadd.s32 %v712, %v716
        %v723 = vadd.s32 %v715, %v721
        %vm724 = vc.u32 %v722, %v718
        %v725 = vsel %vm724, 1, 0
        %v726 = vadd.s32 %v722, %v718
        %v727 = vadd.s32 %v723, %v725
        %v728 = vadd.s32 %v727, %v717
        %v729 = vadd.s32 %v728, %v719
        %v730 = vshrl.u32 %v729, 4
        %v731 = vmul.u32 %v730, 24
        %v732 = vsub.s32 %v708, %v731
        %v733 = vsub.s32 0, %v732
        %v734 = vsel %vm706, %v733, %v732
        %vm735 = vcmp.lt.s32.totalorder %v351, 0
        %v736 = vsub.s32 0, %v351
        %v737 = vsel %vm735, %v736, %v351
        %v738 = vand.u32 %v737, 65535
        %v739 = vshrl.u32 %v737, 16
        %v741 = vmul.u32 %v738, 43691
        %v742 = vmul.u32 %v738, 43690
        %v743 = vmul.u32 %v739, 43691
        %v744 = vmul.u32 %v739, 43690
        %v745 = vshll.u32 %v742, 16
        %v746 = vshrl.u32 %v742, 16
        %v747 = vshll.u32 %v743, 16
        %v748 = vshrl.u32 %v743, 16
        %vm749 = vc.u32 %v741, %v745
        %v750 = vsel %vm749, 1, 0
        %v751 = vadd.s32 %v741, %v745
        %v752 = vadd.s32 %v744, %v750
        %vm753 = vc.u32 %v751, %v747
        %v754 = vsel %vm753, 1, 0
        %v755 = vadd.s32 %v751, %v747
        %v756 = vadd.s32 %v752, %v754
        %v757 = vadd.s32 %v756, %v746
        %v758 = vadd.s32 %v757, %v748
        %v759 = vshrl.u32 %v758, 4
        %v760 = vmul.u32 %v759, 24
        %v761 = vsub.s32 %v737, %v760
        %v762 = vsub.s32 0, %v761
        %v763 = vsel %vm735, %v762, %v761
        %vm764 = vcmp.lt.s32.totalorder %v352, 0
        %v765 = vsub.s32 0, %v352
        %v766 = vsel %vm764, %v765, %v352
        %v767 = vand.u32 %v766, 65535
        %v768 = vshrl.u32 %v766, 16
        %v770 = vmul.u32 %v767, 43691
        %v771 = vmul.u32 %v767, 43690
        %v772 = vmul.u32 %v768, 43691
        %v773 = vmul.u32 %v768, 43690
        %v774 = vshll.u32 %v771, 16
        %v775 = vshrl.u32 %v771, 16
        %v776 = vshll.u32 %v772, 16
        %v777 = vshrl.u32 %v772, 16
        %vm778 = vc.u32 %v770, %v774
        %v779 = vsel %vm778, 1, 0
        %v780 = vadd.s32 %v770, %v774
        %v781 = vadd.s32 %v773, %v779
        %vm782 = vc.u32 %v780, %v776
        %v783 = vsel %vm782, 1, 0
        %v784 = vadd.s32 %v780, %v776
        %v785 = vadd.s32 %v781, %v783
        %v786 = vadd.s32 %v785, %v775
        %v787 = vadd.s32 %v786, %v777
        %v788 = vshrl.u32 %v787, 4
        %v789 = vmul.u32 %v788, 24
        %v790 = vsub.s32 %v766, %v789
        %v791 = vsub.s32 0, %v790
        %v792 = vsel %vm764, %v791, %v790
        %vm793 = vcmp.lt.s32.totalorder %v353, 0
        %v794 = vsub.s32 0, %v353
        %v795 = vsel %vm793, %v794, %v353
        %v796 = vand.u32 %v795, 65535
        %v797 = vshrl.u32 %v795, 16
        %v799 = vmul.u32 %v796, 43691
        %v800 = vmul.u32 %v796, 43690
        %v801 = vmul.u32 %v797, 43691
        %v802 = vmul.u32 %v797, 43690
        %v803 = vshll.u32 %v800, 16
        %v804 = vshrl.u32 %v800, 16
        %v805 = vshll.u32 %v801, 16
        %v806 = vshrl.u32 %v801, 16
        %vm807 = vc.u32 %v799, %v803
        %v808 = vsel %vm807, 1, 0
        %v809 = vadd.s32 %v799, %v803
        %v810 = vadd.s32 %v802, %v808
        %vm811 = vc.u32 %v809, %v805
        %v812 = vsel %vm811, 1, 0
        %v813 = vadd.s32 %v809, %v805
        %v814 = vadd.s32 %v810, %v812
        %v815 = vadd.s32 %v814, %v804
        %v816 = vadd.s32 %v815, %v806
        %v817 = vshrl.u32 %v816, 4
        %v818 = vmul.u32 %v817, 24
        %v819 = vsub.s32 %v795, %v818
        %v820 = vsub.s32 0, %v819
        %v821 = vsel %vm793, %v820, %v819
        %vm822 = vcmp.lt.s32.totalorder %v354, 0
        %v823 = vsub.s32 0, %v354
        %v824 = vsel %vm822, %v823, %v354
        %v825 = vand.u32 %v824, 65535
        %v826 = vshrl.u32 %v824, 16
        %v828 = vmul.u32 %v825, 43691
        %v829 = vmul.u32 %v825, 43690
        %v830 = vmul.u32 %v826, 43691
        %v831 = vmul.u32 %v826, 43690
        %v832 = vshll.u32 %v829, 16
        %v833 = vshrl.u32 %v829, 16
        %v834 = vshll.u32 %v830, 16
        %v835 = vshrl.u32 %v830, 16
        %vm836 = vc.u32 %v828, %v832
        %v837 = vsel %vm836, 1, 0
        %v838 = vadd.s32 %v828, %v832
        %v839 = vadd.s32 %v831, %v837
        %vm840 = vc.u32 %v838, %v834
        %v841 = vsel %vm840, 1, 0
        %v842 = vadd.s32 %v838, %v834
        %v843 = vadd.s32 %v839, %v841
        %v844 = vadd.s32 %v843, %v833
        %v845 = vadd.s32 %v844, %v835
        %v846 = vshrl.u32 %v845, 4
        %v847 = vmul.u32 %v846, 24
        %v848 = vsub.s32 %v824, %v847
        %v849 = vsub.s32 0, %v848
        %v850 = vsel %vm822, %v849, %v848
        %vm851 = vcmp.lt.s32.totalorder %v355, 0
        %v852 = vsub.s32 0, %v355
        %v853 = vsel %vm851, %v852, %v355
        %v854 = vand.u32 %v853, 65535
        %v855 = vshrl.u32 %v853, 16
        %v857 = vmul.u32 %v854, 43691
        %v858 = vmul.u32 %v854, 43690
        %v859 = vmul.u32 %v855, 43691
        %v860 = vmul.u32 %v855, 43690
        %v861 = vshll.u32 %v858, 16
        %v862 = vshrl.u32 %v858, 16
        %v863 = vshll.u32 %v859, 16
        %v864 = vshrl.u32 %v859, 16
        %vm865 = vc.u32 %v857, %v861
        %v866 = vsel %vm865, 1, 0
        %v867 = vadd.s32 %v857, %v861
        %v868 = vadd.s32 %v860, %v866
        %vm869 = vc.u32 %v867, %v863
        %v870 = vsel %vm869, 1, 0
        %v871 = vadd.s32 %v867, %v863
        %v872 = vadd.s32 %v868, %v870
        %v873 = vadd.s32 %v872, %v862
        %v874 = vadd.s32 %v873, %v864
        %v875 = vshrl.u32 %v874, 4
        %v876 = vmul.u32 %v875, 24
        %v877 = vsub.s32 %v853, %v876
        %v878 = vsub.s32 0, %v877
        %v879 = vsel %vm851, %v878, %v877
        %vm880 = vcmp.lt.s32.totalorder %v356, 0
        %v881 = vsub.s32 0, %v356
        %v882 = vsel %vm880, %v881, %v356
        %v883 = vand.u32 %v882, 65535
        %v884 = vshrl.u32 %v882, 16
        %v886 = vmul.u32 %v883, 43691
        %v887 = vmul.u32 %v883, 43690
        %v888 = vmul.u32 %v884, 43691
        %v889 = vmul.u32 %v884, 43690
        %v890 = vshll.u32 %v887, 16
        %v891 = vshrl.u32 %v887, 16
        %v892 = vshll.u32 %v888, 16
        %v893 = vshrl.u32 %v888, 16
        %vm894 = vc.u32 %v886, %v890
        %v895 = vsel %vm894, 1, 0
        %v896 = vadd.s32 %v886, %v890
        %v897 = vadd.s32 %v889, %v895
        %vm898 = vc.u32 %v896, %v892
        %v899 = vsel %vm898, 1, 0
        %v900 = vadd.s32 %v896, %v892
        %v901 = vadd.s32 %v897, %v899
        %v902 = vadd.s32 %v901, %v891
        %v903 = vadd.s32 %v902, %v893
        %v904 = vshrl.u32 %v903, 4
        %v905 = vmul.u32 %v904, 24
        %v906 = vsub.s32 %v882, %v905
        %v907 = vsub.s32 0, %v906
        %v908 = vsel %vm880, %v907, %v906
        %vm909 = vcmp.lt.s32.totalorder %v357, 0
        %v910 = vsub.s32 0, %v357
        %v911 = vsel %vm909, %v910, %v357
        %v912 = vand.u32 %v911, 65535
        %v913 = vshrl.u32 %v911, 16
        %v915 = vmul.u32 %v912, 43691
        %v916 = vmul.u32 %v912, 43690
        %v917 = vmul.u32 %v913, 43691
        %v918 = vmul.u32 %v913, 43690
        %v919 = vshll.u32 %v916, 16
        %v920 = vshrl.u32 %v916, 16
        %v921 = vshll.u32 %v917, 16
        %v922 = vshrl.u32 %v917, 16
        %vm923 = vc.u32 %v915, %v919
        %v924 = vsel %vm923, 1, 0
        %v925 = vadd.s32 %v915, %v919
        %v926 = vadd.s32 %v918, %v924
        %vm927 = vc.u32 %v925, %v921
        %v928 = vsel %vm927, 1, 0
        %v929 = vadd.s32 %v925, %v921
        %v930 = vadd.s32 %v926, %v928
        %v931 = vadd.s32 %v930, %v920
        %v932 = vadd.s32 %v931, %v922
        %v933 = vshrl.u32 %v932, 4
        %v934 = vmul.u32 %v933, 24
        %v935 = vsub.s32 %v911, %v934
        %v936 = vsub.s32 0, %v935
        %v937 = vsel %vm909, %v936, %v935
        %vm938 = vcmp.lt.s32.totalorder %v358, 0
        %v939 = vsub.s32 0, %v358
        %v940 = vsel %vm938, %v939, %v358
        %v941 = vand.u32 %v940, 65535
        %v942 = vshrl.u32 %v940, 16
        %v944 = vmul.u32 %v941, 43691
        %v945 = vmul.u32 %v941, 43690
        %v946 = vmul.u32 %v942, 43691
        %v947 = vmul.u32 %v942, 43690
        %v948 = vshll.u32 %v945, 16
        %v949 = vshrl.u32 %v945, 16
        %v950 = vshll.u32 %v946, 16
        %v951 = vshrl.u32 %v946, 16
        %vm952 = vc.u32 %v944, %v948
        %v953 = vsel %vm952, 1, 0
        %v954 = vadd.s32 %v944, %v948
        %v955 = vadd.s32 %v947, %v953
        %vm956 = vc.u32 %v954, %v950
        %v957 = vsel %vm956, 1, 0
        %v958 = vadd.s32 %v954, %v950
        %v959 = vadd.s32 %v955, %v957
        %v960 = vadd.s32 %v959, %v949
        %v961 = vadd.s32 %v960, %v951
        %v962 = vshrl.u32 %v961, 4
        %v963 = vmul.u32 %v962, 24
        %v964 = vsub.s32 %v940, %v963
        %v965 = vsub.s32 0, %v964
        %v966 = vsel %vm938, %v965, %v964
        %vm967 = vcmp.lt.s32.totalorder %v359, 0
        %v968 = vsub.s32 0, %v359
        %v969 = vsel %vm967, %v968, %v359
        %v970 = vand.u32 %v969, 65535
        %v971 = vshrl.u32 %v969, 16
        %v973 = vmul.u32 %v970, 43691
        %v974 = vmul.u32 %v970, 43690
        %v975 = vmul.u32 %v971, 43691
        %v976 = vmul.u32 %v971, 43690
        %v977 = vshll.u32 %v974, 16
        %v978 = vshrl.u32 %v974, 16
        %v979 = vshll.u32 %v975, 16
        %v980 = vshrl.u32 %v975, 16
        %vm981 = vc.u32 %v973, %v977
        %v982 = vsel %vm981, 1, 0
        %v983 = vadd.s32 %v973, %v977
        %v984 = vadd.s32 %v976, %v982
        %vm985 = vc.u32 %v983, %v979
        %v986 = vsel %vm985, 1, 0
        %v987 = vadd.s32 %v983, %v979
        %v988 = vadd.s32 %v984, %v986
        %v989 = vadd.s32 %v988, %v978
        %v990 = vadd.s32 %v989, %v980
        %v991 = vshrl.u32 %v990, 4
        %v992 = vmul.u32 %v991, 24
        %v993 = vsub.s32 %v969, %v992
        %v994 = vsub.s32 0, %v993
        %v995 = vsel %vm967, %v994, %v993
        %vm996 = vcmp.lt.s32.totalorder %v360, 0
        %v997 = vsub.s32 0, %v360
        %v998 = vsel %vm996, %v997, %v360
        %v999 = vand.u32 %v998, 65535
        %v1000 = vshrl.u32 %v998, 16
        %v1002 = vmul.u32 %v999, 43691
        %v1003 = vmul.u32 %v999, 43690
        %v1004 = vmul.u32 %v1000, 43691
        %v1005 = vmul.u32 %v1000, 43690
        %v1006 = vshll.u32 %v1003, 16
        %v1007 = vshrl.u32 %v1003, 16
        %v1008 = vshll.u32 %v1004, 16
        %v1009 = vshrl.u32 %v1004, 16
        %vm1010 = vc.u32 %v1002, %v1006
        %v1011 = vsel %vm1010, 1, 0
        %v1012 = vadd.s32 %v1002, %v1006
        %v1013 = vadd.s32 %v1005, %v1011
        %vm1014 = vc.u32 %v1012, %v1008
        %v1015 = vsel %vm1014, 1, 0
        %v1016 = vadd.s32 %v1012, %v1008
        %v1017 = vadd.s32 %v1013, %v1015
        %v1018 = vadd.s32 %v1017, %v1007
        %v1019 = vadd.s32 %v1018, %v1009
        %v1020 = vshrl.u32 %v1019, 4
        %v1021 = vmul.u32 %v1020, 24
        %v1022 = vsub.s32 %v998, %v1021
        %v1023 = vsub.s32 0, %v1022
        %v1024 = vsel %vm996, %v1023, %v1022
        %vm1025 = vcmp.lt.s32.totalorder %v361, 0
        %v1026 = vsub.s32 0, %v361
        %v1027 = vsel %vm1025, %v1026, %v361
        %v1028 = vand.u32 %v1027, 65535
        %v1029 = vshrl.u32 %v1027, 16
        %v1031 = vmul.u32 %v1028, 43691
        %v1032 = vmul.u32 %v1028, 43690
        %v1033 = vmul.u32 %v1029, 43691
        %v1034 = vmul.u32 %v1029, 43690
        %v1035 = vshll.u32 %v1032, 16
        %v1036 = vshrl.u32 %v1032, 16
        %v1037 = vshll.u32 %v1033, 16
        %v1038 = vshrl.u32 %v1033, 16
        %vm1039 = vc.u32 %v1031, %v1035
        %v1040 = vsel %vm1039, 1, 0
        %v1041 = vadd.s32 %v1031, %v1035
        %v1042 = vadd.s32 %v1034, %v1040
        %vm1043 = vc.u32 %v1041, %v1037
        %v1044 = vsel %vm1043, 1, 0
        %v1045 = vadd.s32 %v1041, %v1037
        %v1046 = vadd.s32 %v1042, %v1044
        %v1047 = vadd.s32 %v1046, %v1036
        %v1048 = vadd.s32 %v1047, %v1038
        %v1049 = vshrl.u32 %v1048, 4
        %v1050 = vmul.u32 %v1049, 24
        %v1051 = vsub.s32 %v1027, %v1050
        %v1052 = vsub.s32 0, %v1051
        %v1053 = vsel %vm1025, %v1052, %v1051
        %vm1054 = vcmp.lt.s32.totalorder %v362, 0
        %v1055 = vsub.s32 0, %v362
        %v1056 = vsel %vm1054, %v1055, %v362
        %v1057 = vand.u32 %v1056, 65535
        %v1058 = vshrl.u32 %v1056, 16
        %v1060 = vmul.u32 %v1057, 43691
        %v1061 = vmul.u32 %v1057, 43690
        %v1062 = vmul.u32 %v1058, 43691
        %v1063 = vmul.u32 %v1058, 43690
        %v1064 = vshll.u32 %v1061, 16
        %v1065 = vshrl.u32 %v1061, 16
        %v1066 = vshll.u32 %v1062, 16
        %v1067 = vshrl.u32 %v1062, 16
        %vm1068 = vc.u32 %v1060, %v1064
        %v1069 = vsel %vm1068, 1, 0
        %v1070 = vadd.s32 %v1060, %v1064
        %v1071 = vadd.s32 %v1063, %v1069
        %vm1072 = vc.u32 %v1070, %v1066
        %v1073 = vsel %vm1072, 1, 0
        %v1074 = vadd.s32 %v1070, %v1066
        %v1075 = vadd.s32 %v1071, %v1073
        %v1076 = vadd.s32 %v1075, %v1065
        %v1077 = vadd.s32 %v1076, %v1067
        %v1078 = vshrl.u32 %v1077, 4
        %v1079 = vmul.u32 %v1078, 24
        %v1080 = vsub.s32 %v1056, %v1079
        %v1081 = vsub.s32 0, %v1080
        %v1082 = vsel %vm1054, %v1081, %v1080
        %vm1083 = vcmp.lt.s32.totalorder %v363, 0
        %v1084 = vsub.s32 0, %v363
        %v1085 = vsel %vm1083, %v1084, %v363
        %v1086 = vand.u32 %v1085, 65535
        %v1087 = vshrl.u32 %v1085, 16
        %v1089 = vmul.u32 %v1086, 43691
        %v1090 = vmul.u32 %v1086, 43690
        %v1091 = vmul.u32 %v1087, 43691
        %v1092 = vmul.u32 %v1087, 43690
        %v1093 = vshll.u32 %v1090, 16
        %v1094 = vshrl.u32 %v1090, 16
        %v1095 = vshll.u32 %v1091, 16
        %v1096 = vshrl.u32 %v1091, 16
        %vm1097 = vc.u32 %v1089, %v1093
        %v1098 = vsel %vm1097, 1, 0
        %v1099 = vadd.s32 %v1089, %v1093
        %v1100 = vadd.s32 %v1092, %v1098
        %vm1101 = vc.u32 %v1099, %v1095
        %v1102 = vsel %vm1101, 1, 0
        %v1103 = vadd.s32 %v1099, %v1095
        %v1104 = vadd.s32 %v1100, %v1102
        %v1105 = vadd.s32 %v1104, %v1094
        %v1106 = vadd.s32 %v1105, %v1096
        %v1107 = vshrl.u32 %v1106, 4
        %v1108 = vmul.u32 %v1107, 24
        %v1109 = vsub.s32 %v1085, %v1108
        %v1110 = vsub.s32 0, %v1109
        %v1111 = vsel %vm1083, %v1110, %v1109
        %vm1112 = vcmp.lt.s32.totalorder %v364, 0
        %v1113 = vsub.s32 0, %v364
        %v1114 = vsel %vm1112, %v1113, %v364
        %v1115 = vand.u32 %v1114, 65535
        %v1116 = vshrl.u32 %v1114, 16
        %v1118 = vmul.u32 %v1115, 43691
        %v1119 = vmul.u32 %v1115, 43690
        %v1120 = vmul.u32 %v1116, 43691
        %v1121 = vmul.u32 %v1116, 43690
        %v1122 = vshll.u32 %v1119, 16
        %v1123 = vshrl.u32 %v1119, 16
        %v1124 = vshll.u32 %v1120, 16
        %v1125 = vshrl.u32 %v1120, 16
        %vm1126 = vc.u32 %v1118, %v1122
        %v1127 = vsel %vm1126, 1, 0
        %v1128 = vadd.s32 %v1118, %v1122
        %v1129 = vadd.s32 %v1121, %v1127
        %vm1130 = vc.u32 %v1128, %v1124
        %v1131 = vsel %vm1130, 1, 0
        %v1132 = vadd.s32 %v1128, %v1124
        %v1133 = vadd.s32 %v1129, %v1131
        %v1134 = vadd.s32 %v1133, %v1123
        %v1135 = vadd.s32 %v1134, %v1125
        %v1136 = vshrl.u32 %v1135, 4
        %v1137 = vmul.u32 %v1136, 24
        %v1138 = vsub.s32 %v1114, %v1137
        %v1139 = vsub.s32 0, %v1138
        %v1140 = vsel %vm1112, %v1139, %v1138
        %vm1141 = vcmp.lt.s32.totalorder %v365, 0
        %v1142 = vsub.s32 0, %v365
        %v1143 = vsel %vm1141, %v1142, %v365
        %v1144 = vand.u32 %v1143, 65535
        %v1145 = vshrl.u32 %v1143, 16
        %v1147 = vmul.u32 %v1144, 43691
        %v1148 = vmul.u32 %v1144, 43690
        %v1149 = vmul.u32 %v1145, 43691
        %v1150 = vmul.u32 %v1145, 43690
        %v1151 = vshll.u32 %v1148, 16
        %v1152 = vshrl.u32 %v1148, 16
        %v1153 = vshll.u32 %v1149, 16
        %v1154 = vshrl.u32 %v1149, 16
        %vm1155 = vc.u32 %v1147, %v1151
        %v1156 = vsel %vm1155, 1, 0
        %v1157 = vadd.s32 %v1147, %v1151
        %v1158 = vadd.s32 %v1150, %v1156
        %vm1159 = vc.u32 %v1157, %v1153
        %v1160 = vsel %vm1159, 1, 0
        %v1161 = vadd.s32 %v1157, %v1153
        %v1162 = vadd.s32 %v1158, %v1160
        %v1163 = vadd.s32 %v1162, %v1152
        %v1164 = vadd.s32 %v1163, %v1154
        %v1165 = vshrl.u32 %v1164, 4
        %v1166 = vmul.u32 %v1165, 24
        %v1167 = vsub.s32 %v1143, %v1166
        %v1168 = vsub.s32 0, %v1167
        %v1169 = vsel %vm1141, %v1168, %v1167
        %vm1170 = vcmp.lt.s32.totalorder %v366, 0
        %v1171 = vsub.s32 0, %v366
        %v1172 = vsel %vm1170, %v1171, %v366
        %v1173 = vand.u32 %v1172, 65535
        %v1174 = vshrl.u32 %v1172, 16
        %v1176 = vmul.u32 %v1173, 43691
        %v1177 = vmul.u32 %v1173, 43690
        %v1178 = vmul.u32 %v1174, 43691
        %v1179 = vmul.u32 %v1174, 43690
        %v1180 = vshll.u32 %v1177, 16
        %v1181 = vshrl.u32 %v1177, 16
        %v1182 = vshll.u32 %v1178, 16
        %v1183 = vshrl.u32 %v1178, 16
        %vm1184 = vc.u32 %v1176, %v1180
        %v1185 = vsel %vm1184, 1, 0
        %v1186 = vadd.s32 %v1176, %v1180
        %v1187 = vadd.s32 %v1179, %v1185
        %vm1188 = vc.u32 %v1186, %v1182
        %v1189 = vsel %vm1188, 1, 0
        %v1190 = vadd.s32 %v1186, %v1182
        %v1191 = vadd.s32 %v1187, %v1189
        %v1192 = vadd.s32 %v1191, %v1181
        %v1193 = vadd.s32 %v1192, %v1183
        %v1194 = vshrl.u32 %v1193, 4
        %v1195 = vmul.u32 %v1194, 24
        %v1196 = vsub.s32 %v1172, %v1195
        %v1197 = vsub.s32 0, %v1196
        %v1198 = vsel %vm1170, %v1197, %v1196
        %vm1199 = vcmp.lt.s32.totalorder %v367, 0
        %v1200 = vsub.s32 0, %v367
        %v1201 = vsel %vm1199, %v1200, %v367
        %v1202 = vand.u32 %v1201, 65535
        %v1203 = vshrl.u32 %v1201, 16
        %v1205 = vmul.u32 %v1202, 43691
        %v1206 = vmul.u32 %v1202, 43690
        %v1207 = vmul.u32 %v1203, 43691
        %v1208 = vmul.u32 %v1203, 43690
        %v1209 = vshll.u32 %v1206, 16
        %v1210 = vshrl.u32 %v1206, 16
        %v1211 = vshll.u32 %v1207, 16
        %v1212 = vshrl.u32 %v1207, 16
        %vm1213 = vc.u32 %v1205, %v1209
        %v1214 = vsel %vm1213, 1, 0
        %v1215 = vadd.s32 %v1205, %v1209
        %v1216 = vadd.s32 %v1208, %v1214
        %vm1217 = vc.u32 %v1215, %v1211
        %v1218 = vsel %vm1217, 1, 0
        %v1219 = vadd.s32 %v1215, %v1211
        %v1220 = vadd.s32 %v1216, %v1218
        %v1221 = vadd.s32 %v1220, %v1210
        %v1222 = vadd.s32 %v1221, %v1212
        %v1223 = vshrl.u32 %v1222, 4
        %v1224 = vmul.u32 %v1223, 24
        %v1225 = vsub.s32 %v1201, %v1224
        %v1226 = vsub.s32 0, %v1225
        %v1227 = vsel %vm1199, %v1226, %v1225
        %vm1228 = vcmp.lt.s32.totalorder %v368, 0
        %v1229 = vsub.s32 0, %v368
        %v1230 = vsel %vm1228, %v1229, %v368
        %v1231 = vand.u32 %v1230, 65535
        %v1232 = vshrl.u32 %v1230, 16
        %v1234 = vmul.u32 %v1231, 43691
        %v1235 = vmul.u32 %v1231, 43690
        %v1236 = vmul.u32 %v1232, 43691
        %v1237 = vmul.u32 %v1232, 43690
        %v1238 = vshll.u32 %v1235, 16
        %v1239 = vshrl.u32 %v1235, 16
        %v1240 = vshll.u32 %v1236, 16
        %v1241 = vshrl.u32 %v1236, 16
        %vm1242 = vc.u32 %v1234, %v1238
        %v1243 = vsel %vm1242, 1, 0
        %v1244 = vadd.s32 %v1234, %v1238
        %v1245 = vadd.s32 %v1237, %v1243
        %vm1246 = vc.u32 %v1244, %v1240
        %v1247 = vsel %vm1246, 1, 0
        %v1248 = vadd.s32 %v1244, %v1240
        %v1249 = vadd.s32 %v1245, %v1247
        %v1250 = vadd.s32 %v1249, %v1239
        %v1251 = vadd.s32 %v1250, %v1241
        %v1252 = vshrl.u32 %v1251, 4
        %v1253 = vmul.u32 %v1252, 24
        %v1254 = vsub.s32 %v1230, %v1253
        %v1255 = vsub.s32 0, %v1254
        %v1256 = vsel %vm1228, %v1255, %v1254
        %vm1257 = vcmp.lt.s32.totalorder %v369, 0
        %v1258 = vsub.s32 0, %v369
        %v1259 = vsel %vm1257, %v1258, %v369
        %v1260 = vand.u32 %v1259, 65535
        %v1261 = vshrl.u32 %v1259, 16
        %v1263 = vmul.u32 %v1260, 43691
        %v1264 = vmul.u32 %v1260, 43690
        %v1265 = vmul.u32 %v1261, 43691
        %v1266 = vmul.u32 %v1261, 43690
        %v1267 = vshll.u32 %v1264, 16
        %v1268 = vshrl.u32 %v1264, 16
        %v1269 = vshll.u32 %v1265, 16
        %v1270 = vshrl.u32 %v1265, 16
        %vm1271 = vc.u32 %v1263, %v1267
        %v1272 = vsel %vm1271, 1, 0
        %v1273 = vadd.s32 %v1263, %v1267
        %v1274 = vadd.s32 %v1266, %v1272
        %vm1275 = vc.u32 %v1273, %v1269
        %v1276 = vsel %vm1275, 1, 0
        %v1277 = vadd.s32 %v1273, %v1269
        %v1278 = vadd.s32 %v1274, %v1276
        %v1279 = vadd.s32 %v1278, %v1268
        %v1280 = vadd.s32 %v1279, %v1270
        %v1281 = vshrl.u32 %v1280, 4
        %v1282 = vmul.u32 %v1281, 24
        %v1283 = vsub.s32 %v1259, %v1282
        %v1284 = vsub.s32 0, %v1283
        %v1285 = vsel %vm1257, %v1284, %v1283
        %vm1286 = vcmp.lt.s32.totalorder %v370, 0
        %v1287 = vsub.s32 0, %v370
        %v1288 = vsel %vm1286, %v1287, %v370
        %v1289 = vand.u32 %v1288, 65535
        %v1290 = vshrl.u32 %v1288, 16
        %v1292 = vmul.u32 %v1289, 43691
        %v1293 = vmul.u32 %v1289, 43690
        %v1294 = vmul.u32 %v1290, 43691
        %v1295 = vmul.u32 %v1290, 43690
        %v1296 = vshll.u32 %v1293, 16
        %v1297 = vshrl.u32 %v1293, 16
        %v1298 = vshll.u32 %v1294, 16
        %v1299 = vshrl.u32 %v1294, 16
        %vm1300 = vc.u32 %v1292, %v1296
        %v1301 = vsel %vm1300, 1, 0
        %v1302 = vadd.s32 %v1292, %v1296
        %v1303 = vadd.s32 %v1295, %v1301
        %vm1304 = vc.u32 %v1302, %v1298
        %v1305 = vsel %vm1304, 1, 0
        %v1306 = vadd.s32 %v1302, %v1298
        %v1307 = vadd.s32 %v1303, %v1305
        %v1308 = vadd.s32 %v1307, %v1297
        %v1309 = vadd.s32 %v1308, %v1299
        %v1310 = vshrl.u32 %v1309, 4
        %v1311 = vmul.u32 %v1310, 24
        %v1312 = vsub.s32 %v1288, %v1311
        %v1313 = vsub.s32 0, %v1312
        %v1314 = vsel %vm1286, %v1313, %v1312
        %vm1315 = vcmp.lt.s32.totalorder %v371, 0
        %v1316 = vsub.s32 0, %v371
        %v1317 = vsel %vm1315, %v1316, %v371
        %v1318 = vand.u32 %v1317, 65535
        %v1319 = vshrl.u32 %v1317, 16
        %v1321 = vmul.u32 %v1318, 43691
        %v1322 = vmul.u32 %v1318, 43690
        %v1323 = vmul.u32 %v1319, 43691
        %v1324 = vmul.u32 %v1319, 43690
        %v1325 = vshll.u32 %v1322, 16
        %v1326 = vshrl.u32 %v1322, 16
        %v1327 = vshll.u32 %v1323, 16
        %v1328 = vshrl.u32 %v1323, 16
        %vm1329 = vc.u32 %v1321, %v1325
        %v1330 = vsel %vm1329, 1, 0
        %v1331 = vadd.s32 %v1321, %v1325
        %v1332 = vadd.s32 %v1324, %v1330
        %vm1333 = vc.u32 %v1331, %v1327
        %v1334 = vsel %vm1333, 1, 0
        %v1335 = vadd.s32 %v1331, %v1327
        %v1336 = vadd.s32 %v1332, %v1334
        %v1337 = vadd.s32 %v1336, %v1326
        %v1338 = vadd.s32 %v1337, %v1328
        %v1339 = vshrl.u32 %v1338, 4
        %v1340 = vmul.u32 %v1339, 24
        %v1341 = vsub.s32 %v1317, %v1340
        %v1342 = vsub.s32 0, %v1341
        %v1343 = vsel %vm1315, %v1342, %v1341
        %vm1344 = vcmp.lt.s32.totalorder %v372, 0
        %v1345 = vsub.s32 0, %v372
        %v1346 = vsel %vm1344, %v1345, %v372
        %v1347 = vand.u32 %v1346, 65535
        %v1348 = vshrl.u32 %v1346, 16
        %v1350 = vmul.u32 %v1347, 43691
        %v1351 = vmul.u32 %v1347, 43690
        %v1352 = vmul.u32 %v1348, 43691
        %v1353 = vmul.u32 %v1348, 43690
        %v1354 = vshll.u32 %v1351, 16
        %v1355 = vshrl.u32 %v1351, 16
        %v1356 = vshll.u32 %v1352, 16
        %v1357 = vshrl.u32 %v1352, 16
        %vm1358 = vc.u32 %v1350, %v1354
        %v1359 = vsel %vm1358, 1, 0
        %v1360 = vadd.s32 %v1350, %v1354
        %v1361 = vadd.s32 %v1353, %v1359
        %vm1362 = vc.u32 %v1360, %v1356
        %v1363 = vsel %vm1362, 1, 0
        %v1364 = vadd.s32 %v1360, %v1356
        %v1365 = vadd.s32 %v1361, %v1363
        %v1366 = vadd.s32 %v1365, %v1355
        %v1367 = vadd.s32 %v1366, %v1357
        %v1368 = vshrl.u32 %v1367, 4
        %v1369 = vmul.u32 %v1368, 24
        %v1370 = vsub.s32 %v1346, %v1369
        %v1371 = vsub.s32 0, %v1370
        %v1372 = vsel %vm1344, %v1371, %v1370
        %vm1373 = vcmp.lt.s32.totalorder %v373, 0
        %v1374 = vsub.s32 0, %v373
        %v1375 = vsel %vm1373, %v1374, %v373
        %v1376 = vand.u32 %v1375, 65535
        %v1377 = vshrl.u32 %v1375, 16
        %v1379 = vmul.u32 %v1376, 43691
        %v1380 = vmul.u32 %v1376, 43690
        %v1381 = vmul.u32 %v1377, 43691
        %v1382 = vmul.u32 %v1377, 43690
        %v1383 = vshll.u32 %v1380, 16
        %v1384 = vshrl.u32 %v1380, 16
        %v1385 = vshll.u32 %v1381, 16
        %v1386 = vshrl.u32 %v1381, 16
        %vm1387 = vc.u32 %v1379, %v1383
        %v1388 = vsel %vm1387, 1, 0
        %v1389 = vadd.s32 %v1379, %v1383
        %v1390 = vadd.s32 %v1382, %v1388
        %vm1391 = vc.u32 %v1389, %v1385
        %v1392 = vsel %vm1391, 1, 0
        %v1393 = vadd.s32 %v1389, %v1385
        %v1394 = vadd.s32 %v1390, %v1392
        %v1395 = vadd.s32 %v1394, %v1384
        %v1396 = vadd.s32 %v1395, %v1386
        %v1397 = vshrl.u32 %v1396, 4
        %v1398 = vmul.u32 %v1397, 24
        %v1399 = vsub.s32 %v1375, %v1398
        %v1400 = vsub.s32 0, %v1399
        %v1401 = vsel %vm1373, %v1400, %v1399
        %vm1402 = vcmp.lt.s32.totalorder %v374, 0
        %v1403 = vsub.s32 0, %v374
        %v1404 = vsel %vm1402, %v1403, %v374
        %v1405 = vand.u32 %v1404, 65535
        %v1406 = vshrl.u32 %v1404, 16
        %v1408 = vmul.u32 %v1405, 43691
        %v1409 = vmul.u32 %v1405, 43690
        %v1410 = vmul.u32 %v1406, 43691
        %v1411 = vmul.u32 %v1406, 43690
        %v1412 = vshll.u32 %v1409, 16
        %v1413 = vshrl.u32 %v1409, 16
        %v1414 = vshll.u32 %v1410, 16
        %v1415 = vshrl.u32 %v1410, 16
        %vm1416 = vc.u32 %v1408, %v1412
        %v1417 = vsel %vm1416, 1, 0
        %v1418 = vadd.s32 %v1408, %v1412
        %v1419 = vadd.s32 %v1411, %v1417
        %vm1420 = vc.u32 %v1418, %v1414
        %v1421 = vsel %vm1420, 1, 0
        %v1422 = vadd.s32 %v1418, %v1414
        %v1423 = vadd.s32 %v1419, %v1421
        %v1424 = vadd.s32 %v1423, %v1413
        %v1425 = vadd.s32 %v1424, %v1415
        %v1426 = vshrl.u32 %v1425, 4
        %v1427 = vmul.u32 %v1426, 24
        %v1428 = vsub.s32 %v1404, %v1427
        %v1429 = vsub.s32 0, %v1428
        %v1430 = vsel %vm1402, %v1429, %v1428
        %vm1431 = vcmp.lt.s32.totalorder %v375, 0
        %v1432 = vsub.s32 0, %v375
        %v1433 = vsel %vm1431, %v1432, %v375
        %v1434 = vand.u32 %v1433, 65535
        %v1435 = vshrl.u32 %v1433, 16
        %v1437 = vmul.u32 %v1434, 43691
        %v1438 = vmul.u32 %v1434, 43690
        %v1439 = vmul.u32 %v1435, 43691
        %v1440 = vmul.u32 %v1435, 43690
        %v1441 = vshll.u32 %v1438, 16
        %v1442 = vshrl.u32 %v1438, 16
        %v1443 = vshll.u32 %v1439, 16
        %v1444 = vshrl.u32 %v1439, 16
        %vm1445 = vc.u32 %v1437, %v1441
        %v1446 = vsel %vm1445, 1, 0
        %v1447 = vadd.s32 %v1437, %v1441
        %v1448 = vadd.s32 %v1440, %v1446
        %vm1449 = vc.u32 %v1447, %v1443
        %v1450 = vsel %vm1449, 1, 0
        %v1451 = vadd.s32 %v1447, %v1443
        %v1452 = vadd.s32 %v1448, %v1450
        %v1453 = vadd.s32 %v1452, %v1442
        %v1454 = vadd.s32 %v1453, %v1444
        %v1455 = vshrl.u32 %v1454, 4
        %v1456 = vmul.u32 %v1455, 24
        %v1457 = vsub.s32 %v1433, %v1456
        %v1458 = vsub.s32 0, %v1457
        %v1459 = vsel %vm1431, %v1458, %v1457
        %vm1460 = vcmp.lt.s32.totalorder %v376, 0
        %v1461 = vsub.s32 0, %v376
        %v1462 = vsel %vm1460, %v1461, %v376
        %v1463 = vand.u32 %v1462, 65535
        %v1464 = vshrl.u32 %v1462, 16
        %v1466 = vmul.u32 %v1463, 43691
        %v1467 = vmul.u32 %v1463, 43690
        %v1468 = vmul.u32 %v1464, 43691
        %v1469 = vmul.u32 %v1464, 43690
        %v1470 = vshll.u32 %v1467, 16
        %v1471 = vshrl.u32 %v1467, 16
        %v1472 = vshll.u32 %v1468, 16
        %v1473 = vshrl.u32 %v1468, 16
        %vm1474 = vc.u32 %v1466, %v1470
        %v1475 = vsel %vm1474, 1, 0
        %v1476 = vadd.s32 %v1466, %v1470
        %v1477 = vadd.s32 %v1469, %v1475
        %vm1478 = vc.u32 %v1476, %v1472
        %v1479 = vsel %vm1478, 1, 0
        %v1480 = vadd.s32 %v1476, %v1472
        %v1481 = vadd.s32 %v1477, %v1479
        %v1482 = vadd.s32 %v1481, %v1471
        %v1483 = vadd.s32 %v1482, %v1473
        %v1484 = vshrl.u32 %v1483, 4
        %v1485 = vmul.u32 %v1484, 24
        %v1486 = vsub.s32 %v1462, %v1485
        %v1487 = vsub.s32 0, %v1486
        %v1488 = vsel %vm1460, %v1487, %v1486
        %vm1489 = vcmp.lt.s32.totalorder %v377, 0
        %v1490 = vsub.s32 0, %v377
        %v1491 = vsel %vm1489, %v1490, %v377
        %v1492 = vand.u32 %v1491, 65535
        %v1493 = vshrl.u32 %v1491, 16
        %v1495 = vmul.u32 %v1492, 43691
        %v1496 = vmul.u32 %v1492, 43690
        %v1497 = vmul.u32 %v1493, 43691
        %v1498 = vmul.u32 %v1493, 43690
        %v1499 = vshll.u32 %v1496, 16
        %v1500 = vshrl.u32 %v1496, 16
        %v1501 = vshll.u32 %v1497, 16
        %v1502 = vshrl.u32 %v1497, 16
        %vm1503 = vc.u32 %v1495, %v1499
        %v1504 = vsel %vm1503, 1, 0
        %v1505 = vadd.s32 %v1495, %v1499
        %v1506 = vadd.s32 %v1498, %v1504
        %vm1507 = vc.u32 %v1505, %v1501
        %v1508 = vsel %vm1507, 1, 0
        %v1509 = vadd.s32 %v1505, %v1501
        %v1510 = vadd.s32 %v1506, %v1508
        %v1511 = vadd.s32 %v1510, %v1500
        %v1512 = vadd.s32 %v1511, %v1502
        %v1513 = vshrl.u32 %v1512, 4
        %v1514 = vmul.u32 %v1513, 24
        %v1515 = vsub.s32 %v1491, %v1514
        %v1516 = vsub.s32 0, %v1515
        %v1517 = vsel %vm1489, %v1516, %v1515
        %vm1518 = vcmp.lt.s32.totalorder %v378, 0
        %v1519 = vsub.s32 0, %v378
        %v1520 = vsel %vm1518, %v1519, %v378
        %v1521 = vand.u32 %v1520, 65535
        %v1522 = vshrl.u32 %v1520, 16
        %v1524 = vmul.u32 %v1521, 43691
        %v1525 = vmul.u32 %v1521, 43690
        %v1526 = vmul.u32 %v1522, 43691
        %v1527 = vmul.u32 %v1522, 43690
        %v1528 = vshll.u32 %v1525, 16
        %v1529 = vshrl.u32 %v1525, 16
        %v1530 = vshll.u32 %v1526, 16
        %v1531 = vshrl.u32 %v1526, 16
        %vm1532 = vc.u32 %v1524, %v1528
        %v1533 = vsel %vm1532, 1, 0
        %v1534 = vadd.s32 %v1524, %v1528
        %v1535 = vadd.s32 %v1527, %v1533
        %vm1536 = vc.u32 %v1534, %v1530
        %v1537 = vsel %vm1536, 1, 0
        %v1538 = vadd.s32 %v1534, %v1530
        %v1539 = vadd.s32 %v1535, %v1537
        %v1540 = vadd.s32 %v1539, %v1529
        %v1541 = vadd.s32 %v1540, %v1531
        %v1542 = vshrl.u32 %v1541, 4
        %v1543 = vmul.u32 %v1542, 24
        %v1544 = vsub.s32 %v1520, %v1543
        %v1545 = vsub.s32 0, %v1544
        %v1546 = vsel %vm1518, %v1545, %v1544
        %vm1547 = vcmp.lt.s32.totalorder %v379, 0
        %v1548 = vsub.s32 0, %v379
        %v1549 = vsel %vm1547, %v1548, %v379
        %v1550 = vand.u32 %v1549, 65535
        %v1551 = vshrl.u32 %v1549, 16
        %v1553 = vmul.u32 %v1550, 43691
        %v1554 = vmul.u32 %v1550, 43690
        %v1555 = vmul.u32 %v1551, 43691
        %v1556 = vmul.u32 %v1551, 43690
        %v1557 = vshll.u32 %v1554, 16
        %v1558 = vshrl.u32 %v1554, 16
        %v1559 = vshll.u32 %v1555, 16
        %v1560 = vshrl.u32 %v1555, 16
        %vm1561 = vc.u32 %v1553, %v1557
        %v1562 = vsel %vm1561, 1, 0
        %v1563 = vadd.s32 %v1553, %v1557
        %v1564 = vadd.s32 %v1556, %v1562
        %vm1565 = vc.u32 %v1563, %v1559
        %v1566 = vsel %vm1565, 1, 0
        %v1567 = vadd.s32 %v1563, %v1559
        %v1568 = vadd.s32 %v1564, %v1566
        %v1569 = vadd.s32 %v1568, %v1558
        %v1570 = vadd.s32 %v1569, %v1560
        %v1571 = vshrl.u32 %v1570, 4
        %v1572 = vmul.u32 %v1571, 24
        %v1573 = vsub.s32 %v1549, %v1572
        %v1574 = vsub.s32 0, %v1573
        %v1575 = vsel %vm1547, %v1574, %v1573
        %vm1576 = vcmp.lt.s32.totalorder %v380, 0
        %v1577 = vsub.s32 0, %v380
        %v1578 = vsel %vm1576, %v1577, %v380
        %v1579 = vand.u32 %v1578, 65535
        %v1580 = vshrl.u32 %v1578, 16
        %v1582 = vmul.u32 %v1579, 43691
        %v1583 = vmul.u32 %v1579, 43690
        %v1584 = vmul.u32 %v1580, 43691
        %v1585 = vmul.u32 %v1580, 43690
        %v1586 = vshll.u32 %v1583, 16
        %v1587 = vshrl.u32 %v1583, 16
        %v1588 = vshll.u32 %v1584, 16
        %v1589 = vshrl.u32 %v1584, 16
        %vm1590 = vc.u32 %v1582, %v1586
        %v1591 = vsel %vm1590, 1, 0
        %v1592 = vadd.s32 %v1582, %v1586
        %v1593 = vadd.s32 %v1585, %v1591
        %vm1594 = vc.u32 %v1592, %v1588
        %v1595 = vsel %vm1594, 1, 0
        %v1596 = vadd.s32 %v1592, %v1588
        %v1597 = vadd.s32 %v1593, %v1595
        %v1598 = vadd.s32 %v1597, %v1587
        %v1599 = vadd.s32 %v1598, %v1589
        %v1600 = vshrl.u32 %v1599, 4
        %v1601 = vmul.u32 %v1600, 24
        %v1602 = vsub.s32 %v1578, %v1601
        %v1603 = vsub.s32 0, %v1602
        %v1604 = vsel %vm1576, %v1603, %v1602
        %vm1605 = vcmp.lt.s32.totalorder %v381, 0
        %v1606 = vsub.s32 0, %v381
        %v1607 = vsel %vm1605, %v1606, %v381
        %v1608 = vand.u32 %v1607, 65535
        %v1609 = vshrl.u32 %v1607, 16
        %v1611 = vmul.u32 %v1608, 43691
        %v1612 = vmul.u32 %v1608, 43690
        %v1613 = vmul.u32 %v1609, 43691
        %v1614 = vmul.u32 %v1609, 43690
        %v1615 = vshll.u32 %v1612, 16
        %v1616 = vshrl.u32 %v1612, 16
        %v1617 = vshll.u32 %v1613, 16
        %v1618 = vshrl.u32 %v1613, 16
        %vm1619 = vc.u32 %v1611, %v1615
        %v1620 = vsel %vm1619, 1, 0
        %v1621 = vadd.s32 %v1611, %v1615
        %v1622 = vadd.s32 %v1614, %v1620
        %vm1623 = vc.u32 %v1621, %v1617
        %v1624 = vsel %vm1623, 1, 0
        %v1625 = vadd.s32 %v1621, %v1617
        %v1626 = vadd.s32 %v1622, %v1624
        %v1627 = vadd.s32 %v1626, %v1616
        %v1628 = vadd.s32 %v1627, %v1618
        %v1629 = vshrl.u32 %v1628, 4
        %v1630 = vmul.u32 %v1629, 24
        %v1631 = vsub.s32 %v1607, %v1630
        %v1632 = vsub.s32 0, %v1631
        %v1633 = vsel %vm1605, %v1632, %v1631
        %vm1634 = vcmp.lt.s32.totalorder %v382, 0
        %v1635 = vsub.s32 0, %v382
        %v1636 = vsel %vm1634, %v1635, %v382
        %v1637 = vand.u32 %v1636, 65535
        %v1638 = vshrl.u32 %v1636, 16
        %v1640 = vmul.u32 %v1637, 43691
        %v1641 = vmul.u32 %v1637, 43690
        %v1642 = vmul.u32 %v1638, 43691
        %v1643 = vmul.u32 %v1638, 43690
        %v1644 = vshll.u32 %v1641, 16
        %v1645 = vshrl.u32 %v1641, 16
        %v1646 = vshll.u32 %v1642, 16
        %v1647 = vshrl.u32 %v1642, 16
        %vm1648 = vc.u32 %v1640, %v1644
        %v1649 = vsel %vm1648, 1, 0
        %v1650 = vadd.s32 %v1640, %v1644
        %v1651 = vadd.s32 %v1643, %v1649
        %vm1652 = vc.u32 %v1650, %v1646
        %v1653 = vsel %vm1652, 1, 0
        %v1654 = vadd.s32 %v1650, %v1646
        %v1655 = vadd.s32 %v1651, %v1653
        %v1656 = vadd.s32 %v1655, %v1645
        %v1657 = vadd.s32 %v1656, %v1647
        %v1658 = vshrl.u32 %v1657, 4
        %v1659 = vmul.u32 %v1658, 24
        %v1660 = vsub.s32 %v1636, %v1659
        %v1661 = vsub.s32 0, %v1660
        %v1662 = vsel %vm1634, %v1661, %v1660
        %vm1663 = vcmp.lt.s32.totalorder %v383, 0
        %v1664 = vsub.s32 0, %v383
        %v1665 = vsel %vm1663, %v1664, %v383
        %v1666 = vand.u32 %v1665, 65535
        %v1667 = vshrl.u32 %v1665, 16
        %v1669 = vmul.u32 %v1666, 43691
        %v1670 = vmul.u32 %v1666, 43690
        %v1671 = vmul.u32 %v1667, 43691
        %v1672 = vmul.u32 %v1667, 43690
        %v1673 = vshll.u32 %v1670, 16
        %v1674 = vshrl.u32 %v1670, 16
        %v1675 = vshll.u32 %v1671, 16
        %v1676 = vshrl.u32 %v1671, 16
        %vm1677 = vc.u32 %v1669, %v1673
        %v1678 = vsel %vm1677, 1, 0
        %v1679 = vadd.s32 %v1669, %v1673
        %v1680 = vadd.s32 %v1672, %v1678
        %vm1681 = vc.u32 %v1679, %v1675
        %v1682 = vsel %vm1681, 1, 0
        %v1683 = vadd.s32 %v1679, %v1675
        %v1684 = vadd.s32 %v1680, %v1682
        %v1685 = vadd.s32 %v1684, %v1674
        %v1686 = vadd.s32 %v1685, %v1676
        %v1687 = vshrl.u32 %v1686, 4
        %v1688 = vmul.u32 %v1687, 24
        %v1689 = vsub.s32 %v1665, %v1688
        %v1690 = vsub.s32 0, %v1689
        %v1691 = vsel %vm1663, %v1690, %v1689
        %vm1692 = vcmp.lt.s32.totalorder %v384, 0
        %v1693 = vsub.s32 0, %v384
        %v1694 = vsel %vm1692, %v1693, %v384
        %v1695 = vand.u32 %v1694, 65535
        %v1696 = vshrl.u32 %v1694, 16
        %v1698 = vmul.u32 %v1695, 43691
        %v1699 = vmul.u32 %v1695, 43690
        %v1700 = vmul.u32 %v1696, 43691
        %v1701 = vmul.u32 %v1696, 43690
        %v1702 = vshll.u32 %v1699, 16
        %v1703 = vshrl.u32 %v1699, 16
        %v1704 = vshll.u32 %v1700, 16
        %v1705 = vshrl.u32 %v1700, 16
        %vm1706 = vc.u32 %v1698, %v1702
        %v1707 = vsel %vm1706, 1, 0
        %v1708 = vadd.s32 %v1698, %v1702
        %v1709 = vadd.s32 %v1701, %v1707
        %vm1710 = vc.u32 %v1708, %v1704
        %v1711 = vsel %vm1710, 1, 0
        %v1712 = vadd.s32 %v1708, %v1704
        %v1713 = vadd.s32 %v1709, %v1711
        %v1714 = vadd.s32 %v1713, %v1703
        %v1715 = vadd.s32 %v1714, %v1705
        %v1716 = vshrl.u32 %v1715, 4
        %v1717 = vmul.u32 %v1716, 24
        %v1718 = vsub.s32 %v1694, %v1717
        %v1719 = vsub.s32 0, %v1718
        %v1720 = vsel %vm1692, %v1719, %v1718
        %vm1721 = vcmp.lt.s32.totalorder %v385, 0
        %v1722 = vsub.s32 0, %v385
        %v1723 = vsel %vm1721, %v1722, %v385
        %v1724 = vand.u32 %v1723, 65535
        %v1725 = vshrl.u32 %v1723, 16
        %v1727 = vmul.u32 %v1724, 43691
        %v1728 = vmul.u32 %v1724, 43690
        %v1729 = vmul.u32 %v1725, 43691
        %v1730 = vmul.u32 %v1725, 43690
        %v1731 = vshll.u32 %v1728, 16
        %v1732 = vshrl.u32 %v1728, 16
        %v1733 = vshll.u32 %v1729, 16
        %v1734 = vshrl.u32 %v1729, 16
        %vm1735 = vc.u32 %v1727, %v1731
        %v1736 = vsel %vm1735, 1, 0
        %v1737 = vadd.s32 %v1727, %v1731
        %v1738 = vadd.s32 %v1730, %v1736
        %vm1739 = vc.u32 %v1737, %v1733
        %v1740 = vsel %vm1739, 1, 0
        %v1741 = vadd.s32 %v1737, %v1733
        %v1742 = vadd.s32 %v1738, %v1740
        %v1743 = vadd.s32 %v1742, %v1732
        %v1744 = vadd.s32 %v1743, %v1734
        %v1745 = vshrl.u32 %v1744, 4
        %v1746 = vmul.u32 %v1745, 24
        %v1747 = vsub.s32 %v1723, %v1746
        %v1748 = vsub.s32 0, %v1747
        %v1749 = vsel %vm1721, %v1748, %v1747
        %vm1750 = vcmp.lt.s32.totalorder %v386, 0
        %v1751 = vsub.s32 0, %v386
        %v1752 = vsel %vm1750, %v1751, %v386
        %v1753 = vand.u32 %v1752, 65535
        %v1754 = vshrl.u32 %v1752, 16
        %v1756 = vmul.u32 %v1753, 43691
        %v1757 = vmul.u32 %v1753, 43690
        %v1758 = vmul.u32 %v1754, 43691
        %v1759 = vmul.u32 %v1754, 43690
        %v1760 = vshll.u32 %v1757, 16
        %v1761 = vshrl.u32 %v1757, 16
        %v1762 = vshll.u32 %v1758, 16
        %v1763 = vshrl.u32 %v1758, 16
        %vm1764 = vc.u32 %v1756, %v1760
        %v1765 = vsel %vm1764, 1, 0
        %v1766 = vadd.s32 %v1756, %v1760
        %v1767 = vadd.s32 %v1759, %v1765
        %vm1768 = vc.u32 %v1766, %v1762
        %v1769 = vsel %vm1768, 1, 0
        %v1770 = vadd.s32 %v1766, %v1762
        %v1771 = vadd.s32 %v1767, %v1769
        %v1772 = vadd.s32 %v1771, %v1761
        %v1773 = vadd.s32 %v1772, %v1763
        %v1774 = vshrl.u32 %v1773, 4
        %v1775 = vmul.u32 %v1774, 24
        %v1776 = vsub.s32 %v1752, %v1775
        %v1777 = vsub.s32 0, %v1776
        %v1778 = vsel %vm1750, %v1777, %v1776
        %vm1779 = vcmp.ne.s32.totalorder %v415, 0
        %vm1780 = vcmp.ne.s32.totalorder %v444, 0
        %vm1781 = vcmp.ne.s32.totalorder %v473, 0
        %vm1782 = vcmp.ne.s32.totalorder %v502, 0
        %vm1783 = vcmp.ne.s32.totalorder %v531, 0
        %vm1784 = vcmp.ne.s32.totalorder %v560, 0
        %vm1785 = vcmp.ne.s32.totalorder %v589, 0
        %vm1786 = vcmp.ne.s32.totalorder %v618, 0
        %vm1787 = vcmp.ne.s32.totalorder %v647, 0
        %vm1788 = vcmp.ne.s32.totalorder %v676, 0
        %vm1789 = vcmp.ne.s32.totalorder %v705, 0
        %vm1790 = vcmp.ne.s32.totalorder %v734, 0
        %vm1791 = vcmp.ne.s32.totalorder %v763, 0
        %vm1792 = vcmp.ne.s32.totalorder %v792, 0
        %vm1793 = vcmp.ne.s32.totalorder %v821, 0
        %vm1794 = vcmp.ne.s32.totalorder %v850, 0
        %vm1795 = vcmp.ne.s32.totalorder %v879, 0
        %vm1796 = vcmp.ne.s32.totalorder %v908, 0
        %vm1797 = vcmp.ne.s32.totalorder %v937, 0
        %vm1798 = vcmp.ne.s32.totalorder %v966, 0
        %vm1799 = vcmp.ne.s32.totalorder %v995, 0
        %vm1800 = vcmp.ne.s32.totalorder %v1024, 0
        %vm1801 = vcmp.ne.s32.totalorder %v1053, 0
        %vm1802 = vcmp.ne.s32.totalorder %v1082, 0
        %vm1803 = vcmp.ne.s32.totalorder %v1111, 0
        %vm1804 = vcmp.ne.s32.totalorder %v1140, 0
        %vm1805 = vcmp.ne.s32.totalorder %v1169, 0
        %vm1806 = vcmp.ne.s32.totalorder %v1198, 0
        %vm1807 = vcmp.ne.s32.totalorder %v1227, 0
        %vm1808 = vcmp.ne.s32.totalorder %v1256, 0
        %vm1809 = vcmp.ne.s32.totalorder %v1285, 0
        %vm1810 = vcmp.ne.s32.totalorder %v1314, 0
        %vm1811 = vcmp.ne.s32.totalorder %v1343, 0
        %vm1812 = vcmp.ne.s32.totalorder %v1372, 0
        %vm1813 = vcmp.ne.s32.totalorder %v1401, 0
        %vm1814 = vcmp.ne.s32.totalorder %v1430, 0
        %vm1815 = vcmp.ne.s32.totalorder %v1459, 0
        %vm1816 = vcmp.ne.s32.totalorder %v1488, 0
        %vm1817 = vcmp.ne.s32.totalorder %v1517, 0
        %vm1818 = vcmp.ne.s32.totalorder %v1546, 0
        %vm1819 = vcmp.ne.s32.totalorder %v1575, 0
        %vm1820 = vcmp.ne.s32.totalorder %v1604, 0
        %vm1821 = vcmp.ne.s32.totalorder %v1633, 0
        %vm1822 = vcmp.ne.s32.totalorder %v1662, 0
        %vm1823 = vcmp.ne.s32.totalorder %v1691, 0
        %vm1824 = vcmp.ne.s32.totalorder %v1720, 0
        %vm1825 = vcmp.ne.s32.totalorder %v1749, 0
        %vm1826 = vcmp.ne.s32.totalorder %v1778, 0
        %vm1827 = vcmp.lt.s32.totalorder %v415, 0
        %vm1828 = vcmp.lt.s32.totalorder %v444, 0
        %vm1829 = vcmp.lt.s32.totalorder %v473, 0
        %vm1830 = vcmp.lt.s32.totalorder %v502, 0
        %vm1831 = vcmp.lt.s32.totalorder %v531, 0
        %vm1832 = vcmp.lt.s32.totalorder %v560, 0
        %vm1833 = vcmp.lt.s32.totalorder %v589, 0
        %vm1834 = vcmp.lt.s32.totalorder %v618, 0
        %vm1835 = vcmp.lt.s32.totalorder %v647, 0
        %vm1836 = vcmp.lt.s32.totalorder %v676, 0
        %vm1837 = vcmp.lt.s32.totalorder %v705, 0
        %vm1838 = vcmp.lt.s32.totalorder %v734, 0
        %vm1839 = vcmp.lt.s32.totalorder %v763, 0
        %vm1840 = vcmp.lt.s32.totalorder %v792, 0
        %vm1841 = vcmp.lt.s32.totalorder %v821, 0
        %vm1842 = vcmp.lt.s32.totalorder %v850, 0
        %vm1843 = vcmp.lt.s32.totalorder %v879, 0
        %vm1844 = vcmp.lt.s32.totalorder %v908, 0
        %vm1845 = vcmp.lt.s32.totalorder %v937, 0
        %vm1846 = vcmp.lt.s32.totalorder %v966, 0
        %vm1847 = vcmp.lt.s32.totalorder %v995, 0
        %vm1848 = vcmp.lt.s32.totalorder %v1024, 0
        %vm1849 = vcmp.lt.s32.totalorder %v1053, 0
        %vm1850 = vcmp.lt.s32.totalorder %v1082, 0
        %vm1851 = vcmp.lt.s32.totalorder %v1111, 0
        %vm1852 = vcmp.lt.s32.totalorder %v1140, 0
        %vm1853 = vcmp.lt.s32.totalorder %v1169, 0
        %vm1854 = vcmp.lt.s32.totalorder %v1198, 0
        %vm1855 = vcmp.lt.s32.totalorder %v1227, 0
        %vm1856 = vcmp.lt.s32.totalorder %v1256, 0
        %vm1857 = vcmp.lt.s32.totalorder %v1285, 0
        %vm1858 = vcmp.lt.s32.totalorder %v1314, 0
        %vm1859 = vcmp.lt.s32.totalorder %v1343, 0
        %vm1860 = vcmp.lt.s32.totalorder %v1372, 0
        %vm1861 = vcmp.lt.s32.totalorder %v1401, 0
        %vm1862 = vcmp.lt.s32.totalorder %v1430, 0
        %vm1863 = vcmp.lt.s32.totalorder %v1459, 0
        %vm1864 = vcmp.lt.s32.totalorder %v1488, 0
        %vm1865 = vcmp.lt.s32.totalorder %v1517, 0
        %vm1866 = vcmp.lt.s32.totalorder %v1546, 0
        %vm1867 = vcmp.lt.s32.totalorder %v1575, 0
        %vm1868 = vcmp.lt.s32.totalorder %v1604, 0
        %vm1869 = vcmp.lt.s32.totalorder %v1633, 0
        %vm1870 = vcmp.lt.s32.totalorder %v1662, 0
        %vm1871 = vcmp.lt.s32.totalorder %v1691, 0
        %vm1872 = vcmp.lt.s32.totalorder %v1720, 0
        %vm1873 = vcmp.lt.s32.totalorder %v1749, 0
        %vm1874 = vcmp.lt.s32.totalorder %v1778, 0
        %vm1875 = vmand %vm1827, %vm1779
        %vm1876 = vmand %vm1828, %vm1780
        %vm1877 = vmand %vm1829, %vm1781
        %vm1878 = vmand %vm1830, %vm1782
        %vm1879 = vmand %vm1831, %vm1783
        %vm1880 = vmand %vm1832, %vm1784
        %vm1881 = vmand %vm1833, %vm1785
        %vm1882 = vmand %vm1834, %vm1786
        %vm1883 = vmand %vm1835, %vm1787
        %vm1884 = vmand %vm1836, %vm1788
        %vm1885 = vmand %vm1837, %vm1789
        %vm1886 = vmand %vm1838, %vm1790
        %vm1887 = vmand %vm1839, %vm1791
        %vm1888 = vmand %vm1840, %vm1792
        %vm1889 = vmand %vm1841, %vm1793
        %vm1890 = vmand %vm1842, %vm1794
        %vm1891 = vmand %vm1843, %vm1795
        %vm1892 = vmand %vm1844, %vm1796
        %vm1893 = vmand %vm1845, %vm1797
        %vm1894 = vmand %vm1846, %vm1798
        %vm1895 = vmand %vm1847, %vm1799
        %vm1896 = vmand %vm1848, %vm1800
        %vm1897 = vmand %vm1849, %vm1801
        %vm1898 = vmand %vm1850, %vm1802
        %vm1899 = vmand %vm1851, %vm1803
        %vm1900 = vmand %vm1852, %vm1804
        %vm1901 = vmand %vm1853, %vm1805
        %vm1902 = vmand %vm1854, %vm1806
        %vm1903 = vmand %vm1855, %vm1807
        %vm1904 = vmand %vm1856, %vm1808
        %vm1905 = vmand %vm1857, %vm1809
        %vm1906 = vmand %vm1858, %vm1810
        %vm1907 = vmand %vm1859, %vm1811
        %vm1908 = vmand %vm1860, %vm1812
        %vm1909 = vmand %vm1861, %vm1813
        %vm1910 = vmand %vm1862, %vm1814
        %vm1911 = vmand %vm1863, %vm1815
        %vm1912 = vmand %vm1864, %vm1816
        %vm1913 = vmand %vm1865, %vm1817
        %vm1914 = vmand %vm1866, %vm1818
        %vm1915 = vmand %vm1867, %vm1819
        %vm1916 = vmand %vm1868, %vm1820
        %vm1917 = vmand %vm1869, %vm1821
        %vm1918 = vmand %vm1870, %vm1822
        %vm1919 = vmand %vm1871, %vm1823
        %vm1920 = vmand %vm1872, %vm1824
        %vm1921 = vmand %vm1873, %vm1825
        %vm1922 = vmand %vm1874, %vm1826
        %v1923 = vadd.s32 %v415, 24
        %v1924 = vadd.s32 %v444, 24
        %v1925 = vadd.s32 %v473, 24
        %v1926 = vadd.s32 %v502, 24
        %v1927 = vadd.s32 %v531, 24
        %v1928 = vadd.s32 %v560, 24
        %v1929 = vadd.s32 %v589, 24
        %v1930 = vadd.s32 %v618, 24
        %v1931 = vadd.s32 %v647, 24
        %v1932 = vadd.s32 %v676, 24
        %v1933 = vadd.s32 %v705, 24
        %v1934 = vadd.s32 %v734, 24
        %v1935 = vadd.s32 %v763, 24
        %v1936 = vadd.s32 %v792, 24
        %v1937 = vadd.s32 %v821, 24
        %v1938 = vadd.s32 %v850, 24
        %v1939 = vadd.s32 %v879, 24
        %v1940 = vadd.s32 %v908, 24
        %v1941 = vadd.s32 %v937, 24
        %v1942 = vadd.s32 %v966, 24
        %v1943 = vadd.s32 %v995, 24
        %v1944 = vadd.s32 %v1024, 24
        %v1945 = vadd.s32 %v1053, 24
        %v1946 = vadd.s32 %v1082, 24
        %v1947 = vadd.s32 %v1111, 24
        %v1948 = vadd.s32 %v1140, 24
        %v1949 = vadd.s32 %v1169, 24
        %v1950 = vadd.s32 %v1198, 24
        %v1951 = vadd.s32 %v1227, 24
        %v1952 = vadd.s32 %v1256, 24
        %v1953 = vadd.s32 %v1285, 24
        %v1954 = vadd.s32 %v1314, 24
        %v1955 = vadd.s32 %v1343, 24
        %v1956 = vadd.s32 %v1372, 24
        %v1957 = vadd.s32 %v1401, 24
        %v1958 = vadd.s32 %v1430, 24
        %v1959 = vadd.s32 %v1459, 24
        %v1960 = vadd.s32 %v1488, 24
        %v1961 = vadd.s32 %v1517, 24
        %v1962 = vadd.s32 %v1546, 24
        %v1963 = vadd.s32 %v1575, 24
        %v1964 = vadd.s32 %v1604, 24
        %v1965 = vadd.s32 %v1633, 24
        %v1966 = vadd.s32 %v1662, 24
        %v1967 = vadd.s32 %v1691, 24
        %v1968 = vadd.s32 %v1720, 24
        %v1969 = vadd.s32 %v1749, 24
        %v1970 = vadd.s32 %v1778, 24
        %v1971 = vsel %vm1875, %v1923, %v415
        %v1972 = vsel %vm1876, %v1924, %v444
        %v1973 = vsel %vm1877, %v1925, %v473
        %v1974 = vsel %vm1878, %v1926, %v502
        %v1975 = vsel %vm1879, %v1927, %v531
        %v1976 = vsel %vm1880, %v1928, %v560
        %v1977 = vsel %vm1881, %v1929, %v589
        %v1978 = vsel %vm1882, %v1930, %v618
        %v1979 = vsel %vm1883, %v1931, %v647
        %v1980 = vsel %vm1884, %v1932, %v676
        %v1981 = vsel %vm1885, %v1933, %v705
        %v1982 = vsel %vm1886, %v1934, %v734
        %v1983 = vsel %vm1887, %v1935, %v763
        %v1984 = vsel %vm1888, %v1936, %v792
        %v1985 = vsel %vm1889, %v1937, %v821
        %v1986 = vsel %vm1890, %v1938, %v850
        %v1987 = vsel %vm1891, %v1939, %v879
        %v1988 = vsel %vm1892, %v1940, %v908
        %v1989 = vsel %vm1893, %v1941, %v937
        %v1990 = vsel %vm1894, %v1942, %v966
        %v1991 = vsel %vm1895, %v1943, %v995
        %v1992 = vsel %vm1896, %v1944, %v1024
        %v1993 = vsel %vm1897, %v1945, %v1053
        %v1994 = vsel %vm1898, %v1946, %v1082
        %v1995 = vsel %vm1899, %v1947, %v1111
        %v1996 = vsel %vm1900, %v1948, %v1140
        %v1997 = vsel %vm1901, %v1949, %v1169
        %v1998 = vsel %vm1902, %v1950, %v1198
        %v1999 = vsel %vm1903, %v1951, %v1227
        %v2000 = vsel %vm1904, %v1952, %v1256
        %v2001 = vsel %vm1905, %v1953, %v1285
        %v2002 = vsel %vm1906, %v1954, %v1314
        %v2003 = vsel %vm1907, %v1955, %v1343
        %v2004 = vsel %vm1908, %v1956, %v1372
        %v2005 = vsel %vm1909, %v1957, %v1401
        %v2006 = vsel %vm1910, %v1958, %v1430
        %v2007 = vsel %vm1911, %v1959, %v1459
        %v2008 = vsel %vm1912, %v1960, %v1488
        %v2009 = vsel %vm1913, %v1961, %v1517
        %v2010 = vsel %vm1914, %v1962, %v1546
        %v2011 = vsel %vm1915, %v1963, %v1575
        %v2012 = vsel %vm1916, %v1964, %v1604
        %v2013 = vsel %vm1917, %v1965, %v1633
        %v2014 = vsel %vm1918, %v1966, %v1662
        %v2015 = vsel %vm1919, %v1967, %v1691
        %v2016 = vsel %vm1920, %v1968, %v1720
        %v2017 = vsel %vm1921, %v1969, %v1749
        %v2018 = vsel %vm1922, %v1970, %v1778
        %vm2019 = vcmp.lt.s32.totalorder %v1971, 16
        %vm2020 = vcmp.lt.s32.totalorder %v1972, 16
        %vm2021 = vcmp.lt.s32.totalorder %v1973, 16
        %vm2022 = vcmp.lt.s32.totalorder %v1974, 16
        %vm2023 = vcmp.lt.s32.totalorder %v1975, 16
        %vm2024 = vcmp.lt.s32.totalorder %v1976, 16
        %vm2025 = vcmp.lt.s32.totalorder %v1977, 16
        %vm2026 = vcmp.lt.s32.totalorder %v1978, 16
        %vm2027 = vcmp.lt.s32.totalorder %v1979, 16
        %vm2028 = vcmp.lt.s32.totalorder %v1980, 16
        %vm2029 = vcmp.lt.s32.totalorder %v1981, 16
        %vm2030 = vcmp.lt.s32.totalorder %v1982, 16
        %vm2031 = vcmp.lt.s32.totalorder %v1983, 16
        %vm2032 = vcmp.lt.s32.totalorder %v1984, 16
        %vm2033 = vcmp.lt.s32.totalorder %v1985, 16
        %vm2034 = vcmp.lt.s32.totalorder %v1986, 16
        %vm2035 = vcmp.lt.s32.totalorder %v1987, 16
        %vm2036 = vcmp.lt.s32.totalorder %v1988, 16
        %vm2037 = vcmp.lt.s32.totalorder %v1989, 16
        %vm2038 = vcmp.lt.s32.totalorder %v1990, 16
        %vm2039 = vcmp.lt.s32.totalorder %v1991, 16
        %vm2040 = vcmp.lt.s32.totalorder %v1992, 16
        %vm2041 = vcmp.lt.s32.totalorder %v1993, 16
        %vm2042 = vcmp.lt.s32.totalorder %v1994, 16
        %vm2043 = vcmp.lt.s32.totalorder %v1995, 16
        %vm2044 = vcmp.lt.s32.totalorder %v1996, 16
        %vm2045 = vcmp.lt.s32.totalorder %v1997, 16
        %vm2046 = vcmp.lt.s32.totalorder %v1998, 16
        %vm2047 = vcmp.lt.s32.totalorder %v1999, 16
        %vm2048 = vcmp.lt.s32.totalorder %v2000, 16
        %vm2049 = vcmp.lt.s32.totalorder %v2001, 16
        %vm2050 = vcmp.lt.s32.totalorder %v2002, 16
        %vm2051 = vcmp.lt.s32.totalorder %v2003, 16
        %vm2052 = vcmp.lt.s32.totalorder %v2004, 16
        %vm2053 = vcmp.lt.s32.totalorder %v2005, 16
        %vm2054 = vcmp.lt.s32.totalorder %v2006, 16
        %vm2055 = vcmp.lt.s32.totalorder %v2007, 16
        %vm2056 = vcmp.lt.s32.totalorder %v2008, 16
        %vm2057 = vcmp.lt.s32.totalorder %v2009, 16
        %vm2058 = vcmp.lt.s32.totalorder %v2010, 16
        %vm2059 = vcmp.lt.s32.totalorder %v2011, 16
        %vm2060 = vcmp.lt.s32.totalorder %v2012, 16
        %vm2061 = vcmp.lt.s32.totalorder %v2013, 16
        %vm2062 = vcmp.lt.s32.totalorder %v2014, 16
        %vm2063 = vcmp.lt.s32.totalorder %v2015, 16
        %vm2064 = vcmp.lt.s32.totalorder %v2016, 16
        %vm2065 = vcmp.lt.s32.totalorder %v2017, 16
        %vm2066 = vcmp.lt.s32.totalorder %v2018, 16
        %v2067 = vsel %vm2019, 1, 0
        %v2068 = vsel %vm2020, 1, 0
        %v2069 = vsel %vm2021, 1, 0
        %v2070 = vsel %vm2022, 1, 0
        %v2071 = vsel %vm2023, 1, 0
        %v2072 = vsel %vm2024, 1, 0
        %v2073 = vsel %vm2025, 1, 0
        %v2074 = vsel %vm2026, 1, 0
        %v2075 = vsel %vm2027, 1, 0
        %v2076 = vsel %vm2028, 1, 0
        %v2077 = vsel %vm2029, 1, 0
        %v2078 = vsel %vm2030, 1, 0
        %v2079 = vsel %vm2031, 1, 0
        %v2080 = vsel %vm2032, 1, 0
        %v2081 = vsel %vm2033, 1, 0
        %v2082 = vsel %vm2034, 1, 0
        %v2083 = vsel %vm2035, 1, 0
        %v2084 = vsel %vm2036, 1, 0
        %v2085 = vsel %vm2037, 1, 0
        %v2086 = vsel %vm2038, 1, 0
        %v2087 = vsel %vm2039, 1, 0
        %v2088 = vsel %vm2040, 1, 0
        %v2089 = vsel %vm2041, 1, 0
        %v2090 = vsel %vm2042, 1, 0
        %v2091 = vsel %vm2043, 1, 0
        %v2092 = vsel %vm2044, 1, 0
        %v2093 = vsel %vm2045, 1, 0
        %v2094 = vsel %vm2046, 1, 0
        %v2095 = vsel %vm2047, 1, 0
        %v2096 = vsel %vm2048, 1, 0
        %v2097 = vsel %vm2049, 1, 0
        %v2098 = vsel %vm2050, 1, 0
        %v2099 = vsel %vm2051, 1, 0
        %v2100 = vsel %vm2052, 1, 0
        %v2101 = vsel %vm2053, 1, 0
        %v2102 = vsel %vm2054, 1, 0
        %v2103 = vsel %vm2055, 1, 0
        %v2104 = vsel %vm2056, 1, 0
        %v2105 = vsel %vm2057, 1, 0
        %v2106 = vsel %vm2058, 1, 0
        %v2107 = vsel %vm2059, 1, 0
        %v2108 = vsel %vm2060, 1, 0
        %v2109 = vsel %vm2061, 1, 0
        %v2110 = vsel %vm2062, 1, 0
        %v2111 = vsel %vm2063, 1, 0
        %v2112 = vsel %vm2064, 1, 0
        %v2113 = vsel %vm2065, 1, 0
        %v2114 = vsel %vm2066, 1, 0
        %v2115 = vcvt.s32.f32 %v2067
        %v2116 = vcvt.s32.f32 %v2068
        %v2117 = vcvt.s32.f32 %v2069
        %v2118 = vcvt.s32.f32 %v2070
        %v2119 = vcvt.s32.f32 %v2071
        %v2120 = vcvt.s32.f32 %v2072
        %v2121 = vcvt.s32.f32 %v2073
        %v2122 = vcvt.s32.f32 %v2074
        %v2123 = vcvt.s32.f32 %v2075
        %v2124 = vcvt.s32.f32 %v2076
        %v2125 = vcvt.s32.f32 %v2077
        %v2126 = vcvt.s32.f32 %v2078
        %v2127 = vcvt.s32.f32 %v2079
        %v2128 = vcvt.s32.f32 %v2080
        %v2129 = vcvt.s32.f32 %v2081
        %v2130 = vcvt.s32.f32 %v2082
        %v2131 = vcvt.s32.f32 %v2083
        %v2132 = vcvt.s32.f32 %v2084
        %v2133 = vcvt.s32.f32 %v2085
        %v2134 = vcvt.s32.f32 %v2086
        %v2135 = vcvt.s32.f32 %v2087
        %v2136 = vcvt.s32.f32 %v2088
        %v2137 = vcvt.s32.f32 %v2089
        %v2138 = vcvt.s32.f32 %v2090
        %v2139 = vcvt.s32.f32 %v2091
        %v2140 = vcvt.s32.f32 %v2092
        %v2141 = vcvt.s32.f32 %v2093
        %v2142 = vcvt.s32.f32 %v2094
        %v2143 = vcvt.s32.f32 %v2095
        %v2144 = vcvt.s32.f32 %v2096
        %v2145 = vcvt.s32.f32 %v2097
        %v2146 = vcvt.s32.f32 %v2098
        %v2147 = vcvt.s32.f32 %v2099
        %v2148 = vcvt.s32.f32 %v2100
        %v2149 = vcvt.s32.f32 %v2101
        %v2150 = vcvt.s32.f32 %v2102
        %v2151 = vcvt.s32.f32 %v2103
        %v2152 = vcvt.s32.f32 %v2104
        %v2153 = vcvt.s32.f32 %v2105
        %v2154 = vcvt.s32.f32 %v2106
        %v2155 = vcvt.s32.f32 %v2107
        %v2156 = vcvt.s32.f32 %v2108
        %v2157 = vcvt.s32.f32 %v2109
        %v2158 = vcvt.s32.f32 %v2110
        %v2159 = vcvt.s32.f32 %v2111
        %v2160 = vcvt.s32.f32 %v2112
        %v2161 = vcvt.s32.f32 %v2113
        %v2162 = vcvt.s32.f32 %v2114
        %v2163 = vld [vmem:[%s4] sm:$0x1]
        %v2164 = vld [vmem:[%s4 + $0x1] sm:$0x1]
        %v2165 = vld [vmem:[%s4 + $0x2] sm:$0x1]
        %v2166 = vld [vmem:[%s4 + $0x3] sm:$0x1]
        %v2167 = vld [vmem:[%s4 + $0x4] sm:$0x1]
        %v2168 = vld [vmem:[%s4 + $0x5] sm:$0x1]
        %vm2169 = vcmask 785408
        %2170 = vst.msk [vmem:[#allocation2] sm:$0xff] %vm2169, 0.0
        %2171 = vst.msk [vmem:[#allocation2 + $0x8] sm:$0xff] %vm2169, 0.0
        %2172 = vst.msk [vmem:[#allocation2 + $0x10] sm:$0xff] %vm2169, 0.0
        %2173 = vst.msk [vmem:[#allocation2 + $0x18] sm:$0xff] %vm2169, 0.0
        %2174 = vst.msk [vmem:[#allocation2 + $0x190] sm:$0xff] %vm2169, 0.0
        %2175 = vst.msk [vmem:[#allocation2 + $0x198] sm:$0xff] %vm2169, 0.0
        %2176 = vst.msk [vmem:[#allocation2 + $0x1a0] sm:$0xff] %vm2169, 0.0
        %2177 = vst.msk [vmem:[#allocation2 + $0x1a8] sm:$0xff] %vm2169, 0.0
        %v2178 = vld [vmem:[%s334] sm:$0xf]
        %v2179 = vld [vmem:[%s334 + $0x4] sm:$0xf]
        %v2180 = vld [vmem:[%s334 + $0x8] sm:$0xf]
        %v2181 = vld [vmem:[%s334 + $0xc] sm:$0xf]
        %v2182 = vld [vmem:[%s334 + $0x10] sm:$0xf]
        %v2183 = vld [vmem:[%s334 + $0x14] sm:$0xf]
        %v2184 = vld [vmem:[%s334 + $0x18] sm:$0xf]
        %v2185 = vld [vmem:[%s334 + $0x1c] sm:$0xf]
        %v2186 = vld [vmem:[%s334 + $0x20] sm:$0xf]
        %v2187 = vld [vmem:[%s334 + $0x24] sm:$0xf]
        %v2188 = vld [vmem:[%s334 + $0x28] sm:$0xf]
        %v2189 = vld [vmem:[%s334 + $0x2c] sm:$0xf]
        %v2190 = vld [vmem:[%s334 + $0x30] sm:$0xf]
        %v2191 = vld [vmem:[%s334 + $0x34] sm:$0xf]
        %v2192 = vld [vmem:[%s334 + $0x38] sm:$0xf]
        %v2193 = vld [vmem:[%s334 + $0x3c] sm:$0xf]
        %v2194 = vld [vmem:[%s334 + $0x40] sm:$0xf]
        %v2195 = vld [vmem:[%s334 + $0x44] sm:$0xf]
        %v2196 = vld [vmem:[%s334 + $0x48] sm:$0xf]
        %v2197 = vld [vmem:[%s334 + $0x4c] sm:$0xf]
        %v2198 = vld [vmem:[%s334 + $0x50] sm:$0xf]
        %v2199 = vld [vmem:[%s334 + $0x54] sm:$0xf]
        %v2200 = vld [vmem:[%s334 + $0x58] sm:$0xf]
        %v2201 = vld [vmem:[%s334 + $0x5c] sm:$0xf]
        %v2202 = vld [vmem:[%s334 + $0x60] sm:$0xf]
        %v2203 = vld [vmem:[%s334 + $0x64] sm:$0xf]
        %v2204 = vld [vmem:[%s334 + $0x68] sm:$0xf]
        %v2205 = vld [vmem:[%s334 + $0x6c] sm:$0xf]
        %v2206 = vld [vmem:[%s334 + $0x70] sm:$0xf]
        %v2207 = vld [vmem:[%s334 + $0x74] sm:$0xf]
        %v2208 = vld [vmem:[%s334 + $0x78] sm:$0xf]
        %v2209 = vld [vmem:[%s334 + $0x7c] sm:$0xf]
        %v2210 = vld [vmem:[%s334 + $0x80] sm:$0xf]
        %v2211 = vld [vmem:[%s334 + $0x84] sm:$0xf]
        %v2212 = vld [vmem:[%s334 + $0x88] sm:$0xf]
        %v2213 = vld [vmem:[%s334 + $0x8c] sm:$0xf]
        %v2214 = vld [vmem:[%s334 + $0x90] sm:$0xf]
        %v2215 = vld [vmem:[%s334 + $0x94] sm:$0xf]
        %v2216 = vld [vmem:[%s334 + $0x98] sm:$0xf]
        %v2217 = vld [vmem:[%s334 + $0x9c] sm:$0xf]
        %v2218 = vld [vmem:[%s334 + $0xa0] sm:$0xf]
        %v2219 = vld [vmem:[%s334 + $0xa4] sm:$0xf]
        %v2220 = vld [vmem:[%s334 + $0xa8] sm:$0xf]
        %v2221 = vld [vmem:[%s334 + $0xac] sm:$0xf]
        %v2222 = vld [vmem:[%s334 + $0xb0] sm:$0xf]
        %v2223 = vld [vmem:[%s334 + $0xb4] sm:$0xf]
        %v2224 = vld [vmem:[%s334 + $0xb8] sm:$0xf]
        %v2225 = vld [vmem:[%s334 + $0xbc] sm:$0xf]
        %v2226 = vld [vmem:[%s1] sm:$0xf]
        %v2227 = vld [vmem:[%s1 + $0x4] sm:$0x3]
        %v2228 = vld [vmem:[%s334 + $0xc0] sm:$0xf]
        %v2229 = vld [vmem:[%s334 + $0xc4] sm:$0xf]
        %v2230 = vld [vmem:[%s334 + $0xc8] sm:$0xf]
        %s2231 = scalar_lea.vmem %s1, 8
        %v2232 = vld [vmem:[%s2231] sm:$0xf]
        %v2233 = vld [vmem:[%s2231 + $0x4] sm:$0x3]
        %v2282 = vunpack.c.l.b16 %v2181
        %v2283 = vunpack.c.l.b16 %v2182
        %v2284 = vunpack.c.l.b16 %v2183
        %v2285 = vunpack.c.l.b16 %v2184
        %v2286 = vunpack.c.l.b16 %v2185
        %v2287 = vunpack.c.l.b16 %v2186
        %v2288 = vunpack.c.l.b16 %v2187
        %v2289 = vunpack.c.l.b16 %v2188
        %v2290 = vunpack.c.l.b16 %v2189
        %v2291 = vunpack.c.l.b16 %v2190
        %v2292 = vunpack.c.l.b16 %v2191
        %v2293 = vunpack.c.l.b16 %v2192
        %v2294 = vunpack.c.l.b16 %v2193
        %v2295 = vunpack.c.l.b16 %v2194
        %v2296 = vunpack.c.l.b16 %v2195
        %v2297 = vunpack.c.l.b16 %v2196
        %v2298 = vunpack.c.l.b16 %v2197
        %v2299 = vunpack.c.l.b16 %v2198
        %v2300 = vunpack.c.l.b16 %v2199
        %v2301 = vunpack.c.l.b16 %v2200
        %v2302 = vunpack.c.l.b16 %v2201
        %v2303 = vunpack.c.l.b16 %v2202
        %v2304 = vunpack.c.l.b16 %v2203
        %v2305 = vunpack.c.l.b16 %v2204
        %v2306 = vunpack.c.l.b16 %v2205
        %v2307 = vunpack.c.l.b16 %v2206
        %v2308 = vunpack.c.l.b16 %v2207
        %v2309 = vunpack.c.l.b16 %v2208
        %v2310 = vunpack.c.l.b16 %v2209
        %v2311 = vunpack.c.l.b16 %v2210
        %v2312 = vunpack.c.l.b16 %v2211
        %v2313 = vunpack.c.l.b16 %v2212
        %v2314 = vunpack.c.l.b16 %v2213
        %v2315 = vunpack.c.l.b16 %v2214
        %v2316 = vunpack.c.l.b16 %v2215
        %v2317 = vunpack.c.l.b16 %v2216
        %v2318 = vunpack.c.l.b16 %v2217
        %v2319 = vunpack.c.l.b16 %v2218
        %v2320 = vunpack.c.l.b16 %v2219
        %v2321 = vunpack.c.l.b16 %v2220
        %v2322 = vunpack.c.l.b16 %v2221
        %v2323 = vunpack.c.l.b16 %v2222
        %v2324 = vunpack.c.l.b16 %v2223
        %v2325 = vunpack.c.l.b16 %v2224
        %v2326 = vunpack.c.l.b16 %v2225
        %v2327 = vunpack.c.l.b16 %v2228
        %v2328 = vunpack.c.l.b16 %v2229
        %v2329 = vunpack.c.l.b16 %v2230
        %v2330 = vpack.c.b16 %v2283, %v2282
        %v2331 = vpack.c.b16 %v2285, %v2284
        %v2332 = vpack.c.b16 %v2287, %v2286
        %v2333 = vpack.c.b16 %v2289, %v2288
        %v2334 = vpack.c.b16 %v2291, %v2290
        %v2335 = vpack.c.b16 %v2293, %v2292
        %v2336 = vpack.c.b16 %v2295, %v2294
        %v2337 = vpack.c.b16 %v2297, %v2296
        %v2338 = vpack.c.b16 %v2299, %v2298
        %v2339 = vpack.c.b16 %v2301, %v2300
        %v2340 = vpack.c.b16 %v2303, %v2302
        %v2341 = vpack.c.b16 %v2305, %v2304
        %v2342 = vpack.c.b16 %v2307, %v2306
        %v2343 = vpack.c.b16 %v2309, %v2308
        %v2344 = vpack.c.b16 %v2311, %v2310
        %v2345 = vpack.c.b16 %v2313, %v2312
        %v2346 = vpack.c.b16 %v2315, %v2314
        %v2347 = vpack.c.b16 %v2317, %v2316
        %v2348 = vpack.c.b16 %v2319, %v2318
        %v2349 = vpack.c.b16 %v2321, %v2320
        %v2350 = vpack.c.b16 %v2323, %v2322
        %v2351 = vpack.c.b16 %v2325, %v2324
        %v2352 = vpack.c.b16 %v2327, %v2326
        %v2353 = vpack.c.b16 %v2329, %v2328
        %v2356 = vunpack.c.l.b16 %v2232
        %v2357 = vunpack.c.l.b16 %v2233
        %v2358 = vpack.c.b16 %v2357, %v2356
        %vm2359 = vcmask 97280
        %v2361 = vsel %vm2359, %v2330, 0
        %v2364 = vsel %vm2359, %v2331, 0
        %v2367 = vsel %vm2359, %v2332, 0
        %v2370 = vsel %vm2359, %v2333, 0
        %v2373 = vsel %vm2359, %v2334, 0
        %v2376 = vsel %vm2359, %v2335, 0
        %v2379 = vsel %vm2359, %v2336, 0
        %v2382 = vsel %vm2359, %v2337, 0
        %v2385 = vsel %vm2359, %v2338, 0
        %v2388 = vsel %vm2359, %v2339, 0
        %v2391 = vsel %vm2359, %v2340, 0
        %v2394 = vsel %vm2359, %v2341, 0
        %v2397 = vsel %vm2359, %v2342, 0
        %v2400 = vsel %vm2359, %v2343, 0
        %v2403 = vsel %vm2359, %v2344, 0
        %v2406 = vsel %vm2359, %v2345, 0
        %v2409 = vsel %vm2359, %v2346, 0
        %v2412 = vsel %vm2359, %v2347, 0
        %v2415 = vsel %vm2359, %v2348, 0
        %v2418 = vsel %vm2359, %v2349, 0
        %v2421 = vsel %vm2359, %v2350, 0
        %v2424 = vsel %vm2359, %v2351, 0
        %v2427 = vsel %vm2359, %v2352, 0
        %v2430 = vsel %vm2359, %v2353, 0
        %vm2432 = vcmask 1045504
        %v2434 = vsel %vm2432, %v2358, 0
        %2436 = vmatpush.bf16.msra.mxu0 0
        %2437 = vmatpush.bf16.msra.mxu0 0
        %2438 = vmatpush.bf16.msra.mxu0 0
        %2439 = vmatpush.bf16.msra.mxu0 0
        %2440 = vmatpush.bf16.msra.mxu0 0
        %2441 = vmatpush.bf16.msra.mxu0 0
        %2442 = vmatpush.bf16.msra.mxu0 0
        %2443 = vmatpush.bf16.msra.mxu0 %v2434
        %2444 = vmatmul.bf16.gmra.mxu0 %v2361
        %v2445 = vpop.f32.mrf.mxu0
        %v2446 = vadd.f32 0.0, %v2445
        %v2447 = vpop.f32.mrf.mxu0
        %v2448 = vadd.f32 0.0, %v2447
        %2449 = vmatmul.bf16.gmra.mxu0 %v2364
        %v2450 = vpop.f32.mrf.mxu0
        %v2451 = vadd.f32 0.0, %v2450
        %v2452 = vpop.f32.mrf.mxu0
        %v2453 = vadd.f32 0.0, %v2452
        %2454 = vmatmul.bf16.gmra.mxu0 %v2367
        %v2455 = vpop.f32.mrf.mxu0
        %v2456 = vadd.f32 0.0, %v2455
        %v2457 = vpop.f32.mrf.mxu0
        %v2458 = vadd.f32 0.0, %v2457
        %2459 = vmatmul.bf16.gmra.mxu0 %v2370
        %v2460 = vpop.f32.mrf.mxu0
        %v2461 = vadd.f32 0.0, %v2460
        %v2462 = vpop.f32.mrf.mxu0
        %v2463 = vadd.f32 0.0, %v2462
        %2464 = vmatmul.bf16.gmra.mxu0 %v2373
        %v2465 = vpop.f32.mrf.mxu0
        %v2466 = vadd.f32 0.0, %v2465
        %v2467 = vpop.f32.mrf.mxu0
        %v2468 = vadd.f32 0.0, %v2467
        %2469 = vmatmul.bf16.gmra.mxu0 %v2376
        %v2470 = vpop.f32.mrf.mxu0
        %v2471 = vadd.f32 0.0, %v2470
        %v2472 = vpop.f32.mrf.mxu0
        %v2473 = vadd.f32 0.0, %v2472
        %2474 = vmatmul.bf16.gmra.mxu0 %v2379
        %v2475 = vpop.f32.mrf.mxu0
        %v2476 = vadd.f32 0.0, %v2475
        %v2477 = vpop.f32.mrf.mxu0
        %v2478 = vadd.f32 0.0, %v2477
        %2479 = vmatmul.bf16.gmra.mxu0 %v2382
        %v2480 = vpop.f32.mrf.mxu0
        %v2481 = vadd.f32 0.0, %v2480
        %v2482 = vpop.f32.mrf.mxu0
        %v2483 = vadd.f32 0.0, %v2482
        %2484 = vmatmul.bf16.gmra.mxu0 %v2385
        %v2485 = vpop.f32.mrf.mxu0
        %v2486 = vadd.f32 0.0, %v2485
        %v2487 = vpop.f32.mrf.mxu0
        %v2488 = vadd.f32 0.0, %v2487
        %2489 = vmatmul.bf16.gmra.mxu0 %v2388
        %v2490 = vpop.f32.mrf.mxu0
        %v2491 = vadd.f32 0.0, %v2490
        %v2492 = vpop.f32.mrf.mxu0
        %v2493 = vadd.f32 0.0, %v2492
        %2494 = vmatmul.bf16.gmra.mxu0 %v2391
        %v2495 = vpop.f32.mrf.mxu0
        %v2496 = vadd.f32 0.0, %v2495
        %v2497 = vpop.f32.mrf.mxu0
        %v2498 = vadd.f32 0.0, %v2497
        %2499 = vmatmul.bf16.gmra.mxu0 %v2394
        %v2500 = vpop.f32.mrf.mxu0
        %v2501 = vadd.f32 0.0, %v2500
        %v2502 = vpop.f32.mrf.mxu0
        %v2503 = vadd.f32 0.0, %v2502
        %2504 = vmatmul.bf16.gmra.mxu0 %v2397
        %v2505 = vpop.f32.mrf.mxu0
        %v2506 = vadd.f32 0.0, %v2505
        %v2507 = vpop.f32.mrf.mxu0
        %v2508 = vadd.f32 0.0, %v2507
        %2509 = vmatmul.bf16.gmra.mxu0 %v2400
        %v2510 = vpop.f32.mrf.mxu0
        %v2511 = vadd.f32 0.0, %v2510
        %v2512 = vpop.f32.mrf.mxu0
        %v2513 = vadd.f32 0.0, %v2512
        %2514 = vmatmul.bf16.gmra.mxu0 %v2403
        %v2515 = vpop.f32.mrf.mxu0
        %v2516 = vadd.f32 0.0, %v2515
        %v2517 = vpop.f32.mrf.mxu0
        %v2518 = vadd.f32 0.0, %v2517
        %2519 = vmatmul.bf16.gmra.mxu0 %v2406
        %v2520 = vpop.f32.mrf.mxu0
        %v2521 = vadd.f32 0.0, %v2520
        %v2522 = vpop.f32.mrf.mxu0
        %v2523 = vadd.f32 0.0, %v2522
        %2524 = vmatmul.bf16.gmra.mxu0 %v2409
        %v2525 = vpop.f32.mrf.mxu0
        %v2526 = vadd.f32 0.0, %v2525
        %v2527 = vpop.f32.mrf.mxu0
        %v2528 = vadd.f32 0.0, %v2527
        %2529 = vmatmul.bf16.gmra.mxu0 %v2412
        %v2530 = vpop.f32.mrf.mxu0
        %v2531 = vadd.f32 0.0, %v2530
        %v2532 = vpop.f32.mrf.mxu0
        %v2533 = vadd.f32 0.0, %v2532
        %2534 = vmatmul.bf16.gmra.mxu0 %v2415
        %v2535 = vpop.f32.mrf.mxu0
        %v2536 = vadd.f32 0.0, %v2535
        %v2537 = vpop.f32.mrf.mxu0
        %v2538 = vadd.f32 0.0, %v2537
        %2539 = vmatmul.bf16.gmra.mxu0 %v2418
        %v2540 = vpop.f32.mrf.mxu0
        %v2541 = vadd.f32 0.0, %v2540
        %v2542 = vpop.f32.mrf.mxu0
        %v2543 = vadd.f32 0.0, %v2542
        %2544 = vmatmul.bf16.gmra.mxu0 %v2421
        %v2545 = vpop.f32.mrf.mxu0
        %v2546 = vadd.f32 0.0, %v2545
        %v2547 = vpop.f32.mrf.mxu0
        %v2548 = vadd.f32 0.0, %v2547
        %2549 = vmatmul.bf16.gmra.mxu0 %v2424
        %v2550 = vpop.f32.mrf.mxu0
        %v2551 = vadd.f32 0.0, %v2550
        %v2552 = vpop.f32.mrf.mxu0
        %v2553 = vadd.f32 0.0, %v2552
        %2554 = vmatmul.bf16.gmra.mxu0 %v2427
        %v2555 = vpop.f32.mrf.mxu0
        %v2556 = vadd.f32 0.0, %v2555
        %v2557 = vpop.f32.mrf.mxu0
        %v2558 = vadd.f32 0.0, %v2557
        %2559 = vmatmul.bf16.gmra.mxu0 %v2430
        %v2560 = vpop.f32.mrf.mxu0
        %v2561 = vadd.f32 0.0, %v2560
        %v2562 = vpop.f32.mrf.mxu0
        %v2563 = vadd.f32 0.0, %v2562
        %2564 = vdwg.mxu0
        %v2568 = vunpack.c.l.b16 %v2178
        %v2569 = vunpack.c.l.b16 %v2179
        %v2570 = vunpack.c.l.b16 %v2180
        %v2571 = vpack.c.b16 %v2569, %v2568
        %v2572 = vpack.c.b16 %v2282, %v2570
        %v2573 = vpack.c.b16 %v2284, %v2283
        %v2574 = vpack.c.b16 %v2286, %v2285
        %v2575 = vpack.c.b16 %v2288, %v2287
        %v2576 = vpack.c.b16 %v2290, %v2289
        %v2577 = vpack.c.b16 %v2292, %v2291
        %v2578 = vpack.c.b16 %v2294, %v2293
        %v2579 = vpack.c.b16 %v2296, %v2295
        %v2580 = vpack.c.b16 %v2298, %v2297
        %v2581 = vpack.c.b16 %v2300, %v2299
        %v2582 = vpack.c.b16 %v2302, %v2301
        %v2583 = vpack.c.b16 %v2304, %v2303
        %v2584 = vpack.c.b16 %v2306, %v2305
        %v2585 = vpack.c.b16 %v2308, %v2307
        %v2586 = vpack.c.b16 %v2310, %v2309
        %v2587 = vpack.c.b16 %v2312, %v2311
        %v2588 = vpack.c.b16 %v2314, %v2313
        %v2589 = vpack.c.b16 %v2316, %v2315
        %v2590 = vpack.c.b16 %v2318, %v2317
        %v2591 = vpack.c.b16 %v2320, %v2319
        %v2592 = vpack.c.b16 %v2322, %v2321
        %v2593 = vpack.c.b16 %v2324, %v2323
        %v2594 = vpack.c.b16 %v2326, %v2325
        %v2597 = vunpack.c.l.b16 %v2226
        %v2598 = vunpack.c.l.b16 %v2227
        %v2599 = vpack.c.b16 %v2598, %v2597
        %v2601 = vsel %vm2359, %v2571, 0
        %v2604 = vsel %vm2359, %v2572, 0
        %v2607 = vsel %vm2359, %v2573, 0
        %v2610 = vsel %vm2359, %v2574, 0
        %v2613 = vsel %vm2359, %v2575, 0
        %v2616 = vsel %vm2359, %v2576, 0
        %v2619 = vsel %vm2359, %v2577, 0
        %v2622 = vsel %vm2359, %v2578, 0
        %v2625 = vsel %vm2359, %v2579, 0
        %v2628 = vsel %vm2359, %v2580, 0
        %v2631 = vsel %vm2359, %v2581, 0
        %v2634 = vsel %vm2359, %v2582, 0
        %v2637 = vsel %vm2359, %v2583, 0
        %v2640 = vsel %vm2359, %v2584, 0
        %v2643 = vsel %vm2359, %v2585, 0
        %v2646 = vsel %vm2359, %v2586, 0
        %v2649 = vsel %vm2359, %v2587, 0
        %v2652 = vsel %vm2359, %v2588, 0
        %v2655 = vsel %vm2359, %v2589, 0
        %v2658 = vsel %vm2359, %v2590, 0
        %v2661 = vsel %vm2359, %v2591, 0
        %v2664 = vsel %vm2359, %v2592, 0
        %v2667 = vsel %vm2359, %v2593, 0
        %v2670 = vsel %vm2359, %v2594, 0
        %v2673 = vsel %vm2432, %v2599, 0
        %2675 = vmatpush.bf16.msra.mxu0 0
        %2676 = vmatpush.bf16.msra.mxu0 0
        %2677 = vmatpush.bf16.msra.mxu0 0
        %2678 = vmatpush.bf16.msra.mxu0 0
        %2679 = vmatpush.bf16.msra.mxu0 0
        %2680 = vmatpush.bf16.msra.mxu0 0
        %2681 = vmatpush.bf16.msra.mxu0 0
        %2682 = vmatpush.bf16.msra.mxu0 %v2673
        %2683 = vmatmul.bf16.gmra.mxu0 %v2601
        %v2684 = vpop.f32.mrf.mxu0
        %v2685 = vadd.f32 %v2446, %v2684
        %v2686 = vpop.f32.mrf.mxu0
        %v2687 = vadd.f32 %v2448, %v2686
        %2688 = vmatmul.bf16.gmra.mxu0 %v2604
        %v2689 = vpop.f32.mrf.mxu0
        %v2690 = vadd.f32 %v2451, %v2689
        %v2691 = vpop.f32.mrf.mxu0
        %v2692 = vadd.f32 %v2453, %v2691
        %2693 = vmatmul.bf16.gmra.mxu0 %v2607
        %v2694 = vpop.f32.mrf.mxu0
        %v2695 = vadd.f32 %v2456, %v2694
        %v2696 = vpop.f32.mrf.mxu0
        %v2697 = vadd.f32 %v2458, %v2696
        %2698 = vmatmul.bf16.gmra.mxu0 %v2610
        %v2699 = vpop.f32.mrf.mxu0
        %v2700 = vadd.f32 %v2461, %v2699
        %v2701 = vpop.f32.mrf.mxu0
        %v2702 = vadd.f32 %v2463, %v2701
        %2703 = vmatmul.bf16.gmra.mxu0 %v2613
        %v2704 = vpop.f32.mrf.mxu0
        %v2705 = vadd.f32 %v2466, %v2704
        %v2706 = vpop.f32.mrf.mxu0
        %v2707 = vadd.f32 %v2468, %v2706
        %2708 = vmatmul.bf16.gmra.mxu0 %v2616
        %v2709 = vpop.f32.mrf.mxu0
        %v2710 = vadd.f32 %v2471, %v2709
        %v2711 = vpop.f32.mrf.mxu0
        %v2712 = vadd.f32 %v2473, %v2711
        %2713 = vmatmul.bf16.gmra.mxu0 %v2619
        %v2714 = vpop.f32.mrf.mxu0
        %v2715 = vadd.f32 %v2476, %v2714
        %v2716 = vpop.f32.mrf.mxu0
        %v2717 = vadd.f32 %v2478, %v2716
        %2718 = vmatmul.bf16.gmra.mxu0 %v2622
        %v2719 = vpop.f32.mrf.mxu0
        %v2720 = vadd.f32 %v2481, %v2719
        %v2721 = vpop.f32.mrf.mxu0
        %v2722 = vadd.f32 %v2483, %v2721
        %2723 = vmatmul.bf16.gmra.mxu0 %v2625
        %v2724 = vpop.f32.mrf.mxu0
        %v2725 = vadd.f32 %v2486, %v2724
        %v2726 = vpop.f32.mrf.mxu0
        %v2727 = vadd.f32 %v2488, %v2726
        %2728 = vmatmul.bf16.gmra.mxu0 %v2628
        %v2729 = vpop.f32.mrf.mxu0
        %v2730 = vadd.f32 %v2491, %v2729
        %v2731 = vpop.f32.mrf.mxu0
        %v2732 = vadd.f32 %v2493, %v2731
        %2733 = vmatmul.bf16.gmra.mxu0 %v2631
        %v2734 = vpop.f32.mrf.mxu0
        %v2735 = vadd.f32 %v2496, %v2734
        %v2736 = vpop.f32.mrf.mxu0
        %v2737 = vadd.f32 %v2498, %v2736
        %2738 = vmatmul.bf16.gmra.mxu0 %v2634
        %v2739 = vpop.f32.mrf.mxu0
        %v2740 = vadd.f32 %v2501, %v2739
        %v2741 = vpop.f32.mrf.mxu0
        %v2742 = vadd.f32 %v2503, %v2741
        %2743 = vmatmul.bf16.gmra.mxu0 %v2637
        %v2744 = vpop.f32.mrf.mxu0
        %v2745 = vadd.f32 %v2506, %v2744
        %v2746 = vpop.f32.mrf.mxu0
        %v2747 = vadd.f32 %v2508, %v2746
        %2748 = vmatmul.bf16.gmra.mxu0 %v2640
        %v2749 = vpop.f32.mrf.mxu0
        %v2750 = vadd.f32 %v2511, %v2749
        %v2751 = vpop.f32.mrf.mxu0
        %v2752 = vadd.f32 %v2513, %v2751
        %2753 = vmatmul.bf16.gmra.mxu0 %v2643
        %v2754 = vpop.f32.mrf.mxu0
        %v2755 = vadd.f32 %v2516, %v2754
        %v2756 = vpop.f32.mrf.mxu0
        %v2757 = vadd.f32 %v2518, %v2756
        %2758 = vmatmul.bf16.gmra.mxu0 %v2646
        %v2759 = vpop.f32.mrf.mxu0
        %v2760 = vadd.f32 %v2521, %v2759
        %v2761 = vpop.f32.mrf.mxu0
        %v2762 = vadd.f32 %v2523, %v2761
        %2763 = vmatmul.bf16.gmra.mxu0 %v2649
        %v2764 = vpop.f32.mrf.mxu0
        %v2765 = vadd.f32 %v2526, %v2764
        %v2766 = vpop.f32.mrf.mxu0
        %v2767 = vadd.f32 %v2528, %v2766
        %2768 = vmatmul.bf16.gmra.mxu0 %v2652
        %v2769 = vpop.f32.mrf.mxu0
        %v2770 = vadd.f32 %v2531, %v2769
        %v2771 = vpop.f32.mrf.mxu0
        %v2772 = vadd.f32 %v2533, %v2771
        %2773 = vmatmul.bf16.gmra.mxu0 %v2655
        %v2774 = vpop.f32.mrf.mxu0
        %v2775 = vadd.f32 %v2536, %v2774
        %v2776 = vpop.f32.mrf.mxu0
        %v2777 = vadd.f32 %v2538, %v2776
        %2778 = vmatmul.bf16.gmra.mxu0 %v2658
        %v2779 = vpop.f32.mrf.mxu0
        %v2780 = vadd.f32 %v2541, %v2779
        %v2781 = vpop.f32.mrf.mxu0
        %v2782 = vadd.f32 %v2543, %v2781
        %2783 = vmatmul.bf16.gmra.mxu0 %v2661
        %v2784 = vpop.f32.mrf.mxu0
        %v2785 = vadd.f32 %v2546, %v2784
        %v2786 = vpop.f32.mrf.mxu0
        %v2787 = vadd.f32 %v2548, %v2786
        %2788 = vmatmul.bf16.gmra.mxu0 %v2664
        %v2789 = vpop.f32.mrf.mxu0
        %v2790 = vadd.f32 %v2551, %v2789
        %v2791 = vpop.f32.mrf.mxu0
        %v2792 = vadd.f32 %v2553, %v2791
        %2793 = vmatmul.bf16.gmra.mxu0 %v2667
        %v2794 = vpop.f32.mrf.mxu0
        %v2795 = vadd.f32 %v2556, %v2794
        %v2796 = vpop.f32.mrf.mxu0
        %v2797 = vadd.f32 %v2558, %v2796
        %2798 = vmatmul.bf16.gmra.mxu0 %v2670
        %v2799 = vpop.f32.mrf.mxu0
        %v2800 = vadd.f32 %v2561, %v2799
        %v2801 = vpop.f32.mrf.mxu0
        %v2802 = vadd.f32 %v2563, %v2801
        %2803 = vdwg.mxu0
        %v2804 = vld [vmem:[%s334 + $0x18] sm:$0xf]
        %v2805 = vld [vmem:[%s334 + $0x1c] sm:$0xf]
        %v2806 = vld [vmem:[%s334 + $0x20] sm:$0xf]
        %v2807 = vld [vmem:[%s334 + $0x24] sm:$0xf]
        %v2808 = vld [vmem:[%s334 + $0x28] sm:$0xf]
        %v2809 = vld [vmem:[%s334 + $0x2c] sm:$0xf]
        %v2810 = vld [vmem:[%s334 + $0x30] sm:$0xf]
        %v2811 = vld [vmem:[%s334 + $0x34] sm:$0xf]
        %v2812 = vld [vmem:[%s334 + $0x38] sm:$0xf]
        %v2813 = vld [vmem:[%s334 + $0x3c] sm:$0xf]
        %v2814 = vld [vmem:[%s334 + $0x40] sm:$0xf]
        %v2815 = vld [vmem:[%s334 + $0x44] sm:$0xf]
        %v2816 = vld [vmem:[%s334 + $0x48] sm:$0xf]
        %v2817 = vld [vmem:[%s334 + $0x4c] sm:$0xf]
        %v2818 = vld [vmem:[%s334 + $0x50] sm:$0xf]
        %v2819 = vld [vmem:[%s334 + $0x54] sm:$0xf]
        %v2820 = vld [vmem:[%s334 + $0x58] sm:$0xf]
        %v2821 = vld [vmem:[%s334 + $0x5c] sm:$0xf]
        %v2822 = vld [vmem:[%s334 + $0x60] sm:$0xf]
        %v2823 = vld [vmem:[%s334 + $0x64] sm:$0xf]
        %v2824 = vld [vmem:[%s334 + $0x68] sm:$0xf]
        %v2825 = vld [vmem:[%s334 + $0x6c] sm:$0xf]
        %v2826 = vld [vmem:[%s334 + $0x70] sm:$0xf]
        %v2827 = vld [vmem:[%s334 + $0x74] sm:$0xf]
        %v2828 = vld [vmem:[%s334 + $0x78] sm:$0xf]
        %v2829 = vld [vmem:[%s334 + $0x7c] sm:$0xf]
        %v2830 = vld [vmem:[%s334 + $0x80] sm:$0xf]
        %v2831 = vld [vmem:[%s334 + $0x84] sm:$0xf]
        %v2832 = vld [vmem:[%s334 + $0x88] sm:$0xf]
        %v2833 = vld [vmem:[%s334 + $0x8c] sm:$0xf]
        %v2834 = vld [vmem:[%s334 + $0x90] sm:$0xf]
        %v2835 = vld [vmem:[%s334 + $0x94] sm:$0xf]
        %v2836 = vld [vmem:[%s334 + $0x98] sm:$0xf]
        %v2837 = vld [vmem:[%s334 + $0x9c] sm:$0xf]
        %v2838 = vld [vmem:[%s334 + $0xa0] sm:$0xf]
        %v2839 = vld [vmem:[%s334 + $0xa4] sm:$0xf]
        %v2840 = vld [vmem:[%s334 + $0xa8] sm:$0xf]
        %v2841 = vld [vmem:[%s334 + $0xac] sm:$0xf]
        %v2842 = vld [vmem:[%s334 + $0xb0] sm:$0xf]
        %v2843 = vld [vmem:[%s334 + $0xb4] sm:$0xf]
        %v2844 = vld [vmem:[%s334 + $0xb8] sm:$0xf]
        %v2845 = vld [vmem:[%s334 + $0xbc] sm:$0xf]
        %v2846 = vld [vmem:[%s334 + $0xc0] sm:$0xf]
        %v2847 = vld [vmem:[%s334 + $0xc4] sm:$0xf]
        %v2848 = vld [vmem:[%s334 + $0xc8] sm:$0xf]
        %v2849 = vld [vmem:[%s334 + $0xcc] sm:$0xf]
        %v2850 = vld [vmem:[%s334 + $0xd0] sm:$0xf]
        %v2851 = vld [vmem:[%s334 + $0xd4] sm:$0xf]
        %s2852 = scalar_lea.vmem %s1, 16
        %v2853 = vld [vmem:[%s2852] sm:$0xf]
        %v2854 = vld [vmem:[%s2852 + $0x4] sm:$0x3]
        %v2903 = vunpack.c.l.b16 %v2804
        %v2904 = vunpack.c.l.b16 %v2805
        %v2905 = vunpack.c.l.b16 %v2806
        %v2906 = vunpack.c.l.b16 %v2807
        %v2907 = vunpack.c.l.b16 %v2808
        %v2908 = vunpack.c.l.b16 %v2809
        %v2909 = vunpack.c.l.b16 %v2810
        %v2910 = vunpack.c.l.b16 %v2811
        %v2911 = vunpack.c.l.b16 %v2812
        %v2912 = vunpack.c.l.b16 %v2813
        %v2913 = vunpack.c.l.b16 %v2814
        %v2914 = vunpack.c.l.b16 %v2815
        %v2915 = vunpack.c.l.b16 %v2816
        %v2916 = vunpack.c.l.b16 %v2817
        %v2917 = vunpack.c.l.b16 %v2818
        %v2918 = vunpack.c.l.b16 %v2819
        %v2919 = vunpack.c.l.b16 %v2820
        %v2920 = vunpack.c.l.b16 %v2821
        %v2921 = vunpack.c.l.b16 %v2822
        %v2922 = vunpack.c.l.b16 %v2823
        %v2923 = vunpack.c.l.b16 %v2824
        %v2924 = vunpack.c.l.b16 %v2825
        %v2925 = vunpack.c.l.b16 %v2826
        %v2926 = vunpack.c.l.b16 %v2827
        %v2927 = vunpack.c.l.b16 %v2828
        %v2928 = vunpack.c.l.b16 %v2829
        %v2929 = vunpack.c.l.b16 %v2830
        %v2930 = vunpack.c.l.b16 %v2831
        %v2931 = vunpack.c.l.b16 %v2832
        %v2932 = vunpack.c.l.b16 %v2833
        %v2933 = vunpack.c.l.b16 %v2834
        %v2934 = vunpack.c.l.b16 %v2835
        %v2935 = vunpack.c.l.b16 %v2836
        %v2936 = vunpack.c.l.b16 %v2837
        %v2937 = vunpack.c.l.b16 %v2838
        %v2938 = vunpack.c.l.b16 %v2839
        %v2939 = vunpack.c.l.b16 %v2840
        %v2940 = vunpack.c.l.b16 %v2841
        %v2941 = vunpack.c.l.b16 %v2842
        %v2942 = vunpack.c.l.b16 %v2843
        %v2943 = vunpack.c.l.b16 %v2844
        %v2944 = vunpack.c.l.b16 %v2845
        %v2945 = vunpack.c.l.b16 %v2846
        %v2946 = vunpack.c.l.b16 %v2847
        %v2947 = vunpack.c.l.b16 %v2848
        %v2948 = vunpack.c.l.b16 %v2849
        %v2949 = vunpack.c.l.b16 %v2850
        %v2950 = vunpack.c.l.b16 %v2851
        %v2951 = vpack.c.b16 %v2904, %v2903
        %v2952 = vpack.c.b16 %v2906, %v2905
        %v2953 = vpack.c.b16 %v2908, %v2907
        %v2954 = vpack.c.b16 %v2910, %v2909
        %v2955 = vpack.c.b16 %v2912, %v2911
        %v2956 = vpack.c.b16 %v2914, %v2913
        %v2957 = vpack.c.b16 %v2916, %v2915
        %v2958 = vpack.c.b16 %v2918, %v2917
        %v2959 = vpack.c.b16 %v2920, %v2919
        %v2960 = vpack.c.b16 %v2922, %v2921
        %v2961 = vpack.c.b16 %v2924, %v2923
        %v2962 = vpack.c.b16 %v2926, %v2925
        %v2963 = vpack.c.b16 %v2928, %v2927
        %v2964 = vpack.c.b16 %v2930, %v2929
        %v2965 = vpack.c.b16 %v2932, %v2931
        %v2966 = vpack.c.b16 %v2934, %v2933
        %v2967 = vpack.c.b16 %v2936, %v2935
        %v2968 = vpack.c.b16 %v2938, %v2937
        %v2969 = vpack.c.b16 %v2940, %v2939
        %v2970 = vpack.c.b16 %v2942, %v2941
        %v2971 = vpack.c.b16 %v2944, %v2943
        %v2972 = vpack.c.b16 %v2946, %v2945
        %v2973 = vpack.c.b16 %v2948, %v2947
        %v2974 = vpack.c.b16 %v2950, %v2949
        %v2977 = vunpack.c.l.b16 %v2853
        %v2978 = vunpack.c.l.b16 %v2854
        %v2979 = vpack.c.b16 %v2978, %v2977
        %v2981 = vsel %vm2359, %v2951, 0
        %v2984 = vsel %vm2359, %v2952, 0
        %v2987 = vsel %vm2359, %v2953, 0
        %v2990 = vsel %vm2359, %v2954, 0
        %v2993 = vsel %vm2359, %v2955, 0
        %v2996 = vsel %vm2359, %v2956, 0
        %v2999 = vsel %vm2359, %v2957, 0
        %v3002 = vsel %vm2359, %v2958, 0
        %v3005 = vsel %vm2359, %v2959, 0
        %v3008 = vsel %vm2359, %v2960, 0
        %v3011 = vsel %vm2359, %v2961, 0
        %v3014 = vsel %vm2359, %v2962, 0
        %v3017 = vsel %vm2359, %v2963, 0
        %v3020 = vsel %vm2359, %v2964, 0
        %v3023 = vsel %vm2359, %v2965, 0
        %v3026 = vsel %vm2359, %v2966, 0
        %v3029 = vsel %vm2359, %v2967, 0
        %v3032 = vsel %vm2359, %v2968, 0
        %v3035 = vsel %vm2359, %v2969, 0
        %v3038 = vsel %vm2359, %v2970, 0
        %v3041 = vsel %vm2359, %v2971, 0
        %v3044 = vsel %vm2359, %v2972, 0
        %v3047 = vsel %vm2359, %v2973, 0
        %v3050 = vsel %vm2359, %v2974, 0
        %v3053 = vsel %vm2432, %v2979, 0
        %3055 = vmatpush.bf16.msra.mxu0 0
        %3056 = vmatpush.bf16.msra.mxu0 0
        %3057 = vmatpush.bf16.msra.mxu0 0
        %3058 = vmatpush.bf16.msra.mxu0 0
        %3059 = vmatpush.bf16.msra.mxu0 0
        %3060 = vmatpush.bf16.msra.mxu0 0
        %3061 = vmatpush.bf16.msra.mxu0 0
        %3062 = vmatpush.bf16.msra.mxu0 %v3053
        %3063 = vmatmul.bf16.gmra.mxu0 %v2981
        %v3064 = vpop.f32.mrf.mxu0
        %v3065 = vadd.f32 0.0, %v3064
        %v3066 = vpop.f32.mrf.mxu0
        %v3067 = vadd.f32 0.0, %v3066
        %3068 = vmatmul.bf16.gmra.mxu0 %v2984
        %v3069 = vpop.f32.mrf.mxu0
        %v3070 = vadd.f32 0.0, %v3069
        %v3071 = vpop.f32.mrf.mxu0
        %v3072 = vadd.f32 0.0, %v3071
        %3073 = vmatmul.bf16.gmra.mxu0 %v2987
        %v3074 = vpop.f32.mrf.mxu0
        %v3075 = vadd.f32 0.0, %v3074
        %v3076 = vpop.f32.mrf.mxu0
        %v3077 = vadd.f32 0.0, %v3076
        %3078 = vmatmul.bf16.gmra.mxu0 %v2990
        %v3079 = vpop.f32.mrf.mxu0
        %v3080 = vadd.f32 0.0, %v3079
        %v3081 = vpop.f32.mrf.mxu0
        %v3082 = vadd.f32 0.0, %v3081
        %3083 = vmatmul.bf16.gmra.mxu0 %v2993
        %v3084 = vpop.f32.mrf.mxu0
        %v3085 = vadd.f32 0.0, %v3084
        %v3086 = vpop.f32.mrf.mxu0
        %v3087 = vadd.f32 0.0, %v3086
        %3088 = vmatmul.bf16.gmra.mxu0 %v2996
        %v3089 = vpop.f32.mrf.mxu0
        %v3090 = vadd.f32 0.0, %v3089
        %v3091 = vpop.f32.mrf.mxu0
        %v3092 = vadd.f32 0.0, %v3091
        %3093 = vmatmul.bf16.gmra.mxu0 %v2999
        %v3094 = vpop.f32.mrf.mxu0
        %v3095 = vadd.f32 0.0, %v3094
        %v3096 = vpop.f32.mrf.mxu0
        %v3097 = vadd.f32 0.0, %v3096
        %3098 = vmatmul.bf16.gmra.mxu0 %v3002
        %v3099 = vpop.f32.mrf.mxu0
        %v3100 = vadd.f32 0.0, %v3099
        %v3101 = vpop.f32.mrf.mxu0
        %v3102 = vadd.f32 0.0, %v3101
        %3103 = vmatmul.bf16.gmra.mxu0 %v3005
        %v3104 = vpop.f32.mrf.mxu0
        %v3105 = vadd.f32 0.0, %v3104
        %v3106 = vpop.f32.mrf.mxu0
        %v3107 = vadd.f32 0.0, %v3106
        %3108 = vmatmul.bf16.gmra.mxu0 %v3008
        %v3109 = vpop.f32.mrf.mxu0
        %v3110 = vadd.f32 0.0, %v3109
        %v3111 = vpop.f32.mrf.mxu0
        %v3112 = vadd.f32 0.0, %v3111
        %3113 = vmatmul.bf16.gmra.mxu0 %v3011
        %v3114 = vpop.f32.mrf.mxu0
        %v3115 = vadd.f32 0.0, %v3114
        %v3116 = vpop.f32.mrf.mxu0
        %v3117 = vadd.f32 0.0, %v3116
        %3118 = vmatmul.bf16.gmra.mxu0 %v3014
        %v3119 = vpop.f32.mrf.mxu0
        %v3120 = vadd.f32 0.0, %v3119
        %v3121 = vpop.f32.mrf.mxu0
        %v3122 = vadd.f32 0.0, %v3121
        %3123 = vmatmul.bf16.gmra.mxu0 %v3017
        %v3124 = vpop.f32.mrf.mxu0
        %v3125 = vadd.f32 0.0, %v3124
        %v3126 = vpop.f32.mrf.mxu0
        %v3127 = vadd.f32 0.0, %v3126
        %3128 = vmatmul.bf16.gmra.mxu0 %v3020
        %v3129 = vpop.f32.mrf.mxu0
        %v3130 = vadd.f32 0.0, %v3129
        %v3131 = vpop.f32.mrf.mxu0
        %v3132 = vadd.f32 0.0, %v3131
        %3133 = vmatmul.bf16.gmra.mxu0 %v3023
        %v3134 = vpop.f32.mrf.mxu0
        %v3135 = vadd.f32 0.0, %v3134
        %v3136 = vpop.f32.mrf.mxu0
        %v3137 = vadd.f32 0.0, %v3136
        %3138 = vmatmul.bf16.gmra.mxu0 %v3026
        %v3139 = vpop.f32.mrf.mxu0
        %v3140 = vadd.f32 0.0, %v3139
        %v3141 = vpop.f32.mrf.mxu0
        %v3142 = vadd.f32 0.0, %v3141
        %3143 = vmatmul.bf16.gmra.mxu0 %v3029
        %v3144 = vpop.f32.mrf.mxu0
        %v3145 = vadd.f32 0.0, %v3144
        %v3146 = vpop.f32.mrf.mxu0
        %v3147 = vadd.f32 0.0, %v3146
        %3148 = vmatmul.bf16.gmra.mxu0 %v3032
        %v3149 = vpop.f32.mrf.mxu0
        %v3150 = vadd.f32 0.0, %v3149
        %v3151 = vpop.f32.mrf.mxu0
        %v3152 = vadd.f32 0.0, %v3151
        %3153 = vmatmul.bf16.gmra.mxu0 %v3035
        %v3154 = vpop.f32.mrf.mxu0
        %v3155 = vadd.f32 0.0, %v3154
        %v3156 = vpop.f32.mrf.mxu0
        %v3157 = vadd.f32 0.0, %v3156
        %3158 = vmatmul.bf16.gmra.mxu0 %v3038
        %v3159 = vpop.f32.mrf.mxu0
        %v3160 = vadd.f32 0.0, %v3159
        %v3161 = vpop.f32.mrf.mxu0
        %v3162 = vadd.f32 0.0, %v3161
        %3163 = vmatmul.bf16.gmra.mxu0 %v3041
        %v3164 = vpop.f32.mrf.mxu0
        %v3165 = vadd.f32 0.0, %v3164
        %v3166 = vpop.f32.mrf.mxu0
        %v3167 = vadd.f32 0.0, %v3166
        %3168 = vmatmul.bf16.gmra.mxu0 %v3044
        %v3169 = vpop.f32.mrf.mxu0
        %v3170 = vadd.f32 0.0, %v3169
        %v3171 = vpop.f32.mrf.mxu0
        %v3172 = vadd.f32 0.0, %v3171
        %3173 = vmatmul.bf16.gmra.mxu0 %v3047
        %v3174 = vpop.f32.mrf.mxu0
        %v3175 = vadd.f32 0.0, %v3174
        %v3176 = vpop.f32.mrf.mxu0
        %v3177 = vadd.f32 0.0, %v3176
        %3178 = vmatmul.bf16.gmra.mxu0 %v3050
        %v3179 = vpop.f32.mrf.mxu0
        %v3180 = vadd.f32 0.0, %v3179
        %v3181 = vpop.f32.mrf.mxu0
        %v3182 = vadd.f32 0.0, %v3181
        %3183 = vdwg.mxu0
        %v3184 = vadd.f32 %v2685, %v3065
        %v3185 = vadd.f32 %v2687, %v3067
        %v3186 = vadd.f32 %v2690, %v3070
        %v3187 = vadd.f32 %v2692, %v3072
        %v3188 = vadd.f32 %v2695, %v3075
        %v3189 = vadd.f32 %v2697, %v3077
        %v3190 = vadd.f32 %v2700, %v3080
        %v3191 = vadd.f32 %v2702, %v3082
        %v3192 = vadd.f32 %v2705, %v3085
        %v3193 = vadd.f32 %v2707, %v3087
        %v3194 = vadd.f32 %v2710, %v3090
        %v3195 = vadd.f32 %v2712, %v3092
        %v3196 = vadd.f32 %v2715, %v3095
        %v3197 = vadd.f32 %v2717, %v3097
        %v3198 = vadd.f32 %v2720, %v3100
        %v3199 = vadd.f32 %v2722, %v3102
        %v3200 = vadd.f32 %v2725, %v3105
        %v3201 = vadd.f32 %v2727, %v3107
        %v3202 = vadd.f32 %v2730, %v3110
        %v3203 = vadd.f32 %v2732, %v3112
        %v3204 = vadd.f32 %v2735, %v3115
        %v3205 = vadd.f32 %v2737, %v3117
        %v3206 = vadd.f32 %v2740, %v3120
        %v3207 = vadd.f32 %v2742, %v3122
        %v3208 = vadd.f32 %v2745, %v3125
        %v3209 = vadd.f32 %v2747, %v3127
        %v3210 = vadd.f32 %v2750, %v3130
        %v3211 = vadd.f32 %v2752, %v3132
        %v3212 = vadd.f32 %v2755, %v3135
        %v3213 = vadd.f32 %v2757, %v3137
        %v3214 = vadd.f32 %v2760, %v3140
        %v3215 = vadd.f32 %v2762, %v3142
        %v3216 = vadd.f32 %v2765, %v3145
        %v3217 = vadd.f32 %v2767, %v3147
        %v3218 = vadd.f32 %v2770, %v3150
        %v3219 = vadd.f32 %v2772, %v3152
        %v3220 = vadd.f32 %v2775, %v3155
        %v3221 = vadd.f32 %v2777, %v3157
        %v3222 = vadd.f32 %v2780, %v3160
        %v3223 = vadd.f32 %v2782, %v3162
        %v3224 = vadd.f32 %v2785, %v3165
        %v3225 = vadd.f32 %v2787, %v3167
        %v3226 = vadd.f32 %v2790, %v3170
        %v3227 = vadd.f32 %v2792, %v3172
        %v3228 = vadd.f32 %v2795, %v3175
        %v3229 = vadd.f32 %v2797, %v3177
        %v3230 = vadd.f32 %v2800, %v3180
        %v3231 = vadd.f32 %v2802, %v3182
        %v3232 = vperm.slane %v2163, 0
        %v3233 = vmul.f32 %v3184, %v3232
        %v3234 = vmul.f32 %v3185, %v3232
        %v3235 = vmul.f32 %v3186, %v3232
        %v3236 = vmul.f32 %v3187, %v3232
        %v3237 = vmul.f32 %v3188, %v3232
        %v3238 = vmul.f32 %v3189, %v3232
        %v3239 = vmul.f32 %v3190, %v3232
        %v3240 = vmul.f32 %v3191, %v3232
        %v3241 = vmul.f32 %v3192, %v3232
        %v3242 = vmul.f32 %v3193, %v3232
        %v3243 = vmul.f32 %v3194, %v3232
        %v3244 = vmul.f32 %v3195, %v3232
        %v3245 = vmul.f32 %v3196, %v3232
        %v3246 = vmul.f32 %v3197, %v3232
        %v3247 = vmul.f32 %v3198, %v3232
        %v3248 = vmul.f32 %v3199, %v3232
        %v3249 = vmul.f32 %v3200, %v3232
        %v3250 = vmul.f32 %v3201, %v3232
        %v3251 = vmul.f32 %v3202, %v3232
        %v3252 = vmul.f32 %v3203, %v3232
        %v3253 = vmul.f32 %v3204, %v3232
        %v3254 = vmul.f32 %v3205, %v3232
        %v3255 = vmul.f32 %v3206, %v3232
        %v3256 = vmul.f32 %v3207, %v3232
        %v3257 = vmul.f32 %v3208, %v3232
        %v3258 = vmul.f32 %v3209, %v3232
        %v3259 = vmul.f32 %v3210, %v3232
        %v3260 = vmul.f32 %v3211, %v3232
        %v3261 = vmul.f32 %v3212, %v3232
        %v3262 = vmul.f32 %v3213, %v3232
        %v3263 = vmul.f32 %v3214, %v3232
        %v3264 = vmul.f32 %v3215, %v3232
        %v3265 = vmul.f32 %v3216, %v3232
        %v3266 = vmul.f32 %v3217, %v3232
        %v3267 = vmul.f32 %v3218, %v3232
        %v3268 = vmul.f32 %v3219, %v3232
        %v3269 = vmul.f32 %v3220, %v3232
        %v3270 = vmul.f32 %v3221, %v3232
        %v3271 = vmul.f32 %v3222, %v3232
        %v3272 = vmul.f32 %v3223, %v3232
        %v3273 = vmul.f32 %v3224, %v3232
        %v3274 = vmul.f32 %v3225, %v3232
        %v3275 = vmul.f32 %v3226, %v3232
        %v3276 = vmul.f32 %v3227, %v3232
        %v3277 = vmul.f32 %v3228, %v3232
        %v3278 = vmul.f32 %v3229, %v3232
        %v3279 = vmul.f32 %v3230, %v3232
        %v3280 = vmul.f32 %v3231, %v3232
        %v3281 = vperm.slane %v2164, 0
        %v3282 = vadd.f32 %v3233, %v3281
        %v3283 = vadd.f32 %v3234, %v3281
        %v3284 = vadd.f32 %v3235, %v3281
        %v3285 = vadd.f32 %v3236, %v3281
        %v3286 = vadd.f32 %v3237, %v3281
        %v3287 = vadd.f32 %v3238, %v3281
        %v3288 = vadd.f32 %v3239, %v3281
        %v3289 = vadd.f32 %v3240, %v3281
        %v3290 = vadd.f32 %v3241, %v3281
        %v3291 = vadd.f32 %v3242, %v3281
        %v3292 = vadd.f32 %v3243, %v3281
        %v3293 = vadd.f32 %v3244, %v3281
        %v3294 = vadd.f32 %v3245, %v3281
        %v3295 = vadd.f32 %v3246, %v3281
        %v3296 = vadd.f32 %v3247, %v3281
        %v3297 = vadd.f32 %v3248, %v3281
        %v3298 = vadd.f32 %v3249, %v3281
        %v3299 = vadd.f32 %v3250, %v3281
        %v3300 = vadd.f32 %v3251, %v3281
        %v3301 = vadd.f32 %v3252, %v3281
        %v3302 = vadd.f32 %v3253, %v3281
        %v3303 = vadd.f32 %v3254, %v3281
        %v3304 = vadd.f32 %v3255, %v3281
        %v3305 = vadd.f32 %v3256, %v3281
        %v3306 = vadd.f32 %v3257, %v3281
        %v3307 = vadd.f32 %v3258, %v3281
        %v3308 = vadd.f32 %v3259, %v3281
        %v3309 = vadd.f32 %v3260, %v3281
        %v3310 = vadd.f32 %v3261, %v3281
        %v3311 = vadd.f32 %v3262, %v3281
        %v3312 = vadd.f32 %v3263, %v3281
        %v3313 = vadd.f32 %v3264, %v3281
        %v3314 = vadd.f32 %v3265, %v3281
        %v3315 = vadd.f32 %v3266, %v3281
        %v3316 = vadd.f32 %v3267, %v3281
        %v3317 = vadd.f32 %v3268, %v3281
        %v3318 = vadd.f32 %v3269, %v3281
        %v3319 = vadd.f32 %v3270, %v3281
        %v3320 = vadd.f32 %v3271, %v3281
        %v3321 = vadd.f32 %v3272, %v3281
        %v3322 = vadd.f32 %v3273, %v3281
        %v3323 = vadd.f32 %v3274, %v3281
        %v3324 = vadd.f32 %v3275, %v3281
        %v3325 = vadd.f32 %v3276, %v3281
        %v3326 = vadd.f32 %v3277, %v3281
        %v3327 = vadd.f32 %v3278, %v3281
        %v3328 = vadd.f32 %v3279, %v3281
        %v3329 = vadd.f32 %v3280, %v3281
        %v3330 = vmax.f32 %v3282, 0.0
        %v3331 = vmax.f32 %v3283, 0.0
        %v3332 = vmax.f32 %v3284, 0.0
        %v3333 = vmax.f32 %v3285, 0.0
        %v3334 = vmax.f32 %v3286, 0.0
        %v3335 = vmax.f32 %v3287, 0.0
        %v3336 = vmax.f32 %v3288, 0.0
        %v3337 = vmax.f32 %v3289, 0.0
        %v3338 = vmax.f32 %v3290, 0.0
        %v3339 = vmax.f32 %v3291, 0.0
        %v3340 = vmax.f32 %v3292, 0.0
        %v3341 = vmax.f32 %v3293, 0.0
        %v3342 = vmax.f32 %v3294, 0.0
        %v3343 = vmax.f32 %v3295, 0.0
        %v3344 = vmax.f32 %v3296, 0.0
        %v3345 = vmax.f32 %v3297, 0.0
        %v3346 = vmax.f32 %v3298, 0.0
        %v3347 = vmax.f32 %v3299, 0.0
        %v3348 = vmax.f32 %v3300, 0.0
        %v3349 = vmax.f32 %v3301, 0.0
        %v3350 = vmax.f32 %v3302, 0.0
        %v3351 = vmax.f32 %v3303, 0.0
        %v3352 = vmax.f32 %v3304, 0.0
        %v3353 = vmax.f32 %v3305, 0.0
        %v3354 = vmax.f32 %v3306, 0.0
        %v3355 = vmax.f32 %v3307, 0.0
        %v3356 = vmax.f32 %v3308, 0.0
        %v3357 = vmax.f32 %v3309, 0.0
        %v3358 = vmax.f32 %v3310, 0.0
        %v3359 = vmax.f32 %v3311, 0.0
        %v3360 = vmax.f32 %v3312, 0.0
        %v3361 = vmax.f32 %v3313, 0.0
        %v3362 = vmax.f32 %v3314, 0.0
        %v3363 = vmax.f32 %v3315, 0.0
        %v3364 = vmax.f32 %v3316, 0.0
        %v3365 = vmax.f32 %v3317, 0.0
        %v3366 = vmax.f32 %v3318, 0.0
        %v3367 = vmax.f32 %v3319, 0.0
        %v3368 = vmax.f32 %v3320, 0.0
        %v3369 = vmax.f32 %v3321, 0.0
        %v3370 = vmax.f32 %v3322, 0.0
        %v3371 = vmax.f32 %v3323, 0.0
        %v3372 = vmax.f32 %v3324, 0.0
        %v3373 = vmax.f32 %v3325, 0.0
        %v3374 = vmax.f32 %v3326, 0.0
        %v3375 = vmax.f32 %v3327, 0.0
        %v3376 = vmax.f32 %v3328, 0.0
        %v3377 = vmax.f32 %v3329, 0.0
        %v3378 = vmul.f32 %v3330, %v2115
        %v3379 = vmul.f32 %v3331, %v2116
        %v3380 = vmul.f32 %v3332, %v2117
        %v3381 = vmul.f32 %v3333, %v2118
        %v3382 = vmul.f32 %v3334, %v2119
        %v3383 = vmul.f32 %v3335, %v2120
        %v3384 = vmul.f32 %v3336, %v2121
        %v3385 = vmul.f32 %v3337, %v2122
        %v3386 = vmul.f32 %v3338, %v2123
        %v3387 = vmul.f32 %v3339, %v2124
        %v3388 = vmul.f32 %v3340, %v2125
        %v3389 = vmul.f32 %v3341, %v2126
        %v3390 = vmul.f32 %v3342, %v2127
        %v3391 = vmul.f32 %v3343, %v2128
        %v3392 = vmul.f32 %v3344, %v2129
        %v3393 = vmul.f32 %v3345, %v2130
        %v3394 = vmul.f32 %v3346, %v2131
        %v3395 = vmul.f32 %v3347, %v2132
        %v3396 = vmul.f32 %v3348, %v2133
        %v3397 = vmul.f32 %v3349, %v2134
        %v3398 = vmul.f32 %v3350, %v2135
        %v3399 = vmul.f32 %v3351, %v2136
        %v3400 = vmul.f32 %v3352, %v2137
        %v3401 = vmul.f32 %v3353, %v2138
        %v3402 = vmul.f32 %v3354, %v2139
        %v3403 = vmul.f32 %v3355, %v2140
        %v3404 = vmul.f32 %v3356, %v2141
        %v3405 = vmul.f32 %v3357, %v2142
        %v3406 = vmul.f32 %v3358, %v2143
        %v3407 = vmul.f32 %v3359, %v2144
        %v3408 = vmul.f32 %v3360, %v2145
        %v3409 = vmul.f32 %v3361, %v2146
        %v3410 = vmul.f32 %v3362, %v2147
        %v3411 = vmul.f32 %v3363, %v2148
        %v3412 = vmul.f32 %v3364, %v2149
        %v3413 = vmul.f32 %v3365, %v2150
        %v3414 = vmul.f32 %v3366, %v2151
        %v3415 = vmul.f32 %v3367, %v2152
        %v3416 = vmul.f32 %v3368, %v2153
        %v3417 = vmul.f32 %v3369, %v2154
        %v3418 = vmul.f32 %v3370, %v2155
        %v3419 = vmul.f32 %v3371, %v2156
        %v3420 = vmul.f32 %v3372, %v2157
        %v3421 = vmul.f32 %v3373, %v2158
        %v3422 = vmul.f32 %v3374, %v2159
        %v3423 = vmul.f32 %v3375, %v2160
        %v3424 = vmul.f32 %v3376, %v2161
        %v3425 = vmul.f32 %v3377, %v2162
        %vm3426 = vcmask 261120
        %3427 = vst.msk [vmem:[#allocation2 + $0x19] sm:$0xff] %vm3426, %v3378
        %3428 = vst.msk [vmem:[#allocation2 + $0x21] sm:$0xff] %vm3426, %v3379
        %3429 = vst.msk [vmem:[#allocation2 + $0x29] sm:$0xff] %vm3426, %v3380
        %3430 = vst.msk [vmem:[#allocation2 + $0x31] sm:$0xff] %vm3426, %v3381
        %3431 = vst.msk [vmem:[#allocation2 + $0x39] sm:$0xff] %vm3426, %v3382
        %3432 = vst.msk [vmem:[#allocation2 + $0x41] sm:$0xff] %vm3426, %v3383
        %3433 = vst.msk [vmem:[#allocation2 + $0x49] sm:$0xff] %vm3426, %v3384
        %3434 = vst.msk [vmem:[#allocation2 + $0x51] sm:$0xff] %vm3426, %v3385
        %3435 = vst.msk [vmem:[#allocation2 + $0x59] sm:$0xff] %vm3426, %v3386
        %3436 = vst.msk [vmem:[#allocation2 + $0x61] sm:$0xff] %vm3426, %v3387
        %3437 = vst.msk [vmem:[#allocation2 + $0x69] sm:$0xff] %vm3426, %v3388
        %3438 = vst.msk [vmem:[#allocation2 + $0x71] sm:$0xff] %vm3426, %v3389
        %3439 = vst.msk [vmem:[#allocation2 + $0x79] sm:$0xff] %vm3426, %v3390
        %3440 = vst.msk [vmem:[#allocation2 + $0x81] sm:$0xff] %vm3426, %v3391
        %3441 = vst.msk [vmem:[#allocation2 + $0x89] sm:$0xff] %vm3426, %v3392
        %3442 = vst.msk [vmem:[#allocation2 + $0x91] sm:$0xff] %vm3426, %v3393
        %3443 = vst.msk [vmem:[#allocation2 + $0x99] sm:$0xff] %vm3426, %v3394
        %3444 = vst.msk [vmem:[#allocation2 + $0xa1] sm:$0xff] %vm3426, %v3395
        %3445 = vst.msk [vmem:[#allocation2 + $0xa9] sm:$0xff] %vm3426, %v3396
        %3446 = vst.msk [vmem:[#allocation2 + $0xb1] sm:$0xff] %vm3426, %v3397
        %3447 = vst.msk [vmem:[#allocation2 + $0xb9] sm:$0xff] %vm3426, %v3398
        %3448 = vst.msk [vmem:[#allocation2 + $0xc1] sm:$0xff] %vm3426, %v3399
        %3449 = vst.msk [vmem:[#allocation2 + $0xc9] sm:$0xff] %vm3426, %v3400
        %3450 = vst.msk [vmem:[#allocation2 + $0xd1] sm:$0xff] %vm3426, %v3401
        %3451 = vst.msk [vmem:[#allocation2 + $0xd9] sm:$0xff] %vm3426, %v3402
        %3452 = vst.msk [vmem:[#allocation2 + $0xe1] sm:$0xff] %vm3426, %v3403
        %3453 = vst.msk [vmem:[#allocation2 + $0xe9] sm:$0xff] %vm3426, %v3404
        %3454 = vst.msk [vmem:[#allocation2 + $0xf1] sm:$0xff] %vm3426, %v3405
        %3455 = vst.msk [vmem:[#allocation2 + $0xf9] sm:$0xff] %vm3426, %v3406
        %3456 = vst.msk [vmem:[#allocation2 + $0x101] sm:$0xff] %vm3426, %v3407
        %3457 = vst.msk [vmem:[#allocation2 + $0x109] sm:$0xff] %vm3426, %v3408
        %3458 = vst.msk [vmem:[#allocation2 + $0x111] sm:$0xff] %vm3426, %v3409
        %3459 = vst.msk [vmem:[#allocation2 + $0x119] sm:$0xff] %vm3426, %v3410
        %3460 = vst.msk [vmem:[#allocation2 + $0x121] sm:$0xff] %vm3426, %v3411
        %3461 = vst.msk [vmem:[#allocation2 + $0x129] sm:$0xff] %vm3426, %v3412
        %3462 = vst.msk [vmem:[#allocation2 + $0x131] sm:$0xff] %vm3426, %v3413
        %3463 = vst.msk [vmem:[#allocation2 + $0x139] sm:$0xff] %vm3426, %v3414
        %3464 = vst.msk [vmem:[#allocation2 + $0x141] sm:$0xff] %vm3426, %v3415
        %3465 = vst.msk [vmem:[#allocation2 + $0x149] sm:$0xff] %vm3426, %v3416
        %3466 = vst.msk [vmem:[#allocation2 + $0x151] sm:$0xff] %vm3426, %v3417
        %3467 = vst.msk [vmem:[#allocation2 + $0x159] sm:$0xff] %vm3426, %v3418
        %3468 = vst.msk [vmem:[#allocation2 + $0x161] sm:$0xff] %vm3426, %v3419
        %3469 = vst.msk [vmem:[#allocation2 + $0x169] sm:$0xff] %vm3426, %v3420
        %3470 = vst.msk [vmem:[#allocation2 + $0x171] sm:$0xff] %vm3426, %v3421
        %3471 = vst.msk [vmem:[#allocation2 + $0x179] sm:$0xff] %vm3426, %v3422
        %3472 = vst.msk [vmem:[#allocation2 + $0x181] sm:$0xff] %vm3426, %v3423
        %3473 = vst.msk [vmem:[#allocation2 + $0x189] sm:$0xff] %vm3426, %v3424
        %3474 = vst.msk [vmem:[#allocation2 + $0x191] sm:$0xff] %vm3426, %v3425
        %3523 = vrot.lane.b32.xlu0 %v3378, 32
        %v3524 = vpop.permute.xlu0 %3523
        %3525 = vrot.lane.b32.xlu0 %v3379, 32
        %v3526 = vpop.permute.xlu0 %3525
        %3527 = vrot.lane.b32.xlu0 %v3380, 32
        %v3528 = vpop.permute.xlu0 %3527
        %3529 = vrot.lane.b32.xlu0 %v3381, 32
        %v3530 = vpop.permute.xlu0 %3529
        %3531 = vrot.lane.b32.xlu0 %v3382, 32
        %v3532 = vpop.permute.xlu0 %3531
        %3533 = vrot.lane.b32.xlu0 %v3383, 32
        %v3534 = vpop.permute.xlu0 %3533
        %3535 = vrot.lane.b32.xlu0 %v3384, 32
        %v3536 = vpop.permute.xlu0 %3535
        %3537 = vrot.lane.b32.xlu0 %v3385, 32
        %v3538 = vpop.permute.xlu0 %3537
        %3539 = vrot.lane.b32.xlu0 %v3386, 32
        %v3540 = vpop.permute.xlu0 %3539
        %3541 = vrot.lane.b32.xlu0 %v3387, 32
        %v3542 = vpop.permute.xlu0 %3541
        %3543 = vrot.lane.b32.xlu0 %v3388, 32
        %v3544 = vpop.permute.xlu0 %3543
        %3545 = vrot.lane.b32.xlu0 %v3389, 32
        %v3546 = vpop.permute.xlu0 %3545
        %3547 = vrot.lane.b32.xlu0 %v3390, 32
        %v3548 = vpop.permute.xlu0 %3547
        %3549 = vrot.lane.b32.xlu0 %v3391, 32
        %v3550 = vpop.permute.xlu0 %3549
        %3551 = vrot.lane.b32.xlu0 %v3392, 32
        %v3552 = vpop.permute.xlu0 %3551
        %3553 = vrot.lane.b32.xlu0 %v3393, 32
        %v3554 = vpop.permute.xlu0 %3553
        %3555 = vrot.lane.b32.xlu0 %v3394, 32
        %v3556 = vpop.permute.xlu0 %3555
        %3557 = vrot.lane.b32.xlu0 %v3395, 32
        %v3558 = vpop.permute.xlu0 %3557
        %3559 = vrot.lane.b32.xlu0 %v3396, 32
        %v3560 = vpop.permute.xlu0 %3559
        %3561 = vrot.lane.b32.xlu0 %v3397, 32
        %v3562 = vpop.permute.xlu0 %3561
        %3563 = vrot.lane.b32.xlu0 %v3398, 32
        %v3564 = vpop.permute.xlu0 %3563
        %3565 = vrot.lane.b32.xlu0 %v3399, 32
        %v3566 = vpop.permute.xlu0 %3565
        %3567 = vrot.lane.b32.xlu0 %v3400, 32
        %v3568 = vpop.permute.xlu0 %3567
        %3569 = vrot.lane.b32.xlu0 %v3401, 32
        %v3570 = vpop.permute.xlu0 %3569
        %3571 = vrot.lane.b32.xlu0 %v3402, 32
        %v3572 = vpop.permute.xlu0 %3571
        %3573 = vrot.lane.b32.xlu0 %v3403, 32
        %v3574 = vpop.permute.xlu0 %3573
        %3575 = vrot.lane.b32.xlu0 %v3404, 32
        %v3576 = vpop.permute.xlu0 %3575
        %3577 = vrot.lane.b32.xlu0 %v3405, 32
        %v3578 = vpop.permute.xlu0 %3577
        %3579 = vrot.lane.b32.xlu0 %v3406, 32
        %v3580 = vpop.permute.xlu0 %3579
        %3581 = vrot.lane.b32.xlu0 %v3407, 32
        %v3582 = vpop.permute.xlu0 %3581
        %3583 = vrot.lane.b32.xlu0 %v3408, 32
        %v3584 = vpop.permute.xlu0 %3583
        %3585 = vrot.lane.b32.xlu0 %v3409, 32
        %v3586 = vpop.permute.xlu0 %3585
        %3587 = vrot.lane.b32.xlu0 %v3410, 32
        %v3588 = vpop.permute.xlu0 %3587
        %3589 = vrot.lane.b32.xlu0 %v3411, 32
        %v3590 = vpop.permute.xlu0 %3589
        %3591 = vrot.lane.b32.xlu0 %v3412, 32
        %v3592 = vpop.permute.xlu0 %3591
        %3593 = vrot.lane.b32.xlu0 %v3413, 32
        %v3594 = vpop.permute.xlu0 %3593
        %3595 = vrot.lane.b32.xlu0 %v3414, 32
        %v3596 = vpop.permute.xlu0 %3595
        %3597 = vrot.lane.b32.xlu0 %v3415, 32
        %v3598 = vpop.permute.xlu0 %3597
        %3599 = vrot.lane.b32.xlu0 %v3416, 32
        %v3600 = vpop.permute.xlu0 %3599
        %3601 = vrot.lane.b32.xlu0 %v3417, 32
        %v3602 = vpop.permute.xlu0 %3601
        %3603 = vrot.lane.b32.xlu0 %v3418, 32
        %v3604 = vpop.permute.xlu0 %3603
        %3605 = vrot.lane.b32.xlu0 %v3419, 32
        %v3606 = vpop.permute.xlu0 %3605
        %3607 = vrot.lane.b32.xlu0 %v3420, 32
        %v3608 = vpop.permute.xlu0 %3607
        %3609 = vrot.lane.b32.xlu0 %v3421, 32
        %v3610 = vpop.permute.xlu0 %3609
        %3611 = vrot.lane.b32.xlu0 %v3422, 32
        %v3612 = vpop.permute.xlu0 %3611
        %3613 = vrot.lane.b32.xlu0 %v3423, 32
        %v3614 = vpop.permute.xlu0 %3613
        %3615 = vrot.lane.b32.xlu0 %v3424, 32
        %v3616 = vpop.permute.xlu0 %3615
        %3617 = vrot.lane.b32.xlu0 %v3425, 32
        %v3618 = vpop.permute.xlu0 %3617
        %vm3667 = vcmask 523520
        %3668 = vst.msk [vmem:[#allocation2 + $0x18] sm:$0xff] %vm3667, %v3524
        %3669 = vst.msk [vmem:[#allocation2 + $0x20] sm:$0xff] %vm3667, %v3526
        %3670 = vst.msk [vmem:[#allocation2 + $0x28] sm:$0xff] %vm3667, %v3528
        %3671 = vst.msk [vmem:[#allocation2 + $0x30] sm:$0xff] %vm3667, %v3530
        %3672 = vst.msk [vmem:[#allocation2 + $0x38] sm:$0xff] %vm3667, %v3532
        %3673 = vst.msk [vmem:[#allocation2 + $0x40] sm:$0xff] %vm3667, %v3534
        %3674 = vst.msk [vmem:[#allocation2 + $0x48] sm:$0xff] %vm3667, %v3536
        %3675 = vst.msk [vmem:[#allocation2 + $0x50] sm:$0xff] %vm3667, %v3538
        %3676 = vst.msk [vmem:[#allocation2 + $0x58] sm:$0xff] %vm3667, %v3540
        %3677 = vst.msk [vmem:[#allocation2 + $0x60] sm:$0xff] %vm3667, %v3542
        %3678 = vst.msk [vmem:[#allocation2 + $0x68] sm:$0xff] %vm3667, %v3544
        %3679 = vst.msk [vmem:[#allocation2 + $0x70] sm:$0xff] %vm3667, %v3546
        %3680 = vst.msk [vmem:[#allocation2 + $0x78] sm:$0xff] %vm3667, %v3548
        %3681 = vst.msk [vmem:[#allocation2 + $0x80] sm:$0xff] %vm3667, %v3550
        %3682 = vst.msk [vmem:[#allocation2 + $0x88] sm:$0xff] %vm3667, %v3552
        %3683 = vst.msk [vmem:[#allocation2 + $0x90] sm:$0xff] %vm3667, %v3554
        %3684 = vst.msk [vmem:[#allocation2 + $0x98] sm:$0xff] %vm3667, %v3556
        %3685 = vst.msk [vmem:[#allocation2 + $0xa0] sm:$0xff] %vm3667, %v3558
        %3686 = vst.msk [vmem:[#allocation2 + $0xa8] sm:$0xff] %vm3667, %v3560
        %3687 = vst.msk [vmem:[#allocation2 + $0xb0] sm:$0xff] %vm3667, %v3562
        %3688 = vst.msk [vmem:[#allocation2 + $0xb8] sm:$0xff] %vm3667, %v3564
        %3689 = vst.msk [vmem:[#allocation2 + $0xc0] sm:$0xff] %vm3667, %v3566
        %3690 = vst.msk [vmem:[#allocation2 + $0xc8] sm:$0xff] %vm3667, %v3568
        %3691 = vst.msk [vmem:[#allocation2 + $0xd0] sm:$0xff] %vm3667, %v3570
        %3692 = vst.msk [vmem:[#allocation2 + $0xd8] sm:$0xff] %vm3667, %v3572
        %3693 = vst.msk [vmem:[#allocation2 + $0xe0] sm:$0xff] %vm3667, %v3574
        %3694 = vst.msk [vmem:[#allocation2 + $0xe8] sm:$0xff] %vm3667, %v3576
        %3695 = vst.msk [vmem:[#allocation2 + $0xf0] sm:$0xff] %vm3667, %v3578
        %3696 = vst.msk [vmem:[#allocation2 + $0xf8] sm:$0xff] %vm3667, %v3580
        %3697 = vst.msk [vmem:[#allocation2 + $0x100] sm:$0xff] %vm3667, %v3582
        %3698 = vst.msk [vmem:[#allocation2 + $0x108] sm:$0xff] %vm3667, %v3584
        %3699 = vst.msk [vmem:[#allocation2 + $0x110] sm:$0xff] %vm3667, %v3586
        %3700 = vst.msk [vmem:[#allocation2 + $0x118] sm:$0xff] %vm3667, %v3588
        %3701 = vst.msk [vmem:[#allocation2 + $0x120] sm:$0xff] %vm3667, %v3590
        %3702 = vst.msk [vmem:[#allocation2 + $0x128] sm:$0xff] %vm3667, %v3592
        %3703 = vst.msk [vmem:[#allocation2 + $0x130] sm:$0xff] %vm3667, %v3594
        %3704 = vst.msk [vmem:[#allocation2 + $0x138] sm:$0xff] %vm3667, %v3596
        %3705 = vst.msk [vmem:[#allocation2 + $0x140] sm:$0xff] %vm3667, %v3598
        %3706 = vst.msk [vmem:[#allocation2 + $0x148] sm:$0xff] %vm3667, %v3600
        %3707 = vst.msk [vmem:[#allocation2 + $0x150] sm:$0xff] %vm3667, %v3602
        %3708 = vst.msk [vmem:[#allocation2 + $0x158] sm:$0xff] %vm3667, %v3604
        %3709 = vst.msk [vmem:[#allocation2 + $0x160] sm:$0xff] %vm3667, %v3606
        %3710 = vst.msk [vmem:[#allocation2 + $0x168] sm:$0xff] %vm3667, %v3608
        %3711 = vst.msk [vmem:[#allocation2 + $0x170] sm:$0xff] %vm3667, %v3610
        %3712 = vst.msk [vmem:[#allocation2 + $0x178] sm:$0xff] %vm3667, %v3612
        %3713 = vst.msk [vmem:[#allocation2 + $0x180] sm:$0xff] %vm3667, %v3614
        %3714 = vst.msk [vmem:[#allocation2 + $0x188] sm:$0xff] %vm3667, %v3616
        %3715 = vst.msk [vmem:[#allocation2 + $0x190] sm:$0xff] %vm3667, %v3618
        %3716 = vrot.lane.b32.xlu0 %v3378, 64
        %v3717 = vpop.permute.xlu0 %3716
        %3718 = vrot.lane.b32.xlu0 %v3379, 64
        %v3719 = vpop.permute.xlu0 %3718
        %3720 = vrot.lane.b32.xlu0 %v3380, 64
        %v3721 = vpop.permute.xlu0 %3720
        %3722 = vrot.lane.b32.xlu0 %v3381, 64
        %v3723 = vpop.permute.xlu0 %3722
        %3724 = vrot.lane.b32.xlu0 %v3382, 64
        %v3725 = vpop.permute.xlu0 %3724
        %3726 = vrot.lane.b32.xlu0 %v3383, 64
        %v3727 = vpop.permute.xlu0 %3726
        %3728 = vrot.lane.b32.xlu0 %v3384, 64
        %v3729 = vpop.permute.xlu0 %3728
        %3730 = vrot.lane.b32.xlu0 %v3385, 64
        %v3731 = vpop.permute.xlu0 %3730
        %3732 = vrot.lane.b32.xlu0 %v3386, 64
        %v3733 = vpop.permute.xlu0 %3732
        %3734 = vrot.lane.b32.xlu0 %v3387, 64
        %v3735 = vpop.permute.xlu0 %3734
        %3736 = vrot.lane.b32.xlu0 %v3388, 64
        %v3737 = vpop.permute.xlu0 %3736
        %3738 = vrot.lane.b32.xlu0 %v3389, 64
        %v3739 = vpop.permute.xlu0 %3738
        %3740 = vrot.lane.b32.xlu0 %v3390, 64
        %v3741 = vpop.permute.xlu0 %3740
        %3742 = vrot.lane.b32.xlu0 %v3391, 64
        %v3743 = vpop.permute.xlu0 %3742
        %3744 = vrot.lane.b32.xlu0 %v3392, 64
        %v3745 = vpop.permute.xlu0 %3744
        %3746 = vrot.lane.b32.xlu0 %v3393, 64
        %v3747 = vpop.permute.xlu0 %3746
        %3748 = vrot.lane.b32.xlu0 %v3394, 64
        %v3749 = vpop.permute.xlu0 %3748
        %3750 = vrot.lane.b32.xlu0 %v3395, 64
        %v3751 = vpop.permute.xlu0 %3750
        %3752 = vrot.lane.b32.xlu0 %v3396, 64
        %v3753 = vpop.permute.xlu0 %3752
        %3754 = vrot.lane.b32.xlu0 %v3397, 64
        %v3755 = vpop.permute.xlu0 %3754
        %3756 = vrot.lane.b32.xlu0 %v3398, 64
        %v3757 = vpop.permute.xlu0 %3756
        %3758 = vrot.lane.b32.xlu0 %v3399, 64
        %v3759 = vpop.permute.xlu0 %3758
        %3760 = vrot.lane.b32.xlu0 %v3400, 64
        %v3761 = vpop.permute.xlu0 %3760
        %3762 = vrot.lane.b32.xlu0 %v3401, 64
        %v3763 = vpop.permute.xlu0 %3762
        %3764 = vrot.lane.b32.xlu0 %v3402, 64
        %v3765 = vpop.permute.xlu0 %3764
        %3766 = vrot.lane.b32.xlu0 %v3403, 64
        %v3767 = vpop.permute.xlu0 %3766
        %3768 = vrot.lane.b32.xlu0 %v3404, 64
        %v3769 = vpop.permute.xlu0 %3768
        %3770 = vrot.lane.b32.xlu0 %v3405, 64
        %v3771 = vpop.permute.xlu0 %3770
        %3772 = vrot.lane.b32.xlu0 %v3406, 64
        %v3773 = vpop.permute.xlu0 %3772
        %3774 = vrot.lane.b32.xlu0 %v3407, 64
        %v3775 = vpop.permute.xlu0 %3774
        %3776 = vrot.lane.b32.xlu0 %v3408, 64
        %v3777 = vpop.permute.xlu0 %3776
        %3778 = vrot.lane.b32.xlu0 %v3409, 64
        %v3779 = vpop.permute.xlu0 %3778
        %3780 = vrot.lane.b32.xlu0 %v3410, 64
        %v3781 = vpop.permute.xlu0 %3780
        %3782 = vrot.lane.b32.xlu0 %v3411, 64
        %v3783 = vpop.permute.xlu0 %3782
        %3784 = vrot.lane.b32.xlu0 %v3412, 64
        %v3785 = vpop.permute.xlu0 %3784
        %3786 = vrot.lane.b32.xlu0 %v3413, 64
        %v3787 = vpop.permute.xlu0 %3786
        %3788 = vrot.lane.b32.xlu0 %v3414, 64
        %v3789 = vpop.permute.xlu0 %3788
        %3790 = vrot.lane.b32.xlu0 %v3415, 64
        %v3791 = vpop.permute.xlu0 %3790
        %3792 = vrot.lane.b32.xlu0 %v3416, 64
        %v3793 = vpop.permute.xlu0 %3792
        %3794 = vrot.lane.b32.xlu0 %v3417, 64
        %v3795 = vpop.permute.xlu0 %3794
        %3796 = vrot.lane.b32.xlu0 %v3418, 64
        %v3797 = vpop.permute.xlu0 %3796
        %3798 = vrot.lane.b32.xlu0 %v3419, 64
        %v3799 = vpop.permute.xlu0 %3798
        %3800 = vrot.lane.b32.xlu0 %v3420, 64
        %v3801 = vpop.permute.xlu0 %3800
        %3802 = vrot.lane.b32.xlu0 %v3421, 64
        %v3803 = vpop.permute.xlu0 %3802
        %3804 = vrot.lane.b32.xlu0 %v3422, 64
        %v3805 = vpop.permute.xlu0 %3804
        %3806 = vrot.lane.b32.xlu0 %v3423, 64
        %v3807 = vpop.permute.xlu0 %3806
        %3808 = vrot.lane.b32.xlu0 %v3424, 64
        %v3809 = vpop.permute.xlu0 %3808
        %3810 = vrot.lane.b32.xlu0 %v3425, 64
        %v3811 = vpop.permute.xlu0 %3810
        %vm3860 = vcmask 785920
        %3861 = vst.msk [vmem:[#allocation2 + $0x17] sm:$0xff] %vm3860, %v3717
        %3862 = vst.msk [vmem:[#allocation2 + $0x1f] sm:$0xff] %vm3860, %v3719
        %3863 = vst.msk [vmem:[#allocation2 + $0x27] sm:$0xff] %vm3860, %v3721
        %3864 = vst.msk [vmem:[#allocation2 + $0x2f] sm:$0xff] %vm3860, %v3723
        %3865 = vst.msk [vmem:[#allocation2 + $0x37] sm:$0xff] %vm3860, %v3725
        %3866 = vst.msk [vmem:[#allocation2 + $0x3f] sm:$0xff] %vm3860, %v3727
        %3867 = vst.msk [vmem:[#allocation2 + $0x47] sm:$0xff] %vm3860, %v3729
        %3868 = vst.msk [vmem:[#allocation2 + $0x4f] sm:$0xff] %vm3860, %v3731
        %3869 = vst.msk [vmem:[#allocation2 + $0x57] sm:$0xff] %vm3860, %v3733
        %3870 = vst.msk [vmem:[#allocation2 + $0x5f] sm:$0xff] %vm3860, %v3735
        %3871 = vst.msk [vmem:[#allocation2 + $0x67] sm:$0xff] %vm3860, %v3737
        %3872 = vst.msk [vmem:[#allocation2 + $0x6f] sm:$0xff] %vm3860, %v3739
        %3873 = vst.msk [vmem:[#allocation2 + $0x77] sm:$0xff] %vm3860, %v3741
        %3874 = vst.msk [vmem:[#allocation2 + $0x7f] sm:$0xff] %vm3860, %v3743
        %3875 = vst.msk [vmem:[#allocation2 + $0x87] sm:$0xff] %vm3860, %v3745
        %3876 = vst.msk [vmem:[#allocation2 + $0x8f] sm:$0xff] %vm3860, %v3747
        %3877 = vst.msk [vmem:[#allocation2 + $0x97] sm:$0xff] %vm3860, %v3749
        %3878 = vst.msk [vmem:[#allocation2 + $0x9f] sm:$0xff] %vm3860, %v3751
        %3879 = vst.msk [vmem:[#allocation2 + $0xa7] sm:$0xff] %vm3860, %v3753
        %3880 = vst.msk [vmem:[#allocation2 + $0xaf] sm:$0xff] %vm3860, %v3755
        %3881 = vst.msk [vmem:[#allocation2 + $0xb7] sm:$0xff] %vm3860, %v3757
        %3882 = vst.msk [vmem:[#allocation2 + $0xbf] sm:$0xff] %vm3860, %v3759
        %3883 = vst.msk [vmem:[#allocation2 + $0xc7] sm:$0xff] %vm3860, %v3761
        %3884 = vst.msk [vmem:[#allocation2 + $0xcf] sm:$0xff] %vm3860, %v3763
        %3885 = vst.msk [vmem:[#allocation2 + $0xd7] sm:$0xff] %vm3860, %v3765
        %3886 = vst.msk [vmem:[#allocation2 + $0xdf] sm:$0xff] %vm3860, %v3767
        %3887 = vst.msk [vmem:[#allocation2 + $0xe7] sm:$0xff] %vm3860, %v3769
        %3888 = vst.msk [vmem:[#allocation2 + $0xef] sm:$0xff] %vm3860, %v3771
        %3889 = vst.msk [vmem:[#allocation2 + $0xf7] sm:$0xff] %vm3860, %v3773
        %3890 = vst.msk [vmem:[#allocation2 + $0xff] sm:$0xff] %vm3860, %v3775
        %3891 = vst.msk [vmem:[#allocation2 + $0x107] sm:$0xff] %vm3860, %v3777
        %3892 = vst.msk [vmem:[#allocation2 + $0x10f] sm:$0xff] %vm3860, %v3779
        %3893 = vst.msk [vmem:[#allocation2 + $0x117] sm:$0xff] %vm3860, %v3781
        %3894 = vst.msk [vmem:[#allocation2 + $0x11f] sm:$0xff] %vm3860, %v3783
        %3895 = vst.msk [vmem:[#allocation2 + $0x127] sm:$0xff] %vm3860, %v3785
        %3896 = vst.msk [vmem:[#allocation2 + $0x12f] sm:$0xff] %vm3860, %v3787
        %3897 = vst.msk [vmem:[#allocation2 + $0x137] sm:$0xff] %vm3860, %v3789
        %3898 = vst.msk [vmem:[#allocation2 + $0x13f] sm:$0xff] %vm3860, %v3791
        %3899 = vst.msk [vmem:[#allocation2 + $0x147] sm:$0xff] %vm3860, %v3793
        %3900 = vst.msk [vmem:[#allocation2 + $0x14f] sm:$0xff] %vm3860, %v3795
        %3901 = vst.msk [vmem:[#allocation2 + $0x157] sm:$0xff] %vm3860, %v3797
        %3902 = vst.msk [vmem:[#allocation2 + $0x15f] sm:$0xff] %vm3860, %v3799
        %3903 = vst.msk [vmem:[#allocation2 + $0x167] sm:$0xff] %vm3860, %v3801
        %3904 = vst.msk [vmem:[#allocation2 + $0x16f] sm:$0xff] %vm3860, %v3803
        %3905 = vst.msk [vmem:[#allocation2 + $0x177] sm:$0xff] %vm3860, %v3805
        %3906 = vst.msk [vmem:[#allocation2 + $0x17f] sm:$0xff] %vm3860, %v3807
        %3907 = vst.msk [vmem:[#allocation2 + $0x187] sm:$0xff] %vm3860, %v3809
        %3908 = vst.msk [vmem:[#allocation2 + $0x18f] sm:$0xff] %vm3860, %v3811
        %v3909 = vld [vmem:[#allocation2] sm:$0xff]
        %v3910 = vld [vmem:[#allocation2 + $0x8] sm:$0xff]
        %v3911 = vld [vmem:[#allocation2 + $0x10] sm:$0xff]
        %v3912 = vld [vmem:[#allocation2 + $0x18] sm:$0xff]
        %v3913 = vld [vmem:[#allocation2 + $0x20] sm:$0xff]
        %v3914 = vld [vmem:[#allocation2 + $0x28] sm:$0xff]
        %v3915 = vld [vmem:[#allocation2 + $0x30] sm:$0xff]
        %v3916 = vld [vmem:[#allocation2 + $0x38] sm:$0xff]
        %v3917 = vld [vmem:[#allocation2 + $0x40] sm:$0xff]
        %v3918 = vld [vmem:[#allocation2 + $0x48] sm:$0xff]
        %v3919 = vld [vmem:[#allocation2 + $0x50] sm:$0xff]
        %v3920 = vld [vmem:[#allocation2 + $0x58] sm:$0xff]
        %v3921 = vld [vmem:[#allocation2 + $0x60] sm:$0xff]
        %v3922 = vld [vmem:[#allocation2 + $0x68] sm:$0xff]
        %v3923 = vld [vmem:[#allocation2 + $0x70] sm:$0xff]
        %v3924 = vld [vmem:[#allocation2 + $0x78] sm:$0xff]
        %v3925 = vld [vmem:[#allocation2 + $0x80] sm:$0xff]
        %v3926 = vld [vmem:[#allocation2 + $0x88] sm:$0xff]
        %v3927 = vld [vmem:[#allocation2 + $0x90] sm:$0xff]
        %v3928 = vld [vmem:[#allocation2 + $0x98] sm:$0xff]
        %v3929 = vld [vmem:[#allocation2 + $0xa0] sm:$0xff]
        %v3930 = vld [vmem:[#allocation2 + $0xa8] sm:$0xff]
        %v3931 = vld [vmem:[#allocation2 + $0xb0] sm:$0xff]
        %v3932 = vld [vmem:[#allocation2 + $0xb8] sm:$0xff]
        %v3933 = vld [vmem:[#allocation2 + $0xc0] sm:$0xff]
        %v3934 = vld [vmem:[#allocation2 + $0xc8] sm:$0xff]
        %v3935 = vld [vmem:[#allocation2 + $0xd0] sm:$0xff]
        %v3936 = vld [vmem:[#allocation2 + $0xd8] sm:$0xff]
        %v3937 = vld [vmem:[#allocation2 + $0xe0] sm:$0xff]
        %v3938 = vld [vmem:[#allocation2 + $0xe8] sm:$0xff]
        %v3939 = vld [vmem:[#allocation2 + $0xf0] sm:$0xff]
        %v3940 = vld [vmem:[#allocation2 + $0xf8] sm:$0xff]
        %v3941 = vld [vmem:[#allocation2 + $0x100] sm:$0xff]
        %v3942 = vld [vmem:[#allocation2 + $0x108] sm:$0xff]
        %v3943 = vld [vmem:[#allocation2 + $0x110] sm:$0xff]
        %v3944 = vld [vmem:[#allocation2 + $0x118] sm:$0xff]
        %v3945 = vld [vmem:[#allocation2 + $0x120] sm:$0xff]
        %v3946 = vld [vmem:[#allocation2 + $0x128] sm:$0xff]
        %v3947 = vld [vmem:[#allocation2 + $0x130] sm:$0xff]
        %v3948 = vld [vmem:[#allocation2 + $0x138] sm:$0xff]
        %v3949 = vld [vmem:[#allocation2 + $0x140] sm:$0xff]
        %v3950 = vld [vmem:[#allocation2 + $0x148] sm:$0xff]
        %v3951 = vld [vmem:[#allocation2 + $0x150] sm:$0xff]
        %v3952 = vld [vmem:[#allocation2 + $0x158] sm:$0xff]
        %v3953 = vld [vmem:[#allocation2 + $0x160] sm:$0xff]
        %v3954 = vld [vmem:[#allocation2 + $0x168] sm:$0xff]
        %v3955 = vld [vmem:[#allocation2 + $0x170] sm:$0xff]
        %v3956 = vld [vmem:[#allocation2 + $0x178] sm:$0xff]
        %v3957 = vpack.c.bf16 %v3910, %v3909
        %v3958 = vpack.c.bf16 %v3912, %v3911
        %v3959 = vpack.c.bf16 %v3914, %v3913
        %v3960 = vpack.c.bf16 %v3916, %v3915
        %v3961 = vpack.c.bf16 %v3918, %v3917
        %v3962 = vpack.c.bf16 %v3920, %v3919
        %v3963 = vpack.c.bf16 %v3922, %v3921
        %v3964 = vpack.c.bf16 %v3924, %v3923
        %v3965 = vpack.c.bf16 %v3926, %v3925
        %v3966 = vpack.c.bf16 %v3928, %v3927
        %v3967 = vpack.c.bf16 %v3930, %v3929
        %v3968 = vpack.c.bf16 %v3932, %v3931
        %v3969 = vpack.c.bf16 %v3934, %v3933
        %v3970 = vpack.c.bf16 %v3936, %v3935
        %v3971 = vpack.c.bf16 %v3938, %v3937
        %v3972 = vpack.c.bf16 %v3940, %v3939
        %v3973 = vpack.c.bf16 %v3942, %v3941
        %v3974 = vpack.c.bf16 %v3944, %v3943
        %v3975 = vpack.c.bf16 %v3946, %v3945
        %v3976 = vpack.c.bf16 %v3948, %v3947
        %v3977 = vpack.c.bf16 %v3950, %v3949
        %v3978 = vpack.c.bf16 %v3952, %v3951
        %v3979 = vpack.c.bf16 %v3954, %v3953
        %v3980 = vpack.c.bf16 %v3956, %v3955
        %v3981 = vld [vmem:[%s2] sm:$0xf]
        %v3982 = vld [vmem:[%s2 + $0x4] sm:$0xf]
        %v3983 = vld [vmem:[%s2 + $0x8] sm:$0xf]
        %v3984 = vld [vmem:[%s2 + $0xc] sm:$0xf]
        %v3985 = vld [vmem:[%s2 + $0x10] sm:$0xf]
        %v3986 = vld [vmem:[%s2 + $0x14] sm:$0xf]
        %v3987 = vld [vmem:[%s2 + $0x18] sm:$0xf]
        %v3988 = vld [vmem:[%s2 + $0x1c] sm:$0xf]
        %v3989 = vld [vmem:[%s2 + $0x20] sm:$0xf]
        %v3990 = vld [vmem:[%s2 + $0x24] sm:$0xf]
        %v3991 = vld [vmem:[%s2 + $0x28] sm:$0xf]
        %v3992 = vld [vmem:[%s2 + $0x2c] sm:$0xf]
        %v3993 = vld [vmem:[#allocation2 + $0x180] sm:$0xff]
        %v3994 = vld [vmem:[#allocation2 + $0x188] sm:$0xff]
        %v3995 = vld [vmem:[#allocation2 + $0x190] sm:$0xff]
        %v3996 = vpack.c.bf16 %v3913, %v3912
        %v3997 = vpack.c.bf16 %v3915, %v3914
        %v3998 = vpack.c.bf16 %v3917, %v3916
        %v3999 = vpack.c.bf16 %v3919, %v3918
        %v4000 = vpack.c.bf16 %v3921, %v3920
        %v4001 = vpack.c.bf16 %v3923, %v3922
        %v4002 = vpack.c.bf16 %v3925, %v3924
        %v4003 = vpack.c.bf16 %v3927, %v3926
        %v4004 = vpack.c.bf16 %v3929, %v3928
        %v4005 = vpack.c.bf16 %v3931, %v3930
        %v4006 = vpack.c.bf16 %v3933, %v3932
        %v4007 = vpack.c.bf16 %v3935, %v3934
        %v4008 = vpack.c.bf16 %v3937, %v3936
        %v4009 = vpack.c.bf16 %v3939, %v3938
        %v4010 = vpack.c.bf16 %v3941, %v3940
        %v4011 = vpack.c.bf16 %v3943, %v3942
        %v4012 = vpack.c.bf16 %v3945, %v3944
        %v4013 = vpack.c.bf16 %v3947, %v3946
        %v4014 = vpack.c.bf16 %v3949, %v3948
        %v4015 = vpack.c.bf16 %v3951, %v3950
        %v4016 = vpack.c.bf16 %v3953, %v3952
        %v4017 = vpack.c.bf16 %v3955, %v3954
        %v4018 = vpack.c.bf16 %v3993, %v3956
        %v4019 = vpack.c.bf16 %v3995, %v3994
        %s4020 = scalar_lea.vmem %s2, 48
        %v4021 = vld [vmem:[%s4020] sm:$0xf]
        %v4022 = vld [vmem:[%s4020 + $0x4] sm:$0xf]
        %v4023 = vld [vmem:[%s4020 + $0x8] sm:$0xf]
        %v4024 = vld [vmem:[%s4020 + $0xc] sm:$0xf]
        %v4025 = vld [vmem:[%s4020 + $0x10] sm:$0xf]
        %v4026 = vld [vmem:[%s4020 + $0x14] sm:$0xf]
        %v4027 = vld [vmem:[%s4020 + $0x18] sm:$0xf]
        %v4028 = vld [vmem:[%s4020 + $0x1c] sm:$0xf]
        %v4029 = vld [vmem:[%s4020 + $0x20] sm:$0xf]
        %v4030 = vld [vmem:[%s4020 + $0x24] sm:$0xf]
        %v4031 = vld [vmem:[%s4020 + $0x28] sm:$0xf]
        %v4032 = vld [vmem:[%s4020 + $0x2c] sm:$0xf]
        %v4045 = vunpack.c.l.b16 %v4021
        %v4046 = vunpack.c.l.b16 %v4022
        %v4047 = vunpack.c.l.b16 %v4023
        %v4048 = vunpack.c.l.b16 %v4024
        %v4049 = vunpack.c.l.b16 %v4025
        %v4050 = vunpack.c.l.b16 %v4026
        %v4051 = vunpack.c.l.b16 %v4027
        %v4052 = vunpack.c.l.b16 %v4028
        %v4053 = vunpack.c.l.b16 %v4029
        %v4054 = vunpack.c.l.b16 %v4030
        %v4055 = vunpack.c.l.b16 %v4031
        %v4056 = vunpack.c.l.b16 %v4032
        %v4057 = vpack.c.b16 %v4046, %v4045
        %v4058 = vpack.c.b16 %v4048, %v4047
        %v4059 = vpack.c.b16 %v4050, %v4049
        %v4060 = vpack.c.b16 %v4052, %v4051
        %v4061 = vpack.c.b16 %v4054, %v4053
        %v4062 = vpack.c.b16 %v4056, %v4055
        %v4070 = vsel %vm2169, %v3996, 0
        %v4073 = vsel %vm2169, %v3997, 0
        %v4076 = vsel %vm2169, %v3998, 0
        %v4079 = vsel %vm2169, %v3999, 0
        %v4082 = vsel %vm2169, %v4000, 0
        %v4085 = vsel %vm2169, %v4001, 0
        %v4088 = vsel %vm2169, %v4002, 0
        %v4091 = vsel %vm2169, %v4003, 0
        %v4094 = vsel %vm2169, %v4004, 0
        %v4097 = vsel %vm2169, %v4005, 0
        %v4100 = vsel %vm2169, %v4006, 0
        %v4103 = vsel %vm2169, %v4007, 0
        %v4106 = vsel %vm2169, %v4008, 0
        %v4109 = vsel %vm2169, %v4009, 0
        %v4112 = vsel %vm2169, %v4010, 0
        %v4115 = vsel %vm2169, %v4011, 0
        %v4118 = vsel %vm2169, %v4012, 0
        %v4121 = vsel %vm2169, %v4013, 0
        %v4124 = vsel %vm2169, %v4014, 0
        %v4127 = vsel %vm2169, %v4015, 0
        %v4130 = vsel %vm2169, %v4016, 0
        %v4133 = vsel %vm2169, %v4017, 0
        %v4136 = vsel %vm2169, %v4018, 0
        %v4139 = vsel %vm2169, %v4019, 0
        %4141 = vmatpush.bf16.msra.mxu0 0
        %4142 = vmatpush.bf16.msra.mxu0 0
        %4143 = vmatpush.bf16.msra.mxu0 %v4062
        %4144 = vmatpush.bf16.msra.mxu0 %v4061
        %4145 = vmatpush.bf16.msra.mxu0 %v4060
        %4146 = vmatpush.bf16.msra.mxu0 %v4059
        %4147 = vmatpush.bf16.msra.mxu0 %v4058
        %4148 = vmatpush.bf16.msra.mxu0 %v4057
        %4149 = vmatmul.bf16.gmra.mxu0 %v4070
        %v4150 = vpop.f32.mrf.mxu0
        %v4151 = vadd.f32 0.0, %v4150
        %v4152 = vpop.f32.mrf.mxu0
        %v4153 = vadd.f32 0.0, %v4152
        %4154 = vmatmul.bf16.gmra.mxu0 %v4073
        %v4155 = vpop.f32.mrf.mxu0
        %v4156 = vadd.f32 0.0, %v4155
        %v4157 = vpop.f32.mrf.mxu0
        %v4158 = vadd.f32 0.0, %v4157
        %4159 = vmatmul.bf16.gmra.mxu0 %v4076
        %v4160 = vpop.f32.mrf.mxu0
        %v4161 = vadd.f32 0.0, %v4160
        %v4162 = vpop.f32.mrf.mxu0
        %v4163 = vadd.f32 0.0, %v4162
        %4164 = vmatmul.bf16.gmra.mxu0 %v4079
        %v4165 = vpop.f32.mrf.mxu0
        %v4166 = vadd.f32 0.0, %v4165
        %v4167 = vpop.f32.mrf.mxu0
        %v4168 = vadd.f32 0.0, %v4167
        %4169 = vmatmul.bf16.gmra.mxu0 %v4082
        %v4170 = vpop.f32.mrf.mxu0
        %v4171 = vadd.f32 0.0, %v4170
        %v4172 = vpop.f32.mrf.mxu0
        %v4173 = vadd.f32 0.0, %v4172
        %4174 = vmatmul.bf16.gmra.mxu0 %v4085
        %v4175 = vpop.f32.mrf.mxu0
        %v4176 = vadd.f32 0.0, %v4175
        %v4177 = vpop.f32.mrf.mxu0
        %v4178 = vadd.f32 0.0, %v4177
        %4179 = vmatmul.bf16.gmra.mxu0 %v4088
        %v4180 = vpop.f32.mrf.mxu0
        %v4181 = vadd.f32 0.0, %v4180
        %v4182 = vpop.f32.mrf.mxu0
        %v4183 = vadd.f32 0.0, %v4182
        %4184 = vmatmul.bf16.gmra.mxu0 %v4091
        %v4185 = vpop.f32.mrf.mxu0
        %v4186 = vadd.f32 0.0, %v4185
        %v4187 = vpop.f32.mrf.mxu0
        %v4188 = vadd.f32 0.0, %v4187
        %4189 = vmatmul.bf16.gmra.mxu0 %v4094
        %v4190 = vpop.f32.mrf.mxu0
        %v4191 = vadd.f32 0.0, %v4190
        %v4192 = vpop.f32.mrf.mxu0
        %v4193 = vadd.f32 0.0, %v4192
        %4194 = vmatmul.bf16.gmra.mxu0 %v4097
        %v4195 = vpop.f32.mrf.mxu0
        %v4196 = vadd.f32 0.0, %v4195
        %v4197 = vpop.f32.mrf.mxu0
        %v4198 = vadd.f32 0.0, %v4197
        %4199 = vmatmul.bf16.gmra.mxu0 %v4100
        %v4200 = vpop.f32.mrf.mxu0
        %v4201 = vadd.f32 0.0, %v4200
        %v4202 = vpop.f32.mrf.mxu0
        %v4203 = vadd.f32 0.0, %v4202
        %4204 = vmatmul.bf16.gmra.mxu0 %v4103
        %v4205 = vpop.f32.mrf.mxu0
        %v4206 = vadd.f32 0.0, %v4205
        %v4207 = vpop.f32.mrf.mxu0
        %v4208 = vadd.f32 0.0, %v4207
        %4209 = vmatmul.bf16.gmra.mxu0 %v4106
        %v4210 = vpop.f32.mrf.mxu0
        %v4211 = vadd.f32 0.0, %v4210
        %v4212 = vpop.f32.mrf.mxu0
        %v4213 = vadd.f32 0.0, %v4212
        %4214 = vmatmul.bf16.gmra.mxu0 %v4109
        %v4215 = vpop.f32.mrf.mxu0
        %v4216 = vadd.f32 0.0, %v4215
        %v4217 = vpop.f32.mrf.mxu0
        %v4218 = vadd.f32 0.0, %v4217
        %4219 = vmatmul.bf16.gmra.mxu0 %v4112
        %v4220 = vpop.f32.mrf.mxu0
        %v4221 = vadd.f32 0.0, %v4220
        %v4222 = vpop.f32.mrf.mxu0
        %v4223 = vadd.f32 0.0, %v4222
        %4224 = vmatmul.bf16.gmra.mxu0 %v4115
        %v4225 = vpop.f32.mrf.mxu0
        %v4226 = vadd.f32 0.0, %v4225
        %v4227 = vpop.f32.mrf.mxu0
        %v4228 = vadd.f32 0.0, %v4227
        %4229 = vmatmul.bf16.gmra.mxu0 %v4118
        %v4230 = vpop.f32.mrf.mxu0
        %v4231 = vadd.f32 0.0, %v4230
        %v4232 = vpop.f32.mrf.mxu0
        %v4233 = vadd.f32 0.0, %v4232
        %4234 = vmatmul.bf16.gmra.mxu0 %v4121
        %v4235 = vpop.f32.mrf.mxu0
        %v4236 = vadd.f32 0.0, %v4235
        %v4237 = vpop.f32.mrf.mxu0
        %v4238 = vadd.f32 0.0, %v4237
        %4239 = vmatmul.bf16.gmra.mxu0 %v4124
        %v4240 = vpop.f32.mrf.mxu0
        %v4241 = vadd.f32 0.0, %v4240
        %v4242 = vpop.f32.mrf.mxu0
        %v4243 = vadd.f32 0.0, %v4242
        %4244 = vmatmul.bf16.gmra.mxu0 %v4127
        %v4245 = vpop.f32.mrf.mxu0
        %v4246 = vadd.f32 0.0, %v4245
        %v4247 = vpop.f32.mrf.mxu0
        %v4248 = vadd.f32 0.0, %v4247
        %4249 = vmatmul.bf16.gmra.mxu0 %v4130
        %v4250 = vpop.f32.mrf.mxu0
        %v4251 = vadd.f32 0.0, %v4250
        %v4252 = vpop.f32.mrf.mxu0
        %v4253 = vadd.f32 0.0, %v4252
        %4254 = vmatmul.bf16.gmra.mxu0 %v4133
        %v4255 = vpop.f32.mrf.mxu0
        %v4256 = vadd.f32 0.0, %v4255
        %v4257 = vpop.f32.mrf.mxu0
        %v4258 = vadd.f32 0.0, %v4257
        %4259 = vmatmul.bf16.gmra.mxu0 %v4136
        %v4260 = vpop.f32.mrf.mxu0
        %v4261 = vadd.f32 0.0, %v4260
        %v4262 = vpop.f32.mrf.mxu0
        %v4263 = vadd.f32 0.0, %v4262
        %4264 = vmatmul.bf16.gmra.mxu0 %v4139
        %v4265 = vpop.f32.mrf.mxu0
        %v4266 = vadd.f32 0.0, %v4265
        %v4267 = vpop.f32.mrf.mxu0
        %v4268 = vadd.f32 0.0, %v4267
        %4269 = vdwg.mxu0
        %v4282 = vunpack.c.l.b16 %v3981
        %v4283 = vunpack.c.l.b16 %v3982
        %v4284 = vunpack.c.l.b16 %v3983
        %v4285 = vunpack.c.l.b16 %v3984
        %v4286 = vunpack.c.l.b16 %v3985
        %v4287 = vunpack.c.l.b16 %v3986
        %v4288 = vunpack.c.l.b16 %v3987
        %v4289 = vunpack.c.l.b16 %v3988
        %v4290 = vunpack.c.l.b16 %v3989
        %v4291 = vunpack.c.l.b16 %v3990
        %v4292 = vunpack.c.l.b16 %v3991
        %v4293 = vunpack.c.l.b16 %v3992
        %v4294 = vpack.c.b16 %v4283, %v4282
        %v4295 = vpack.c.b16 %v4285, %v4284
        %v4296 = vpack.c.b16 %v4287, %v4286
        %v4297 = vpack.c.b16 %v4289, %v4288
        %v4298 = vpack.c.b16 %v4291, %v4290
        %v4299 = vpack.c.b16 %v4293, %v4292
        %v4307 = vsel %vm2169, %v3957, 0
        %v4310 = vsel %vm2169, %v3958, 0
        %v4313 = vsel %vm2169, %v3959, 0
        %v4316 = vsel %vm2169, %v3960, 0
        %v4319 = vsel %vm2169, %v3961, 0
        %v4322 = vsel %vm2169, %v3962, 0
        %v4325 = vsel %vm2169, %v3963, 0
        %v4328 = vsel %vm2169, %v3964, 0
        %v4331 = vsel %vm2169, %v3965, 0
        %v4334 = vsel %vm2169, %v3966, 0
        %v4337 = vsel %vm2169, %v3967, 0
        %v4340 = vsel %vm2169, %v3968, 0
        %v4343 = vsel %vm2169, %v3969, 0
        %v4346 = vsel %vm2169, %v3970, 0
        %v4349 = vsel %vm2169, %v3971, 0
        %v4352 = vsel %vm2169, %v3972, 0
        %v4355 = vsel %vm2169, %v3973, 0
        %v4358 = vsel %vm2169, %v3974, 0
        %v4361 = vsel %vm2169, %v3975, 0
        %v4364 = vsel %vm2169, %v3976, 0
        %v4367 = vsel %vm2169, %v3977, 0
        %v4370 = vsel %vm2169, %v3978, 0
        %v4373 = vsel %vm2169, %v3979, 0
        %v4376 = vsel %vm2169, %v3980, 0
        %4378 = vmatpush.bf16.msra.mxu0 0
        %4379 = vmatpush.bf16.msra.mxu0 0
        %4380 = vmatpush.bf16.msra.mxu0 %v4299
        %4381 = vmatpush.bf16.msra.mxu0 %v4298
        %4382 = vmatpush.bf16.msra.mxu0 %v4297
        %4383 = vmatpush.bf16.msra.mxu0 %v4296
        %4384 = vmatpush.bf16.msra.mxu0 %v4295
        %4385 = vmatpush.bf16.msra.mxu0 %v4294
        %4386 = vmatmul.bf16.gmra.mxu0 %v4307
        %v4387 = vpop.f32.mrf.mxu0
        %v4388 = vadd.f32 %v4151, %v4387
        %v4389 = vpop.f32.mrf.mxu0
        %v4390 = vadd.f32 %v4153, %v4389
        %4391 = vmatmul.bf16.gmra.mxu0 %v4310
        %v4392 = vpop.f32.mrf.mxu0
        %v4393 = vadd.f32 %v4156, %v4392
        %v4394 = vpop.f32.mrf.mxu0
        %v4395 = vadd.f32 %v4158, %v4394
        %4396 = vmatmul.bf16.gmra.mxu0 %v4313
        %v4397 = vpop.f32.mrf.mxu0
        %v4398 = vadd.f32 %v4161, %v4397
        %v4399 = vpop.f32.mrf.mxu0
        %v4400 = vadd.f32 %v4163, %v4399
        %4401 = vmatmul.bf16.gmra.mxu0 %v4316
        %v4402 = vpop.f32.mrf.mxu0
        %v4403 = vadd.f32 %v4166, %v4402
        %v4404 = vpop.f32.mrf.mxu0
        %v4405 = vadd.f32 %v4168, %v4404
        %4406 = vmatmul.bf16.gmra.mxu0 %v4319
        %v4407 = vpop.f32.mrf.mxu0
        %v4408 = vadd.f32 %v4171, %v4407
        %v4409 = vpop.f32.mrf.mxu0
        %v4410 = vadd.f32 %v4173, %v4409
        %4411 = vmatmul.bf16.gmra.mxu0 %v4322
        %v4412 = vpop.f32.mrf.mxu0
        %v4413 = vadd.f32 %v4176, %v4412
        %v4414 = vpop.f32.mrf.mxu0
        %v4415 = vadd.f32 %v4178, %v4414
        %4416 = vmatmul.bf16.gmra.mxu0 %v4325
        %v4417 = vpop.f32.mrf.mxu0
        %v4418 = vadd.f32 %v4181, %v4417
        %v4419 = vpop.f32.mrf.mxu0
        %v4420 = vadd.f32 %v4183, %v4419
        %4421 = vmatmul.bf16.gmra.mxu0 %v4328
        %v4422 = vpop.f32.mrf.mxu0
        %v4423 = vadd.f32 %v4186, %v4422
        %v4424 = vpop.f32.mrf.mxu0
        %v4425 = vadd.f32 %v4188, %v4424
        %4426 = vmatmul.bf16.gmra.mxu0 %v4331
        %v4427 = vpop.f32.mrf.mxu0
        %v4428 = vadd.f32 %v4191, %v4427
        %v4429 = vpop.f32.mrf.mxu0
        %v4430 = vadd.f32 %v4193, %v4429
        %4431 = vmatmul.bf16.gmra.mxu0 %v4334
        %v4432 = vpop.f32.mrf.mxu0
        %v4433 = vadd.f32 %v4196, %v4432
        %v4434 = vpop.f32.mrf.mxu0
        %v4435 = vadd.f32 %v4198, %v4434
        %4436 = vmatmul.bf16.gmra.mxu0 %v4337
        %v4437 = vpop.f32.mrf.mxu0
        %v4438 = vadd.f32 %v4201, %v4437
        %v4439 = vpop.f32.mrf.mxu0
        %v4440 = vadd.f32 %v4203, %v4439
        %4441 = vmatmul.bf16.gmra.mxu0 %v4340
        %v4442 = vpop.f32.mrf.mxu0
        %v4443 = vadd.f32 %v4206, %v4442
        %v4444 = vpop.f32.mrf.mxu0
        %v4445 = vadd.f32 %v4208, %v4444
        %4446 = vmatmul.bf16.gmra.mxu0 %v4343
        %v4447 = vpop.f32.mrf.mxu0
        %v4448 = vadd.f32 %v4211, %v4447
        %v4449 = vpop.f32.mrf.mxu0
        %v4450 = vadd.f32 %v4213, %v4449
        %4451 = vmatmul.bf16.gmra.mxu0 %v4346
        %v4452 = vpop.f32.mrf.mxu0
        %v4453 = vadd.f32 %v4216, %v4452
        %v4454 = vpop.f32.mrf.mxu0
        %v4455 = vadd.f32 %v4218, %v4454
        %4456 = vmatmul.bf16.gmra.mxu0 %v4349
        %v4457 = vpop.f32.mrf.mxu0
        %v4458 = vadd.f32 %v4221, %v4457
        %v4459 = vpop.f32.mrf.mxu0
        %v4460 = vadd.f32 %v4223, %v4459
        %4461 = vmatmul.bf16.gmra.mxu0 %v4352
        %v4462 = vpop.f32.mrf.mxu0
        %v4463 = vadd.f32 %v4226, %v4462
        %v4464 = vpop.f32.mrf.mxu0
        %v4465 = vadd.f32 %v4228, %v4464
        %4466 = vmatmul.bf16.gmra.mxu0 %v4355
        %v4467 = vpop.f32.mrf.mxu0
        %v4468 = vadd.f32 %v4231, %v4467
        %v4469 = vpop.f32.mrf.mxu0
        %v4470 = vadd.f32 %v4233, %v4469
        %4471 = vmatmul.bf16.gmra.mxu0 %v4358
        %v4472 = vpop.f32.mrf.mxu0
        %v4473 = vadd.f32 %v4236, %v4472
        %v4474 = vpop.f32.mrf.mxu0
        %v4475 = vadd.f32 %v4238, %v4474
        %4476 = vmatmul.bf16.gmra.mxu0 %v4361
        %v4477 = vpop.f32.mrf.mxu0
        %v4478 = vadd.f32 %v4241, %v4477
        %v4479 = vpop.f32.mrf.mxu0
        %v4480 = vadd.f32 %v4243, %v4479
        %4481 = vmatmul.bf16.gmra.mxu0 %v4364
        %v4482 = vpop.f32.mrf.mxu0
        %v4483 = vadd.f32 %v4246, %v4482
        %v4484 = vpop.f32.mrf.mxu0
        %v4485 = vadd.f32 %v4248, %v4484
        %4486 = vmatmul.bf16.gmra.mxu0 %v4367
        %v4487 = vpop.f32.mrf.mxu0
        %v4488 = vadd.f32 %v4251, %v4487
        %v4489 = vpop.f32.mrf.mxu0
        %v4490 = vadd.f32 %v4253, %v4489
        %4491 = vmatmul.bf16.gmra.mxu0 %v4370
        %v4492 = vpop.f32.mrf.mxu0
        %v4493 = vadd.f32 %v4256, %v4492
        %v4494 = vpop.f32.mrf.mxu0
        %v4495 = vadd.f32 %v4258, %v4494
        %4496 = vmatmul.bf16.gmra.mxu0 %v4373
        %v4497 = vpop.f32.mrf.mxu0
        %v4498 = vadd.f32 %v4261, %v4497
        %v4499 = vpop.f32.mrf.mxu0
        %v4500 = vadd.f32 %v4263, %v4499
        %4501 = vmatmul.bf16.gmra.mxu0 %v4376
        %v4502 = vpop.f32.mrf.mxu0
        %v4503 = vadd.f32 %v4266, %v4502
        %v4504 = vpop.f32.mrf.mxu0
        %v4505 = vadd.f32 %v4268, %v4504
        %4506 = vdwg.mxu0
        %v4507 = vld [vmem:[#allocation2 + $0x30] sm:$0xff]
        %v4508 = vld [vmem:[#allocation2 + $0x38] sm:$0xff]
        %v4509 = vld [vmem:[#allocation2 + $0x40] sm:$0xff]
        %v4510 = vld [vmem:[#allocation2 + $0x48] sm:$0xff]
        %v4511 = vld [vmem:[#allocation2 + $0x50] sm:$0xff]
        %v4512 = vld [vmem:[#allocation2 + $0x58] sm:$0xff]
        %v4513 = vld [vmem:[#allocation2 + $0x60] sm:$0xff]
        %v4514 = vld [vmem:[#allocation2 + $0x68] sm:$0xff]
        %v4515 = vld [vmem:[#allocation2 + $0x70] sm:$0xff]
        %v4516 = vld [vmem:[#allocation2 + $0x78] sm:$0xff]
        %v4517 = vld [vmem:[#allocation2 + $0x80] sm:$0xff]
        %v4518 = vld [vmem:[#allocation2 + $0x88] sm:$0xff]
        %v4519 = vld [vmem:[#allocation2 + $0x90] sm:$0xff]
        %v4520 = vld [vmem:[#allocation2 + $0x98] sm:$0xff]
        %v4521 = vld [vmem:[#allocation2 + $0xa0] sm:$0xff]
        %v4522 = vld [vmem:[#allocation2 + $0xa8] sm:$0xff]
        %v4523 = vld [vmem:[#allocation2 + $0xb0] sm:$0xff]
        %v4524 = vld [vmem:[#allocation2 + $0xb8] sm:$0xff]
        %v4525 = vld [vmem:[#allocation2 + $0xc0] sm:$0xff]
        %v4526 = vld [vmem:[#allocation2 + $0xc8] sm:$0xff]
        %v4527 = vld [vmem:[#allocation2 + $0xd0] sm:$0xff]
        %v4528 = vld [vmem:[#allocation2 + $0xd8] sm:$0xff]
        %v4529 = vld [vmem:[#allocation2 + $0xe0] sm:$0xff]
        %v4530 = vld [vmem:[#allocation2 + $0xe8] sm:$0xff]
        %v4531 = vld [vmem:[#allocation2 + $0xf0] sm:$0xff]
        %v4532 = vld [vmem:[#allocation2 + $0xf8] sm:$0xff]
        %v4533 = vld [vmem:[#allocation2 + $0x100] sm:$0xff]
        %v4534 = vld [vmem:[#allocation2 + $0x108] sm:$0xff]
        %v4535 = vld [vmem:[#allocation2 + $0x110] sm:$0xff]
        %v4536 = vld [vmem:[#allocation2 + $0x118] sm:$0xff]
        %v4537 = vld [vmem:[#allocation2 + $0x120] sm:$0xff]
        %v4538 = vld [vmem:[#allocation2 + $0x128] sm:$0xff]
        %v4539 = vld [vmem:[#allocation2 + $0x130] sm:$0xff]
        %v4540 = vld [vmem:[#allocation2 + $0x138] sm:$0xff]
        %v4541 = vld [vmem:[#allocation2 + $0x140] sm:$0xff]
        %v4542 = vld [vmem:[#allocation2 + $0x148] sm:$0xff]
        %v4543 = vld [vmem:[#allocation2 + $0x150] sm:$0xff]
        %v4544 = vld [vmem:[#allocation2 + $0x158] sm:$0xff]
        %v4545 = vld [vmem:[#allocation2 + $0x160] sm:$0xff]
        %v4546 = vld [vmem:[#allocation2 + $0x168] sm:$0xff]
        %v4547 = vld [vmem:[#allocation2 + $0x170] sm:$0xff]
        %v4548 = vld [vmem:[#allocation2 + $0x178] sm:$0xff]
        %v4549 = vld [vmem:[#allocation2 + $0x180] sm:$0xff]
        %v4550 = vld [vmem:[#allocation2 + $0x188] sm:$0xff]
        %v4551 = vld [vmem:[#allocation2 + $0x190] sm:$0xff]
        %v4552 = vld [vmem:[#allocation2 + $0x198] sm:$0xff]
        %v4553 = vld [vmem:[#allocation2 + $0x1a0] sm:$0xff]
        %v4554 = vld [vmem:[#allocation2 + $0x1a8] sm:$0xff]
        %v4555 = vpack.c.bf16 %v4508, %v4507
        %v4556 = vpack.c.bf16 %v4510, %v4509
        %v4557 = vpack.c.bf16 %v4512, %v4511
        %v4558 = vpack.c.bf16 %v4514, %v4513
        %v4559 = vpack.c.bf16 %v4516, %v4515
        %v4560 = vpack.c.bf16 %v4518, %v4517
        %v4561 = vpack.c.bf16 %v4520, %v4519
        %v4562 = vpack.c.bf16 %v4522, %v4521
        %v4563 = vpack.c.bf16 %v4524, %v4523
        %v4564 = vpack.c.bf16 %v4526, %v4525
        %v4565 = vpack.c.bf16 %v4528, %v4527
        %v4566 = vpack.c.bf16 %v4530, %v4529
        %v4567 = vpack.c.bf16 %v4532, %v4531
        %v4568 = vpack.c.bf16 %v4534, %v4533
        %v4569 = vpack.c.bf16 %v4536, %v4535
        %v4570 = vpack.c.bf16 %v4538, %v4537
        %v4571 = vpack.c.bf16 %v4540, %v4539
        %v4572 = vpack.c.bf16 %v4542, %v4541
        %v4573 = vpack.c.bf16 %v4544, %v4543
        %v4574 = vpack.c.bf16 %v4546, %v4545
        %v4575 = vpack.c.bf16 %v4548, %v4547
        %v4576 = vpack.c.bf16 %v4550, %v4549
        %v4577 = vpack.c.bf16 %v4552, %v4551
        %v4578 = vpack.c.bf16 %v4554, %v4553
        %s4579 = scalar_lea.vmem %s2, 96
        %v4580 = vld [vmem:[%s4579] sm:$0xf]
        %v4581 = vld [vmem:[%s4579 + $0x4] sm:$0xf]
        %v4582 = vld [vmem:[%s4579 + $0x8] sm:$0xf]
        %v4583 = vld [vmem:[%s4579 + $0xc] sm:$0xf]
        %v4584 = vld [vmem:[%s4579 + $0x10] sm:$0xf]
        %v4585 = vld [vmem:[%s4579 + $0x14] sm:$0xf]
        %v4586 = vld [vmem:[%s4579 + $0x18] sm:$0xf]
        %v4587 = vld [vmem:[%s4579 + $0x1c] sm:$0xf]
        %v4588 = vld [vmem:[%s4579 + $0x20] sm:$0xf]
        %v4589 = vld [vmem:[%s4579 + $0x24] sm:$0xf]
        %v4590 = vld [vmem:[%s4579 + $0x28] sm:$0xf]
        %v4591 = vld [vmem:[%s4579 + $0x2c] sm:$0xf]
        %v4604 = vunpack.c.l.b16 %v4580
        %v4605 = vunpack.c.l.b16 %v4581
        %v4606 = vunpack.c.l.b16 %v4582
        %v4607 = vunpack.c.l.b16 %v4583
        %v4608 = vunpack.c.l.b16 %v4584
        %v4609 = vunpack.c.l.b16 %v4585
        %v4610 = vunpack.c.l.b16 %v4586
        %v4611 = vunpack.c.l.b16 %v4587
        %v4612 = vunpack.c.l.b16 %v4588
        %v4613 = vunpack.c.l.b16 %v4589
        %v4614 = vunpack.c.l.b16 %v4590
        %v4615 = vunpack.c.l.b16 %v4591
        %v4616 = vpack.c.b16 %v4605, %v4604
        %v4617 = vpack.c.b16 %v4607, %v4606
        %v4618 = vpack.c.b16 %v4609, %v4608
        %v4619 = vpack.c.b16 %v4611, %v4610
        %v4620 = vpack.c.b16 %v4613, %v4612
        %v4621 = vpack.c.b16 %v4615, %v4614
        %v4629 = vsel %vm2169, %v4555, 0
        %v4632 = vsel %vm2169, %v4556, 0
        %v4635 = vsel %vm2169, %v4557, 0
        %v4638 = vsel %vm2169, %v4558, 0
        %v4641 = vsel %vm2169, %v4559, 0
        %v4644 = vsel %vm2169, %v4560, 0
        %v4647 = vsel %vm2169, %v4561, 0
        %v4650 = vsel %vm2169, %v4562, 0
        %v4653 = vsel %vm2169, %v4563, 0
        %v4656 = vsel %vm2169, %v4564, 0
        %v4659 = vsel %vm2169, %v4565, 0
        %v4662 = vsel %vm2169, %v4566, 0
        %v4665 = vsel %vm2169, %v4567, 0
        %v4668 = vsel %vm2169, %v4568, 0
        %v4671 = vsel %vm2169, %v4569, 0
        %v4674 = vsel %vm2169, %v4570, 0
        %v4677 = vsel %vm2169, %v4571, 0
        %v4680 = vsel %vm2169, %v4572, 0
        %v4683 = vsel %vm2169, %v4573, 0
        %v4686 = vsel %vm2169, %v4574, 0
        %v4689 = vsel %vm2169, %v4575, 0
        %v4692 = vsel %vm2169, %v4576, 0
        %v4695 = vsel %vm2169, %v4577, 0
        %v4698 = vsel %vm2169, %v4578, 0
        %4700 = vmatpush.bf16.msra.mxu0 0
        %4701 = vmatpush.bf16.msra.mxu0 0
        %4702 = vmatpush.bf16.msra.mxu0 %v4621
        %4703 = vmatpush.bf16.msra.mxu0 %v4620
        %4704 = vmatpush.bf16.msra.mxu0 %v4619
        %4705 = vmatpush.bf16.msra.mxu0 %v4618
        %4706 = vmatpush.bf16.msra.mxu0 %v4617
        %4707 = vmatpush.bf16.msra.mxu0 %v4616
        %4708 = vmatmul.bf16.gmra.mxu0 %v4629
        %v4709 = vpop.f32.mrf.mxu0
        %v4710 = vadd.f32 0.0, %v4709
        %v4711 = vpop.f32.mrf.mxu0
        %v4712 = vadd.f32 0.0, %v4711
        %4713 = vmatmul.bf16.gmra.mxu0 %v4632
        %v4714 = vpop.f32.mrf.mxu0
        %v4715 = vadd.f32 0.0, %v4714
        %v4716 = vpop.f32.mrf.mxu0
        %v4717 = vadd.f32 0.0, %v4716
        %4718 = vmatmul.bf16.gmra.mxu0 %v4635
        %v4719 = vpop.f32.mrf.mxu0
        %v4720 = vadd.f32 0.0, %v4719
        %v4721 = vpop.f32.mrf.mxu0
        %v4722 = vadd.f32 0.0, %v4721
        %4723 = vmatmul.bf16.gmra.mxu0 %v4638
        %v4724 = vpop.f32.mrf.mxu0
        %v4725 = vadd.f32 0.0, %v4724
        %v4726 = vpop.f32.mrf.mxu0
        %v4727 = vadd.f32 0.0, %v4726
        %4728 = vmatmul.bf16.gmra.mxu0 %v4641
        %v4729 = vpop.f32.mrf.mxu0
        %v4730 = vadd.f32 0.0, %v4729
        %v4731 = vpop.f32.mrf.mxu0
        %v4732 = vadd.f32 0.0, %v4731
        %4733 = vmatmul.bf16.gmra.mxu0 %v4644
        %v4734 = vpop.f32.mrf.mxu0
        %v4735 = vadd.f32 0.0, %v4734
        %v4736 = vpop.f32.mrf.mxu0
        %v4737 = vadd.f32 0.0, %v4736
        %4738 = vmatmul.bf16.gmra.mxu0 %v4647
        %v4739 = vpop.f32.mrf.mxu0
        %v4740 = vadd.f32 0.0, %v4739
        %v4741 = vpop.f32.mrf.mxu0
        %v4742 = vadd.f32 0.0, %v4741
        %4743 = vmatmul.bf16.gmra.mxu0 %v4650
        %v4744 = vpop.f32.mrf.mxu0
        %v4745 = vadd.f32 0.0, %v4744
        %v4746 = vpop.f32.mrf.mxu0
        %v4747 = vadd.f32 0.0, %v4746
        %4748 = vmatmul.bf16.gmra.mxu0 %v4653
        %v4749 = vpop.f32.mrf.mxu0
        %v4750 = vadd.f32 0.0, %v4749
        %v4751 = vpop.f32.mrf.mxu0
        %v4752 = vadd.f32 0.0, %v4751
        %4753 = vmatmul.bf16.gmra.mxu0 %v4656
        %v4754 = vpop.f32.mrf.mxu0
        %v4755 = vadd.f32 0.0, %v4754
        %v4756 = vpop.f32.mrf.mxu0
        %v4757 = vadd.f32 0.0, %v4756
        %4758 = vmatmul.bf16.gmra.mxu0 %v4659
        %v4759 = vpop.f32.mrf.mxu0
        %v4760 = vadd.f32 0.0, %v4759
        %v4761 = vpop.f32.mrf.mxu0
        %v4762 = vadd.f32 0.0, %v4761
        %4763 = vmatmul.bf16.gmra.mxu0 %v4662
        %v4764 = vpop.f32.mrf.mxu0
        %v4765 = vadd.f32 0.0, %v4764
        %v4766 = vpop.f32.mrf.mxu0
        %v4767 = vadd.f32 0.0, %v4766
        %4768 = vmatmul.bf16.gmra.mxu0 %v4665
        %v4769 = vpop.f32.mrf.mxu0
        %v4770 = vadd.f32 0.0, %v4769
        %v4771 = vpop.f32.mrf.mxu0
        %v4772 = vadd.f32 0.0, %v4771
        %4773 = vmatmul.bf16.gmra.mxu0 %v4668
        %v4774 = vpop.f32.mrf.mxu0
        %v4775 = vadd.f32 0.0, %v4774
        %v4776 = vpop.f32.mrf.mxu0
        %v4777 = vadd.f32 0.0, %v4776
        %4778 = vmatmul.bf16.gmra.mxu0 %v4671
        %v4779 = vpop.f32.mrf.mxu0
        %v4780 = vadd.f32 0.0, %v4779
        %v4781 = vpop.f32.mrf.mxu0
        %v4782 = vadd.f32 0.0, %v4781
        %4783 = vmatmul.bf16.gmra.mxu0 %v4674
        %v4784 = vpop.f32.mrf.mxu0
        %v4785 = vadd.f32 0.0, %v4784
        %v4786 = vpop.f32.mrf.mxu0
        %v4787 = vadd.f32 0.0, %v4786
        %4788 = vmatmul.bf16.gmra.mxu0 %v4677
        %v4789 = vpop.f32.mrf.mxu0
        %v4790 = vadd.f32 0.0, %v4789
        %v4791 = vpop.f32.mrf.mxu0
        %v4792 = vadd.f32 0.0, %v4791
        %4793 = vmatmul.bf16.gmra.mxu0 %v4680
        %v4794 = vpop.f32.mrf.mxu0
        %v4795 = vadd.f32 0.0, %v4794
        %v4796 = vpop.f32.mrf.mxu0
        %v4797 = vadd.f32 0.0, %v4796
        %4798 = vmatmul.bf16.gmra.mxu0 %v4683
        %v4799 = vpop.f32.mrf.mxu0
        %v4800 = vadd.f32 0.0, %v4799
        %v4801 = vpop.f32.mrf.mxu0
        %v4802 = vadd.f32 0.0, %v4801
        %4803 = vmatmul.bf16.gmra.mxu0 %v4686
        %v4804 = vpop.f32.mrf.mxu0
        %v4805 = vadd.f32 0.0, %v4804
        %v4806 = vpop.f32.mrf.mxu0
        %v4807 = vadd.f32 0.0, %v4806
        %4808 = vmatmul.bf16.gmra.mxu0 %v4689
        %v4809 = vpop.f32.mrf.mxu0
        %v4810 = vadd.f32 0.0, %v4809
        %v4811 = vpop.f32.mrf.mxu0
        %v4812 = vadd.f32 0.0, %v4811
        %4813 = vmatmul.bf16.gmra.mxu0 %v4692
        %v4814 = vpop.f32.mrf.mxu0
        %v4815 = vadd.f32 0.0, %v4814
        %v4816 = vpop.f32.mrf.mxu0
        %v4817 = vadd.f32 0.0, %v4816
        %4818 = vmatmul.bf16.gmra.mxu0 %v4695
        %v4819 = vpop.f32.mrf.mxu0
        %v4820 = vadd.f32 0.0, %v4819
        %v4821 = vpop.f32.mrf.mxu0
        %v4822 = vadd.f32 0.0, %v4821
        %4823 = vmatmul.bf16.gmra.mxu0 %v4698
        %v4824 = vpop.f32.mrf.mxu0
        %v4825 = vadd.f32 0.0, %v4824
        %v4826 = vpop.f32.mrf.mxu0
        %v4827 = vadd.f32 0.0, %v4826
        %4828 = vdwg.mxu0
        %v4829 = vadd.f32 %v4388, %v4710
        %v4830 = vadd.f32 %v4390, %v4712
        %v4831 = vadd.f32 %v4393, %v4715
        %v4832 = vadd.f32 %v4395, %v4717
        %v4833 = vadd.f32 %v4398, %v4720
        %v4834 = vadd.f32 %v4400, %v4722
        %v4835 = vadd.f32 %v4403, %v4725
        %v4836 = vadd.f32 %v4405, %v4727
        %v4837 = vadd.f32 %v4408, %v4730
        %v4838 = vadd.f32 %v4410, %v4732
        %v4839 = vadd.f32 %v4413, %v4735
        %v4840 = vadd.f32 %v4415, %v4737
        %v4841 = vadd.f32 %v4418, %v4740
        %v4842 = vadd.f32 %v4420, %v4742
        %v4843 = vadd.f32 %v4423, %v4745
        %v4844 = vadd.f32 %v4425, %v4747
        %v4845 = vadd.f32 %v4428, %v4750
        %v4846 = vadd.f32 %v4430, %v4752
        %v4847 = vadd.f32 %v4433, %v4755
        %v4848 = vadd.f32 %v4435, %v4757
        %v4849 = vadd.f32 %v4438, %v4760
        %v4850 = vadd.f32 %v4440, %v4762
        %v4851 = vadd.f32 %v4443, %v4765
        %v4852 = vadd.f32 %v4445, %v4767
        %v4853 = vadd.f32 %v4448, %v4770
        %v4854 = vadd.f32 %v4450, %v4772
        %v4855 = vadd.f32 %v4453, %v4775
        %v4856 = vadd.f32 %v4455, %v4777
        %v4857 = vadd.f32 %v4458, %v4780
        %v4858 = vadd.f32 %v4460, %v4782
        %v4859 = vadd.f32 %v4463, %v4785
        %v4860 = vadd.f32 %v4465, %v4787
        %v4861 = vadd.f32 %v4468, %v4790
        %v4862 = vadd.f32 %v4470, %v4792
        %v4863 = vadd.f32 %v4473, %v4795
        %v4864 = vadd.f32 %v4475, %v4797
        %v4865 = vadd.f32 %v4478, %v4800
        %v4866 = vadd.f32 %v4480, %v4802
        %v4867 = vadd.f32 %v4483, %v4805
        %v4868 = vadd.f32 %v4485, %v4807
        %v4869 = vadd.f32 %v4488, %v4810
        %v4870 = vadd.f32 %v4490, %v4812
        %v4871 = vadd.f32 %v4493, %v4815
        %v4872 = vadd.f32 %v4495, %v4817
        %v4873 = vadd.f32 %v4498, %v4820
        %v4874 = vadd.f32 %v4500, %v4822
        %v4875 = vadd.f32 %v4503, %v4825
        %v4876 = vadd.f32 %v4505, %v4827
        %v4877 = vperm.slane %v2165, 0
        %v4878 = vmul.f32 %v4829, %v4877
        %v4879 = vmul.f32 %v4830, %v4877
        %v4880 = vmul.f32 %v4831, %v4877
        %v4881 = vmul.f32 %v4832, %v4877
        %v4882 = vmul.f32 %v4833, %v4877
        %v4883 = vmul.f32 %v4834, %v4877
        %v4884 = vmul.f32 %v4835, %v4877
        %v4885 = vmul.f32 %v4836, %v4877
        %v4886 = vmul.f32 %v4837, %v4877
        %v4887 = vmul.f32 %v4838, %v4877
        %v4888 = vmul.f32 %v4839, %v4877
        %v4889 = vmul.f32 %v4840, %v4877
        %v4890 = vmul.f32 %v4841, %v4877
        %v4891 = vmul.f32 %v4842, %v4877
        %v4892 = vmul.f32 %v4843, %v4877
        %v4893 = vmul.f32 %v4844, %v4877
        %v4894 = vmul.f32 %v4845, %v4877
        %v4895 = vmul.f32 %v4846, %v4877
        %v4896 = vmul.f32 %v4847, %v4877
        %v4897 = vmul.f32 %v4848, %v4877
        %v4898 = vmul.f32 %v4849, %v4877
        %v4899 = vmul.f32 %v4850, %v4877
        %v4900 = vmul.f32 %v4851, %v4877
        %v4901 = vmul.f32 %v4852, %v4877
        %v4902 = vmul.f32 %v4853, %v4877
        %v4903 = vmul.f32 %v4854, %v4877
        %v4904 = vmul.f32 %v4855, %v4877
        %v4905 = vmul.f32 %v4856, %v4877
        %v4906 = vmul.f32 %v4857, %v4877
        %v4907 = vmul.f32 %v4858, %v4877
        %v4908 = vmul.f32 %v4859, %v4877
        %v4909 = vmul.f32 %v4860, %v4877
        %v4910 = vmul.f32 %v4861, %v4877
        %v4911 = vmul.f32 %v4862, %v4877
        %v4912 = vmul.f32 %v4863, %v4877
        %v4913 = vmul.f32 %v4864, %v4877
        %v4914 = vmul.f32 %v4865, %v4877
        %v4915 = vmul.f32 %v4866, %v4877
        %v4916 = vmul.f32 %v4867, %v4877
        %v4917 = vmul.f32 %v4868, %v4877
        %v4918 = vmul.f32 %v4869, %v4877
        %v4919 = vmul.f32 %v4870, %v4877
        %v4920 = vmul.f32 %v4871, %v4877
        %v4921 = vmul.f32 %v4872, %v4877
        %v4922 = vmul.f32 %v4873, %v4877
        %v4923 = vmul.f32 %v4874, %v4877
        %v4924 = vmul.f32 %v4875, %v4877
        %v4925 = vmul.f32 %v4876, %v4877
        %v4926 = vperm.slane %v2166, 0
        %v4927 = vadd.f32 %v4878, %v4926
        %v4928 = vadd.f32 %v4879, %v4926
        %v4929 = vadd.f32 %v4880, %v4926
        %v4930 = vadd.f32 %v4881, %v4926
        %v4931 = vadd.f32 %v4882, %v4926
        %v4932 = vadd.f32 %v4883, %v4926
        %v4933 = vadd.f32 %v4884, %v4926
        %v4934 = vadd.f32 %v4885, %v4926
        %v4935 = vadd.f32 %v4886, %v4926
        %v4936 = vadd.f32 %v4887, %v4926
        %v4937 = vadd.f32 %v4888, %v4926
        %v4938 = vadd.f32 %v4889, %v4926
        %v4939 = vadd.f32 %v4890, %v4926
        %v4940 = vadd.f32 %v4891, %v4926
        %v4941 = vadd.f32 %v4892, %v4926
        %v4942 = vadd.f32 %v4893, %v4926
        %v4943 = vadd.f32 %v4894, %v4926
        %v4944 = vadd.f32 %v4895, %v4926
        %v4945 = vadd.f32 %v4896, %v4926
        %v4946 = vadd.f32 %v4897, %v4926
        %v4947 = vadd.f32 %v4898, %v4926
        %v4948 = vadd.f32 %v4899, %v4926
        %v4949 = vadd.f32 %v4900, %v4926
        %v4950 = vadd.f32 %v4901, %v4926
        %v4951 = vadd.f32 %v4902, %v4926
        %v4952 = vadd.f32 %v4903, %v4926
        %v4953 = vadd.f32 %v4904, %v4926
        %v4954 = vadd.f32 %v4905, %v4926
        %v4955 = vadd.f32 %v4906, %v4926
        %v4956 = vadd.f32 %v4907, %v4926
        %v4957 = vadd.f32 %v4908, %v4926
        %v4958 = vadd.f32 %v4909, %v4926
        %v4959 = vadd.f32 %v4910, %v4926
        %v4960 = vadd.f32 %v4911, %v4926
        %v4961 = vadd.f32 %v4912, %v4926
        %v4962 = vadd.f32 %v4913, %v4926
        %v4963 = vadd.f32 %v4914, %v4926
        %v4964 = vadd.f32 %v4915, %v4926
        %v4965 = vadd.f32 %v4916, %v4926
        %v4966 = vadd.f32 %v4917, %v4926
        %v4967 = vadd.f32 %v4918, %v4926
        %v4968 = vadd.f32 %v4919, %v4926
        %v4969 = vadd.f32 %v4920, %v4926
        %v4970 = vadd.f32 %v4921, %v4926
        %v4971 = vadd.f32 %v4922, %v4926
        %v4972 = vadd.f32 %v4923, %v4926
        %v4973 = vadd.f32 %v4924, %v4926
        %v4974 = vadd.f32 %v4925, %v4926
        %v4975 = vmul.f32 %v4927, %v2115
        %v4976 = vmul.f32 %v4928, %v2116
        %v4977 = vmul.f32 %v4929, %v2117
        %v4978 = vmul.f32 %v4930, %v2118
        %v4979 = vmul.f32 %v4931, %v2119
        %v4980 = vmul.f32 %v4932, %v2120
        %v4981 = vmul.f32 %v4933, %v2121
        %v4982 = vmul.f32 %v4934, %v2122
        %v4983 = vmul.f32 %v4935, %v2123
        %v4984 = vmul.f32 %v4936, %v2124
        %v4985 = vmul.f32 %v4937, %v2125
        %v4986 = vmul.f32 %v4938, %v2126
        %v4987 = vmul.f32 %v4939, %v2127
        %v4988 = vmul.f32 %v4940, %v2128
        %v4989 = vmul.f32 %v4941, %v2129
        %v4990 = vmul.f32 %v4942, %v2130
        %v4991 = vmul.f32 %v4943, %v2131
        %v4992 = vmul.f32 %v4944, %v2132
        %v4993 = vmul.f32 %v4945, %v2133
        %v4994 = vmul.f32 %v4946, %v2134
        %v4995 = vmul.f32 %v4947, %v2135
        %v4996 = vmul.f32 %v4948, %v2136
        %v4997 = vmul.f32 %v4949, %v2137
        %v4998 = vmul.f32 %v4950, %v2138
        %v4999 = vmul.f32 %v4951, %v2139
        %v5000 = vmul.f32 %v4952, %v2140
        %v5001 = vmul.f32 %v4953, %v2141
        %v5002 = vmul.f32 %v4954, %v2142
        %v5003 = vmul.f32 %v4955, %v2143
        %v5004 = vmul.f32 %v4956, %v2144
        %v5005 = vmul.f32 %v4957, %v2145
        %v5006 = vmul.f32 %v4958, %v2146
        %v5007 = vmul.f32 %v4959, %v2147
        %v5008 = vmul.f32 %v4960, %v2148
        %v5009 = vmul.f32 %v4961, %v2149
        %v5010 = vmul.f32 %v4962, %v2150
        %v5011 = vmul.f32 %v4963, %v2151
        %v5012 = vmul.f32 %v4964, %v2152
        %v5013 = vmul.f32 %v4965, %v2153
        %v5014 = vmul.f32 %v4966, %v2154
        %v5015 = vmul.f32 %v4967, %v2155
        %v5016 = vmul.f32 %v4968, %v2156
        %v5017 = vmul.f32 %v4969, %v2157
        %v5018 = vmul.f32 %v4970, %v2158
        %v5019 = vmul.f32 %v4971, %v2159
        %v5020 = vmul.f32 %v4972, %v2160
        %v5021 = vmul.f32 %v4973, %v2161
        %v5022 = vmul.f32 %v4974, %v2162
        %v5023 = vsel %vm3426, %v4975, 0.0
        %v5024 = vsel %vm3426, %v4976, 0.0
        %v5025 = vadd.f32 %v5023, %v5024
        %v5026 = vsel %vm3426, %v4977, 0.0
        %v5027 = vadd.f32 %v5025, %v5026
        %v5028 = vsel %vm3426, %v4978, 0.0
        %v5029 = vadd.f32 %v5027, %v5028
        %v5030 = vsel %vm3426, %v4979, 0.0
        %v5031 = vadd.f32 %v5029, %v5030
        %v5032 = vsel %vm3426, %v4980, 0.0
        %v5033 = vadd.f32 %v5031, %v5032
        %v5034 = vsel %vm3426, %v4981, 0.0
        %v5035 = vadd.f32 %v5033, %v5034
        %v5036 = vsel %vm3426, %v4982, 0.0
        %v5037 = vadd.f32 %v5035, %v5036
        %v5038 = vsel %vm3426, %v4983, 0.0
        %v5039 = vadd.f32 %v5037, %v5038
        %v5040 = vsel %vm3426, %v4984, 0.0
        %v5041 = vadd.f32 %v5039, %v5040
        %v5042 = vsel %vm3426, %v4985, 0.0
        %v5043 = vadd.f32 %v5041, %v5042
        %v5044 = vsel %vm3426, %v4986, 0.0
        %v5045 = vadd.f32 %v5043, %v5044
        %v5046 = vsel %vm3426, %v4987, 0.0
        %v5047 = vadd.f32 %v5045, %v5046
        %v5048 = vsel %vm3426, %v4988, 0.0
        %v5049 = vadd.f32 %v5047, %v5048
        %v5050 = vsel %vm3426, %v4989, 0.0
        %v5051 = vadd.f32 %v5049, %v5050
        %v5052 = vsel %vm3426, %v4990, 0.0
        %v5053 = vadd.f32 %v5051, %v5052
        %v5054 = vsel %vm3426, %v4991, 0.0
        %v5055 = vadd.f32 %v5053, %v5054
        %v5056 = vsel %vm3426, %v4992, 0.0
        %v5057 = vadd.f32 %v5055, %v5056
        %v5058 = vsel %vm3426, %v4993, 0.0
        %v5059 = vadd.f32 %v5057, %v5058
        %v5060 = vsel %vm3426, %v4994, 0.0
        %v5061 = vadd.f32 %v5059, %v5060
        %v5062 = vsel %vm3426, %v4995, 0.0
        %v5063 = vadd.f32 %v5061, %v5062
        %v5064 = vsel %vm3426, %v4996, 0.0
        %v5065 = vadd.f32 %v5063, %v5064
        %v5066 = vsel %vm3426, %v4997, 0.0
        %v5067 = vadd.f32 %v5065, %v5066
        %v5068 = vsel %vm3426, %v4998, 0.0
        %v5069 = vadd.f32 %v5067, %v5068
        %v5070 = vsel %vm3426, %v4999, 0.0
        %v5071 = vadd.f32 %v5069, %v5070
        %v5072 = vsel %vm3426, %v5000, 0.0
        %v5073 = vadd.f32 %v5071, %v5072
        %v5074 = vsel %vm3426, %v5001, 0.0
        %v5075 = vadd.f32 %v5073, %v5074
        %v5076 = vsel %vm3426, %v5002, 0.0
        %v5077 = vadd.f32 %v5075, %v5076
        %v5078 = vsel %vm3426, %v5003, 0.0
        %v5079 = vadd.f32 %v5077, %v5078
        %v5080 = vsel %vm3426, %v5004, 0.0
        %v5081 = vadd.f32 %v5079, %v5080
        %v5082 = vsel %vm3426, %v5005, 0.0
        %v5083 = vadd.f32 %v5081, %v5082
        %v5084 = vsel %vm3426, %v5006, 0.0
        %v5085 = vadd.f32 %v5083, %v5084
        %v5086 = vsel %vm3426, %v5007, 0.0
        %v5087 = vadd.f32 %v5085, %v5086
        %v5088 = vsel %vm3426, %v5008, 0.0
        %v5089 = vadd.f32 %v5087, %v5088
        %v5090 = vsel %vm3426, %v5009, 0.0
        %v5091 = vadd.f32 %v5089, %v5090
        %v5092 = vsel %vm3426, %v5010, 0.0
        %v5093 = vadd.f32 %v5091, %v5092
        %v5094 = vsel %vm3426, %v5011, 0.0
        %v5095 = vadd.f32 %v5093, %v5094
        %v5096 = vsel %vm3426, %v5012, 0.0
        %v5097 = vadd.f32 %v5095, %v5096
        %v5098 = vsel %vm3426, %v5013, 0.0
        %v5099 = vadd.f32 %v5097, %v5098
        %v5100 = vsel %vm3426, %v5014, 0.0
        %v5101 = vadd.f32 %v5099, %v5100
        %v5102 = vsel %vm3426, %v5015, 0.0
        %v5103 = vadd.f32 %v5101, %v5102
        %v5104 = vsel %vm3426, %v5016, 0.0
        %v5105 = vadd.f32 %v5103, %v5104
        %v5106 = vsel %vm3426, %v5017, 0.0
        %v5107 = vadd.f32 %v5105, %v5106
        %v5108 = vsel %vm3426, %v5018, 0.0
        %v5109 = vadd.f32 %v5107, %v5108
        %v5110 = vsel %vm3426, %v5019, 0.0
        %v5111 = vadd.f32 %v5109, %v5110
        %v5112 = vsel %vm3426, %v5020, 0.0
        %v5113 = vadd.f32 %v5111, %v5112
        %v5114 = vsel %vm3426, %v5021, 0.0
        %v5115 = vadd.f32 %v5113, %v5114
        %v5116 = vsel %vm3426, %v5022, 0.0
        %v5117 = vadd.f32 %v5115, %v5116
        %v5118 = vrot.slane %v5117, 4
        %v5119 = vadd.f32 %v5117, %v5118
        %v5120 = vrot.slane %v5119, 2
        %v5121 = vadd.f32 %v5119, %v5120
        %v5122 = vrot.slane %v5121, 1
        %v5123 = vadd.f32 %v5121, %v5122
        %v5124 = vmul.f32 %v5123, 0.00390625
        %v5125 = vld [vmem:[%s5] sm:$0xff]
        %v5126 = vld [vmem:[%s5 + $0x8] sm:$0xff]
        %v5127 = vld [vmem:[%s5 + $0x10] sm:$0xff]
        %v5128 = vld [vmem:[%s5 + $0x18] sm:$0xff]
        %v5129 = vld [vmem:[%s6] sm:$0x1]
        %v5131 = vsel %vm3426, %v5124, 0
        %5133 = vmatpush.msra.mxu0 0.0
        %5134 = vmatpush.msra.mxu0 0.0
        %5135 = vmatpush.msra.mxu0 0.0
        %5136 = vmatpush.msra.mxu0 0.0
        %5137 = vmatpush.msra.mxu0 0.0
        %5138 = vmatpush.msra.mxu0 0.0
        %5139 = vmatpush.msra.mxu0 0.0
        %5140 = vmatpush.msra.mxu0 0.0
        %5141 = vmatpush.msra.mxu0 0.0
        %5142 = vmatpush.msra.mxu0 0.0
        %5143 = vmatpush.msra.mxu0 0.0
        %5144 = vmatpush.msra.mxu0 0.0
        %5145 = vmatpush.msra.mxu0 %v5128
        %5146 = vmatpush.msra.mxu0 %v5127
        %5147 = vmatpush.msra.mxu0 %v5126
        %5148 = vmatpush.msra.mxu0 %v5125
        %5149 = vmatmul.f32.gmra.mxu0 %v5131
        %v5150 = vpop.f32.mrf.mxu0
        %v5151 = vadd.f32 %v5129, %v5150
        %5152 = vdwg.mxu0
        %v5153 = vmax.f32 %v5151, 0.0
        %v5154 = vld [vmem:[%s7] sm:$0x3]
        %v5155 = vld [vmem:[%s8] sm:$0x1]
        %vm5156 = vcmask 15360
        %v5158 = vsel %vm5156, %v5153, 0
        %vm5160 = vcmask 1041408
        %v5162 = vsel %vm5160, %v5154, 0
        %5164 = vmatpush.msra.mxu0 0.0
        %5165 = vmatpush.msra.mxu0 0.0
        %5166 = vmatpush.msra.mxu0 0.0
        %5167 = vmatpush.msra.mxu0 0.0
        %5168 = vmatpush.msra.mxu0 0.0
        %5169 = vmatpush.msra.mxu0 0.0
        %5170 = vmatpush.msra.mxu0 0.0
        %5171 = vmatpush.msra.mxu0 0.0
        %5172 = vmatpush.msra.mxu0 0.0
        %5173 = vmatpush.msra.mxu0 0.0
        %5174 = vmatpush.msra.mxu0 0.0
        %5175 = vmatpush.msra.mxu0 0.0
        %5176 = vmatpush.msra.mxu0 0.0
        %5177 = vmatpush.msra.mxu0 0.0
        %5178 = vmatpush.msra.mxu0 0.0
        %5179 = vmatpush.msra.mxu0 %v5162
        %5180 = vmatmul.f32.gmra.mxu0 %v5158
        %v5181 = vpop.f32.mrf.mxu0
        %v5182 = vadd.f32 %v5155, %v5181
        %5183 = vdwg.mxu0
        %v5184 = vmul.f32 %v5182, 0.5
        %v5185 = vtanh.pop %v5184
        %v5186 = vadd.f32 %v5185, 1.0
        %v5187 = vmul.f32 %v5186, 0.5
        %v5188 = vld [vmem:[%s334 + $0xc] sm:$0xf]
        %v5189 = vld [vmem:[%s334 + $0x10] sm:$0xf]
        %v5190 = vld [vmem:[%s334 + $0x14] sm:$0xf]
        %v5191 = vld [vmem:[%s334 + $0x18] sm:$0xf]
        %v5192 = vld [vmem:[%s334 + $0x1c] sm:$0xf]
        %v5193 = vld [vmem:[%s334 + $0x20] sm:$0xf]
        %v5194 = vld [vmem:[%s334 + $0x24] sm:$0xf]
        %v5195 = vld [vmem:[%s334 + $0x28] sm:$0xf]
        %v5196 = vld [vmem:[%s334 + $0x2c] sm:$0xf]
        %v5197 = vld [vmem:[%s334 + $0x30] sm:$0xf]
        %v5198 = vld [vmem:[%s334 + $0x34] sm:$0xf]
        %v5199 = vld [vmem:[%s334 + $0x38] sm:$0xf]
        %v5200 = vld [vmem:[%s334 + $0x3c] sm:$0xf]
        %v5201 = vld [vmem:[%s334 + $0x40] sm:$0xf]
        %v5202 = vld [vmem:[%s334 + $0x44] sm:$0xf]
        %v5203 = vld [vmem:[%s334 + $0x48] sm:$0xf]
        %v5204 = vld [vmem:[%s334 + $0x4c] sm:$0xf]
        %v5205 = vld [vmem:[%s334 + $0x50] sm:$0xf]
        %v5206 = vld [vmem:[%s334 + $0x54] sm:$0xf]
        %v5207 = vld [vmem:[%s334 + $0x58] sm:$0xf]
        %v5208 = vld [vmem:[%s334 + $0x5c] sm:$0xf]
        %v5209 = vld [vmem:[%s334 + $0x60] sm:$0xf]
        %v5210 = vld [vmem:[%s334 + $0x64] sm:$0xf]
        %v5211 = vld [vmem:[%s334 + $0x68] sm:$0xf]
        %v5212 = vld [vmem:[%s334 + $0x6c] sm:$0xf]
        %v5213 = vld [vmem:[%s334 + $0x70] sm:$0xf]
        %v5214 = vld [vmem:[%s334 + $0x74] sm:$0xf]
        %v5215 = vld [vmem:[%s334 + $0x78] sm:$0xf]
        %v5216 = vld [vmem:[%s334 + $0x7c] sm:$0xf]
        %v5217 = vld [vmem:[%s334 + $0x80] sm:$0xf]
        %v5218 = vld [vmem:[%s334 + $0x84] sm:$0xf]
        %v5219 = vld [vmem:[%s334 + $0x88] sm:$0xf]
        %v5220 = vld [vmem:[%s334 + $0x8c] sm:$0xf]
        %v5221 = vld [vmem:[%s334 + $0x90] sm:$0xf]
        %v5222 = vld [vmem:[%s334 + $0x94] sm:$0xf]
        %v5223 = vld [vmem:[%s334 + $0x98] sm:$0xf]
        %v5224 = vld [vmem:[%s334 + $0x9c] sm:$0xf]
        %v5225 = vld [vmem:[%s334 + $0xa0] sm:$0xf]
        %v5226 = vld [vmem:[%s334 + $0xa4] sm:$0xf]
        %v5227 = vld [vmem:[%s334 + $0xa8] sm:$0xf]
        %v5228 = vld [vmem:[%s334 + $0xac] sm:$0xf]
        %v5229 = vld [vmem:[%s334 + $0xb0] sm:$0xf]
        %v5230 = vld [vmem:[%s334 + $0xb4] sm:$0xf]
        %v5231 = vld [vmem:[%s334 + $0xb8] sm:$0xf]
        %v5232 = vld [vmem:[%s334 + $0xbc] sm:$0xf]
        %v5233 = vld [vmem:[%s334 + $0xc0] sm:$0xf]
        %v5234 = vld [vmem:[%s334 + $0xc4] sm:$0xf]
        %v5235 = vld [vmem:[%s334 + $0xc8] sm:$0xf]
        %v5236 = vld [vmem:[%s3] sm:$0x3]
        %v5285 = vunpack.c.l.b16 %v5188
        %v5286 = vunpack.c.l.b16 %v5189
        %v5287 = vunpack.c.l.b16 %v5190
        %v5288 = vunpack.c.l.b16 %v5191
        %v5289 = vunpack.c.l.b16 %v5192
        %v5290 = vunpack.c.l.b16 %v5193
        %v5291 = vunpack.c.l.b16 %v5194
        %v5292 = vunpack.c.l.b16 %v5195
        %v5293 = vunpack.c.l.b16 %v5196
        %v5294 = vunpack.c.l.b16 %v5197
        %v5295 = vunpack.c.l.b16 %v5198
        %v5296 = vunpack.c.l.b16 %v5199
        %v5297 = vunpack.c.l.b16 %v5200
        %v5298 = vunpack.c.l.b16 %v5201
        %v5299 = vunpack.c.l.b16 %v5202
        %v5300 = vunpack.c.l.b16 %v5203
        %v5301 = vunpack.c.l.b16 %v5204
        %v5302 = vunpack.c.l.b16 %v5205
        %v5303 = vunpack.c.l.b16 %v5206
        %v5304 = vunpack.c.l.b16 %v5207
        %v5305 = vunpack.c.l.b16 %v5208
        %v5306 = vunpack.c.l.b16 %v5209
        %v5307 = vunpack.c.l.b16 %v5210
        %v5308 = vunpack.c.l.b16 %v5211
        %v5309 = vunpack.c.l.b16 %v5212
        %v5310 = vunpack.c.l.b16 %v5213
        %v5311 = vunpack.c.l.b16 %v5214
        %v5312 = vunpack.c.l.b16 %v5215
        %v5313 = vunpack.c.l.b16 %v5216
        %v5314 = vunpack.c.l.b16 %v5217
        %v5315 = vunpack.c.l.b16 %v5218
        %v5316 = vunpack.c.l.b16 %v5219
        %v5317 = vunpack.c.l.b16 %v5220
        %v5318 = vunpack.c.l.b16 %v5221
        %v5319 = vunpack.c.l.b16 %v5222
        %v5320 = vunpack.c.l.b16 %v5223
        %v5321 = vunpack.c.l.b16 %v5224
        %v5322 = vunpack.c.l.b16 %v5225
        %v5323 = vunpack.c.l.b16 %v5226
        %v5324 = vunpack.c.l.b16 %v5227
        %v5325 = vunpack.c.l.b16 %v5228
        %v5326 = vunpack.c.l.b16 %v5229
        %v5327 = vunpack.c.l.b16 %v5230
        %v5328 = vunpack.c.l.b16 %v5231
        %v5329 = vunpack.c.l.b16 %v5232
        %v5330 = vunpack.c.l.b16 %v5233
        %v5331 = vunpack.c.l.b16 %v5234
        %v5332 = vunpack.c.l.b16 %v5235
        %v5333 = vpack.c.b16 %v5286, %v5285
        %v5334 = vpack.c.b16 %v5288, %v5287
        %v5335 = vpack.c.b16 %v5290, %v5289
        %v5336 = vpack.c.b16 %v5292, %v5291
        %v5337 = vpack.c.b16 %v5294, %v5293
        %v5338 = vpack.c.b16 %v5296, %v5295
        %v5339 = vpack.c.b16 %v5298, %v5297
        %v5340 = vpack.c.b16 %v5300, %v5299
        %v5341 = vpack.c.b16 %v5302, %v5301
        %v5342 = vpack.c.b16 %v5304, %v5303
        %v5343 = vpack.c.b16 %v5306, %v5305
        %v5344 = vpack.c.b16 %v5308, %v5307
        %v5345 = vpack.c.b16 %v5310, %v5309
        %v5346 = vpack.c.b16 %v5312, %v5311
        %v5347 = vpack.c.b16 %v5314, %v5313
        %v5348 = vpack.c.b16 %v5316, %v5315
        %v5349 = vpack.c.b16 %v5318, %v5317
        %v5350 = vpack.c.b16 %v5320, %v5319
        %v5351 = vpack.c.b16 %v5322, %v5321
        %v5352 = vpack.c.b16 %v5324, %v5323
        %v5353 = vpack.c.b16 %v5326, %v5325
        %v5354 = vpack.c.b16 %v5328, %v5327
        %v5355 = vpack.c.b16 %v5330, %v5329
        %v5356 = vpack.c.b16 %v5332, %v5331
        %5357 = vrot.lane.b32.xlu0 %v5333, 124
        %v5358 = vpop.permute.xlu0 %5357
        %5359 = vrot.lane.b32.xlu0 %v5334, 124
        %v5360 = vpop.permute.xlu0 %5359
        %5361 = vrot.lane.b32.xlu0 %v5335, 124
        %v5362 = vpop.permute.xlu0 %5361
        %5363 = vrot.lane.b32.xlu0 %v5336, 124
        %v5364 = vpop.permute.xlu0 %5363
        %5365 = vrot.lane.b32.xlu0 %v5337, 124
        %v5366 = vpop.permute.xlu0 %5365
        %5367 = vrot.lane.b32.xlu0 %v5338, 124
        %v5368 = vpop.permute.xlu0 %5367
        %5369 = vrot.lane.b32.xlu0 %v5339, 124
        %v5370 = vpop.permute.xlu0 %5369
        %5371 = vrot.lane.b32.xlu0 %v5340, 124
        %v5372 = vpop.permute.xlu0 %5371
        %5373 = vrot.lane.b32.xlu0 %v5341, 124
        %v5374 = vpop.permute.xlu0 %5373
        %5375 = vrot.lane.b32.xlu0 %v5342, 124
        %v5376 = vpop.permute.xlu0 %5375
        %5377 = vrot.lane.b32.xlu0 %v5343, 124
        %v5378 = vpop.permute.xlu0 %5377
        %5379 = vrot.lane.b32.xlu0 %v5344, 124
        %v5380 = vpop.permute.xlu0 %5379
        %5381 = vrot.lane.b32.xlu0 %v5345, 124
        %v5382 = vpop.permute.xlu0 %5381
        %5383 = vrot.lane.b32.xlu0 %v5346, 124
        %v5384 = vpop.permute.xlu0 %5383
        %5385 = vrot.lane.b32.xlu0 %v5347, 124
        %v5386 = vpop.permute.xlu0 %5385
        %5387 = vrot.lane.b32.xlu0 %v5348, 124
        %v5388 = vpop.permute.xlu0 %5387
        %5389 = vrot.lane.b32.xlu0 %v5349, 124
        %v5390 = vpop.permute.xlu0 %5389
        %5391 = vrot.lane.b32.xlu0 %v5350, 124
        %v5392 = vpop.permute.xlu0 %5391
        %5393 = vrot.lane.b32.xlu0 %v5351, 124
        %v5394 = vpop.permute.xlu0 %5393
        %5395 = vrot.lane.b32.xlu0 %v5352, 124
        %v5396 = vpop.permute.xlu0 %5395
        %5397 = vrot.lane.b32.xlu0 %v5353, 124
        %v5398 = vpop.permute.xlu0 %5397
        %5399 = vrot.lane.b32.xlu0 %v5354, 124
        %v5400 = vpop.permute.xlu0 %5399
        %5401 = vrot.lane.b32.xlu0 %v5355, 124
        %v5402 = vpop.permute.xlu0 %5401
        %5403 = vrot.lane.b32.xlu0 %v5356, 124
        %v5404 = vpop.permute.xlu0 %5403
        %vm5405 = vcmask 31744
        %v5407 = vsel %vm5405, %v5358, 0
        %v5410 = vsel %vm5405, %v5360, 0
        %v5413 = vsel %vm5405, %v5362, 0
        %v5416 = vsel %vm5405, %v5364, 0
        %v5419 = vsel %vm5405, %v5366, 0
        %v5422 = vsel %vm5405, %v5368, 0
        %v5425 = vsel %vm5405, %v5370, 0
        %v5428 = vsel %vm5405, %v5372, 0
        %v5431 = vsel %vm5405, %v5374, 0
        %v5434 = vsel %vm5405, %v5376, 0
        %v5437 = vsel %vm5405, %v5378, 0
        %v5440 = vsel %vm5405, %v5380, 0
        %v5443 = vsel %vm5405, %v5382, 0
        %v5446 = vsel %vm5405, %v5384, 0
        %v5449 = vsel %vm5405, %v5386, 0
        %v5452 = vsel %vm5405, %v5388, 0
        %v5455 = vsel %vm5405, %v5390, 0
        %v5458 = vsel %vm5405, %v5392, 0
        %v5461 = vsel %vm5405, %v5394, 0
        %v5464 = vsel %vm5405, %v5396, 0
        %v5467 = vsel %vm5405, %v5398, 0
        %v5470 = vsel %vm5405, %v5400, 0
        %v5473 = vsel %vm5405, %v5402, 0
        %v5476 = vsel %vm5405, %v5404, 0
        %v5479 = vsel %vm5160, %v5236, 0
        %5481 = vmatpush.bf16.msra.mxu0 0
        %5482 = vmatpush.bf16.msra.mxu0 0
        %5483 = vmatpush.bf16.msra.mxu0 0
        %5484 = vmatpush.bf16.msra.mxu0 0
        %5485 = vmatpush.bf16.msra.mxu0 0
        %5486 = vmatpush.bf16.msra.mxu0 0
        %5487 = vmatpush.bf16.msra.mxu0 0
        %5488 = vmatpush.bf16.msra.mxu0 %v5479
        %5489 = vmatmul.bf16.gmra.mxu0 %v5407
        %v5490 = vpop.f32.mrf.mxu0
        %v5491 = vadd.f32 0.0, %v5490
        %v5492 = vpop.f32.mrf.mxu0
        %v5493 = vadd.f32 0.0, %v5492
        %5494 = vmatmul.bf16.gmra.mxu0 %v5410
        %v5495 = vpop.f32.mrf.mxu0
        %v5496 = vpop.f32.mrf.mxu0
        %v5497 = vadd.f32 0.0, %v5496
        %5498 = vmatmul.bf16.gmra.mxu0 %v5413
        %v5499 = vpop.f32.mrf.mxu0
        %v5500 = vadd.f32 0.0, %v5499
        %v5501 = vpop.f32.mrf.mxu0
        %5502 = vmatmul.bf16.gmra.mxu0 %v5416
        %v5503 = vpop.f32.mrf.mxu0
        %v5504 = vadd.f32 0.0, %v5503
        %v5505 = vpop.f32.mrf.mxu0
        %v5506 = vadd.f32 0.0, %v5505
        %5507 = vmatmul.bf16.gmra.mxu0 %v5419
        %v5508 = vpop.f32.mrf.mxu0
        %v5509 = vpop.f32.mrf.mxu0
        %v5510 = vadd.f32 0.0, %v5509
        %5511 = vmatmul.bf16.gmra.mxu0 %v5422
        %v5512 = vpop.f32.mrf.mxu0
        %v5513 = vadd.f32 0.0, %v5512
        %v5514 = vpop.f32.mrf.mxu0
        %5515 = vmatmul.bf16.gmra.mxu0 %v5425
        %v5516 = vpop.f32.mrf.mxu0
        %v5517 = vadd.f32 0.0, %v5516
        %v5518 = vpop.f32.mrf.mxu0
        %v5519 = vadd.f32 0.0, %v5518
        %5520 = vmatmul.bf16.gmra.mxu0 %v5428
        %v5521 = vpop.f32.mrf.mxu0
        %v5522 = vpop.f32.mrf.mxu0
        %v5523 = vadd.f32 0.0, %v5522
        %5524 = vmatmul.bf16.gmra.mxu0 %v5431
        %v5525 = vpop.f32.mrf.mxu0
        %v5526 = vadd.f32 0.0, %v5525
        %v5527 = vpop.f32.mrf.mxu0
        %5528 = vmatmul.bf16.gmra.mxu0 %v5434
        %v5529 = vpop.f32.mrf.mxu0
        %v5530 = vadd.f32 0.0, %v5529
        %v5531 = vpop.f32.mrf.mxu0
        %v5532 = vadd.f32 0.0, %v5531
        %5533 = vmatmul.bf16.gmra.mxu0 %v5437
        %v5534 = vpop.f32.mrf.mxu0
        %v5535 = vpop.f32.mrf.mxu0
        %v5536 = vadd.f32 0.0, %v5535
        %5537 = vmatmul.bf16.gmra.mxu0 %v5440
        %v5538 = vpop.f32.mrf.mxu0
        %v5539 = vadd.f32 0.0, %v5538
        %v5540 = vpop.f32.mrf.mxu0
        %5541 = vmatmul.bf16.gmra.mxu0 %v5443
        %v5542 = vpop.f32.mrf.mxu0
        %v5543 = vadd.f32 0.0, %v5542
        %v5544 = vpop.f32.mrf.mxu0
        %v5545 = vadd.f32 0.0, %v5544
        %5546 = vmatmul.bf16.gmra.mxu0 %v5446
        %v5547 = vpop.f32.mrf.mxu0
        %v5548 = vpop.f32.mrf.mxu0
        %v5549 = vadd.f32 0.0, %v5548
        %5550 = vmatmul.bf16.gmra.mxu0 %v5449
        %v5551 = vpop.f32.mrf.mxu0
        %v5552 = vadd.f32 0.0, %v5551
        %v5553 = vpop.f32.mrf.mxu0
        %5554 = vmatmul.bf16.gmra.mxu0 %v5452
        %v5555 = vpop.f32.mrf.mxu0
        %v5556 = vadd.f32 0.0, %v5555
        %v5557 = vpop.f32.mrf.mxu0
        %v5558 = vadd.f32 0.0, %v5557
        %5559 = vmatmul.bf16.gmra.mxu0 %v5455
        %v5560 = vpop.f32.mrf.mxu0
        %v5561 = vpop.f32.mrf.mxu0
        %v5562 = vadd.f32 0.0, %v5561
        %5563 = vmatmul.bf16.gmra.mxu0 %v5458
        %v5564 = vpop.f32.mrf.mxu0
        %v5565 = vadd.f32 0.0, %v5564
        %v5566 = vpop.f32.mrf.mxu0
        %5567 = vmatmul.bf16.gmra.mxu0 %v5461
        %v5568 = vpop.f32.mrf.mxu0
        %v5569 = vadd.f32 0.0, %v5568
        %v5570 = vpop.f32.mrf.mxu0
        %v5571 = vadd.f32 0.0, %v5570
        %5572 = vmatmul.bf16.gmra.mxu0 %v5464
        %v5573 = vpop.f32.mrf.mxu0
        %v5574 = vpop.f32.mrf.mxu0
        %v5575 = vadd.f32 0.0, %v5574
        %5576 = vmatmul.bf16.gmra.mxu0 %v5467
        %v5577 = vpop.f32.mrf.mxu0
        %v5578 = vadd.f32 0.0, %v5577
        %v5579 = vpop.f32.mrf.mxu0
        %5580 = vmatmul.bf16.gmra.mxu0 %v5470
        %v5581 = vpop.f32.mrf.mxu0
        %v5582 = vadd.f32 0.0, %v5581
        %v5583 = vpop.f32.mrf.mxu0
        %v5584 = vadd.f32 0.0, %v5583
        %5585 = vmatmul.bf16.gmra.mxu0 %v5473
        %v5586 = vpop.f32.mrf.mxu0
        %v5587 = vpop.f32.mrf.mxu0
        %v5588 = vadd.f32 0.0, %v5587
        %5589 = vmatmul.bf16.gmra.mxu0 %v5476
        %v5590 = vpop.f32.mrf.mxu0
        %v5591 = vadd.f32 0.0, %v5590
        %v5592 = vpop.f32.mrf.mxu0
        %5593 = vdwg.mxu0
        %v5594 = vperm.slane %v2167, 0
        %v5595 = vmul.f32 %v5491, %v5594
        %v5596 = vmul.f32 %v5493, %v5594
        %v5597 = vmul.f32 %v5497, %v5594
        %v5598 = vmul.f32 %v5500, %v5594
        %v5599 = vmul.f32 %v5504, %v5594
        %v5600 = vmul.f32 %v5506, %v5594
        %v5601 = vmul.f32 %v5510, %v5594
        %v5602 = vmul.f32 %v5513, %v5594
        %v5603 = vmul.f32 %v5517, %v5594
        %v5604 = vmul.f32 %v5519, %v5594
        %v5605 = vmul.f32 %v5523, %v5594
        %v5606 = vmul.f32 %v5526, %v5594
        %v5607 = vmul.f32 %v5530, %v5594
        %v5608 = vmul.f32 %v5532, %v5594
        %v5609 = vmul.f32 %v5536, %v5594
        %v5610 = vmul.f32 %v5539, %v5594
        %v5611 = vmul.f32 %v5543, %v5594
        %v5612 = vmul.f32 %v5545, %v5594
        %v5613 = vmul.f32 %v5549, %v5594
        %v5614 = vmul.f32 %v5552, %v5594
        %v5615 = vmul.f32 %v5556, %v5594
        %v5616 = vmul.f32 %v5558, %v5594
        %v5617 = vmul.f32 %v5562, %v5594
        %v5618 = vmul.f32 %v5565, %v5594
        %v5619 = vmul.f32 %v5569, %v5594
        %v5620 = vmul.f32 %v5571, %v5594
        %v5621 = vmul.f32 %v5575, %v5594
        %v5622 = vmul.f32 %v5578, %v5594
        %v5623 = vmul.f32 %v5582, %v5594
        %v5624 = vmul.f32 %v5584, %v5594
        %v5625 = vmul.f32 %v5588, %v5594
        %v5626 = vmul.f32 %v5591, %v5594
        %v5627 = vperm.slane %v2168, 0
        %v5628 = vadd.f32 %v5595, %v5627
        %v5629 = vadd.f32 %v5596, %v5627
        %v5630 = vadd.f32 %v5597, %v5627
        %v5631 = vadd.f32 %v5598, %v5627
        %v5632 = vadd.f32 %v5599, %v5627
        %v5633 = vadd.f32 %v5600, %v5627
        %v5634 = vadd.f32 %v5601, %v5627
        %v5635 = vadd.f32 %v5602, %v5627
        %v5636 = vadd.f32 %v5603, %v5627
        %v5637 = vadd.f32 %v5604, %v5627
        %v5638 = vadd.f32 %v5605, %v5627
        %v5639 = vadd.f32 %v5606, %v5627
        %v5640 = vadd.f32 %v5607, %v5627
        %v5641 = vadd.f32 %v5608, %v5627
        %v5642 = vadd.f32 %v5609, %v5627
        %v5643 = vadd.f32 %v5610, %v5627
        %v5644 = vadd.f32 %v5611, %v5627
        %v5645 = vadd.f32 %v5612, %v5627
        %v5646 = vadd.f32 %v5613, %v5627
        %v5647 = vadd.f32 %v5614, %v5627
        %v5648 = vadd.f32 %v5615, %v5627
        %v5649 = vadd.f32 %v5616, %v5627
        %v5650 = vadd.f32 %v5617, %v5627
        %v5651 = vadd.f32 %v5618, %v5627
        %v5652 = vadd.f32 %v5619, %v5627
        %v5653 = vadd.f32 %v5620, %v5627
        %v5654 = vadd.f32 %v5621, %v5627
        %v5655 = vadd.f32 %v5622, %v5627
        %v5656 = vadd.f32 %v5623, %v5627
        %v5657 = vadd.f32 %v5624, %v5627
        %v5658 = vadd.f32 %v5625, %v5627
        %v5659 = vadd.f32 %v5626, %v5627
        %v5660 = vperm.slane %v5187, 0
        %v5661 = vmul.f32 %v4975, %v5660
        %v5662 = vmul.f32 %v4976, %v5660
        %v5663 = vadd.f32 %v5661, %v5628
        %v5664 = vadd.f32 %v5662, %v5629
        %v5665 = vmax.f32 %v5663, 0.0
        %v5666 = vmax.f32 %v5664, 0.0
        %5667 = vst.msk [vmem:[%s328] sm:$0xff] %vm3426, %v5665
        %5668 = vst.msk [vmem:[%s328 + $0x8] sm:$0xff] %vm3426, %v5666
        %v5669 = vmul.f32 %v4978, %v5660
        %v5670 = vmul.f32 %v4979, %v5660
        %v5671 = vadd.f32 %v5669, %v5630
        %v5672 = vadd.f32 %v5670, %v5631
        %v5673 = vmax.f32 %v5671, 0.0
        %v5674 = vmax.f32 %v5672, 0.0
        %s5675 = scalar_lea.vmem %s328, 16 [#allocation3]
        %5676 = vst.msk [vmem:[%s5675] sm:$0xff] %vm3426, %v5673
        %5677 = vst.msk [vmem:[%s5675 + $0x8] sm:$0xff] %vm3426, %v5674
        %v5678 = vmul.f32 %v4981, %v5660
        %v5679 = vmul.f32 %v4982, %v5660
        %v5680 = vadd.f32 %v5678, %v5632
        %v5681 = vadd.f32 %v5679, %v5633
        %v5682 = vmax.f32 %v5680, 0.0
        %v5683 = vmax.f32 %v5681, 0.0
        %s5684 = scalar_lea.vmem %s328, 32 [#allocation3]
        %5685 = vst.msk [vmem:[%s5684] sm:$0xff] %vm3426, %v5682
        %5686 = vst.msk [vmem:[%s5684 + $0x8] sm:$0xff] %vm3426, %v5683
        %v5687 = vmul.f32 %v4984, %v5660
        %v5688 = vmul.f32 %v4985, %v5660
        %v5689 = vadd.f32 %v5687, %v5634
        %v5690 = vadd.f32 %v5688, %v5635
        %v5691 = vmax.f32 %v5689, 0.0
        %v5692 = vmax.f32 %v5690, 0.0
        %s5693 = scalar_lea.vmem %s328, 48 [#allocation3]
        %5694 = vst.msk [vmem:[%s5693] sm:$0xff] %vm3426, %v5691
        %5695 = vst.msk [vmem:[%s5693 + $0x8] sm:$0xff] %vm3426, %v5692
        %v5696 = vmul.f32 %v4987, %v5660
        %v5697 = vmul.f32 %v4988, %v5660
        %v5698 = vadd.f32 %v5696, %v5636
        %v5699 = vadd.f32 %v5697, %v5637
        %v5700 = vmax.f32 %v5698, 0.0
        %v5701 = vmax.f32 %v5699, 0.0
        %s5702 = scalar_lea.vmem %s328, 64 [#allocation3]
        %5703 = vst.msk [vmem:[%s5702] sm:$0xff] %vm3426, %v5700
        %5704 = vst.msk [vmem:[%s5702 + $0x8] sm:$0xff] %vm3426, %v5701
        %v5705 = vmul.f32 %v4990, %v5660
        %v5706 = vmul.f32 %v4991, %v5660
        %v5707 = vadd.f32 %v5705, %v5638
        %v5708 = vadd.f32 %v5706, %v5639
        %v5709 = vmax.f32 %v5707, 0.0
        %v5710 = vmax.f32 %v5708, 0.0
        %s5711 = scalar_lea.vmem %s328, 80 [#allocation3]
        %5712 = vst.msk [vmem:[%s5711] sm:$0xff] %vm3426, %v5709
        %5713 = vst.msk [vmem:[%s5711 + $0x8] sm:$0xff] %vm3426, %v5710
        %v5714 = vmul.f32 %v4993, %v5660
        %v5715 = vmul.f32 %v4994, %v5660
        %v5716 = vadd.f32 %v5714, %v5640
        %v5717 = vadd.f32 %v5715, %v5641
        %v5718 = vmax.f32 %v5716, 0.0
        %v5719 = vmax.f32 %v5717, 0.0
        %s5720 = scalar_lea.vmem %s328, 96 [#allocation3]
        %5721 = vst.msk [vmem:[%s5720] sm:$0xff] %vm3426, %v5718
        %5722 = vst.msk [vmem:[%s5720 + $0x8] sm:$0xff] %vm3426, %v5719
        %v5723 = vmul.f32 %v4996, %v5660
        %v5724 = vmul.f32 %v4997, %v5660
        %v5725 = vadd.f32 %v5723, %v5642
        %v5726 = vadd.f32 %v5724, %v5643
        %v5727 = vmax.f32 %v5725, 0.0
        %v5728 = vmax.f32 %v5726, 0.0
        %s5729 = scalar_lea.vmem %s328, 112 [#allocation3]
        %5730 = vst.msk [vmem:[%s5729] sm:$0xff] %vm3426, %v5727
        %5731 = vst.msk [vmem:[%s5729 + $0x8] sm:$0xff] %vm3426, %v5728
        %v5732 = vmul.f32 %v4999, %v5660
        %v5733 = vmul.f32 %v5000, %v5660
        %v5734 = vadd.f32 %v5732, %v5644
        %v5735 = vadd.f32 %v5733, %v5645
        %v5736 = vmax.f32 %v5734, 0.0
        %v5737 = vmax.f32 %v5735, 0.0
        %s5738 = scalar_lea.vmem %s328, 128 [#allocation3]
        %5739 = vst.msk [vmem:[%s5738] sm:$0xff] %vm3426, %v5736
        %5740 = vst.msk [vmem:[%s5738 + $0x8] sm:$0xff] %vm3426, %v5737
        %v5741 = vmul.f32 %v5002, %v5660
        %v5742 = vmul.f32 %v5003, %v5660
        %v5743 = vadd.f32 %v5741, %v5646
        %v5744 = vadd.f32 %v5742, %v5647
        %v5745 = vmax.f32 %v5743, 0.0
        %v5746 = vmax.f32 %v5744, 0.0
        %s5747 = scalar_lea.vmem %s328, 144 [#allocation3]
        %5748 = vst.msk [vmem:[%s5747] sm:$0xff] %vm3426, %v5745
        %5749 = vst.msk [vmem:[%s5747 + $0x8] sm:$0xff] %vm3426, %v5746
        %v5750 = vmul.f32 %v5005, %v5660
        %v5751 = vmul.f32 %v5006, %v5660
        %v5752 = vadd.f32 %v5750, %v5648
        %v5753 = vadd.f32 %v5751, %v5649
        %v5754 = vmax.f32 %v5752, 0.0
        %v5755 = vmax.f32 %v5753, 0.0
        %s5756 = scalar_lea.vmem %s328, 160 [#allocation3]
        %5757 = vst.msk [vmem:[%s5756] sm:$0xff] %vm3426, %v5754
        %5758 = vst.msk [vmem:[%s5756 + $0x8] sm:$0xff] %vm3426, %v5755
        %v5759 = vmul.f32 %v5008, %v5660
        %v5760 = vmul.f32 %v5009, %v5660
        %v5761 = vadd.f32 %v5759, %v5650
        %v5762 = vadd.f32 %v5760, %v5651
        %v5763 = vmax.f32 %v5761, 0.0
        %v5764 = vmax.f32 %v5762, 0.0
        %s5765 = scalar_lea.vmem %s328, 176 [#allocation3]
        %5766 = vst.msk [vmem:[%s5765] sm:$0xff] %vm3426, %v5763
        %5767 = vst.msk [vmem:[%s5765 + $0x8] sm:$0xff] %vm3426, %v5764
        %v5768 = vmul.f32 %v5011, %v5660
        %v5769 = vmul.f32 %v5012, %v5660
        %v5770 = vadd.f32 %v5768, %v5652
        %v5771 = vadd.f32 %v5769, %v5653
        %v5772 = vmax.f32 %v5770, 0.0
        %v5773 = vmax.f32 %v5771, 0.0
        %s5774 = scalar_lea.vmem %s328, 192 [#allocation3]
        %5775 = vst.msk [vmem:[%s5774] sm:$0xff] %vm3426, %v5772
        %5776 = vst.msk [vmem:[%s5774 + $0x8] sm:$0xff] %vm3426, %v5773
        %v5777 = vmul.f32 %v5014, %v5660
        %v5778 = vmul.f32 %v5015, %v5660
        %v5779 = vadd.f32 %v5777, %v5654
        %v5780 = vadd.f32 %v5778, %v5655
        %v5781 = vmax.f32 %v5779, 0.0
        %v5782 = vmax.f32 %v5780, 0.0
        %s5783 = scalar_lea.vmem %s328, 208 [#allocation3]
        %5784 = vst.msk [vmem:[%s5783] sm:$0xff] %vm3426, %v5781
        %5785 = vst.msk [vmem:[%s5783 + $0x8] sm:$0xff] %vm3426, %v5782
        %v5786 = vmul.f32 %v5017, %v5660
        %v5787 = vmul.f32 %v5018, %v5660
        %v5788 = vadd.f32 %v5786, %v5656
        %v5789 = vadd.f32 %v5787, %v5657
        %v5790 = vmax.f32 %v5788, 0.0
        %v5791 = vmax.f32 %v5789, 0.0
        %s5792 = scalar_lea.vmem %s328, 224 [#allocation3]
        %5793 = vst.msk [vmem:[%s5792] sm:$0xff] %vm3426, %v5790
        %5794 = vst.msk [vmem:[%s5792 + $0x8] sm:$0xff] %vm3426, %v5791
        %v5795 = vmul.f32 %v5020, %v5660
        %v5796 = vmul.f32 %v5021, %v5660
        %v5797 = vadd.f32 %v5795, %v5658
        %v5798 = vadd.f32 %v5796, %v5659
        %v5799 = vmax.f32 %v5797, 0.0
        %v5800 = vmax.f32 %v5798, 0.0
        %s5801 = scalar_lea.vmem %s328, 240 [#allocation3]
        %5802 = vst.msk [vmem:[%s5801] sm:$0xff] %vm3426, %v5799
        %5803 = vst.msk [vmem:[%s5801 + $0x8] sm:$0xff] %vm3426, %v5800
        %s5804 = scalar_lea.vmem %s334, 216
        %v5805 = vld [vmem:[%s5804] sm:$0xf]
        %v5806 = vld [vmem:[%s5804 + $0x4] sm:$0xf]
        %v5807 = vld [vmem:[%s5804 + $0x8] sm:$0xf]
        %v5808 = vld [vmem:[%s5804 + $0xc] sm:$0xf]
        %v5809 = vld [vmem:[%s5804 + $0x10] sm:$0xf]
        %v5810 = vld [vmem:[%s5804 + $0x14] sm:$0xf]
        %v5811 = vld [vmem:[%s5804 + $0x18] sm:$0xf]
        %v5812 = vld [vmem:[%s5804 + $0x1c] sm:$0xf]
        %v5813 = vld [vmem:[%s5804 + $0x20] sm:$0xf]
        %v5814 = vld [vmem:[%s5804 + $0x24] sm:$0xf]
        %v5815 = vld [vmem:[%s5804 + $0x28] sm:$0xf]
        %v5816 = vld [vmem:[%s5804 + $0x2c] sm:$0xf]
        %v5817 = vld [vmem:[%s5804 + $0x30] sm:$0xf]
        %v5818 = vld [vmem:[%s5804 + $0x34] sm:$0xf]
        %v5819 = vld [vmem:[%s5804 + $0x38] sm:$0xf]
        %v5820 = vld [vmem:[%s5804 + $0x3c] sm:$0xf]
        %v5821 = vld [vmem:[%s5804 + $0x40] sm:$0xf]
        %v5822 = vld [vmem:[%s5804 + $0x44] sm:$0xf]
        %v5823 = vld [vmem:[%s5804 + $0x48] sm:$0xf]
        %v5824 = vld [vmem:[%s5804 + $0x4c] sm:$0xf]
        %v5825 = vld [vmem:[%s5804 + $0x50] sm:$0xf]
        %v5826 = vld [vmem:[%s5804 + $0x54] sm:$0xf]
        %v5827 = vld [vmem:[%s5804 + $0x58] sm:$0xf]
        %v5828 = vld [vmem:[%s5804 + $0x5c] sm:$0xf]
        %v5829 = vld [vmem:[%s5804 + $0x60] sm:$0xf]
        %v5830 = vld [vmem:[%s5804 + $0x64] sm:$0xf]
        %v5831 = vld [vmem:[%s5804 + $0x68] sm:$0xf]
        %v5832 = vld [vmem:[%s5804 + $0x6c] sm:$0xf]
        %v5833 = vld [vmem:[%s5804 + $0x70] sm:$0xf]
        %v5834 = vld [vmem:[%s5804 + $0x74] sm:$0xf]
        %v5835 = vld [vmem:[%s5804 + $0x78] sm:$0xf]
        %v5836 = vld [vmem:[%s5804 + $0x7c] sm:$0xf]
        %v5837 = vld [vmem:[%s5804 + $0x80] sm:$0xf]
        %v5838 = vld [vmem:[%s5804 + $0x84] sm:$0xf]
        %v5839 = vld [vmem:[%s5804 + $0x88] sm:$0xf]
        %v5840 = vld [vmem:[%s5804 + $0x8c] sm:$0xf]
        %v5841 = vld [vmem:[%s5804 + $0x90] sm:$0xf]
        %v5842 = vld [vmem:[%s5804 + $0x94] sm:$0xf]
        %v5843 = vld [vmem:[%s5804 + $0x98] sm:$0xf]
        %v5844 = vld [vmem:[%s5804 + $0x9c] sm:$0xf]
        %v5845 = vld [vmem:[%s5804 + $0xa0] sm:$0xf]
        %v5846 = vld [vmem:[%s5804 + $0xa4] sm:$0xf]
        %v5847 = vld [vmem:[%s5804 + $0xa8] sm:$0xf]
        %v5848 = vld [vmem:[%s5804 + $0xac] sm:$0xf]
        %v5849 = vld [vmem:[%s5804 + $0xb0] sm:$0xf]
        %v5850 = vld [vmem:[%s5804 + $0xb4] sm:$0xf]
        %v5851 = vld [vmem:[%s5804 + $0xb8] sm:$0xf]
        %v5852 = vld [vmem:[%s5804 + $0xbc] sm:$0xf]
        %v5853 = vld [vmem:[%s1] sm:$0xf]
        %v5854 = vld [vmem:[%s1 + $0x4] sm:$0x3]
        %v5855 = vld [vmem:[%s5804 + $0xc0] sm:$0xf]
        %v5856 = vld [vmem:[%s5804 + $0xc4] sm:$0xf]
        %v5857 = vld [vmem:[%s5804 + $0xc8] sm:$0xf]
        %v5858 = vld [vmem:[%s2231] sm:$0xf]
        %v5859 = vld [vmem:[%s2231 + $0x4] sm:$0x3]
        %v5908 = vunpack.c.l.b16 %v5808
        %v5909 = vunpack.c.l.b16 %v5809
        %v5910 = vunpack.c.l.b16 %v5810
        %v5911 = vunpack.c.l.b16 %v5811
        %v5912 = vunpack.c.l.b16 %v5812
        %v5913 = vunpack.c.l.b16 %v5813
        %v5914 = vunpack.c.l.b16 %v5814
        %v5915 = vunpack.c.l.b16 %v5815
        %v5916 = vunpack.c.l.b16 %v5816
        %v5917 = vunpack.c.l.b16 %v5817
        %v5918 = vunpack.c.l.b16 %v5818
        %v5919 = vunpack.c.l.b16 %v5819
        %v5920 = vunpack.c.l.b16 %v5820
        %v5921 = vunpack.c.l.b16 %v5821
        %v5922 = vunpack.c.l.b16 %v5822
        %v5923 = vunpack.c.l.b16 %v5823
        %v5924 = vunpack.c.l.b16 %v5824
        %v5925 = vunpack.c.l.b16 %v5825
        %v5926 = vunpack.c.l.b16 %v5826
        %v5927 = vunpack.c.l.b16 %v5827
        %v5928 = vunpack.c.l.b16 %v5828
        %v5929 = vunpack.c.l.b16 %v5829
        %v5930 = vunpack.c.l.b16 %v5830
        %v5931 = vunpack.c.l.b16 %v5831
        %v5932 = vunpack.c.l.b16 %v5832
        %v5933 = vunpack.c.l.b16 %v5833
        %v5934 = vunpack.c.l.b16 %v5834
        %v5935 = vunpack.c.l.b16 %v5835
        %v5936 = vunpack.c.l.b16 %v5836
        %v5937 = vunpack.c.l.b16 %v5837
        %v5938 = vunpack.c.l.b16 %v5838
        %v5939 = vunpack.c.l.b16 %v5839
        %v5940 = vunpack.c.l.b16 %v5840
        %v5941 = vunpack.c.l.b16 %v5841
        %v5942 = vunpack.c.l.b16 %v5842
        %v5943 = vunpack.c.l.b16 %v5843
        %v5944 = vunpack.c.l.b16 %v5844
        %v5945 = vunpack.c.l.b16 %v5845
        %v5946 = vunpack.c.l.b16 %v5846
        %v5947 = vunpack.c.l.b16 %v5847
        %v5948 = vunpack.c.l.b16 %v5848
        %v5949 = vunpack.c.l.b16 %v5849
        %v5950 = vunpack.c.l.b16 %v5850
        %v5951 = vunpack.c.l.b16 %v5851
        %v5952 = vunpack.c.l.b16 %v5852
        %v5953 = vunpack.c.l.b16 %v5855
        %v5954 = vunpack.c.l.b16 %v5856
        %v5955 = vunpack.c.l.b16 %v5857
        %v5956 = vpack.c.b16 %v5909, %v5908
        %v5957 = vpack.c.b16 %v5911, %v5910
        %v5958 = vpack.c.b16 %v5913, %v5912
        %v5959 = vpack.c.b16 %v5915, %v5914
        %v5960 = vpack.c.b16 %v5917, %v5916
        %v5961 = vpack.c.b16 %v5919, %v5918
        %v5962 = vpack.c.b16 %v5921, %v5920
        %v5963 = vpack.c.b16 %v5923, %v5922
        %v5964 = vpack.c.b16 %v5925, %v5924
        %v5965 = vpack.c.b16 %v5927, %v5926
        %v5966 = vpack.c.b16 %v5929, %v5928
        %v5967 = vpack.c.b16 %v5931, %v5930
        %v5968 = vpack.c.b16 %v5933, %v5932
        %v5969 = vpack.c.b16 %v5935, %v5934
        %v5970 = vpack.c.b16 %v5937, %v5936
        %v5971 = vpack.c.b16 %v5939, %v5938
        %v5972 = vpack.c.b16 %v5941, %v5940
        %v5973 = vpack.c.b16 %v5943, %v5942
        %v5974 = vpack.c.b16 %v5945, %v5944
        %v5975 = vpack.c.b16 %v5947, %v5946
        %v5976 = vpack.c.b16 %v5949, %v5948
        %v5977 = vpack.c.b16 %v5951, %v5950
        %v5978 = vpack.c.b16 %v5953, %v5952
        %v5979 = vpack.c.b16 %v5955, %v5954
        %v5982 = vunpack.c.l.b16 %v5858
        %v5983 = vunpack.c.l.b16 %v5859
        %v5984 = vpack.c.b16 %v5983, %v5982
        %v5986 = vsel %vm2359, %v5956, 0
        %v5989 = vsel %vm2359, %v5957, 0
        %v5992 = vsel %vm2359, %v5958, 0
        %v5995 = vsel %vm2359, %v5959, 0
        %v5998 = vsel %vm2359, %v5960, 0
        %v6001 = vsel %vm2359, %v5961, 0
        %v6004 = vsel %vm2359, %v5962, 0
        %v6007 = vsel %vm2359, %v5963, 0
        %v6010 = vsel %vm2359, %v5964, 0
        %v6013 = vsel %vm2359, %v5965, 0
        %v6016 = vsel %vm2359, %v5966, 0
        %v6019 = vsel %vm2359, %v5967, 0
        %v6022 = vsel %vm2359, %v5968, 0
        %v6025 = vsel %vm2359, %v5969, 0
        %v6028 = vsel %vm2359, %v5970, 0
        %v6031 = vsel %vm2359, %v5971, 0
        %v6034 = vsel %vm2359, %v5972, 0
        %v6037 = vsel %vm2359, %v5973, 0
        %v6040 = vsel %vm2359, %v5974, 0
        %v6043 = vsel %vm2359, %v5975, 0
        %v6046 = vsel %vm2359, %v5976, 0
        %v6049 = vsel %vm2359, %v5977, 0
        %v6052 = vsel %vm2359, %v5978, 0
        %v6055 = vsel %vm2359, %v5979, 0
        %v6058 = vsel %vm2432, %v5984, 0
        %6060 = vmatpush.bf16.msra.mxu0 0
        %6061 = vmatpush.bf16.msra.mxu0 0
        %6062 = vmatpush.bf16.msra.mxu0 0
        %6063 = vmatpush.bf16.msra.mxu0 0
        %6064 = vmatpush.bf16.msra.mxu0 0
        %6065 = vmatpush.bf16.msra.mxu0 0
        %6066 = vmatpush.bf16.msra.mxu0 0
        %6067 = vmatpush.bf16.msra.mxu0 %v6058
        %6068 = vmatmul.bf16.gmra.mxu0 %v5986
        %v6069 = vpop.f32.mrf.mxu0
        %v6070 = vadd.f32 0.0, %v6069
        %v6071 = vpop.f32.mrf.mxu0
        %v6072 = vadd.f32 0.0, %v6071
        %6073 = vmatmul.bf16.gmra.mxu0 %v5989
        %v6074 = vpop.f32.mrf.mxu0
        %v6075 = vadd.f32 0.0, %v6074
        %v6076 = vpop.f32.mrf.mxu0
        %v6077 = vadd.f32 0.0, %v6076
        %6078 = vmatmul.bf16.gmra.mxu0 %v5992
        %v6079 = vpop.f32.mrf.mxu0
        %v6080 = vadd.f32 0.0, %v6079
        %v6081 = vpop.f32.mrf.mxu0
        %v6082 = vadd.f32 0.0, %v6081
        %6083 = vmatmul.bf16.gmra.mxu0 %v5995
        %v6084 = vpop.f32.mrf.mxu0
        %v6085 = vadd.f32 0.0, %v6084
        %v6086 = vpop.f32.mrf.mxu0
        %v6087 = vadd.f32 0.0, %v6086
        %6088 = vmatmul.bf16.gmra.mxu0 %v5998
        %v6089 = vpop.f32.mrf.mxu0
        %v6090 = vadd.f32 0.0, %v6089
        %v6091 = vpop.f32.mrf.mxu0
        %v6092 = vadd.f32 0.0, %v6091
        %6093 = vmatmul.bf16.gmra.mxu0 %v6001
        %v6094 = vpop.f32.mrf.mxu0
        %v6095 = vadd.f32 0.0, %v6094
        %v6096 = vpop.f32.mrf.mxu0
        %v6097 = vadd.f32 0.0, %v6096
        %6098 = vmatmul.bf16.gmra.mxu0 %v6004
        %v6099 = vpop.f32.mrf.mxu0
        %v6100 = vadd.f32 0.0, %v6099
        %v6101 = vpop.f32.mrf.mxu0
        %v6102 = vadd.f32 0.0, %v6101
        %6103 = vmatmul.bf16.gmra.mxu0 %v6007
        %v6104 = vpop.f32.mrf.mxu0
        %v6105 = vadd.f32 0.0, %v6104
        %v6106 = vpop.f32.mrf.mxu0
        %v6107 = vadd.f32 0.0, %v6106
        %6108 = vmatmul.bf16.gmra.mxu0 %v6010
        %v6109 = vpop.f32.mrf.mxu0
        %v6110 = vadd.f32 0.0, %v6109
        %v6111 = vpop.f32.mrf.mxu0
        %v6112 = vadd.f32 0.0, %v6111
        %6113 = vmatmul.bf16.gmra.mxu0 %v6013
        %v6114 = vpop.f32.mrf.mxu0
        %v6115 = vadd.f32 0.0, %v6114
        %v6116 = vpop.f32.mrf.mxu0
        %v6117 = vadd.f32 0.0, %v6116
        %6118 = vmatmul.bf16.gmra.mxu0 %v6016
        %v6119 = vpop.f32.mrf.mxu0
        %v6120 = vadd.f32 0.0, %v6119
        %v6121 = vpop.f32.mrf.mxu0
        %v6122 = vadd.f32 0.0, %v6121
        %6123 = vmatmul.bf16.gmra.mxu0 %v6019
        %v6124 = vpop.f32.mrf.mxu0
        %v6125 = vadd.f32 0.0, %v6124
        %v6126 = vpop.f32.mrf.mxu0
        %v6127 = vadd.f32 0.0, %v6126
        %6128 = vmatmul.bf16.gmra.mxu0 %v6022
        %v6129 = vpop.f32.mrf.mxu0
        %v6130 = vadd.f32 0.0, %v6129
        %v6131 = vpop.f32.mrf.mxu0
        %v6132 = vadd.f32 0.0, %v6131
        %6133 = vmatmul.bf16.gmra.mxu0 %v6025
        %v6134 = vpop.f32.mrf.mxu0
        %v6135 = vadd.f32 0.0, %v6134
        %v6136 = vpop.f32.mrf.mxu0
        %v6137 = vadd.f32 0.0, %v6136
        %6138 = vmatmul.bf16.gmra.mxu0 %v6028
        %v6139 = vpop.f32.mrf.mxu0
        %v6140 = vadd.f32 0.0, %v6139
        %v6141 = vpop.f32.mrf.mxu0
        %v6142 = vadd.f32 0.0, %v6141
        %6143 = vmatmul.bf16.gmra.mxu0 %v6031
        %v6144 = vpop.f32.mrf.mxu0
        %v6145 = vadd.f32 0.0, %v6144
        %v6146 = vpop.f32.mrf.mxu0
        %v6147 = vadd.f32 0.0, %v6146
        %6148 = vmatmul.bf16.gmra.mxu0 %v6034
        %v6149 = vpop.f32.mrf.mxu0
        %v6150 = vadd.f32 0.0, %v6149
        %v6151 = vpop.f32.mrf.mxu0
        %v6152 = vadd.f32 0.0, %v6151
        %6153 = vmatmul.bf16.gmra.mxu0 %v6037
        %v6154 = vpop.f32.mrf.mxu0
        %v6155 = vadd.f32 0.0, %v6154
        %v6156 = vpop.f32.mrf.mxu0
        %v6157 = vadd.f32 0.0, %v6156
        %6158 = vmatmul.bf16.gmra.mxu0 %v6040
        %v6159 = vpop.f32.mrf.mxu0
        %v6160 = vadd.f32 0.0, %v6159
        %v6161 = vpop.f32.mrf.mxu0
        %v6162 = vadd.f32 0.0, %v6161
        %6163 = vmatmul.bf16.gmra.mxu0 %v6043
        %v6164 = vpop.f32.mrf.mxu0
        %v6165 = vadd.f32 0.0, %v6164
        %v6166 = vpop.f32.mrf.mxu0
        %v6167 = vadd.f32 0.0, %v6166
        %6168 = vmatmul.bf16.gmra.mxu0 %v6046
        %v6169 = vpop.f32.mrf.mxu0
        %v6170 = vadd.f32 0.0, %v6169
        %v6171 = vpop.f32.mrf.mxu0
        %v6172 = vadd.f32 0.0, %v6171
        %6173 = vmatmul.bf16.gmra.mxu0 %v6049
        %v6174 = vpop.f32.mrf.mxu0
        %v6175 = vadd.f32 0.0, %v6174
        %v6176 = vpop.f32.mrf.mxu0
        %v6177 = vadd.f32 0.0, %v6176
        %6178 = vmatmul.bf16.gmra.mxu0 %v6052
        %v6179 = vpop.f32.mrf.mxu0
        %v6180 = vadd.f32 0.0, %v6179
        %v6181 = vpop.f32.mrf.mxu0
        %v6182 = vadd.f32 0.0, %v6181
        %6183 = vmatmul.bf16.gmra.mxu0 %v6055
        %v6184 = vpop.f32.mrf.mxu0
        %v6185 = vadd.f32 0.0, %v6184
        %v6186 = vpop.f32.mrf.mxu0
        %v6187 = vadd.f32 0.0, %v6186
        %6188 = vdwg.mxu0
        %v6192 = vunpack.c.l.b16 %v5805
        %v6193 = vunpack.c.l.b16 %v5806
        %v6194 = vunpack.c.l.b16 %v5807
        %v6195 = vpack.c.b16 %v6193, %v6192
        %v6196 = vpack.c.b16 %v5908, %v6194
        %v6197 = vpack.c.b16 %v5910, %v5909
        %v6198 = vpack.c.b16 %v5912, %v5911
        %v6199 = vpack.c.b16 %v5914, %v5913
        %v6200 = vpack.c.b16 %v5916, %v5915
        %v6201 = vpack.c.b16 %v5918, %v5917
        %v6202 = vpack.c.b16 %v5920, %v5919
        %v6203 = vpack.c.b16 %v5922, %v5921
        %v6204 = vpack.c.b16 %v5924, %v5923
        %v6205 = vpack.c.b16 %v5926, %v5925
        %v6206 = vpack.c.b16 %v5928, %v5927
        %v6207 = vpack.c.b16 %v5930, %v5929
        %v6208 = vpack.c.b16 %v5932, %v5931
        %v6209 = vpack.c.b16 %v5934, %v5933
        %v6210 = vpack.c.b16 %v5936, %v5935
        %v6211 = vpack.c.b16 %v5938, %v5937
        %v6212 = vpack.c.b16 %v5940, %v5939
        %v6213 = vpack.c.b16 %v5942, %v5941
        %v6214 = vpack.c.b16 %v5944, %v5943
        %v6215 = vpack.c.b16 %v5946, %v5945
        %v6216 = vpack.c.b16 %v5948, %v5947
        %v6217 = vpack.c.b16 %v5950, %v5949
        %v6218 = vpack.c.b16 %v5952, %v5951
        %v6221 = vunpack.c.l.b16 %v5853
        %v6222 = vunpack.c.l.b16 %v5854
        %v6223 = vpack.c.b16 %v6222, %v6221
        %v6225 = vsel %vm2359, %v6195, 0
        %v6228 = vsel %vm2359, %v6196, 0
        %v6231 = vsel %vm2359, %v6197, 0
        %v6234 = vsel %vm2359, %v6198, 0
        %v6237 = vsel %vm2359, %v6199, 0
        %v6240 = vsel %vm2359, %v6200, 0
        %v6243 = vsel %vm2359, %v6201, 0
        %v6246 = vsel %vm2359, %v6202, 0
        %v6249 = vsel %vm2359, %v6203, 0
        %v6252 = vsel %vm2359, %v6204, 0
        %v6255 = vsel %vm2359, %v6205, 0
        %v6258 = vsel %vm2359, %v6206, 0
        %v6261 = vsel %vm2359, %v6207, 0
        %v6264 = vsel %vm2359, %v6208, 0
        %v6267 = vsel %vm2359, %v6209, 0
        %v6270 = vsel %vm2359, %v6210, 0
        %v6273 = vsel %vm2359, %v6211, 0
        %v6276 = vsel %vm2359, %v6212, 0
        %v6279 = vsel %vm2359, %v6213, 0
        %v6282 = vsel %vm2359, %v6214, 0
        %v6285 = vsel %vm2359, %v6215, 0
        %v6288 = vsel %vm2359, %v6216, 0
        %v6291 = vsel %vm2359, %v6217, 0
        %v6294 = vsel %vm2359, %v6218, 0
        %v6297 = vsel %vm2432, %v6223, 0
        %6299 = vmatpush.bf16.msra.mxu0 0
        %6300 = vmatpush.bf16.msra.mxu0 0
        %6301 = vmatpush.bf16.msra.mxu0 0
        %6302 = vmatpush.bf16.msra.mxu0 0
        %6303 = vmatpush.bf16.msra.mxu0 0
        %6304 = vmatpush.bf16.msra.mxu0 0
        %6305 = vmatpush.bf16.msra.mxu0 0
        %6306 = vmatpush.bf16.msra.mxu0 %v6297
        %6307 = vmatmul.bf16.gmra.mxu0 %v6225
        %v6308 = vpop.f32.mrf.mxu0
        %v6309 = vadd.f32 %v6070, %v6308
        %v6310 = vpop.f32.mrf.mxu0
        %v6311 = vadd.f32 %v6072, %v6310
        %6312 = vmatmul.bf16.gmra.mxu0 %v6228
        %v6313 = vpop.f32.mrf.mxu0
        %v6314 = vadd.f32 %v6075, %v6313
        %v6315 = vpop.f32.mrf.mxu0
        %v6316 = vadd.f32 %v6077, %v6315
        %6317 = vmatmul.bf16.gmra.mxu0 %v6231
        %v6318 = vpop.f32.mrf.mxu0
        %v6319 = vadd.f32 %v6080, %v6318
        %v6320 = vpop.f32.mrf.mxu0
        %v6321 = vadd.f32 %v6082, %v6320
        %6322 = vmatmul.bf16.gmra.mxu0 %v6234
        %v6323 = vpop.f32.mrf.mxu0
        %v6324 = vadd.f32 %v6085, %v6323
        %v6325 = vpop.f32.mrf.mxu0
        %v6326 = vadd.f32 %v6087, %v6325
        %6327 = vmatmul.bf16.gmra.mxu0 %v6237
        %v6328 = vpop.f32.mrf.mxu0
        %v6329 = vadd.f32 %v6090, %v6328
        %v6330 = vpop.f32.mrf.mxu0
        %v6331 = vadd.f32 %v6092, %v6330
        %6332 = vmatmul.bf16.gmra.mxu0 %v6240
        %v6333 = vpop.f32.mrf.mxu0
        %v6334 = vadd.f32 %v6095, %v6333
        %v6335 = vpop.f32.mrf.mxu0
        %v6336 = vadd.f32 %v6097, %v6335
        %6337 = vmatmul.bf16.gmra.mxu0 %v6243
        %v6338 = vpop.f32.mrf.mxu0
        %v6339 = vadd.f32 %v6100, %v6338
        %v6340 = vpop.f32.mrf.mxu0
        %v6341 = vadd.f32 %v6102, %v6340
        %6342 = vmatmul.bf16.gmra.mxu0 %v6246
        %v6343 = vpop.f32.mrf.mxu0
        %v6344 = vadd.f32 %v6105, %v6343
        %v6345 = vpop.f32.mrf.mxu0
        %v6346 = vadd.f32 %v6107, %v6345
        %6347 = vmatmul.bf16.gmra.mxu0 %v6249
        %v6348 = vpop.f32.mrf.mxu0
        %v6349 = vadd.f32 %v6110, %v6348
        %v6350 = vpop.f32.mrf.mxu0
        %v6351 = vadd.f32 %v6112, %v6350
        %6352 = vmatmul.bf16.gmra.mxu0 %v6252
        %v6353 = vpop.f32.mrf.mxu0
        %v6354 = vadd.f32 %v6115, %v6353
        %v6355 = vpop.f32.mrf.mxu0
        %v6356 = vadd.f32 %v6117, %v6355
        %6357 = vmatmul.bf16.gmra.mxu0 %v6255
        %v6358 = vpop.f32.mrf.mxu0
        %v6359 = vadd.f32 %v6120, %v6358
        %v6360 = vpop.f32.mrf.mxu0
        %v6361 = vadd.f32 %v6122, %v6360
        %6362 = vmatmul.bf16.gmra.mxu0 %v6258
        %v6363 = vpop.f32.mrf.mxu0
        %v6364 = vadd.f32 %v6125, %v6363
        %v6365 = vpop.f32.mrf.mxu0
        %v6366 = vadd.f32 %v6127, %v6365
        %6367 = vmatmul.bf16.gmra.mxu0 %v6261
        %v6368 = vpop.f32.mrf.mxu0
        %v6369 = vadd.f32 %v6130, %v6368
        %v6370 = vpop.f32.mrf.mxu0
        %v6371 = vadd.f32 %v6132, %v6370
        %6372 = vmatmul.bf16.gmra.mxu0 %v6264
        %v6373 = vpop.f32.mrf.mxu0
        %v6374 = vadd.f32 %v6135, %v6373
        %v6375 = vpop.f32.mrf.mxu0
        %v6376 = vadd.f32 %v6137, %v6375
        %6377 = vmatmul.bf16.gmra.mxu0 %v6267
        %v6378 = vpop.f32.mrf.mxu0
        %v6379 = vadd.f32 %v6140, %v6378
        %v6380 = vpop.f32.mrf.mxu0
        %v6381 = vadd.f32 %v6142, %v6380
        %6382 = vmatmul.bf16.gmra.mxu0 %v6270
        %v6383 = vpop.f32.mrf.mxu0
        %v6384 = vadd.f32 %v6145, %v6383
        %v6385 = vpop.f32.mrf.mxu0
        %v6386 = vadd.f32 %v6147, %v6385
        %6387 = vmatmul.bf16.gmra.mxu0 %v6273
        %v6388 = vpop.f32.mrf.mxu0
        %v6389 = vadd.f32 %v6150, %v6388
        %v6390 = vpop.f32.mrf.mxu0
        %v6391 = vadd.f32 %v6152, %v6390
        %6392 = vmatmul.bf16.gmra.mxu0 %v6276
        %v6393 = vpop.f32.mrf.mxu0
        %v6394 = vadd.f32 %v6155, %v6393
        %v6395 = vpop.f32.mrf.mxu0
        %v6396 = vadd.f32 %v6157, %v6395
        %6397 = vmatmul.bf16.gmra.mxu0 %v6279
        %v6398 = vpop.f32.mrf.mxu0
        %v6399 = vadd.f32 %v6160, %v6398
        %v6400 = vpop.f32.mrf.mxu0
        %v6401 = vadd.f32 %v6162, %v6400
        %6402 = vmatmul.bf16.gmra.mxu0 %v6282
        %v6403 = vpop.f32.mrf.mxu0
        %v6404 = vadd.f32 %v6165, %v6403
        %v6405 = vpop.f32.mrf.mxu0
        %v6406 = vadd.f32 %v6167, %v6405
        %6407 = vmatmul.bf16.gmra.mxu0 %v6285
        %v6408 = vpop.f32.mrf.mxu0
        %v6409 = vadd.f32 %v6170, %v6408
        %v6410 = vpop.f32.mrf.mxu0
        %v6411 = vadd.f32 %v6172, %v6410
        %6412 = vmatmul.bf16.gmra.mxu0 %v6288
        %v6413 = vpop.f32.mrf.mxu0
        %v6414 = vadd.f32 %v6175, %v6413
        %v6415 = vpop.f32.mrf.mxu0
        %v6416 = vadd.f32 %v6177, %v6415
        %6417 = vmatmul.bf16.gmra.mxu0 %v6291
        %v6418 = vpop.f32.mrf.mxu0
        %v6419 = vadd.f32 %v6180, %v6418
        %v6420 = vpop.f32.mrf.mxu0
        %v6421 = vadd.f32 %v6182, %v6420
        %6422 = vmatmul.bf16.gmra.mxu0 %v6294
        %v6423 = vpop.f32.mrf.mxu0
        %v6424 = vadd.f32 %v6185, %v6423
        %v6425 = vpop.f32.mrf.mxu0
        %v6426 = vadd.f32 %v6187, %v6425
        %6427 = vdwg.mxu0
        %v6428 = vld [vmem:[%s5804 + $0x18] sm:$0xf]
        %v6429 = vld [vmem:[%s5804 + $0x1c] sm:$0xf]
        %v6430 = vld [vmem:[%s5804 + $0x20] sm:$0xf]
        %v6431 = vld [vmem:[%s5804 + $0x24] sm:$0xf]
        %v6432 = vld [vmem:[%s5804 + $0x28] sm:$0xf]
        %v6433 = vld [vmem:[%s5804 + $0x2c] sm:$0xf]
        %v6434 = vld [vmem:[%s5804 + $0x30] sm:$0xf]
        %v6435 = vld [vmem:[%s5804 + $0x34] sm:$0xf]
        %v6436 = vld [vmem:[%s5804 + $0x38] sm:$0xf]
        %v6437 = vld [vmem:[%s5804 + $0x3c] sm:$0xf]
        %v6438 = vld [vmem:[%s5804 + $0x40] sm:$0xf]
        %v6439 = vld [vmem:[%s5804 + $0x44] sm:$0xf]
        %v6440 = vld [vmem:[%s5804 + $0x48] sm:$0xf]
        %v6441 = vld [vmem:[%s5804 + $0x4c] sm:$0xf]
        %v6442 = vld [vmem:[%s5804 + $0x50] sm:$0xf]
        %v6443 = vld [vmem:[%s5804 + $0x54] sm:$0xf]
        %v6444 = vld [vmem:[%s5804 + $0x58] sm:$0xf]
        %v6445 = vld [vmem:[%s5804 + $0x5c] sm:$0xf]
        %v6446 = vld [vmem:[%s5804 + $0x60] sm:$0xf]
        %v6447 = vld [vmem:[%s5804 + $0x64] sm:$0xf]
        %v6448 = vld [vmem:[%s5804 + $0x68] sm:$0xf]
        %v6449 = vld [vmem:[%s5804 + $0x6c] sm:$0xf]
        %v6450 = vld [vmem:[%s5804 + $0x70] sm:$0xf]
        %v6451 = vld [vmem:[%s5804 + $0x74] sm:$0xf]
        %v6452 = vld [vmem:[%s5804 + $0x78] sm:$0xf]
        %v6453 = vld [vmem:[%s5804 + $0x7c] sm:$0xf]
        %v6454 = vld [vmem:[%s5804 + $0x80] sm:$0xf]
        %v6455 = vld [vmem:[%s5804 + $0x84] sm:$0xf]
        %v6456 = vld [vmem:[%s5804 + $0x88] sm:$0xf]
        %v6457 = vld [vmem:[%s5804 + $0x8c] sm:$0xf]
        %v6458 = vld [vmem:[%s5804 + $0x90] sm:$0xf]
        %v6459 = vld [vmem:[%s5804 + $0x94] sm:$0xf]
        %v6460 = vld [vmem:[%s5804 + $0x98] sm:$0xf]
        %v6461 = vld [vmem:[%s5804 + $0x9c] sm:$0xf]
        %v6462 = vld [vmem:[%s5804 + $0xa0] sm:$0xf]
        %v6463 = vld [vmem:[%s5804 + $0xa4] sm:$0xf]
        %v6464 = vld [vmem:[%s5804 + $0xa8] sm:$0xf]
        %v6465 = vld [vmem:[%s5804 + $0xac] sm:$0xf]
        %v6466 = vld [vmem:[%s5804 + $0xb0] sm:$0xf]
        %v6467 = vld [vmem:[%s5804 + $0xb4] sm:$0xf]
        %v6468 = vld [vmem:[%s5804 + $0xb8] sm:$0xf]
        %v6469 = vld [vmem:[%s5804 + $0xbc] sm:$0xf]
        %v6470 = vld [vmem:[%s5804 + $0xc0] sm:$0xf]
        %v6471 = vld [vmem:[%s5804 + $0xc4] sm:$0xf]
        %v6472 = vld [vmem:[%s5804 + $0xc8] sm:$0xf]
        %v6473 = vld [vmem:[%s5804 + $0xcc] sm:$0xf]
        %v6474 = vld [vmem:[%s5804 + $0xd0] sm:$0xf]
        %v6475 = vld [vmem:[%s5804 + $0xd4] sm:$0xf]
        %v6476 = vld [vmem:[%s2852] sm:$0xf]
        %v6477 = vld [vmem:[%s2852 + $0x4] sm:$0x3]
        %v6526 = vunpack.c.l.b16 %v6428
        %v6527 = vunpack.c.l.b16 %v6429
        %v6528 = vunpack.c.l.b16 %v6430
        %v6529 = vunpack.c.l.b16 %v6431
        %v6530 = vunpack.c.l.b16 %v6432
        %v6531 = vunpack.c.l.b16 %v6433
        %v6532 = vunpack.c.l.b16 %v6434
        %v6533 = vunpack.c.l.b16 %v6435
        %v6534 = vunpack.c.l.b16 %v6436
        %v6535 = vunpack.c.l.b16 %v6437
        %v6536 = vunpack.c.l.b16 %v6438
        %v6537 = vunpack.c.l.b16 %v6439
        %v6538 = vunpack.c.l.b16 %v6440
        %v6539 = vunpack.c.l.b16 %v6441
        %v6540 = vunpack.c.l.b16 %v6442
        %v6541 = vunpack.c.l.b16 %v6443
        %v6542 = vunpack.c.l.b16 %v6444
        %v6543 = vunpack.c.l.b16 %v6445
        %v6544 = vunpack.c.l.b16 %v6446
        %v6545 = vunpack.c.l.b16 %v6447
        %v6546 = vunpack.c.l.b16 %v6448
        %v6547 = vunpack.c.l.b16 %v6449
        %v6548 = vunpack.c.l.b16 %v6450
        %v6549 = vunpack.c.l.b16 %v6451
        %v6550 = vunpack.c.l.b16 %v6452
        %v6551 = vunpack.c.l.b16 %v6453
        %v6552 = vunpack.c.l.b16 %v6454
        %v6553 = vunpack.c.l.b16 %v6455
        %v6554 = vunpack.c.l.b16 %v6456
        %v6555 = vunpack.c.l.b16 %v6457
        %v6556 = vunpack.c.l.b16 %v6458
        %v6557 = vunpack.c.l.b16 %v6459
        %v6558 = vunpack.c.l.b16 %v6460
        %v6559 = vunpack.c.l.b16 %v6461
        %v6560 = vunpack.c.l.b16 %v6462
        %v6561 = vunpack.c.l.b16 %v6463
        %v6562 = vunpack.c.l.b16 %v6464
        %v6563 = vunpack.c.l.b16 %v6465
        %v6564 = vunpack.c.l.b16 %v6466
        %v6565 = vunpack.c.l.b16 %v6467
        %v6566 = vunpack.c.l.b16 %v6468
        %v6567 = vunpack.c.l.b16 %v6469
        %v6568 = vunpack.c.l.b16 %v6470
        %v6569 = vunpack.c.l.b16 %v6471
        %v6570 = vunpack.c.l.b16 %v6472
        %v6571 = vunpack.c.l.b16 %v6473
        %v6572 = vunpack.c.l.b16 %v6474
        %v6573 = vunpack.c.l.b16 %v6475
        %v6574 = vpack.c.b16 %v6527, %v6526
        %v6575 = vpack.c.b16 %v6529, %v6528
        %v6576 = vpack.c.b16 %v6531, %v6530
        %v6577 = vpack.c.b16 %v6533, %v6532
        %v6578 = vpack.c.b16 %v6535, %v6534
        %v6579 = vpack.c.b16 %v6537, %v6536
        %v6580 = vpack.c.b16 %v6539, %v6538
        %v6581 = vpack.c.b16 %v6541, %v6540
        %v6582 = vpack.c.b16 %v6543, %v6542
        %v6583 = vpack.c.b16 %v6545, %v6544
        %v6584 = vpack.c.b16 %v6547, %v6546
        %v6585 = vpack.c.b16 %v6549, %v6548
        %v6586 = vpack.c.b16 %v6551, %v6550
        %v6587 = vpack.c.b16 %v6553, %v6552
        %v6588 = vpack.c.b16 %v6555, %v6554
        %v6589 = vpack.c.b16 %v6557, %v6556
        %v6590 = vpack.c.b16 %v6559, %v6558
        %v6591 = vpack.c.b16 %v6561, %v6560
        %v6592 = vpack.c.b16 %v6563, %v6562
        %v6593 = vpack.c.b16 %v6565, %v6564
        %v6594 = vpack.c.b16 %v6567, %v6566
        %v6595 = vpack.c.b16 %v6569, %v6568
        %v6596 = vpack.c.b16 %v6571, %v6570
        %v6597 = vpack.c.b16 %v6573, %v6572
        %v6600 = vunpack.c.l.b16 %v6476
        %v6601 = vunpack.c.l.b16 %v6477
        %v6602 = vpack.c.b16 %v6601, %v6600
        %v6604 = vsel %vm2359, %v6574, 0
        %v6607 = vsel %vm2359, %v6575, 0
        %v6610 = vsel %vm2359, %v6576, 0
        %v6613 = vsel %vm2359, %v6577, 0
        %v6616 = vsel %vm2359, %v6578, 0
        %v6619 = vsel %vm2359, %v6579, 0
        %v6622 = vsel %vm2359, %v6580, 0
        %v6625 = vsel %vm2359, %v6581, 0
        %v6628 = vsel %vm2359, %v6582, 0
        %v6631 = vsel %vm2359, %v6583, 0
        %v6634 = vsel %vm2359, %v6584, 0
        %v6637 = vsel %vm2359, %v6585, 0
        %v6640 = vsel %vm2359, %v6586, 0
        %v6643 = vsel %vm2359, %v6587, 0
        %v6646 = vsel %vm2359, %v6588, 0
        %v6649 = vsel %vm2359, %v6589, 0
        %v6652 = vsel %vm2359, %v6590, 0
        %v6655 = vsel %vm2359, %v6591, 0
        %v6658 = vsel %vm2359, %v6592, 0
        %v6661 = vsel %vm2359, %v6593, 0
        %v6664 = vsel %vm2359, %v6594, 0
        %v6667 = vsel %vm2359, %v6595, 0
        %v6670 = vsel %vm2359, %v6596, 0
        %v6673 = vsel %vm2359, %v6597, 0
        %v6676 = vsel %vm2432, %v6602, 0
        %6678 = vmatpush.bf16.msra.mxu0 0
        %6679 = vmatpush.bf16.msra.mxu0 0
        %6680 = vmatpush.bf16.msra.mxu0 0
        %6681 = vmatpush.bf16.msra.mxu0 0
        %6682 = vmatpush.bf16.msra.mxu0 0
        %6683 = vmatpush.bf16.msra.mxu0 0
        %6684 = vmatpush.bf16.msra.mxu0 0
        %6685 = vmatpush.bf16.msra.mxu0 %v6676
        %6686 = vmatmul.bf16.gmra.mxu0 %v6604
        %v6687 = vpop.f32.mrf.mxu0
        %v6688 = vadd.f32 0.0, %v6687
        %v6689 = vpop.f32.mrf.mxu0
        %v6690 = vadd.f32 0.0, %v6689
        %6691 = vmatmul.bf16.gmra.mxu0 %v6607
        %v6692 = vpop.f32.mrf.mxu0
        %v6693 = vadd.f32 0.0, %v6692
        %v6694 = vpop.f32.mrf.mxu0
        %v6695 = vadd.f32 0.0, %v6694
        %6696 = vmatmul.bf16.gmra.mxu0 %v6610
        %v6697 = vpop.f32.mrf.mxu0
        %v6698 = vadd.f32 0.0, %v6697
        %v6699 = vpop.f32.mrf.mxu0
        %v6700 = vadd.f32 0.0, %v6699
        %6701 = vmatmul.bf16.gmra.mxu0 %v6613
        %v6702 = vpop.f32.mrf.mxu0
        %v6703 = vadd.f32 0.0, %v6702
        %v6704 = vpop.f32.mrf.mxu0
        %v6705 = vadd.f32 0.0, %v6704
        %6706 = vmatmul.bf16.gmra.mxu0 %v6616
        %v6707 = vpop.f32.mrf.mxu0
        %v6708 = vadd.f32 0.0, %v6707
        %v6709 = vpop.f32.mrf.mxu0
        %v6710 = vadd.f32 0.0, %v6709
        %6711 = vmatmul.bf16.gmra.mxu0 %v6619
        %v6712 = vpop.f32.mrf.mxu0
        %v6713 = vadd.f32 0.0, %v6712
        %v6714 = vpop.f32.mrf.mxu0
        %v6715 = vadd.f32 0.0, %v6714
        %6716 = vmatmul.bf16.gmra.mxu0 %v6622
        %v6717 = vpop.f32.mrf.mxu0
        %v6718 = vadd.f32 0.0, %v6717
        %v6719 = vpop.f32.mrf.mxu0
        %v6720 = vadd.f32 0.0, %v6719
        %6721 = vmatmul.bf16.gmra.mxu0 %v6625
        %v6722 = vpop.f32.mrf.mxu0
        %v6723 = vadd.f32 0.0, %v6722
        %v6724 = vpop.f32.mrf.mxu0
        %v6725 = vadd.f32 0.0, %v6724
        %6726 = vmatmul.bf16.gmra.mxu0 %v6628
        %v6727 = vpop.f32.mrf.mxu0
        %v6728 = vadd.f32 0.0, %v6727
        %v6729 = vpop.f32.mrf.mxu0
        %v6730 = vadd.f32 0.0, %v6729
        %6731 = vmatmul.bf16.gmra.mxu0 %v6631
        %v6732 = vpop.f32.mrf.mxu0
        %v6733 = vadd.f32 0.0, %v6732
        %v6734 = vpop.f32.mrf.mxu0
        %v6735 = vadd.f32 0.0, %v6734
        %6736 = vmatmul.bf16.gmra.mxu0 %v6634
        %v6737 = vpop.f32.mrf.mxu0
        %v6738 = vadd.f32 0.0, %v6737
        %v6739 = vpop.f32.mrf.mxu0
        %v6740 = vadd.f32 0.0, %v6739
        %6741 = vmatmul.bf16.gmra.mxu0 %v6637
        %v6742 = vpop.f32.mrf.mxu0
        %v6743 = vadd.f32 0.0, %v6742
        %v6744 = vpop.f32.mrf.mxu0
        %v6745 = vadd.f32 0.0, %v6744
        %6746 = vmatmul.bf16.gmra.mxu0 %v6640
        %v6747 = vpop.f32.mrf.mxu0
        %v6748 = vadd.f32 0.0, %v6747
        %v6749 = vpop.f32.mrf.mxu0
        %v6750 = vadd.f32 0.0, %v6749
        %6751 = vmatmul.bf16.gmra.mxu0 %v6643
        %v6752 = vpop.f32.mrf.mxu0
        %v6753 = vadd.f32 0.0, %v6752
        %v6754 = vpop.f32.mrf.mxu0
        %v6755 = vadd.f32 0.0, %v6754
        %6756 = vmatmul.bf16.gmra.mxu0 %v6646
        %v6757 = vpop.f32.mrf.mxu0
        %v6758 = vadd.f32 0.0, %v6757
        %v6759 = vpop.f32.mrf.mxu0
        %v6760 = vadd.f32 0.0, %v6759
        %6761 = vmatmul.bf16.gmra.mxu0 %v6649
        %v6762 = vpop.f32.mrf.mxu0
        %v6763 = vadd.f32 0.0, %v6762
        %v6764 = vpop.f32.mrf.mxu0
        %v6765 = vadd.f32 0.0, %v6764
        %6766 = vmatmul.bf16.gmra.mxu0 %v6652
        %v6767 = vpop.f32.mrf.mxu0
        %v6768 = vadd.f32 0.0, %v6767
        %v6769 = vpop.f32.mrf.mxu0
        %v6770 = vadd.f32 0.0, %v6769
        %6771 = vmatmul.bf16.gmra.mxu0 %v6655
        %v6772 = vpop.f32.mrf.mxu0
        %v6773 = vadd.f32 0.0, %v6772
        %v6774 = vpop.f32.mrf.mxu0
        %v6775 = vadd.f32 0.0, %v6774
        %6776 = vmatmul.bf16.gmra.mxu0 %v6658
        %v6777 = vpop.f32.mrf.mxu0
        %v6778 = vadd.f32 0.0, %v6777
        %v6779 = vpop.f32.mrf.mxu0
        %v6780 = vadd.f32 0.0, %v6779
        %6781 = vmatmul.bf16.gmra.mxu0 %v6661
        %v6782 = vpop.f32.mrf.mxu0
        %v6783 = vadd.f32 0.0, %v6782
        %v6784 = vpop.f32.mrf.mxu0
        %v6785 = vadd.f32 0.0, %v6784
        %6786 = vmatmul.bf16.gmra.mxu0 %v6664
        %v6787 = vpop.f32.mrf.mxu0
        %v6788 = vadd.f32 0.0, %v6787
        %v6789 = vpop.f32.mrf.mxu0
        %v6790 = vadd.f32 0.0, %v6789
        %6791 = vmatmul.bf16.gmra.mxu0 %v6667
        %v6792 = vpop.f32.mrf.mxu0
        %v6793 = vadd.f32 0.0, %v6792
        %v6794 = vpop.f32.mrf.mxu0
        %v6795 = vadd.f32 0.0, %v6794
        %6796 = vmatmul.bf16.gmra.mxu0 %v6670
        %v6797 = vpop.f32.mrf.mxu0
        %v6798 = vadd.f32 0.0, %v6797
        %v6799 = vpop.f32.mrf.mxu0
        %v6800 = vadd.f32 0.0, %v6799
        %6801 = vmatmul.bf16.gmra.mxu0 %v6673
        %v6802 = vpop.f32.mrf.mxu0
        %v6803 = vadd.f32 0.0, %v6802
        %v6804 = vpop.f32.mrf.mxu0
        %v6805 = vadd.f32 0.0, %v6804
        %6806 = vdwg.mxu0
        %v6807 = vadd.f32 %v6309, %v6688
        %v6808 = vadd.f32 %v6311, %v6690
        %v6809 = vadd.f32 %v6314, %v6693
        %v6810 = vadd.f32 %v6316, %v6695
        %v6811 = vadd.f32 %v6319, %v6698
        %v6812 = vadd.f32 %v6321, %v6700
        %v6813 = vadd.f32 %v6324, %v6703
        %v6814 = vadd.f32 %v6326, %v6705
        %v6815 = vadd.f32 %v6329, %v6708
        %v6816 = vadd.f32 %v6331, %v6710
        %v6817 = vadd.f32 %v6334, %v6713
        %v6818 = vadd.f32 %v6336, %v6715
        %v6819 = vadd.f32 %v6339, %v6718
        %v6820 = vadd.f32 %v6341, %v6720
        %v6821 = vadd.f32 %v6344, %v6723
        %v6822 = vadd.f32 %v6346, %v6725
        %v6823 = vadd.f32 %v6349, %v6728
        %v6824 = vadd.f32 %v6351, %v6730
        %v6825 = vadd.f32 %v6354, %v6733
        %v6826 = vadd.f32 %v6356, %v6735
        %v6827 = vadd.f32 %v6359, %v6738
        %v6828 = vadd.f32 %v6361, %v6740
        %v6829 = vadd.f32 %v6364, %v6743
        %v6830 = vadd.f32 %v6366, %v6745
        %v6831 = vadd.f32 %v6369, %v6748
        %v6832 = vadd.f32 %v6371, %v6750
        %v6833 = vadd.f32 %v6374, %v6753
        %v6834 = vadd.f32 %v6376, %v6755
        %v6835 = vadd.f32 %v6379, %v6758
        %v6836 = vadd.f32 %v6381, %v6760
        %v6837 = vadd.f32 %v6384, %v6763
        %v6838 = vadd.f32 %v6386, %v6765
        %v6839 = vadd.f32 %v6389, %v6768
        %v6840 = vadd.f32 %v6391, %v6770
        %v6841 = vadd.f32 %v6394, %v6773
        %v6842 = vadd.f32 %v6396, %v6775
        %v6843 = vadd.f32 %v6399, %v6778
        %v6844 = vadd.f32 %v6401, %v6780
        %v6845 = vadd.f32 %v6404, %v6783
        %v6846 = vadd.f32 %v6406, %v6785
        %v6847 = vadd.f32 %v6409, %v6788
        %v6848 = vadd.f32 %v6411, %v6790
        %v6849 = vadd.f32 %v6414, %v6793
        %v6850 = vadd.f32 %v6416, %v6795
        %v6851 = vadd.f32 %v6419, %v6798
        %v6852 = vadd.f32 %v6421, %v6800
        %v6853 = vadd.f32 %v6424, %v6803
        %v6854 = vadd.f32 %v6426, %v6805
        %v6855 = vmul.f32 %v6807, %v3232
        %v6856 = vmul.f32 %v6808, %v3232
        %v6857 = vmul.f32 %v6809, %v3232
        %v6858 = vmul.f32 %v6810, %v3232
        %v6859 = vmul.f32 %v6811, %v3232
        %v6860 = vmul.f32 %v6812, %v3232
        %v6861 = vmul.f32 %v6813, %v3232
        %v6862 = vmul.f32 %v6814, %v3232
        %v6863 = vmul.f32 %v6815, %v3232
        %v6864 = vmul.f32 %v6816, %v3232
        %v6865 = vmul.f32 %v6817, %v3232
        %v6866 = vmul.f32 %v6818, %v3232
        %v6867 = vmul.f32 %v6819, %v3232
        %v6868 = vmul.f32 %v6820, %v3232
        %v6869 = vmul.f32 %v6821, %v3232
        %v6870 = vmul.f32 %v6822, %v3232
        %v6871 = vmul.f32 %v6823, %v3232
        %v6872 = vmul.f32 %v6824, %v3232
        %v6873 = vmul.f32 %v6825, %v3232
        %v6874 = vmul.f32 %v6826, %v3232
        %v6875 = vmul.f32 %v6827, %v3232
        %v6876 = vmul.f32 %v6828, %v3232
        %v6877 = vmul.f32 %v6829, %v3232
        %v6878 = vmul.f32 %v6830, %v3232
        %v6879 = vmul.f32 %v6831, %v3232
        %v6880 = vmul.f32 %v6832, %v3232
        %v6881 = vmul.f32 %v6833, %v3232
        %v6882 = vmul.f32 %v6834, %v3232
        %v6883 = vmul.f32 %v6835, %v3232
        %v6884 = vmul.f32 %v6836, %v3232
        %v6885 = vmul.f32 %v6837, %v3232
        %v6886 = vmul.f32 %v6838, %v3232
        %v6887 = vmul.f32 %v6839, %v3232
        %v6888 = vmul.f32 %v6840, %v3232
        %v6889 = vmul.f32 %v6841, %v3232
        %v6890 = vmul.f32 %v6842, %v3232
        %v6891 = vmul.f32 %v6843, %v3232
        %v6892 = vmul.f32 %v6844, %v3232
        %v6893 = vmul.f32 %v6845, %v3232
        %v6894 = vmul.f32 %v6846, %v3232
        %v6895 = vmul.f32 %v6847, %v3232
        %v6896 = vmul.f32 %v6848, %v3232
        %v6897 = vmul.f32 %v6849, %v3232
        %v6898 = vmul.f32 %v6850, %v3232
        %v6899 = vmul.f32 %v6851, %v3232
        %v6900 = vmul.f32 %v6852, %v3232
        %v6901 = vmul.f32 %v6853, %v3232
        %v6902 = vmul.f32 %v6854, %v3232
        %v6903 = vadd.f32 %v6855, %v3281
        %v6904 = vadd.f32 %v6856, %v3281
        %v6905 = vadd.f32 %v6857, %v3281
        %v6906 = vadd.f32 %v6858, %v3281
        %v6907 = vadd.f32 %v6859, %v3281
        %v6908 = vadd.f32 %v6860, %v3281
        %v6909 = vadd.f32 %v6861, %v3281
        %v6910 = vadd.f32 %v6862, %v3281
        %v6911 = vadd.f32 %v6863, %v3281
        %v6912 = vadd.f32 %v6864, %v3281
        %v6913 = vadd.f32 %v6865, %v3281
        %v6914 = vadd.f32 %v6866, %v3281
        %v6915 = vadd.f32 %v6867, %v3281
        %v6916 = vadd.f32 %v6868, %v3281
        %v6917 = vadd.f32 %v6869, %v3281
        %v6918 = vadd.f32 %v6870, %v3281
        %v6919 = vadd.f32 %v6871, %v3281
        %v6920 = vadd.f32 %v6872, %v3281
        %v6921 = vadd.f32 %v6873, %v3281
        %v6922 = vadd.f32 %v6874, %v3281
        %v6923 = vadd.f32 %v6875, %v3281
        %v6924 = vadd.f32 %v6876, %v3281
        %v6925 = vadd.f32 %v6877, %v3281
        %v6926 = vadd.f32 %v6878, %v3281
        %v6927 = vadd.f32 %v6879, %v3281
        %v6928 = vadd.f32 %v6880, %v3281
        %v6929 = vadd.f32 %v6881, %v3281
        %v6930 = vadd.f32 %v6882, %v3281
        %v6931 = vadd.f32 %v6883, %v3281
        %v6932 = vadd.f32 %v6884, %v3281
        %v6933 = vadd.f32 %v6885, %v3281
        %v6934 = vadd.f32 %v6886, %v3281
        %v6935 = vadd.f32 %v6887, %v3281
        %v6936 = vadd.f32 %v6888, %v3281
        %v6937 = vadd.f32 %v6889, %v3281
        %v6938 = vadd.f32 %v6890, %v3281
        %v6939 = vadd.f32 %v6891, %v3281
        %v6940 = vadd.f32 %v6892, %v3281
        %v6941 = vadd.f32 %v6893, %v3281
        %v6942 = vadd.f32 %v6894, %v3281
        %v6943 = vadd.f32 %v6895, %v3281
        %v6944 = vadd.f32 %v6896, %v3281
        %v6945 = vadd.f32 %v6897, %v3281
        %v6946 = vadd.f32 %v6898, %v3281
        %v6947 = vadd.f32 %v6899, %v3281
        %v6948 = vadd.f32 %v6900, %v3281
        %v6949 = vadd.f32 %v6901, %v3281
        %v6950 = vadd.f32 %v6902, %v3281
        %v6951 = vmax.f32 %v6903, 0.0
        %v6952 = vmax.f32 %v6904, 0.0
        %v6953 = vmax.f32 %v6905, 0.0
        %v6954 = vmax.f32 %v6906, 0.0
        %v6955 = vmax.f32 %v6907, 0.0
        %v6956 = vmax.f32 %v6908, 0.0
        %v6957 = vmax.f32 %v6909, 0.0
        %v6958 = vmax.f32 %v6910, 0.0
        %v6959 = vmax.f32 %v6911, 0.0
        %v6960 = vmax.f32 %v6912, 0.0
        %v6961 = vmax.f32 %v6913, 0.0
        %v6962 = vmax.f32 %v6914, 0.0
        %v6963 = vmax.f32 %v6915, 0.0
        %v6964 = vmax.f32 %v6916, 0.0
        %v6965 = vmax.f32 %v6917, 0.0
        %v6966 = vmax.f32 %v6918, 0.0
        %v6967 = vmax.f32 %v6919, 0.0
        %v6968 = vmax.f32 %v6920, 0.0
        %v6969 = vmax.f32 %v6921, 0.0
        %v6970 = vmax.f32 %v6922, 0.0
        %v6971 = vmax.f32 %v6923, 0.0
        %v6972 = vmax.f32 %v6924, 0.0
        %v6973 = vmax.f32 %v6925, 0.0
        %v6974 = vmax.f32 %v6926, 0.0
        %v6975 = vmax.f32 %v6927, 0.0
        %v6976 = vmax.f32 %v6928, 0.0
        %v6977 = vmax.f32 %v6929, 0.0
        %v6978 = vmax.f32 %v6930, 0.0
        %v6979 = vmax.f32 %v6931, 0.0
        %v6980 = vmax.f32 %v6932, 0.0
        %v6981 = vmax.f32 %v6933, 0.0
        %v6982 = vmax.f32 %v6934, 0.0
        %v6983 = vmax.f32 %v6935, 0.0
        %v6984 = vmax.f32 %v6936, 0.0
        %v6985 = vmax.f32 %v6937, 0.0
        %v6986 = vmax.f32 %v6938, 0.0
        %v6987 = vmax.f32 %v6939, 0.0
        %v6988 = vmax.f32 %v6940, 0.0
        %v6989 = vmax.f32 %v6941, 0.0
        %v6990 = vmax.f32 %v6942, 0.0
        %v6991 = vmax.f32 %v6943, 0.0
        %v6992 = vmax.f32 %v6944, 0.0
        %v6993 = vmax.f32 %v6945, 0.0
        %v6994 = vmax.f32 %v6946, 0.0
        %v6995 = vmax.f32 %v6947, 0.0
        %v6996 = vmax.f32 %v6948, 0.0
        %v6997 = vmax.f32 %v6949, 0.0
        %v6998 = vmax.f32 %v6950, 0.0
        %v6999 = vmul.f32 %v6951, %v2115
        %v7000 = vmul.f32 %v6952, %v2116
        %v7001 = vmul.f32 %v6953, %v2117
        %v7002 = vmul.f32 %v6954, %v2118
        %v7003 = vmul.f32 %v6955, %v2119
        %v7004 = vmul.f32 %v6956, %v2120
        %v7005 = vmul.f32 %v6957, %v2121
        %v7006 = vmul.f32 %v6958, %v2122
        %v7007 = vmul.f32 %v6959, %v2123
        %v7008 = vmul.f32 %v6960, %v2124
        %v7009 = vmul.f32 %v6961, %v2125
        %v7010 = vmul.f32 %v6962, %v2126
        %v7011 = vmul.f32 %v6963, %v2127
        %v7012 = vmul.f32 %v6964, %v2128
        %v7013 = vmul.f32 %v6965, %v2129
        %v7014 = vmul.f32 %v6966, %v2130
        %v7015 = vmul.f32 %v6967, %v2131
        %v7016 = vmul.f32 %v6968, %v2132
        %v7017 = vmul.f32 %v6969, %v2133
        %v7018 = vmul.f32 %v6970, %v2134
        %v7019 = vmul.f32 %v6971, %v2135
        %v7020 = vmul.f32 %v6972, %v2136
        %v7021 = vmul.f32 %v6973, %v2137
        %v7022 = vmul.f32 %v6974, %v2138
        %v7023 = vmul.f32 %v6975, %v2139
        %v7024 = vmul.f32 %v6976, %v2140
        %v7025 = vmul.f32 %v6977, %v2141
        %v7026 = vmul.f32 %v6978, %v2142
        %v7027 = vmul.f32 %v6979, %v2143
        %v7028 = vmul.f32 %v6980, %v2144
        %v7029 = vmul.f32 %v6981, %v2145
        %v7030 = vmul.f32 %v6982, %v2146
        %v7031 = vmul.f32 %v6983, %v2147
        %v7032 = vmul.f32 %v6984, %v2148
        %v7033 = vmul.f32 %v6985, %v2149
        %v7034 = vmul.f32 %v6986, %v2150
        %v7035 = vmul.f32 %v6987, %v2151
        %v7036 = vmul.f32 %v6988, %v2152
        %v7037 = vmul.f32 %v6989, %v2153
        %v7038 = vmul.f32 %v6990, %v2154
        %v7039 = vmul.f32 %v6991, %v2155
        %v7040 = vmul.f32 %v6992, %v2156
        %v7041 = vmul.f32 %v6993, %v2157
        %v7042 = vmul.f32 %v6994, %v2158
        %v7043 = vmul.f32 %v6995, %v2159
        %v7044 = vmul.f32 %v6996, %v2160
        %v7045 = vmul.f32 %v6997, %v2161
        %v7046 = vmul.f32 %v6998, %v2162
        %7047 = vst.msk [vmem:[#allocation2 + $0x19] sm:$0xff] %vm3426, %v6999
        %7048 = vst.msk [vmem:[#allocation2 + $0x21] sm:$0xff] %vm3426, %v7000
        %7049 = vst.msk [vmem:[#allocation2 + $0x29] sm:$0xff] %vm3426, %v7001
        %7050 = vst.msk [vmem:[#allocation2 + $0x31] sm:$0xff] %vm3426, %v7002
        %7051 = vst.msk [vmem:[#allocation2 + $0x39] sm:$0xff] %vm3426, %v7003
        %7052 = vst.msk [vmem:[#allocation2 + $0x41] sm:$0xff] %vm3426, %v7004
        %7053 = vst.msk [vmem:[#allocation2 + $0x49] sm:$0xff] %vm3426, %v7005
        %7054 = vst.msk [vmem:[#allocation2 + $0x51] sm:$0xff] %vm3426, %v7006
        %7055 = vst.msk [vmem:[#allocation2 + $0x59] sm:$0xff] %vm3426, %v7007
        %7056 = vst.msk [vmem:[#allocation2 + $0x61] sm:$0xff] %vm3426, %v7008
        %7057 = vst.msk [vmem:[#allocation2 + $0x69] sm:$0xff] %vm3426, %v7009
        %7058 = vst.msk [vmem:[#allocation2 + $0x71] sm:$0xff] %vm3426, %v7010
        %7059 = vst.msk [vmem:[#allocation2 + $0x79] sm:$0xff] %vm3426, %v7011
        %7060 = vst.msk [vmem:[#allocation2 + $0x81] sm:$0xff] %vm3426, %v7012
        %7061 = vst.msk [vmem:[#allocation2 + $0x89] sm:$0xff] %vm3426, %v7013
        %7062 = vst.msk [vmem:[#allocation2 + $0x91] sm:$0xff] %vm3426, %v7014
        %7063 = vst.msk [vmem:[#allocation2 + $0x99] sm:$0xff] %vm3426, %v7015
        %7064 = vst.msk [vmem:[#allocation2 + $0xa1] sm:$0xff] %vm3426, %v7016
        %7065 = vst.msk [vmem:[#allocation2 + $0xa9] sm:$0xff] %vm3426, %v7017
        %7066 = vst.msk [vmem:[#allocation2 + $0xb1] sm:$0xff] %vm3426, %v7018
        %7067 = vst.msk [vmem:[#allocation2 + $0xb9] sm:$0xff] %vm3426, %v7019
        %7068 = vst.msk [vmem:[#allocation2 + $0xc1] sm:$0xff] %vm3426, %v7020
        %7069 = vst.msk [vmem:[#allocation2 + $0xc9] sm:$0xff] %vm3426, %v7021
        %7070 = vst.msk [vmem:[#allocation2 + $0xd1] sm:$0xff] %vm3426, %v7022
        %7071 = vst.msk [vmem:[#allocation2 + $0xd9] sm:$0xff] %vm3426, %v7023
        %7072 = vst.msk [vmem:[#allocation2 + $0xe1] sm:$0xff] %vm3426, %v7024
        %7073 = vst.msk [vmem:[#allocation2 + $0xe9] sm:$0xff] %vm3426, %v7025
        %7074 = vst.msk [vmem:[#allocation2 + $0xf1] sm:$0xff] %vm3426, %v7026
        %7075 = vst.msk [vmem:[#allocation2 + $0xf9] sm:$0xff] %vm3426, %v7027
        %7076 = vst.msk [vmem:[#allocation2 + $0x101] sm:$0xff] %vm3426, %v7028
        %7077 = vst.msk [vmem:[#allocation2 + $0x109] sm:$0xff] %vm3426, %v7029
        %7078 = vst.msk [vmem:[#allocation2 + $0x111] sm:$0xff] %vm3426, %v7030
        %7079 = vst.msk [vmem:[#allocation2 + $0x119] sm:$0xff] %vm3426, %v7031
        %7080 = vst.msk [vmem:[#allocation2 + $0x121] sm:$0xff] %vm3426, %v7032
        %7081 = vst.msk [vmem:[#allocation2 + $0x129] sm:$0xff] %vm3426, %v7033
        %7082 = vst.msk [vmem:[#allocation2 + $0x131] sm:$0xff] %vm3426, %v7034
        %7083 = vst.msk [vmem:[#allocation2 + $0x139] sm:$0xff] %vm3426, %v7035
        %7084 = vst.msk [vmem:[#allocation2 + $0x141] sm:$0xff] %vm3426, %v7036
        %7085 = vst.msk [vmem:[#allocation2 + $0x149] sm:$0xff] %vm3426, %v7037
        %7086 = vst.msk [vmem:[#allocation2 + $0x151] sm:$0xff] %vm3426, %v7038
        %7087 = vst.msk [vmem:[#allocation2 + $0x159] sm:$0xff] %vm3426, %v7039
        %7088 = vst.msk [vmem:[#allocation2 + $0x161] sm:$0xff] %vm3426, %v7040
        %7089 = vst.msk [vmem:[#allocation2 + $0x169] sm:$0xff] %vm3426, %v7041
        %7090 = vst.msk [vmem:[#allocation2 + $0x171] sm:$0xff] %vm3426, %v7042
        %7091 = vst.msk [vmem:[#allocation2 + $0x179] sm:$0xff] %vm3426, %v7043
        %7092 = vst.msk [vmem:[#allocation2 + $0x181] sm:$0xff] %vm3426, %v7044
        %7093 = vst.msk [vmem:[#allocation2 + $0x189] sm:$0xff] %vm3426, %v7045
        %7094 = vst.msk [vmem:[#allocation2 + $0x191] sm:$0xff] %vm3426, %v7046
        %7143 = vrot.lane.b32.xlu0 %v6999, 32
        %v7144 = vpop.permute.xlu0 %7143
        %7145 = vrot.lane.b32.xlu0 %v7000, 32
        %v7146 = vpop.permute.xlu0 %7145
        %7147 = vrot.lane.b32.xlu0 %v7001, 32
        %v7148 = vpop.permute.xlu0 %7147
        %7149 = vrot.lane.b32.xlu0 %v7002, 32
        %v7150 = vpop.permute.xlu0 %7149
        %7151 = vrot.lane.b32.xlu0 %v7003, 32
        %v7152 = vpop.permute.xlu0 %7151
        %7153 = vrot.lane.b32.xlu0 %v7004, 32
        %v7154 = vpop.permute.xlu0 %7153
        %7155 = vrot.lane.b32.xlu0 %v7005, 32
        %v7156 = vpop.permute.xlu0 %7155
        %7157 = vrot.lane.b32.xlu0 %v7006, 32
        %v7158 = vpop.permute.xlu0 %7157
        %7159 = vrot.lane.b32.xlu0 %v7007, 32
        %v7160 = vpop.permute.xlu0 %7159
        %7161 = vrot.lane.b32.xlu0 %v7008, 32
        %v7162 = vpop.permute.xlu0 %7161
        %7163 = vrot.lane.b32.xlu0 %v7009, 32
        %v7164 = vpop.permute.xlu0 %7163
        %7165 = vrot.lane.b32.xlu0 %v7010, 32
        %v7166 = vpop.permute.xlu0 %7165
        %7167 = vrot.lane.b32.xlu0 %v7011, 32
        %v7168 = vpop.permute.xlu0 %7167
        %7169 = vrot.lane.b32.xlu0 %v7012, 32
        %v7170 = vpop.permute.xlu0 %7169
        %7171 = vrot.lane.b32.xlu0 %v7013, 32
        %v7172 = vpop.permute.xlu0 %7171
        %7173 = vrot.lane.b32.xlu0 %v7014, 32
        %v7174 = vpop.permute.xlu0 %7173
        %7175 = vrot.lane.b32.xlu0 %v7015, 32
        %v7176 = vpop.permute.xlu0 %7175
        %7177 = vrot.lane.b32.xlu0 %v7016, 32
        %v7178 = vpop.permute.xlu0 %7177
        %7179 = vrot.lane.b32.xlu0 %v7017, 32
        %v7180 = vpop.permute.xlu0 %7179
        %7181 = vrot.lane.b32.xlu0 %v7018, 32
        %v7182 = vpop.permute.xlu0 %7181
        %7183 = vrot.lane.b32.xlu0 %v7019, 32
        %v7184 = vpop.permute.xlu0 %7183
        %7185 = vrot.lane.b32.xlu0 %v7020, 32
        %v7186 = vpop.permute.xlu0 %7185
        %7187 = vrot.lane.b32.xlu0 %v7021, 32
        %v7188 = vpop.permute.xlu0 %7187
        %7189 = vrot.lane.b32.xlu0 %v7022, 32
        %v7190 = vpop.permute.xlu0 %7189
        %7191 = vrot.lane.b32.xlu0 %v7023, 32
        %v7192 = vpop.permute.xlu0 %7191
        %7193 = vrot.lane.b32.xlu0 %v7024, 32
        %v7194 = vpop.permute.xlu0 %7193
        %7195 = vrot.lane.b32.xlu0 %v7025, 32
        %v7196 = vpop.permute.xlu0 %7195
        %7197 = vrot.lane.b32.xlu0 %v7026, 32
        %v7198 = vpop.permute.xlu0 %7197
        %7199 = vrot.lane.b32.xlu0 %v7027, 32
        %v7200 = vpop.permute.xlu0 %7199
        %7201 = vrot.lane.b32.xlu0 %v7028, 32
        %v7202 = vpop.permute.xlu0 %7201
        %7203 = vrot.lane.b32.xlu0 %v7029, 32
        %v7204 = vpop.permute.xlu0 %7203
        %7205 = vrot.lane.b32.xlu0 %v7030, 32
        %v7206 = vpop.permute.xlu0 %7205
        %7207 = vrot.lane.b32.xlu0 %v7031, 32
        %v7208 = vpop.permute.xlu0 %7207
        %7209 = vrot.lane.b32.xlu0 %v7032, 32
        %v7210 = vpop.permute.xlu0 %7209
        %7211 = vrot.lane.b32.xlu0 %v7033, 32
        %v7212 = vpop.permute.xlu0 %7211
        %7213 = vrot.lane.b32.xlu0 %v7034, 32
        %v7214 = vpop.permute.xlu0 %7213
        %7215 = vrot.lane.b32.xlu0 %v7035, 32
        %v7216 = vpop.permute.xlu0 %7215
        %7217 = vrot.lane.b32.xlu0 %v7036, 32
        %v7218 = vpop.permute.xlu0 %7217
        %7219 = vrot.lane.b32.xlu0 %v7037, 32
        %v7220 = vpop.permute.xlu0 %7219
        %7221 = vrot.lane.b32.xlu0 %v7038, 32
        %v7222 = vpop.permute.xlu0 %7221
        %7223 = vrot.lane.b32.xlu0 %v7039, 32
        %v7224 = vpop.permute.xlu0 %7223
        %7225 = vrot.lane.b32.xlu0 %v7040, 32
        %v7226 = vpop.permute.xlu0 %7225
        %7227 = vrot.lane.b32.xlu0 %v7041, 32
        %v7228 = vpop.permute.xlu0 %7227
        %7229 = vrot.lane.b32.xlu0 %v7042, 32
        %v7230 = vpop.permute.xlu0 %7229
        %7231 = vrot.lane.b32.xlu0 %v7043, 32
        %v7232 = vpop.permute.xlu0 %7231
        %7233 = vrot.lane.b32.xlu0 %v7044, 32
        %v7234 = vpop.permute.xlu0 %7233
        %7235 = vrot.lane.b32.xlu0 %v7045, 32
        %v7236 = vpop.permute.xlu0 %7235
        %7237 = vrot.lane.b32.xlu0 %v7046, 32
        %v7238 = vpop.permute.xlu0 %7237
        %7287 = vst.msk [vmem:[#allocation2 + $0x18] sm:$0xff] %vm3667, %v7144
        %7288 = vst.msk [vmem:[#allocation2 + $0x20] sm:$0xff] %vm3667, %v7146
        %7289 = vst.msk [vmem:[#allocation2 + $0x28] sm:$0xff] %vm3667, %v7148
        %7290 = vst.msk [vmem:[#allocation2 + $0x30] sm:$0xff] %vm3667, %v7150
        %7291 = vst.msk [vmem:[#allocation2 + $0x38] sm:$0xff] %vm3667, %v7152
        %7292 = vst.msk [vmem:[#allocation2 + $0x40] sm:$0xff] %vm3667, %v7154
        %7293 = vst.msk [vmem:[#allocation2 + $0x48] sm:$0xff] %vm3667, %v7156
        %7294 = vst.msk [vmem:[#allocation2 + $0x50] sm:$0xff] %vm3667, %v7158
        %7295 = vst.msk [vmem:[#allocation2 + $0x58] sm:$0xff] %vm3667, %v7160
        %7296 = vst.msk [vmem:[#allocation2 + $0x60] sm:$0xff] %vm3667, %v7162
        %7297 = vst.msk [vmem:[#allocation2 + $0x68] sm:$0xff] %vm3667, %v7164
        %7298 = vst.msk [vmem:[#allocation2 + $0x70] sm:$0xff] %vm3667, %v7166
        %7299 = vst.msk [vmem:[#allocation2 + $0x78] sm:$0xff] %vm3667, %v7168
        %7300 = vst.msk [vmem:[#allocation2 + $0x80] sm:$0xff] %vm3667, %v7170
        %7301 = vst.msk [vmem:[#allocation2 + $0x88] sm:$0xff] %vm3667, %v7172
        %7302 = vst.msk [vmem:[#allocation2 + $0x90] sm:$0xff] %vm3667, %v7174
        %7303 = vst.msk [vmem:[#allocation2 + $0x98] sm:$0xff] %vm3667, %v7176
        %7304 = vst.msk [vmem:[#allocation2 + $0xa0] sm:$0xff] %vm3667, %v7178
        %7305 = vst.msk [vmem:[#allocation2 + $0xa8] sm:$0xff] %vm3667, %v7180
        %7306 = vst.msk [vmem:[#allocation2 + $0xb0] sm:$0xff] %vm3667, %v7182
        %7307 = vst.msk [vmem:[#allocation2 + $0xb8] sm:$0xff] %vm3667, %v7184
        %7308 = vst.msk [vmem:[#allocation2 + $0xc0] sm:$0xff] %vm3667, %v7186
        %7309 = vst.msk [vmem:[#allocation2 + $0xc8] sm:$0xff] %vm3667, %v7188
        %7310 = vst.msk [vmem:[#allocation2 + $0xd0] sm:$0xff] %vm3667, %v7190
        %7311 = vst.msk [vmem:[#allocation2 + $0xd8] sm:$0xff] %vm3667, %v7192
        %7312 = vst.msk [vmem:[#allocation2 + $0xe0] sm:$0xff] %vm3667, %v7194
        %7313 = vst.msk [vmem:[#allocation2 + $0xe8] sm:$0xff] %vm3667, %v7196
        %7314 = vst.msk [vmem:[#allocation2 + $0xf0] sm:$0xff] %vm3667, %v7198
        %7315 = vst.msk [vmem:[#allocation2 + $0xf8] sm:$0xff] %vm3667, %v7200
        %7316 = vst.msk [vmem:[#allocation2 + $0x100] sm:$0xff] %vm3667, %v7202
        %7317 = vst.msk [vmem:[#allocation2 + $0x108] sm:$0xff] %vm3667, %v7204
        %7318 = vst.msk [vmem:[#allocation2 + $0x110] sm:$0xff] %vm3667, %v7206
        %7319 = vst.msk [vmem:[#allocation2 + $0x118] sm:$0xff] %vm3667, %v7208
        %7320 = vst.msk [vmem:[#allocation2 + $0x120] sm:$0xff] %vm3667, %v7210
        %7321 = vst.msk [vmem:[#allocation2 + $0x128] sm:$0xff] %vm3667, %v7212
        %7322 = vst.msk [vmem:[#allocation2 + $0x130] sm:$0xff] %vm3667, %v7214
        %7323 = vst.msk [vmem:[#allocation2 + $0x138] sm:$0xff] %vm3667, %v7216
        %7324 = vst.msk [vmem:[#allocation2 + $0x140] sm:$0xff] %vm3667, %v7218
        %7325 = vst.msk [vmem:[#allocation2 + $0x148] sm:$0xff] %vm3667, %v7220
        %7326 = vst.msk [vmem:[#allocation2 + $0x150] sm:$0xff] %vm3667, %v7222
        %7327 = vst.msk [vmem:[#allocation2 + $0x158] sm:$0xff] %vm3667, %v7224
        %7328 = vst.msk [vmem:[#allocation2 + $0x160] sm:$0xff] %vm3667, %v7226
        %7329 = vst.msk [vmem:[#allocation2 + $0x168] sm:$0xff] %vm3667, %v7228
        %7330 = vst.msk [vmem:[#allocation2 + $0x170] sm:$0xff] %vm3667, %v7230
        %7331 = vst.msk [vmem:[#allocation2 + $0x178] sm:$0xff] %vm3667, %v7232
        %7332 = vst.msk [vmem:[#allocation2 + $0x180] sm:$0xff] %vm3667, %v7234
        %7333 = vst.msk [vmem:[#allocation2 + $0x188] sm:$0xff] %vm3667, %v7236
        %7334 = vst.msk [vmem:[#allocation2 + $0x190] sm:$0xff] %vm3667, %v7238
        %7335 = vrot.lane.b32.xlu0 %v6999, 64
        %v7336 = vpop.permute.xlu0 %7335
        %7337 = vrot.lane.b32.xlu0 %v7000, 64
        %v7338 = vpop.permute.xlu0 %7337
        %7339 = vrot.lane.b32.xlu0 %v7001, 64
        %v7340 = vpop.permute.xlu0 %7339
        %7341 = vrot.lane.b32.xlu0 %v7002, 64
        %v7342 = vpop.permute.xlu0 %7341
        %7343 = vrot.lane.b32.xlu0 %v7003, 64
        %v7344 = vpop.permute.xlu0 %7343
        %7345 = vrot.lane.b32.xlu0 %v7004, 64
        %v7346 = vpop.permute.xlu0 %7345
        %7347 = vrot.lane.b32.xlu0 %v7005, 64
        %v7348 = vpop.permute.xlu0 %7347
        %7349 = vrot.lane.b32.xlu0 %v7006, 64
        %v7350 = vpop.permute.xlu0 %7349
        %7351 = vrot.lane.b32.xlu0 %v7007, 64
        %v7352 = vpop.permute.xlu0 %7351
        %7353 = vrot.lane.b32.xlu0 %v7008, 64
        %v7354 = vpop.permute.xlu0 %7353
        %7355 = vrot.lane.b32.xlu0 %v7009, 64
        %v7356 = vpop.permute.xlu0 %7355
        %7357 = vrot.lane.b32.xlu0 %v7010, 64
        %v7358 = vpop.permute.xlu0 %7357
        %7359 = vrot.lane.b32.xlu0 %v7011, 64
        %v7360 = vpop.permute.xlu0 %7359
        %7361 = vrot.lane.b32.xlu0 %v7012, 64
        %v7362 = vpop.permute.xlu0 %7361
        %7363 = vrot.lane.b32.xlu0 %v7013, 64
        %v7364 = vpop.permute.xlu0 %7363
        %7365 = vrot.lane.b32.xlu0 %v7014, 64
        %v7366 = vpop.permute.xlu0 %7365
        %7367 = vrot.lane.b32.xlu0 %v7015, 64
        %v7368 = vpop.permute.xlu0 %7367
        %7369 = vrot.lane.b32.xlu0 %v7016, 64
        %v7370 = vpop.permute.xlu0 %7369
        %7371 = vrot.lane.b32.xlu0 %v7017, 64
        %v7372 = vpop.permute.xlu0 %7371
        %7373 = vrot.lane.b32.xlu0 %v7018, 64
        %v7374 = vpop.permute.xlu0 %7373
        %7375 = vrot.lane.b32.xlu0 %v7019, 64
        %v7376 = vpop.permute.xlu0 %7375
        %7377 = vrot.lane.b32.xlu0 %v7020, 64
        %v7378 = vpop.permute.xlu0 %7377
        %7379 = vrot.lane.b32.xlu0 %v7021, 64
        %v7380 = vpop.permute.xlu0 %7379
        %7381 = vrot.lane.b32.xlu0 %v7022, 64
        %v7382 = vpop.permute.xlu0 %7381
        %7383 = vrot.lane.b32.xlu0 %v7023, 64
        %v7384 = vpop.permute.xlu0 %7383
        %7385 = vrot.lane.b32.xlu0 %v7024, 64
        %v7386 = vpop.permute.xlu0 %7385
        %7387 = vrot.lane.b32.xlu0 %v7025, 64
        %v7388 = vpop.permute.xlu0 %7387
        %7389 = vrot.lane.b32.xlu0 %v7026, 64
        %v7390 = vpop.permute.xlu0 %7389
        %7391 = vrot.lane.b32.xlu0 %v7027, 64
        %v7392 = vpop.permute.xlu0 %7391
        %7393 = vrot.lane.b32.xlu0 %v7028, 64
        %v7394 = vpop.permute.xlu0 %7393
        %7395 = vrot.lane.b32.xlu0 %v7029, 64
        %v7396 = vpop.permute.xlu0 %7395
        %7397 = vrot.lane.b32.xlu0 %v7030, 64
        %v7398 = vpop.permute.xlu0 %7397
        %7399 = vrot.lane.b32.xlu0 %v7031, 64
        %v7400 = vpop.permute.xlu0 %7399
        %7401 = vrot.lane.b32.xlu0 %v7032, 64
        %v7402 = vpop.permute.xlu0 %7401
        %7403 = vrot.lane.b32.xlu0 %v7033, 64
        %v7404 = vpop.permute.xlu0 %7403
        %7405 = vrot.lane.b32.xlu0 %v7034, 64
        %v7406 = vpop.permute.xlu0 %7405
        %7407 = vrot.lane.b32.xlu0 %v7035, 64
        %v7408 = vpop.permute.xlu0 %7407
        %7409 = vrot.lane.b32.xlu0 %v7036, 64
        %v7410 = vpop.permute.xlu0 %7409
        %7411 = vrot.lane.b32.xlu0 %v7037, 64
        %v7412 = vpop.permute.xlu0 %7411
        %7413 = vrot.lane.b32.xlu0 %v7038, 64
        %v7414 = vpop.permute.xlu0 %7413
        %7415 = vrot.lane.b32.xlu0 %v7039, 64
        %v7416 = vpop.permute.xlu0 %7415
        %7417 = vrot.lane.b32.xlu0 %v7040, 64
        %v7418 = vpop.permute.xlu0 %7417
        %7419 = vrot.lane.b32.xlu0 %v7041, 64
        %v7420 = vpop.permute.xlu0 %7419
        %7421 = vrot.lane.b32.xlu0 %v7042, 64
        %v7422 = vpop.permute.xlu0 %7421
        %7423 = vrot.lane.b32.xlu0 %v7043, 64
        %v7424 = vpop.permute.xlu0 %7423
        %7425 = vrot.lane.b32.xlu0 %v7044, 64
        %v7426 = vpop.permute.xlu0 %7425
        %7427 = vrot.lane.b32.xlu0 %v7045, 64
        %v7428 = vpop.permute.xlu0 %7427
        %7429 = vrot.lane.b32.xlu0 %v7046, 64
        %v7430 = vpop.permute.xlu0 %7429
        %7479 = vst.msk [vmem:[#allocation2 + $0x17] sm:$0xff] %vm3860, %v7336
        %7480 = vst.msk [vmem:[#allocation2 + $0x1f] sm:$0xff] %vm3860, %v7338
        %7481 = vst.msk [vmem:[#allocation2 + $0x27] sm:$0xff] %vm3860, %v7340
        %7482 = vst.msk [vmem:[#allocation2 + $0x2f] sm:$0xff] %vm3860, %v7342
        %7483 = vst.msk [vmem:[#allocation2 + $0x37] sm:$0xff] %vm3860, %v7344
        %7484 = vst.msk [vmem:[#allocation2 + $0x3f] sm:$0xff] %vm3860, %v7346
        %7485 = vst.msk [vmem:[#allocation2 + $0x47] sm:$0xff] %vm3860, %v7348
        %7486 = vst.msk [vmem:[#allocation2 + $0x4f] sm:$0xff] %vm3860, %v7350
        %7487 = vst.msk [vmem:[#allocation2 + $0x57] sm:$0xff] %vm3860, %v7352
        %7488 = vst.msk [vmem:[#allocation2 + $0x5f] sm:$0xff] %vm3860, %v7354
        %7489 = vst.msk [vmem:[#allocation2 + $0x67] sm:$0xff] %vm3860, %v7356
        %7490 = vst.msk [vmem:[#allocation2 + $0x6f] sm:$0xff] %vm3860, %v7358
        %7491 = vst.msk [vmem:[#allocation2 + $0x77] sm:$0xff] %vm3860, %v7360
        %7492 = vst.msk [vmem:[#allocation2 + $0x7f] sm:$0xff] %vm3860, %v7362
        %7493 = vst.msk [vmem:[#allocation2 + $0x87] sm:$0xff] %vm3860, %v7364
        %7494 = vst.msk [vmem:[#allocation2 + $0x8f] sm:$0xff] %vm3860, %v7366
        %7495 = vst.msk [vmem:[#allocation2 + $0x97] sm:$0xff] %vm3860, %v7368
        %7496 = vst.msk [vmem:[#allocation2 + $0x9f] sm:$0xff] %vm3860, %v7370
        %7497 = vst.msk [vmem:[#allocation2 + $0xa7] sm:$0xff] %vm3860, %v7372
        %7498 = vst.msk [vmem:[#allocation2 + $0xaf] sm:$0xff] %vm3860, %v7374
        %7499 = vst.msk [vmem:[#allocation2 + $0xb7] sm:$0xff] %vm3860, %v7376
        %7500 = vst.msk [vmem:[#allocation2 + $0xbf] sm:$0xff] %vm3860, %v7378
        %7501 = vst.msk [vmem:[#allocation2 + $0xc7] sm:$0xff] %vm3860, %v7380
        %7502 = vst.msk [vmem:[#allocation2 + $0xcf] sm:$0xff] %vm3860, %v7382
        %7503 = vst.msk [vmem:[#allocation2 + $0xd7] sm:$0xff] %vm3860, %v7384
        %7504 = vst.msk [vmem:[#allocation2 + $0xdf] sm:$0xff] %vm3860, %v7386
        %7505 = vst.msk [vmem:[#allocation2 + $0xe7] sm:$0xff] %vm3860, %v7388
        %7506 = vst.msk [vmem:[#allocation2 + $0xef] sm:$0xff] %vm3860, %v7390
        %7507 = vst.msk [vmem:[#allocation2 + $0xf7] sm:$0xff] %vm3860, %v7392
        %7508 = vst.msk [vmem:[#allocation2 + $0xff] sm:$0xff] %vm3860, %v7394
        %7509 = vst.msk [vmem:[#allocation2 + $0x107] sm:$0xff] %vm3860, %v7396
        %7510 = vst.msk [vmem:[#allocation2 + $0x10f] sm:$0xff] %vm3860, %v7398
        %7511 = vst.msk [vmem:[#allocation2 + $0x117] sm:$0xff] %vm3860, %v7400
        %7512 = vst.msk [vmem:[#allocation2 + $0x11f] sm:$0xff] %vm3860, %v7402
        %7513 = vst.msk [vmem:[#allocation2 + $0x127] sm:$0xff] %vm3860, %v7404
        %7514 = vst.msk [vmem:[#allocation2 + $0x12f] sm:$0xff] %vm3860, %v7406
        %7515 = vst.msk [vmem:[#allocation2 + $0x137] sm:$0xff] %vm3860, %v7408
        %7516 = vst.msk [vmem:[#allocation2 + $0x13f] sm:$0xff] %vm3860, %v7410
        %7517 = vst.msk [vmem:[#allocation2 + $0x147] sm:$0xff] %vm3860, %v7412
        %7518 = vst.msk [vmem:[#allocation2 + $0x14f] sm:$0xff] %vm3860, %v7414
        %7519 = vst.msk [vmem:[#allocation2 + $0x157] sm:$0xff] %vm3860, %v7416
        %7520 = vst.msk [vmem:[#allocation2 + $0x15f] sm:$0xff] %vm3860, %v7418
        %7521 = vst.msk [vmem:[#allocation2 + $0x167] sm:$0xff] %vm3860, %v7420
        %7522 = vst.msk [vmem:[#allocation2 + $0x16f] sm:$0xff] %vm3860, %v7422
        %7523 = vst.msk [vmem:[#allocation2 + $0x177] sm:$0xff] %vm3860, %v7424
        %7524 = vst.msk [vmem:[#allocation2 + $0x17f] sm:$0xff] %vm3860, %v7426
        %7525 = vst.msk [vmem:[#allocation2 + $0x187] sm:$0xff] %vm3860, %v7428
        %7526 = vst.msk [vmem:[#allocation2 + $0x18f] sm:$0xff] %vm3860, %v7430
        %v7527 = vld [vmem:[#allocation2] sm:$0xff]
        %v7528 = vld [vmem:[#allocation2 + $0x8] sm:$0xff]
        %v7529 = vld [vmem:[#allocation2 + $0x10] sm:$0xff]
        %v7530 = vld [vmem:[#allocation2 + $0x18] sm:$0xff]
        %v7531 = vld [vmem:[#allocation2 + $0x20] sm:$0xff]
        %v7532 = vld [vmem:[#allocation2 + $0x28] sm:$0xff]
        %v7533 = vld [vmem:[#allocation2 + $0x30] sm:$0xff]
        %v7534 = vld [vmem:[#allocation2 + $0x38] sm:$0xff]
        %v7535 = vld [vmem:[#allocation2 + $0x40] sm:$0xff]
        %v7536 = vld [vmem:[#allocation2 + $0x48] sm:$0xff]
        %v7537 = vld [vmem:[#allocation2 + $0x50] sm:$0xff]
        %v7538 = vld [vmem:[#allocation2 + $0x58] sm:$0xff]
        %v7539 = vld [vmem:[#allocation2 + $0x60] sm:$0xff]
        %v7540 = vld [vmem:[#allocation2 + $0x68] sm:$0xff]
        %v7541 = vld [vmem:[#allocation2 + $0x70] sm:$0xff]
        %v7542 = vld [vmem:[#allocation2 + $0x78] sm:$0xff]
        %v7543 = vld [vmem:[#allocation2 + $0x80] sm:$0xff]
        %v7544 = vld [vmem:[#allocation2 + $0x88] sm:$0xff]
        %v7545 = vld [vmem:[#allocation2 + $0x90] sm:$0xff]
        %v7546 = vld [vmem:[#allocation2 + $0x98] sm:$0xff]
        %v7547 = vld [vmem:[#allocation2 + $0xa0] sm:$0xff]
        %v7548 = vld [vmem:[#allocation2 + $0xa8] sm:$0xff]
        %v7549 = vld [vmem:[#allocation2 + $0xb0] sm:$0xff]
        %v7550 = vld [vmem:[#allocation2 + $0xb8] sm:$0xff]
        %v7551 = vld [vmem:[#allocation2 + $0xc0] sm:$0xff]
        %v7552 = vld [vmem:[#allocation2 + $0xc8] sm:$0xff]
        %v7553 = vld [vmem:[#allocation2 + $0xd0] sm:$0xff]
        %v7554 = vld [vmem:[#allocation2 + $0xd8] sm:$0xff]
        %v7555 = vld [vmem:[#allocation2 + $0xe0] sm:$0xff]
        %v7556 = vld [vmem:[#allocation2 + $0xe8] sm:$0xff]
        %v7557 = vld [vmem:[#allocation2 + $0xf0] sm:$0xff]
        %v7558 = vld [vmem:[#allocation2 + $0xf8] sm:$0xff]
        %v7559 = vld [vmem:[#allocation2 + $0x100] sm:$0xff]
        %v7560 = vld [vmem:[#allocation2 + $0x108] sm:$0xff]
        %v7561 = vld [vmem:[#allocation2 + $0x110] sm:$0xff]
        %v7562 = vld [vmem:[#allocation2 + $0x118] sm:$0xff]
        %v7563 = vld [vmem:[#allocation2 + $0x120] sm:$0xff]
        %v7564 = vld [vmem:[#allocation2 + $0x128] sm:$0xff]
        %v7565 = vld [vmem:[#allocation2 + $0x130] sm:$0xff]
        %v7566 = vld [vmem:[#allocation2 + $0x138] sm:$0xff]
        %v7567 = vld [vmem:[#allocation2 + $0x140] sm:$0xff]
        %v7568 = vld [vmem:[#allocation2 + $0x148] sm:$0xff]
        %v7569 = vld [vmem:[#allocation2 + $0x150] sm:$0xff]
        %v7570 = vld [vmem:[#allocation2 + $0x158] sm:$0xff]
        %v7571 = vld [vmem:[#allocation2 + $0x160] sm:$0xff]
        %v7572 = vld [vmem:[#allocation2 + $0x168] sm:$0xff]
        %v7573 = vld [vmem:[#allocation2 + $0x170] sm:$0xff]
        %v7574 = vld [vmem:[#allocation2 + $0x178] sm:$0xff]
        %v7575 = vpack.c.bf16 %v7528, %v7527
        %v7576 = vpack.c.bf16 %v7530, %v7529
        %v7577 = vpack.c.bf16 %v7532, %v7531
        %v7578 = vpack.c.bf16 %v7534, %v7533
        %v7579 = vpack.c.bf16 %v7536, %v7535
        %v7580 = vpack.c.bf16 %v7538, %v7537
        %v7581 = vpack.c.bf16 %v7540, %v7539
        %v7582 = vpack.c.bf16 %v7542, %v7541
        %v7583 = vpack.c.bf16 %v7544, %v7543
        %v7584 = vpack.c.bf16 %v7546, %v7545
        %v7585 = vpack.c.bf16 %v7548, %v7547
        %v7586 = vpack.c.bf16 %v7550, %v7549
        %v7587 = vpack.c.bf16 %v7552, %v7551
        %v7588 = vpack.c.bf16 %v7554, %v7553
        %v7589 = vpack.c.bf16 %v7556, %v7555
        %v7590 = vpack.c.bf16 %v7558, %v7557
        %v7591 = vpack.c.bf16 %v7560, %v7559
        %v7592 = vpack.c.bf16 %v7562, %v7561
        %v7593 = vpack.c.bf16 %v7564, %v7563
        %v7594 = vpack.c.bf16 %v7566, %v7565
        %v7595 = vpack.c.bf16 %v7568, %v7567
        %v7596 = vpack.c.bf16 %v7570, %v7569
        %v7597 = vpack.c.bf16 %v7572, %v7571
        %v7598 = vpack.c.bf16 %v7574, %v7573
        %v7599 = vld [vmem:[%s2] sm:$0xf]
        %v7600 = vld [vmem:[%s2 + $0x4] sm:$0xf]
        %v7601 = vld [vmem:[%s2 + $0x8] sm:$0xf]
        %v7602 = vld [vmem:[%s2 + $0xc] sm:$0xf]
        %v7603 = vld [vmem:[%s2 + $0x10] sm:$0xf]
        %v7604 = vld [vmem:[%s2 + $0x14] sm:$0xf]
        %v7605 = vld [vmem:[%s2 + $0x18] sm:$0xf]
        %v7606 = vld [vmem:[%s2 + $0x1c] sm:$0xf]
        %v7607 = vld [vmem:[%s2 + $0x20] sm:$0xf]
        %v7608 = vld [vmem:[%s2 + $0x24] sm:$0xf]
        %v7609 = vld [vmem:[%s2 + $0x28] sm:$0xf]
        %v7610 = vld [vmem:[%s2 + $0x2c] sm:$0xf]
        %v7611 = vld [vmem:[#allocation2 + $0x180] sm:$0xff]
        %v7612 = vld [vmem:[#allocation2 + $0x188] sm:$0xff]
        %v7613 = vld [vmem:[#allocation2 + $0x190] sm:$0xff]
        %v7614 = vpack.c.bf16 %v7531, %v7530
        %v7615 = vpack.c.bf16 %v7533, %v7532
        %v7616 = vpack.c.bf16 %v7535, %v7534
        %v7617 = vpack.c.bf16 %v7537, %v7536
        %v7618 = vpack.c.bf16 %v7539, %v7538
        %v7619 = vpack.c.bf16 %v7541, %v7540
        %v7620 = vpack.c.bf16 %v7543, %v7542
        %v7621 = vpack.c.bf16 %v7545, %v7544
        %v7622 = vpack.c.bf16 %v7547, %v7546
        %v7623 = vpack.c.bf16 %v7549, %v7548
        %v7624 = vpack.c.bf16 %v7551, %v7550
        %v7625 = vpack.c.bf16 %v7553, %v7552
        %v7626 = vpack.c.bf16 %v7555, %v7554
        %v7627 = vpack.c.bf16 %v7557, %v7556
        %v7628 = vpack.c.bf16 %v7559, %v7558
        %v7629 = vpack.c.bf16 %v7561, %v7560
        %v7630 = vpack.c.bf16 %v7563, %v7562
        %v7631 = vpack.c.bf16 %v7565, %v7564
        %v7632 = vpack.c.bf16 %v7567, %v7566
        %v7633 = vpack.c.bf16 %v7569, %v7568
        %v7634 = vpack.c.bf16 %v7571, %v7570
        %v7635 = vpack.c.bf16 %v7573, %v7572
        %v7636 = vpack.c.bf16 %v7611, %v7574
        %v7637 = vpack.c.bf16 %v7613, %v7612
        %v7638 = vld [vmem:[%s4020] sm:$0xf]
        %v7639 = vld [vmem:[%s4020 + $0x4] sm:$0xf]
        %v7640 = vld [vmem:[%s4020 + $0x8] sm:$0xf]
        %v7641 = vld [vmem:[%s4020 + $0xc] sm:$0xf]
        %v7642 = vld [vmem:[%s4020 + $0x10] sm:$0xf]
        %v7643 = vld [vmem:[%s4020 + $0x14] sm:$0xf]
        %v7644 = vld [vmem:[%s4020 + $0x18] sm:$0xf]
        %v7645 = vld [vmem:[%s4020 + $0x1c] sm:$0xf]
        %v7646 = vld [vmem:[%s4020 + $0x20] sm:$0xf]
        %v7647 = vld [vmem:[%s4020 + $0x24] sm:$0xf]
        %v7648 = vld [vmem:[%s4020 + $0x28] sm:$0xf]
        %v7649 = vld [vmem:[%s4020 + $0x2c] sm:$0xf]
        %v7662 = vunpack.c.l.b16 %v7638
        %v7663 = vunpack.c.l.b16 %v7639
        %v7664 = vunpack.c.l.b16 %v7640
        %v7665 = vunpack.c.l.b16 %v7641
        %v7666 = vunpack.c.l.b16 %v7642
        %v7667 = vunpack.c.l.b16 %v7643
        %v7668 = vunpack.c.l.b16 %v7644
        %v7669 = vunpack.c.l.b16 %v7645
        %v7670 = vunpack.c.l.b16 %v7646
        %v7671 = vunpack.c.l.b16 %v7647
        %v7672 = vunpack.c.l.b16 %v7648
        %v7673 = vunpack.c.l.b16 %v7649
        %v7674 = vpack.c.b16 %v7663, %v7662
        %v7675 = vpack.c.b16 %v7665, %v7664
        %v7676 = vpack.c.b16 %v7667, %v7666
        %v7677 = vpack.c.b16 %v7669, %v7668
        %v7678 = vpack.c.b16 %v7671, %v7670
        %v7679 = vpack.c.b16 %v7673, %v7672
        %v7687 = vsel %vm2169, %v7614, 0
        %v7690 = vsel %vm2169, %v7615, 0
        %v7693 = vsel %vm2169, %v7616, 0
        %v7696 = vsel %vm2169, %v7617, 0
        %v7699 = vsel %vm2169, %v7618, 0
        %v7702 = vsel %vm2169, %v7619, 0
        %v7705 = vsel %vm2169, %v7620, 0
        %v7708 = vsel %vm2169, %v7621, 0
        %v7711 = vsel %vm2169, %v7622, 0
        %v7714 = vsel %vm2169, %v7623, 0
        %v7717 = vsel %vm2169, %v7624, 0
        %v7720 = vsel %vm2169, %v7625, 0
        %v7723 = vsel %vm2169, %v7626, 0
        %v7726 = vsel %vm2169, %v7627, 0
        %v7729 = vsel %vm2169, %v7628, 0
        %v7732 = vsel %vm2169, %v7629, 0
        %v7735 = vsel %vm2169, %v7630, 0
        %v7738 = vsel %vm2169, %v7631, 0
        %v7741 = vsel %vm2169, %v7632, 0
        %v7744 = vsel %vm2169, %v7633, 0
        %v7747 = vsel %vm2169, %v7634, 0
        %v7750 = vsel %vm2169, %v7635, 0
        %v7753 = vsel %vm2169, %v7636, 0
        %v7756 = vsel %vm2169, %v7637, 0
        %7758 = vmatpush.bf16.msra.mxu0 0
        %7759 = vmatpush.bf16.msra.mxu0 0
        %7760 = vmatpush.bf16.msra.mxu0 %v7679
        %7761 = vmatpush.bf16.msra.mxu0 %v7678
        %7762 = vmatpush.bf16.msra.mxu0 %v7677
        %7763 = vmatpush.bf16.msra.mxu0 %v7676
        %7764 = vmatpush.bf16.msra.mxu0 %v7675
        %7765 = vmatpush.bf16.msra.mxu0 %v7674
        %7766 = vmatmul.bf16.gmra.mxu0 %v7687
        %v7767 = vpop.f32.mrf.mxu0
        %v7768 = vadd.f32 0.0, %v7767
        %v7769 = vpop.f32.mrf.mxu0
        %v7770 = vadd.f32 0.0, %v7769
        %7771 = vmatmul.bf16.gmra.mxu0 %v7690
        %v7772 = vpop.f32.mrf.mxu0
        %v7773 = vadd.f32 0.0, %v7772
        %v7774 = vpop.f32.mrf.mxu0
        %v7775 = vadd.f32 0.0, %v7774
        %7776 = vmatmul.bf16.gmra.mxu0 %v7693
        %v7777 = vpop.f32.mrf.mxu0
        %v7778 = vadd.f32 0.0, %v7777
        %v7779 = vpop.f32.mrf.mxu0
        %v7780 = vadd.f32 0.0, %v7779
        %7781 = vmatmul.bf16.gmra.mxu0 %v7696
        %v7782 = vpop.f32.mrf.mxu0
        %v7783 = vadd.f32 0.0, %v7782
        %v7784 = vpop.f32.mrf.mxu0
        %v7785 = vadd.f32 0.0, %v7784
        %7786 = vmatmul.bf16.gmra.mxu0 %v7699
        %v7787 = vpop.f32.mrf.mxu0
        %v7788 = vadd.f32 0.0, %v7787
        %v7789 = vpop.f32.mrf.mxu0
        %v7790 = vadd.f32 0.0, %v7789
        %7791 = vmatmul.bf16.gmra.mxu0 %v7702
        %v7792 = vpop.f32.mrf.mxu0
        %v7793 = vadd.f32 0.0, %v7792
        %v7794 = vpop.f32.mrf.mxu0
        %v7795 = vadd.f32 0.0, %v7794
        %7796 = vmatmul.bf16.gmra.mxu0 %v7705
        %v7797 = vpop.f32.mrf.mxu0
        %v7798 = vadd.f32 0.0, %v7797
        %v7799 = vpop.f32.mrf.mxu0
        %v7800 = vadd.f32 0.0, %v7799
        %7801 = vmatmul.bf16.gmra.mxu0 %v7708
        %v7802 = vpop.f32.mrf.mxu0
        %v7803 = vadd.f32 0.0, %v7802
        %v7804 = vpop.f32.mrf.mxu0
        %v7805 = vadd.f32 0.0, %v7804
        %7806 = vmatmul.bf16.gmra.mxu0 %v7711
        %v7807 = vpop.f32.mrf.mxu0
        %v7808 = vadd.f32 0.0, %v7807
        %v7809 = vpop.f32.mrf.mxu0
        %v7810 = vadd.f32 0.0, %v7809
        %7811 = vmatmul.bf16.gmra.mxu0 %v7714
        %v7812 = vpop.f32.mrf.mxu0
        %v7813 = vadd.f32 0.0, %v7812
        %v7814 = vpop.f32.mrf.mxu0
        %v7815 = vadd.f32 0.0, %v7814
        %7816 = vmatmul.bf16.gmra.mxu0 %v7717
        %v7817 = vpop.f32.mrf.mxu0
        %v7818 = vadd.f32 0.0, %v7817
        %v7819 = vpop.f32.mrf.mxu0
        %v7820 = vadd.f32 0.0, %v7819
        %7821 = vmatmul.bf16.gmra.mxu0 %v7720
        %v7822 = vpop.f32.mrf.mxu0
        %v7823 = vadd.f32 0.0, %v7822
        %v7824 = vpop.f32.mrf.mxu0
        %v7825 = vadd.f32 0.0, %v7824
        %7826 = vmatmul.bf16.gmra.mxu0 %v7723
        %v7827 = vpop.f32.mrf.mxu0
        %v7828 = vadd.f32 0.0, %v7827
        %v7829 = vpop.f32.mrf.mxu0
        %v7830 = vadd.f32 0.0, %v7829
        %7831 = vmatmul.bf16.gmra.mxu0 %v7726
        %v7832 = vpop.f32.mrf.mxu0
        %v7833 = vadd.f32 0.0, %v7832
        %v7834 = vpop.f32.mrf.mxu0
        %v7835 = vadd.f32 0.0, %v7834
        %7836 = vmatmul.bf16.gmra.mxu0 %v7729
        %v7837 = vpop.f32.mrf.mxu0
        %v7838 = vadd.f32 0.0, %v7837
        %v7839 = vpop.f32.mrf.mxu0
        %v7840 = vadd.f32 0.0, %v7839
        %7841 = vmatmul.bf16.gmra.mxu0 %v7732
        %v7842 = vpop.f32.mrf.mxu0
        %v7843 = vadd.f32 0.0, %v7842
        %v7844 = vpop.f32.mrf.mxu0
        %v7845 = vadd.f32 0.0, %v7844
        %7846 = vmatmul.bf16.gmra.mxu0 %v7735
        %v7847 = vpop.f32.mrf.mxu0
        %v7848 = vadd.f32 0.0, %v7847
        %v7849 = vpop.f32.mrf.mxu0
        %v7850 = vadd.f32 0.0, %v7849
        %7851 = vmatmul.bf16.gmra.mxu0 %v7738
        %v7852 = vpop.f32.mrf.mxu0
        %v7853 = vadd.f32 0.0, %v7852
        %v7854 = vpop.f32.mrf.mxu0
        %v7855 = vadd.f32 0.0, %v7854
        %7856 = vmatmul.bf16.gmra.mxu0 %v7741
        %v7857 = vpop.f32.mrf.mxu0
        %v7858 = vadd.f32 0.0, %v7857
        %v7859 = vpop.f32.mrf.mxu0
        %v7860 = vadd.f32 0.0, %v7859
        %7861 = vmatmul.bf16.gmra.mxu0 %v7744
        %v7862 = vpop.f32.mrf.mxu0
        %v7863 = vadd.f32 0.0, %v7862
        %v7864 = vpop.f32.mrf.mxu0
        %v7865 = vadd.f32 0.0, %v7864
        %7866 = vmatmul.bf16.gmra.mxu0 %v7747
        %v7867 = vpop.f32.mrf.mxu0
        %v7868 = vadd.f32 0.0, %v7867
        %v7869 = vpop.f32.mrf.mxu0
        %v7870 = vadd.f32 0.0, %v7869
        %7871 = vmatmul.bf16.gmra.mxu0 %v7750
        %v7872 = vpop.f32.mrf.mxu0
        %v7873 = vadd.f32 0.0, %v7872
        %v7874 = vpop.f32.mrf.mxu0
        %v7875 = vadd.f32 0.0, %v7874
        %7876 = vmatmul.bf16.gmra.mxu0 %v7753
        %v7877 = vpop.f32.mrf.mxu0
        %v7878 = vadd.f32 0.0, %v7877
        %v7879 = vpop.f32.mrf.mxu0
        %v7880 = vadd.f32 0.0, %v7879
        %7881 = vmatmul.bf16.gmra.mxu0 %v7756
        %v7882 = vpop.f32.mrf.mxu0
        %v7883 = vadd.f32 0.0, %v7882
        %v7884 = vpop.f32.mrf.mxu0
        %v7885 = vadd.f32 0.0, %v7884
        %7886 = vdwg.mxu0
        %v7899 = vunpack.c.l.b16 %v7599
        %v7900 = vunpack.c.l.b16 %v7600
        %v7901 = vunpack.c.l.b16 %v7601
        %v7902 = vunpack.c.l.b16 %v7602
        %v7903 = vunpack.c.l.b16 %v7603
        %v7904 = vunpack.c.l.b16 %v7604
        %v7905 = vunpack.c.l.b16 %v7605
        %v7906 = vunpack.c.l.b16 %v7606
        %v7907 = vunpack.c.l.b16 %v7607
        %v7908 = vunpack.c.l.b16 %v7608
        %v7909 = vunpack.c.l.b16 %v7609
        %v7910 = vunpack.c.l.b16 %v7610
        %v7911 = vpack.c.b16 %v7900, %v7899
        %v7912 = vpack.c.b16 %v7902, %v7901
        %v7913 = vpack.c.b16 %v7904, %v7903
        %v7914 = vpack.c.b16 %v7906, %v7905
        %v7915 = vpack.c.b16 %v7908, %v7907
        %v7916 = vpack.c.b16 %v7910, %v7909
        %v7924 = vsel %vm2169, %v7575, 0
        %v7927 = vsel %vm2169, %v7576, 0
        %v7930 = vsel %vm2169, %v7577, 0
        %v7933 = vsel %vm2169, %v7578, 0
        %v7936 = vsel %vm2169, %v7579, 0
        %v7939 = vsel %vm2169, %v7580, 0
        %v7942 = vsel %vm2169, %v7581, 0
        %v7945 = vsel %vm2169, %v7582, 0
        %v7948 = vsel %vm2169, %v7583, 0
        %v7951 = vsel %vm2169, %v7584, 0
        %v7954 = vsel %vm2169, %v7585, 0
        %v7957 = vsel %vm2169, %v7586, 0
        %v7960 = vsel %vm2169, %v7587, 0
        %v7963 = vsel %vm2169, %v7588, 0
        %v7966 = vsel %vm2169, %v7589, 0
        %v7969 = vsel %vm2169, %v7590, 0
        %v7972 = vsel %vm2169, %v7591, 0
        %v7975 = vsel %vm2169, %v7592, 0
        %v7978 = vsel %vm2169, %v7593, 0
        %v7981 = vsel %vm2169, %v7594, 0
        %v7984 = vsel %vm2169, %v7595, 0
        %v7987 = vsel %vm2169, %v7596, 0
        %v7990 = vsel %vm2169, %v7597, 0
        %v7993 = vsel %vm2169, %v7598, 0
        %7995 = vmatpush.bf16.msra.mxu0 0
        %7996 = vmatpush.bf16.msra.mxu0 0
        %7997 = vmatpush.bf16.msra.mxu0 %v7916
        %7998 = vmatpush.bf16.msra.mxu0 %v7915
        %7999 = vmatpush.bf16.msra.mxu0 %v7914
        %8000 = vmatpush.bf16.msra.mxu0 %v7913
        %8001 = vmatpush.bf16.msra.mxu0 %v7912
        %8002 = vmatpush.bf16.msra.mxu0 %v7911
        %8003 = vmatmul.bf16.gmra.mxu0 %v7924
        %v8004 = vpop.f32.mrf.mxu0
        %v8005 = vadd.f32 %v7768, %v8004
        %v8006 = vpop.f32.mrf.mxu0
        %v8007 = vadd.f32 %v7770, %v8006
        %8008 = vmatmul.bf16.gmra.mxu0 %v7927
        %v8009 = vpop.f32.mrf.mxu0
        %v8010 = vadd.f32 %v7773, %v8009
        %v8011 = vpop.f32.mrf.mxu0
        %v8012 = vadd.f32 %v7775, %v8011
        %8013 = vmatmul.bf16.gmra.mxu0 %v7930
        %v8014 = vpop.f32.mrf.mxu0
        %v8015 = vadd.f32 %v7778, %v8014
        %v8016 = vpop.f32.mrf.mxu0
        %v8017 = vadd.f32 %v7780, %v8016
        %8018 = vmatmul.bf16.gmra.mxu0 %v7933
        %v8019 = vpop.f32.mrf.mxu0
        %v8020 = vadd.f32 %v7783, %v8019
        %v8021 = vpop.f32.mrf.mxu0
        %v8022 = vadd.f32 %v7785, %v8021
        %8023 = vmatmul.bf16.gmra.mxu0 %v7936
        %v8024 = vpop.f32.mrf.mxu0
        %v8025 = vadd.f32 %v7788, %v8024
        %v8026 = vpop.f32.mrf.mxu0
        %v8027 = vadd.f32 %v7790, %v8026
        %8028 = vmatmul.bf16.gmra.mxu0 %v7939
        %v8029 = vpop.f32.mrf.mxu0
        %v8030 = vadd.f32 %v7793, %v8029
        %v8031 = vpop.f32.mrf.mxu0
        %v8032 = vadd.f32 %v7795, %v8031
        %8033 = vmatmul.bf16.gmra.mxu0 %v7942
        %v8034 = vpop.f32.mrf.mxu0
        %v8035 = vadd.f32 %v7798, %v8034
        %v8036 = vpop.f32.mrf.mxu0
        %v8037 = vadd.f32 %v7800, %v8036
        %8038 = vmatmul.bf16.gmra.mxu0 %v7945
        %v8039 = vpop.f32.mrf.mxu0
        %v8040 = vadd.f32 %v7803, %v8039
        %v8041 = vpop.f32.mrf.mxu0
        %v8042 = vadd.f32 %v7805, %v8041
        %8043 = vmatmul.bf16.gmra.mxu0 %v7948
        %v8044 = vpop.f32.mrf.mxu0
        %v8045 = vadd.f32 %v7808, %v8044
        %v8046 = vpop.f32.mrf.mxu0
        %v8047 = vadd.f32 %v7810, %v8046
        %8048 = vmatmul.bf16.gmra.mxu0 %v7951
        %v8049 = vpop.f32.mrf.mxu0
        %v8050 = vadd.f32 %v7813, %v8049
        %v8051 = vpop.f32.mrf.mxu0
        %v8052 = vadd.f32 %v7815, %v8051
        %8053 = vmatmul.bf16.gmra.mxu0 %v7954
        %v8054 = vpop.f32.mrf.mxu0
        %v8055 = vadd.f32 %v7818, %v8054
        %v8056 = vpop.f32.mrf.mxu0
        %v8057 = vadd.f32 %v7820, %v8056
        %8058 = vmatmul.bf16.gmra.mxu0 %v7957
        %v8059 = vpop.f32.mrf.mxu0
        %v8060 = vadd.f32 %v7823, %v8059
        %v8061 = vpop.f32.mrf.mxu0
        %v8062 = vadd.f32 %v7825, %v8061
        %8063 = vmatmul.bf16.gmra.mxu0 %v7960
        %v8064 = vpop.f32.mrf.mxu0
        %v8065 = vadd.f32 %v7828, %v8064
        %v8066 = vpop.f32.mrf.mxu0
        %v8067 = vadd.f32 %v7830, %v8066
        %8068 = vmatmul.bf16.gmra.mxu0 %v7963
        %v8069 = vpop.f32.mrf.mxu0
        %v8070 = vadd.f32 %v7833, %v8069
        %v8071 = vpop.f32.mrf.mxu0
        %v8072 = vadd.f32 %v7835, %v8071
        %8073 = vmatmul.bf16.gmra.mxu0 %v7966
        %v8074 = vpop.f32.mrf.mxu0
        %v8075 = vadd.f32 %v7838, %v8074
        %v8076 = vpop.f32.mrf.mxu0
        %v8077 = vadd.f32 %v7840, %v8076
        %8078 = vmatmul.bf16.gmra.mxu0 %v7969
        %v8079 = vpop.f32.mrf.mxu0
        %v8080 = vadd.f32 %v7843, %v8079
        %v8081 = vpop.f32.mrf.mxu0
        %v8082 = vadd.f32 %v7845, %v8081
        %8083 = vmatmul.bf16.gmra.mxu0 %v7972
        %v8084 = vpop.f32.mrf.mxu0
        %v8085 = vadd.f32 %v7848, %v8084
        %v8086 = vpop.f32.mrf.mxu0
        %v8087 = vadd.f32 %v7850, %v8086
        %8088 = vmatmul.bf16.gmra.mxu0 %v7975
        %v8089 = vpop.f32.mrf.mxu0
        %v8090 = vadd.f32 %v7853, %v8089
        %v8091 = vpop.f32.mrf.mxu0
        %v8092 = vadd.f32 %v7855, %v8091
        %8093 = vmatmul.bf16.gmra.mxu0 %v7978
        %v8094 = vpop.f32.mrf.mxu0
        %v8095 = vadd.f32 %v7858, %v8094
        %v8096 = vpop.f32.mrf.mxu0
        %v8097 = vadd.f32 %v7860, %v8096
        %8098 = vmatmul.bf16.gmra.mxu0 %v7981
        %v8099 = vpop.f32.mrf.mxu0
        %v8100 = vadd.f32 %v7863, %v8099
        %v8101 = vpop.f32.mrf.mxu0
        %v8102 = vadd.f32 %v7865, %v8101
        %8103 = vmatmul.bf16.gmra.mxu0 %v7984
        %v8104 = vpop.f32.mrf.mxu0
        %v8105 = vadd.f32 %v7868, %v8104
        %v8106 = vpop.f32.mrf.mxu0
        %v8107 = vadd.f32 %v7870, %v8106
        %8108 = vmatmul.bf16.gmra.mxu0 %v7987
        %v8109 = vpop.f32.mrf.mxu0
        %v8110 = vadd.f32 %v7873, %v8109
        %v8111 = vpop.f32.mrf.mxu0
        %v8112 = vadd.f32 %v7875, %v8111
        %8113 = vmatmul.bf16.gmra.mxu0 %v7990
        %v8114 = vpop.f32.mrf.mxu0
        %v8115 = vadd.f32 %v7878, %v8114
        %v8116 = vpop.f32.mrf.mxu0
        %v8117 = vadd.f32 %v7880, %v8116
        %8118 = vmatmul.bf16.gmra.mxu0 %v7993
        %v8119 = vpop.f32.mrf.mxu0
        %v8120 = vadd.f32 %v7883, %v8119
        %v8121 = vpop.f32.mrf.mxu0
        %v8122 = vadd.f32 %v7885, %v8121
        %8123 = vdwg.mxu0
        %v8124 = vld [vmem:[#allocation2 + $0x30] sm:$0xff]
        %v8125 = vld [vmem:[#allocation2 + $0x38] sm:$0xff]
        %v8126 = vld [vmem:[#allocation2 + $0x40] sm:$0xff]
        %v8127 = vld [vmem:[#allocation2 + $0x48] sm:$0xff]
        %v8128 = vld [vmem:[#allocation2 + $0x50] sm:$0xff]
        %v8129 = vld [vmem:[#allocation2 + $0x58] sm:$0xff]
        %v8130 = vld [vmem:[#allocation2 + $0x60] sm:$0xff]
        %v8131 = vld [vmem:[#allocation2 + $0x68] sm:$0xff]
        %v8132 = vld [vmem:[#allocation2 + $0x70] sm:$0xff]
        %v8133 = vld [vmem:[#allocation2 + $0x78] sm:$0xff]
        %v8134 = vld [vmem:[#allocation2 + $0x80] sm:$0xff]
        %v8135 = vld [vmem:[#allocation2 + $0x88] sm:$0xff]
        %v8136 = vld [vmem:[#allocation2 + $0x90] sm:$0xff]
        %v8137 = vld [vmem:[#allocation2 + $0x98] sm:$0xff]
        %v8138 = vld [vmem:[#allocation2 + $0xa0] sm:$0xff]
        %v8139 = vld [vmem:[#allocation2 + $0xa8] sm:$0xff]
        %v8140 = vld [vmem:[#allocation2 + $0xb0] sm:$0xff]
        %v8141 = vld [vmem:[#allocation2 + $0xb8] sm:$0xff]
        %v8142 = vld [vmem:[#allocation2 + $0xc0] sm:$0xff]
        %v8143 = vld [vmem:[#allocation2 + $0xc8] sm:$0xff]
        %v8144 = vld [vmem:[#allocation2 + $0xd0] sm:$0xff]
        %v8145 = vld [vmem:[#allocation2 + $0xd8] sm:$0xff]
        %v8146 = vld [vmem:[#allocation2 + $0xe0] sm:$0xff]
        %v8147 = vld [vmem:[#allocation2 + $0xe8] sm:$0xff]
        %v8148 = vld [vmem:[#allocation2 + $0xf0] sm:$0xff]
        %v8149 = vld [vmem:[#allocation2 + $0xf8] sm:$0xff]
        %v8150 = vld [vmem:[#allocation2 + $0x100] sm:$0xff]
        %v8151 = vld [vmem:[#allocation2 + $0x108] sm:$0xff]
        %v8152 = vld [vmem:[#allocation2 + $0x110] sm:$0xff]
        %v8153 = vld [vmem:[#allocation2 + $0x118] sm:$0xff]
        %v8154 = vld [vmem:[#allocation2 + $0x120] sm:$0xff]
        %v8155 = vld [vmem:[#allocation2 + $0x128] sm:$0xff]
        %v8156 = vld [vmem:[#allocation2 + $0x130] sm:$0xff]
        %v8157 = vld [vmem:[#allocation2 + $0x138] sm:$0xff]
        %v8158 = vld [vmem:[#allocation2 + $0x140] sm:$0xff]
        %v8159 = vld [vmem:[#allocation2 + $0x148] sm:$0xff]
        %v8160 = vld [vmem:[#allocation2 + $0x150] sm:$0xff]
        %v8161 = vld [vmem:[#allocation2 + $0x158] sm:$0xff]
        %v8162 = vld [vmem:[#allocation2 + $0x160] sm:$0xff]
        %v8163 = vld [vmem:[#allocation2 + $0x168] sm:$0xff]
        %v8164 = vld [vmem:[#allocation2 + $0x170] sm:$0xff]
        %v8165 = vld [vmem:[#allocation2 + $0x178] sm:$0xff]
        %v8166 = vld [vmem:[#allocation2 + $0x180] sm:$0xff]
        %v8167 = vld [vmem:[#allocation2 + $0x188] sm:$0xff]
        %v8168 = vld [vmem:[#allocation2 + $0x190] sm:$0xff]
        %v8169 = vld [vmem:[#allocation2 + $0x198] sm:$0xff]
        %v8170 = vld [vmem:[#allocation2 + $0x1a0] sm:$0xff]
        %v8171 = vld [vmem:[#allocation2 + $0x1a8] sm:$0xff]
        %v8172 = vpack.c.bf16 %v8125, %v8124
        %v8173 = vpack.c.bf16 %v8127, %v8126
        %v8174 = vpack.c.bf16 %v8129, %v8128
        %v8175 = vpack.c.bf16 %v8131, %v8130
        %v8176 = vpack.c.bf16 %v8133, %v8132
        %v8177 = vpack.c.bf16 %v8135, %v8134
        %v8178 = vpack.c.bf16 %v8137, %v8136
        %v8179 = vpack.c.bf16 %v8139, %v8138
        %v8180 = vpack.c.bf16 %v8141, %v8140
        %v8181 = vpack.c.bf16 %v8143, %v8142
        %v8182 = vpack.c.bf16 %v8145, %v8144
        %v8183 = vpack.c.bf16 %v8147, %v8146
        %v8184 = vpack.c.bf16 %v8149, %v8148
        %v8185 = vpack.c.bf16 %v8151, %v8150
        %v8186 = vpack.c.bf16 %v8153, %v8152
        %v8187 = vpack.c.bf16 %v8155, %v8154
        %v8188 = vpack.c.bf16 %v8157, %v8156
        %v8189 = vpack.c.bf16 %v8159, %v8158
        %v8190 = vpack.c.bf16 %v8161, %v8160
        %v8191 = vpack.c.bf16 %v8163, %v8162
        %v8192 = vpack.c.bf16 %v8165, %v8164
        %v8193 = vpack.c.bf16 %v8167, %v8166
        %v8194 = vpack.c.bf16 %v8169, %v8168
        %v8195 = vpack.c.bf16 %v8171, %v8170
        %v8196 = vld [vmem:[%s4579] sm:$0xf]
        %v8197 = vld [vmem:[%s4579 + $0x4] sm:$0xf]
        %v8198 = vld [vmem:[%s4579 + $0x8] sm:$0xf]
        %v8199 = vld [vmem:[%s4579 + $0xc] sm:$0xf]
        %v8200 = vld [vmem:[%s4579 + $0x10] sm:$0xf]
        %v8201 = vld [vmem:[%s4579 + $0x14] sm:$0xf]
        %v8202 = vld [vmem:[%s4579 + $0x18] sm:$0xf]
        %v8203 = vld [vmem:[%s4579 + $0x1c] sm:$0xf]
        %v8204 = vld [vmem:[%s4579 + $0x20] sm:$0xf]
        %v8205 = vld [vmem:[%s4579 + $0x24] sm:$0xf]
        %v8206 = vld [vmem:[%s4579 + $0x28] sm:$0xf]
        %v8207 = vld [vmem:[%s4579 + $0x2c] sm:$0xf]
        %v8220 = vunpack.c.l.b16 %v8196
        %v8221 = vunpack.c.l.b16 %v8197
        %v8222 = vunpack.c.l.b16 %v8198
        %v8223 = vunpack.c.l.b16 %v8199
        %v8224 = vunpack.c.l.b16 %v8200
        %v8225 = vunpack.c.l.b16 %v8201
        %v8226 = vunpack.c.l.b16 %v8202
        %v8227 = vunpack.c.l.b16 %v8203
        %v8228 = vunpack.c.l.b16 %v8204
        %v8229 = vunpack.c.l.b16 %v8205
        %v8230 = vunpack.c.l.b16 %v8206
        %v8231 = vunpack.c.l.b16 %v8207
        %v8232 = vpack.c.b16 %v8221, %v8220
        %v8233 = vpack.c.b16 %v8223, %v8222
        %v8234 = vpack.c.b16 %v8225, %v8224
        %v8235 = vpack.c.b16 %v8227, %v8226
        %v8236 = vpack.c.b16 %v8229, %v8228
        %v8237 = vpack.c.b16 %v8231, %v8230
        %v8245 = vsel %vm2169, %v8172, 0
        %v8248 = vsel %vm2169, %v8173, 0
        %v8251 = vsel %vm2169, %v8174, 0
        %v8254 = vsel %vm2169, %v8175, 0
        %v8257 = vsel %vm2169, %v8176, 0
        %v8260 = vsel %vm2169, %v8177, 0
        %v8263 = vsel %vm2169, %v8178, 0
        %v8266 = vsel %vm2169, %v8179, 0
        %v8269 = vsel %vm2169, %v8180, 0
        %v8272 = vsel %vm2169, %v8181, 0
        %v8275 = vsel %vm2169, %v8182, 0
        %v8278 = vsel %vm2169, %v8183, 0
        %v8281 = vsel %vm2169, %v8184, 0
        %v8284 = vsel %vm2169, %v8185, 0
        %v8287 = vsel %vm2169, %v8186, 0
        %v8290 = vsel %vm2169, %v8187, 0
        %v8293 = vsel %vm2169, %v8188, 0
        %v8296 = vsel %vm2169, %v8189, 0
        %v8299 = vsel %vm2169, %v8190, 0
        %v8302 = vsel %vm2169, %v8191, 0
        %v8305 = vsel %vm2169, %v8192, 0
        %v8308 = vsel %vm2169, %v8193, 0
        %v8311 = vsel %vm2169, %v8194, 0
        %v8314 = vsel %vm2169, %v8195, 0
        %8316 = vmatpush.bf16.msra.mxu0 0
        %8317 = vmatpush.bf16.msra.mxu0 0
        %8318 = vmatpush.bf16.msra.mxu0 %v8237
        %8319 = vmatpush.bf16.msra.mxu0 %v8236
        %8320 = vmatpush.bf16.msra.mxu0 %v8235
        %8321 = vmatpush.bf16.msra.mxu0 %v8234
        %8322 = vmatpush.bf16.msra.mxu0 %v8233
        %8323 = vmatpush.bf16.msra.mxu0 %v8232
        %8324 = vmatmul.bf16.gmra.mxu0 %v8245
        %v8325 = vpop.f32.mrf.mxu0
        %v8326 = vadd.f32 0.0, %v8325
        %v8327 = vpop.f32.mrf.mxu0
        %v8328 = vadd.f32 0.0, %v8327
        %8329 = vmatmul.bf16.gmra.mxu0 %v8248
        %v8330 = vpop.f32.mrf.mxu0
        %v8331 = vadd.f32 0.0, %v8330
        %v8332 = vpop.f32.mrf.mxu0
        %v8333 = vadd.f32 0.0, %v8332
        %8334 = vmatmul.bf16.gmra.mxu0 %v8251
        %v8335 = vpop.f32.mrf.mxu0
        %v8336 = vadd.f32 0.0, %v8335
        %v8337 = vpop.f32.mrf.mxu0
        %v8338 = vadd.f32 0.0, %v8337
        %8339 = vmatmul.bf16.gmra.mxu0 %v8254
        %v8340 = vpop.f32.mrf.mxu0
        %v8341 = vadd.f32 0.0, %v8340
        %v8342 = vpop.f32.mrf.mxu0
        %v8343 = vadd.f32 0.0, %v8342
        %8344 = vmatmul.bf16.gmra.mxu0 %v8257
        %v8345 = vpop.f32.mrf.mxu0
        %v8346 = vadd.f32 0.0, %v8345
        %v8347 = vpop.f32.mrf.mxu0
        %v8348 = vadd.f32 0.0, %v8347
        %8349 = vmatmul.bf16.gmra.mxu0 %v8260
        %v8350 = vpop.f32.mrf.mxu0
        %v8351 = vadd.f32 0.0, %v8350
        %v8352 = vpop.f32.mrf.mxu0
        %v8353 = vadd.f32 0.0, %v8352
        %8354 = vmatmul.bf16.gmra.mxu0 %v8263
        %v8355 = vpop.f32.mrf.mxu0
        %v8356 = vadd.f32 0.0, %v8355
        %v8357 = vpop.f32.mrf.mxu0
        %v8358 = vadd.f32 0.0, %v8357
        %8359 = vmatmul.bf16.gmra.mxu0 %v8266
        %v8360 = vpop.f32.mrf.mxu0
        %v8361 = vadd.f32 0.0, %v8360
        %v8362 = vpop.f32.mrf.mxu0
        %v8363 = vadd.f32 0.0, %v8362
        %8364 = vmatmul.bf16.gmra.mxu0 %v8269
        %v8365 = vpop.f32.mrf.mxu0
        %v8366 = vadd.f32 0.0, %v8365
        %v8367 = vpop.f32.mrf.mxu0
        %v8368 = vadd.f32 0.0, %v8367
        %8369 = vmatmul.bf16.gmra.mxu0 %v8272
        %v8370 = vpop.f32.mrf.mxu0
        %v8371 = vadd.f32 0.0, %v8370
        %v8372 = vpop.f32.mrf.mxu0
        %v8373 = vadd.f32 0.0, %v8372
        %8374 = vmatmul.bf16.gmra.mxu0 %v8275
        %v8375 = vpop.f32.mrf.mxu0
        %v8376 = vadd.f32 0.0, %v8375
        %v8377 = vpop.f32.mrf.mxu0
        %v8378 = vadd.f32 0.0, %v8377
        %8379 = vmatmul.bf16.gmra.mxu0 %v8278
        %v8380 = vpop.f32.mrf.mxu0
        %v8381 = vadd.f32 0.0, %v8380
        %v8382 = vpop.f32.mrf.mxu0
        %v8383 = vadd.f32 0.0, %v8382
        %8384 = vmatmul.bf16.gmra.mxu0 %v8281
        %v8385 = vpop.f32.mrf.mxu0
        %v8386 = vadd.f32 0.0, %v8385
        %v8387 = vpop.f32.mrf.mxu0
        %v8388 = vadd.f32 0.0, %v8387
        %8389 = vmatmul.bf16.gmra.mxu0 %v8284
        %v8390 = vpop.f32.mrf.mxu0
        %v8391 = vadd.f32 0.0, %v8390
        %v8392 = vpop.f32.mrf.mxu0
        %v8393 = vadd.f32 0.0, %v8392
        %8394 = vmatmul.bf16.gmra.mxu0 %v8287
        %v8395 = vpop.f32.mrf.mxu0
        %v8396 = vadd.f32 0.0, %v8395
        %v8397 = vpop.f32.mrf.mxu0
        %v8398 = vadd.f32 0.0, %v8397
        %8399 = vmatmul.bf16.gmra.mxu0 %v8290
        %v8400 = vpop.f32.mrf.mxu0
        %v8401 = vadd.f32 0.0, %v8400
        %v8402 = vpop.f32.mrf.mxu0
        %v8403 = vadd.f32 0.0, %v8402
        %8404 = vmatmul.bf16.gmra.mxu0 %v8293
        %v8405 = vpop.f32.mrf.mxu0
        %v8406 = vadd.f32 0.0, %v8405
        %v8407 = vpop.f32.mrf.mxu0
        %v8408 = vadd.f32 0.0, %v8407
        %8409 = vmatmul.bf16.gmra.mxu0 %v8296
        %v8410 = vpop.f32.mrf.mxu0
        %v8411 = vadd.f32 0.0, %v8410
        %v8412 = vpop.f32.mrf.mxu0
        %v8413 = vadd.f32 0.0, %v8412
        %8414 = vmatmul.bf16.gmra.mxu0 %v8299
        %v8415 = vpop.f32.mrf.mxu0
        %v8416 = vadd.f32 0.0, %v8415
        %v8417 = vpop.f32.mrf.mxu0
        %v8418 = vadd.f32 0.0, %v8417
        %8419 = vmatmul.bf16.gmra.mxu0 %v8302
        %v8420 = vpop.f32.mrf.mxu0
        %v8421 = vadd.f32 0.0, %v8420
        %v8422 = vpop.f32.mrf.mxu0
        %v8423 = vadd.f32 0.0, %v8422
        %8424 = vmatmul.bf16.gmra.mxu0 %v8305
        %v8425 = vpop.f32.mrf.mxu0
        %v8426 = vadd.f32 0.0, %v8425
        %v8427 = vpop.f32.mrf.mxu0
        %v8428 = vadd.f32 0.0, %v8427
        %8429 = vmatmul.bf16.gmra.mxu0 %v8308
        %v8430 = vpop.f32.mrf.mxu0
        %v8431 = vadd.f32 0.0, %v8430
        %v8432 = vpop.f32.mrf.mxu0
        %v8433 = vadd.f32 0.0, %v8432
        %8434 = vmatmul.bf16.gmra.mxu0 %v8311
        %v8435 = vpop.f32.mrf.mxu0
        %v8436 = vadd.f32 0.0, %v8435
        %v8437 = vpop.f32.mrf.mxu0
        %v8438 = vadd.f32 0.0, %v8437
        %8439 = vmatmul.bf16.gmra.mxu0 %v8314
        %v8440 = vpop.f32.mrf.mxu0
        %v8441 = vadd.f32 0.0, %v8440
        %v8442 = vpop.f32.mrf.mxu0
        %v8443 = vadd.f32 0.0, %v8442
        %8444 = vdwg.mxu0
        %v8445 = vadd.f32 %v8005, %v8326
        %v8446 = vadd.f32 %v8007, %v8328
        %v8447 = vadd.f32 %v8010, %v8331
        %v8448 = vadd.f32 %v8012, %v8333
        %v8449 = vadd.f32 %v8015, %v8336
        %v8450 = vadd.f32 %v8017, %v8338
        %v8451 = vadd.f32 %v8020, %v8341
        %v8452 = vadd.f32 %v8022, %v8343
        %v8453 = vadd.f32 %v8025, %v8346
        %v8454 = vadd.f32 %v8027, %v8348
        %v8455 = vadd.f32 %v8030, %v8351
        %v8456 = vadd.f32 %v8032, %v8353
        %v8457 = vadd.f32 %v8035, %v8356
        %v8458 = vadd.f32 %v8037, %v8358
        %v8459 = vadd.f32 %v8040, %v8361
        %v8460 = vadd.f32 %v8042, %v8363
        %v8461 = vadd.f32 %v8045, %v8366
        %v8462 = vadd.f32 %v8047, %v8368
        %v8463 = vadd.f32 %v8050, %v8371
        %v8464 = vadd.f32 %v8052, %v8373
        %v8465 = vadd.f32 %v8055, %v8376
        %v8466 = vadd.f32 %v8057, %v8378
        %v8467 = vadd.f32 %v8060, %v8381
        %v8468 = vadd.f32 %v8062, %v8383
        %v8469 = vadd.f32 %v8065, %v8386
        %v8470 = vadd.f32 %v8067, %v8388
        %v8471 = vadd.f32 %v8070, %v8391
        %v8472 = vadd.f32 %v8072, %v8393
        %v8473 = vadd.f32 %v8075, %v8396
        %v8474 = vadd.f32 %v8077, %v8398
        %v8475 = vadd.f32 %v8080, %v8401
        %v8476 = vadd.f32 %v8082, %v8403
        %v8477 = vadd.f32 %v8085, %v8406
        %v8478 = vadd.f32 %v8087, %v8408
        %v8479 = vadd.f32 %v8090, %v8411
        %v8480 = vadd.f32 %v8092, %v8413
        %v8481 = vadd.f32 %v8095, %v8416
        %v8482 = vadd.f32 %v8097, %v8418
        %v8483 = vadd.f32 %v8100, %v8421
        %v8484 = vadd.f32 %v8102, %v8423
        %v8485 = vadd.f32 %v8105, %v8426
        %v8486 = vadd.f32 %v8107, %v8428
        %v8487 = vadd.f32 %v8110, %v8431
        %v8488 = vadd.f32 %v8112, %v8433
        %v8489 = vadd.f32 %v8115, %v8436
        %v8490 = vadd.f32 %v8117, %v8438
        %v8491 = vadd.f32 %v8120, %v8441
        %v8492 = vadd.f32 %v8122, %v8443
        %v8493 = vmul.f32 %v8445, %v4877
        %v8494 = vmul.f32 %v8446, %v4877
        %v8495 = vmul.f32 %v8447, %v4877
        %v8496 = vmul.f32 %v8448, %v4877
        %v8497 = vmul.f32 %v8449, %v4877
        %v8498 = vmul.f32 %v8450, %v4877
        %v8499 = vmul.f32 %v8451, %v4877
        %v8500 = vmul.f32 %v8452, %v4877
        %v8501 = vmul.f32 %v8453, %v4877
        %v8502 = vmul.f32 %v8454, %v4877
        %v8503 = vmul.f32 %v8455, %v4877
        %v8504 = vmul.f32 %v8456, %v4877
        %v8505 = vmul.f32 %v8457, %v4877
        %v8506 = vmul.f32 %v8458, %v4877
        %v8507 = vmul.f32 %v8459, %v4877
        %v8508 = vmul.f32 %v8460, %v4877
        %v8509 = vmul.f32 %v8461, %v4877
        %v8510 = vmul.f32 %v8462, %v4877
        %v8511 = vmul.f32 %v8463, %v4877
        %v8512 = vmul.f32 %v8464, %v4877
        %v8513 = vmul.f32 %v8465, %v4877
        %v8514 = vmul.f32 %v8466, %v4877
        %v8515 = vmul.f32 %v8467, %v4877
        %v8516 = vmul.f32 %v8468, %v4877
        %v8517 = vmul.f32 %v8469, %v4877
        %v8518 = vmul.f32 %v8470, %v4877
        %v8519 = vmul.f32 %v8471, %v4877
        %v8520 = vmul.f32 %v8472, %v4877
        %v8521 = vmul.f32 %v8473, %v4877
        %v8522 = vmul.f32 %v8474, %v4877
        %v8523 = vmul.f32 %v8475, %v4877
        %v8524 = vmul.f32 %v8476, %v4877
        %v8525 = vmul.f32 %v8477, %v4877
        %v8526 = vmul.f32 %v8478, %v4877
        %v8527 = vmul.f32 %v8479, %v4877
        %v8528 = vmul.f32 %v8480, %v4877
        %v8529 = vmul.f32 %v8481, %v4877
        %v8530 = vmul.f32 %v8482, %v4877
        %v8531 = vmul.f32 %v8483, %v4877
        %v8532 = vmul.f32 %v8484, %v4877
        %v8533 = vmul.f32 %v8485, %v4877
        %v8534 = vmul.f32 %v8486, %v4877
        %v8535 = vmul.f32 %v8487, %v4877
        %v8536 = vmul.f32 %v8488, %v4877
        %v8537 = vmul.f32 %v8489, %v4877
        %v8538 = vmul.f32 %v8490, %v4877
        %v8539 = vmul.f32 %v8491, %v4877
        %v8540 = vmul.f32 %v8492, %v4877
        %v8541 = vadd.f32 %v8493, %v4926
        %v8542 = vadd.f32 %v8494, %v4926
        %v8543 = vadd.f32 %v8495, %v4926
        %v8544 = vadd.f32 %v8496, %v4926
        %v8545 = vadd.f32 %v8497, %v4926
        %v8546 = vadd.f32 %v8498, %v4926
        %v8547 = vadd.f32 %v8499, %v4926
        %v8548 = vadd.f32 %v8500, %v4926
        %v8549 = vadd.f32 %v8501, %v4926
        %v8550 = vadd.f32 %v8502, %v4926
        %v8551 = vadd.f32 %v8503, %v4926
        %v8552 = vadd.f32 %v8504, %v4926
        %v8553 = vadd.f32 %v8505, %v4926
        %v8554 = vadd.f32 %v8506, %v4926
        %v8555 = vadd.f32 %v8507, %v4926
        %v8556 = vadd.f32 %v8508, %v4926
        %v8557 = vadd.f32 %v8509, %v4926
        %v8558 = vadd.f32 %v8510, %v4926
        %v8559 = vadd.f32 %v8511, %v4926
        %v8560 = vadd.f32 %v8512, %v4926
        %v8561 = vadd.f32 %v8513, %v4926
        %v8562 = vadd.f32 %v8514, %v4926
        %v8563 = vadd.f32 %v8515, %v4926
        %v8564 = vadd.f32 %v8516, %v4926
        %v8565 = vadd.f32 %v8517, %v4926
        %v8566 = vadd.f32 %v8518, %v4926
        %v8567 = vadd.f32 %v8519, %v4926
        %v8568 = vadd.f32 %v8520, %v4926
        %v8569 = vadd.f32 %v8521, %v4926
        %v8570 = vadd.f32 %v8522, %v4926
        %v8571 = vadd.f32 %v8523, %v4926
        %v8572 = vadd.f32 %v8524, %v4926
        %v8573 = vadd.f32 %v8525, %v4926
        %v8574 = vadd.f32 %v8526, %v4926
        %v8575 = vadd.f32 %v8527, %v4926
        %v8576 = vadd.f32 %v8528, %v4926
        %v8577 = vadd.f32 %v8529, %v4926
        %v8578 = vadd.f32 %v8530, %v4926
        %v8579 = vadd.f32 %v8531, %v4926
        %v8580 = vadd.f32 %v8532, %v4926
        %v8581 = vadd.f32 %v8533, %v4926
        %v8582 = vadd.f32 %v8534, %v4926
        %v8583 = vadd.f32 %v8535, %v4926
        %v8584 = vadd.f32 %v8536, %v4926
        %v8585 = vadd.f32 %v8537, %v4926
        %v8586 = vadd.f32 %v8538, %v4926
        %v8587 = vadd.f32 %v8539, %v4926
        %v8588 = vadd.f32 %v8540, %v4926
        %v8589 = vmul.f32 %v8541, %v2115
        %v8590 = vmul.f32 %v8542, %v2116
        %v8591 = vmul.f32 %v8543, %v2117
        %v8592 = vmul.f32 %v8544, %v2118
        %v8593 = vmul.f32 %v8545, %v2119
        %v8594 = vmul.f32 %v8546, %v2120
        %v8595 = vmul.f32 %v8547, %v2121
        %v8596 = vmul.f32 %v8548, %v2122
        %v8597 = vmul.f32 %v8549, %v2123
        %v8598 = vmul.f32 %v8550, %v2124
        %v8599 = vmul.f32 %v8551, %v2125
        %v8600 = vmul.f32 %v8552, %v2126
        %v8601 = vmul.f32 %v8553, %v2127
        %v8602 = vmul.f32 %v8554, %v2128
        %v8603 = vmul.f32 %v8555, %v2129
        %v8604 = vmul.f32 %v8556, %v2130
        %v8605 = vmul.f32 %v8557, %v2131
        %v8606 = vmul.f32 %v8558, %v2132
        %v8607 = vmul.f32 %v8559, %v2133
        %v8608 = vmul.f32 %v8560, %v2134
        %v8609 = vmul.f32 %v8561, %v2135
        %v8610 = vmul.f32 %v8562, %v2136
        %v8611 = vmul.f32 %v8563, %v2137
        %v8612 = vmul.f32 %v8564, %v2138
        %v8613 = vmul.f32 %v8565, %v2139
        %v8614 = vmul.f32 %v8566, %v2140
        %v8615 = vmul.f32 %v8567, %v2141
        %v8616 = vmul.f32 %v8568, %v2142
        %v8617 = vmul.f32 %v8569, %v2143
        %v8618 = vmul.f32 %v8570, %v2144
        %v8619 = vmul.f32 %v8571, %v2145
        %v8620 = vmul.f32 %v8572, %v2146
        %v8621 = vmul.f32 %v8573, %v2147
        %v8622 = vmul.f32 %v8574, %v2148
        %v8623 = vmul.f32 %v8575, %v2149
        %v8624 = vmul.f32 %v8576, %v2150
        %v8625 = vmul.f32 %v8577, %v2151
        %v8626 = vmul.f32 %v8578, %v2152
        %v8627 = vmul.f32 %v8579, %v2153
        %v8628 = vmul.f32 %v8580, %v2154
        %v8629 = vmul.f32 %v8581, %v2155
        %v8630 = vmul.f32 %v8582, %v2156
        %v8631 = vmul.f32 %v8583, %v2157
        %v8632 = vmul.f32 %v8584, %v2158
        %v8633 = vmul.f32 %v8585, %v2159
        %v8634 = vmul.f32 %v8586, %v2160
        %v8635 = vmul.f32 %v8587, %v2161
        %v8636 = vmul.f32 %v8588, %v2162
        %v8637 = vsel %vm3426, %v8589, 0.0
        %v8638 = vsel %vm3426, %v8590, 0.0
        %v8639 = vadd.f32 %v8637, %v8638
        %v8640 = vsel %vm3426, %v8591, 0.0
        %v8641 = vadd.f32 %v8639, %v8640
        %v8642 = vsel %vm3426, %v8592, 0.0
        %v8643 = vadd.f32 %v8641, %v8642
        %v8644 = vsel %vm3426, %v8593, 0.0
        %v8645 = vadd.f32 %v8643, %v8644
        %v8646 = vsel %vm3426, %v8594, 0.0
        %v8647 = vadd.f32 %v8645, %v8646
        %v8648 = vsel %vm3426, %v8595, 0.0
        %v8649 = vadd.f32 %v8647, %v8648
        %v8650 = vsel %vm3426, %v8596, 0.0
        %v8651 = vadd.f32 %v8649, %v8650
        %v8652 = vsel %vm3426, %v8597, 0.0
        %v8653 = vadd.f32 %v8651, %v8652
        %v8654 = vsel %vm3426, %v8598, 0.0
        %v8655 = vadd.f32 %v8653, %v8654
        %v8656 = vsel %vm3426, %v8599, 0.0
        %v8657 = vadd.f32 %v8655, %v8656
        %v8658 = vsel %vm3426, %v8600, 0.0
        %v8659 = vadd.f32 %v8657, %v8658
        %v8660 = vsel %vm3426, %v8601, 0.0
        %v8661 = vadd.f32 %v8659, %v8660
        %v8662 = vsel %vm3426, %v8602, 0.0
        %v8663 = vadd.f32 %v8661, %v8662
        %v8664 = vsel %vm3426, %v8603, 0.0
        %v8665 = vadd.f32 %v8663, %v8664
        %v8666 = vsel %vm3426, %v8604, 0.0
        %v8667 = vadd.f32 %v8665, %v8666
        %v8668 = vsel %vm3426, %v8605, 0.0
        %v8669 = vadd.f32 %v8667, %v8668
        %v8670 = vsel %vm3426, %v8606, 0.0
        %v8671 = vadd.f32 %v8669, %v8670
        %v8672 = vsel %vm3426, %v8607, 0.0
        %v8673 = vadd.f32 %v8671, %v8672
        %v8674 = vsel %vm3426, %v8608, 0.0
        %v8675 = vadd.f32 %v8673, %v8674
        %v8676 = vsel %vm3426, %v8609, 0.0
        %v8677 = vadd.f32 %v8675, %v8676
        %v8678 = vsel %vm3426, %v8610, 0.0
        %v8679 = vadd.f32 %v8677, %v8678
        %v8680 = vsel %vm3426, %v8611, 0.0
        %v8681 = vadd.f32 %v8679, %v8680
        %v8682 = vsel %vm3426, %v8612, 0.0
        %v8683 = vadd.f32 %v8681, %v8682
        %v8684 = vsel %vm3426, %v8613, 0.0
        %v8685 = vadd.f32 %v8683, %v8684
        %v8686 = vsel %vm3426, %v8614, 0.0
        %v8687 = vadd.f32 %v8685, %v8686
        %v8688 = vsel %vm3426, %v8615, 0.0
        %v8689 = vadd.f32 %v8687, %v8688
        %v8690 = vsel %vm3426, %v8616, 0.0
        %v8691 = vadd.f32 %v8689, %v8690
        %v8692 = vsel %vm3426, %v8617, 0.0
        %v8693 = vadd.f32 %v8691, %v8692
        %v8694 = vsel %vm3426, %v8618, 0.0
        %v8695 = vadd.f32 %v8693, %v8694
        %v8696 = vsel %vm3426, %v8619, 0.0
        %v8697 = vadd.f32 %v8695, %v8696
        %v8698 = vsel %vm3426, %v8620, 0.0
        %v8699 = vadd.f32 %v8697, %v8698
        %v8700 = vsel %vm3426, %v8621, 0.0
        %v8701 = vadd.f32 %v8699, %v8700
        %v8702 = vsel %vm3426, %v8622, 0.0
        %v8703 = vadd.f32 %v8701, %v8702
        %v8704 = vsel %vm3426, %v8623, 0.0
        %v8705 = vadd.f32 %v8703, %v8704
        %v8706 = vsel %vm3426, %v8624, 0.0
        %v8707 = vadd.f32 %v8705, %v8706
        %v8708 = vsel %vm3426, %v8625, 0.0
        %v8709 = vadd.f32 %v8707, %v8708
        %v8710 = vsel %vm3426, %v8626, 0.0
        %v8711 = vadd.f32 %v8709, %v8710
        %v8712 = vsel %vm3426, %v8627, 0.0
        %v8713 = vadd.f32 %v8711, %v8712
        %v8714 = vsel %vm3426, %v8628, 0.0
        %v8715 = vadd.f32 %v8713, %v8714
        %v8716 = vsel %vm3426, %v8629, 0.0
        %v8717 = vadd.f32 %v8715, %v8716
        %v8718 = vsel %vm3426, %v8630, 0.0
        %v8719 = vadd.f32 %v8717, %v8718
        %v8720 = vsel %vm3426, %v8631, 0.0
        %v8721 = vadd.f32 %v8719, %v8720
        %v8722 = vsel %vm3426, %v8632, 0.0
        %v8723 = vadd.f32 %v8721, %v8722
        %v8724 = vsel %vm3426, %v8633, 0.0
        %v8725 = vadd.f32 %v8723, %v8724
        %v8726 = vsel %vm3426, %v8634, 0.0
        %v8727 = vadd.f32 %v8725, %v8726
        %v8728 = vsel %vm3426, %v8635, 0.0
        %v8729 = vadd.f32 %v8727, %v8728
        %v8730 = vsel %vm3426, %v8636, 0.0
        %v8731 = vadd.f32 %v8729, %v8730
        %v8732 = vrot.slane %v8731, 4
        %v8733 = vadd.f32 %v8731, %v8732
        %v8734 = vrot.slane %v8733, 2
        %v8735 = vadd.f32 %v8733, %v8734
        %v8736 = vrot.slane %v8735, 1
        %v8737 = vadd.f32 %v8735, %v8736
        %v8738 = vmul.f32 %v8737, 0.00390625
        %v8739 = vld [vmem:[%s5] sm:$0xff]
        %v8740 = vld [vmem:[%s5 + $0x8] sm:$0xff]
        %v8741 = vld [vmem:[%s5 + $0x10] sm:$0xff]
        %v8742 = vld [vmem:[%s5 + $0x18] sm:$0xff]
        %v8743 = vld [vmem:[%s6] sm:$0x1]
        %v8745 = vsel %vm3426, %v8738, 0
        %8747 = vmatpush.msra.mxu0 0.0
        %8748 = vmatpush.msra.mxu0 0.0
        %8749 = vmatpush.msra.mxu0 0.0
        %8750 = vmatpush.msra.mxu0 0.0
        %8751 = vmatpush.msra.mxu0 0.0
        %8752 = vmatpush.msra.mxu0 0.0
        %8753 = vmatpush.msra.mxu0 0.0
        %8754 = vmatpush.msra.mxu0 0.0
        %8755 = vmatpush.msra.mxu0 0.0
        %8756 = vmatpush.msra.mxu0 0.0
        %8757 = vmatpush.msra.mxu0 0.0
        %8758 = vmatpush.msra.mxu0 0.0
        %8759 = vmatpush.msra.mxu0 %v8742
        %8760 = vmatpush.msra.mxu0 %v8741
        %8761 = vmatpush.msra.mxu0 %v8740
        %8762 = vmatpush.msra.mxu0 %v8739
        %8763 = vmatmul.f32.gmra.mxu0 %v8745
        %v8764 = vpop.f32.mrf.mxu0
        %v8765 = vadd.f32 %v8743, %v8764
        %8766 = vdwg.mxu0
        %v8767 = vmax.f32 %v8765, 0.0
        %v8768 = vld [vmem:[%s7] sm:$0x3]
        %v8769 = vld [vmem:[%s8] sm:$0x1]
        %v8771 = vsel %vm5156, %v8767, 0
        %v8774 = vsel %vm5160, %v8768, 0
        %8776 = vmatpush.msra.mxu0 0.0
        %8777 = vmatpush.msra.mxu0 0.0
        %8778 = vmatpush.msra.mxu0 0.0
        %8779 = vmatpush.msra.mxu0 0.0
        %8780 = vmatpush.msra.mxu0 0.0
        %8781 = vmatpush.msra.mxu0 0.0
        %8782 = vmatpush.msra.mxu0 0.0
        %8783 = vmatpush.msra.mxu0 0.0
        %8784 = vmatpush.msra.mxu0 0.0
        %8785 = vmatpush.msra.mxu0 0.0
        %8786 = vmatpush.msra.mxu0 0.0
        %8787 = vmatpush.msra.mxu0 0.0
        %8788 = vmatpush.msra.mxu0 0.0
        %8789 = vmatpush.msra.mxu0 0.0
        %8790 = vmatpush.msra.mxu0 0.0
        %8791 = vmatpush.msra.mxu0 %v8774
        %8792 = vmatmul.f32.gmra.mxu0 %v8771
        %v8793 = vpop.f32.mrf.mxu0
        %v8794 = vadd.f32 %v8769, %v8793
        %8795 = vdwg.mxu0
        %v8796 = vmul.f32 %v8794, 0.5
        %v8797 = vtanh.pop %v8796
        %v8798 = vadd.f32 %v8797, 1.0
        %v8799 = vmul.f32 %v8798, 0.5
        %v8800 = vld [vmem:[%s5804 + $0xc] sm:$0xf]
        %v8801 = vld [vmem:[%s5804 + $0x10] sm:$0xf]
        %v8802 = vld [vmem:[%s5804 + $0x14] sm:$0xf]
        %v8803 = vld [vmem:[%s5804 + $0x18] sm:$0xf]
        %v8804 = vld [vmem:[%s5804 + $0x1c] sm:$0xf]
        %v8805 = vld [vmem:[%s5804 + $0x20] sm:$0xf]
        %v8806 = vld [vmem:[%s5804 + $0x24] sm:$0xf]
        %v8807 = vld [vmem:[%s5804 + $0x28] sm:$0xf]
        %v8808 = vld [vmem:[%s5804 + $0x2c] sm:$0xf]
        %v8809 = vld [vmem:[%s5804 + $0x30] sm:$0xf]
        %v8810 = vld [vmem:[%s5804 + $0x34] sm:$0xf]
        %v8811 = vld [vmem:[%s5804 + $0x38] sm:$0xf]
        %v8812 = vld [vmem:[%s5804 + $0x3c] sm:$0xf]
        %v8813 = vld [vmem:[%s5804 + $0x40] sm:$0xf]
        %v8814 = vld [vmem:[%s5804 + $0x44] sm:$0xf]
        %v8815 = vld [vmem:[%s5804 + $0x48] sm:$0xf]
        %v8816 = vld [vmem:[%s5804 + $0x4c] sm:$0xf]
        %v8817 = vld [vmem:[%s5804 + $0x50] sm:$0xf]
        %v8818 = vld [vmem:[%s5804 + $0x54] sm:$0xf]
        %v8819 = vld [vmem:[%s5804 + $0x58] sm:$0xf]
        %v8820 = vld [vmem:[%s5804 + $0x5c] sm:$0xf]
        %v8821 = vld [vmem:[%s5804 + $0x60] sm:$0xf]
        %v8822 = vld [vmem:[%s5804 + $0x64] sm:$0xf]
        %v8823 = vld [vmem:[%s5804 + $0x68] sm:$0xf]
        %v8824 = vld [vmem:[%s5804 + $0x6c] sm:$0xf]
        %v8825 = vld [vmem:[%s5804 + $0x70] sm:$0xf]
        %v8826 = vld [vmem:[%s5804 + $0x74] sm:$0xf]
        %v8827 = vld [vmem:[%s5804 + $0x78] sm:$0xf]
        %v8828 = vld [vmem:[%s5804 + $0x7c] sm:$0xf]
        %v8829 = vld [vmem:[%s5804 + $0x80] sm:$0xf]
        %v8830 = vld [vmem:[%s5804 + $0x84] sm:$0xf]
        %v8831 = vld [vmem:[%s5804 + $0x88] sm:$0xf]
        %v8832 = vld [vmem:[%s5804 + $0x8c] sm:$0xf]
        %v8833 = vld [vmem:[%s5804 + $0x90] sm:$0xf]
        %v8834 = vld [vmem:[%s5804 + $0x94] sm:$0xf]
        %v8835 = vld [vmem:[%s5804 + $0x98] sm:$0xf]
        %v8836 = vld [vmem:[%s5804 + $0x9c] sm:$0xf]
        %v8837 = vld [vmem:[%s5804 + $0xa0] sm:$0xf]
        %v8838 = vld [vmem:[%s5804 + $0xa4] sm:$0xf]
        %v8839 = vld [vmem:[%s5804 + $0xa8] sm:$0xf]
        %v8840 = vld [vmem:[%s5804 + $0xac] sm:$0xf]
        %v8841 = vld [vmem:[%s5804 + $0xb0] sm:$0xf]
        %v8842 = vld [vmem:[%s5804 + $0xb4] sm:$0xf]
        %v8843 = vld [vmem:[%s5804 + $0xb8] sm:$0xf]
        %v8844 = vld [vmem:[%s5804 + $0xbc] sm:$0xf]
        %v8845 = vld [vmem:[%s5804 + $0xc0] sm:$0xf]
        %v8846 = vld [vmem:[%s5804 + $0xc4] sm:$0xf]
        %v8847 = vld [vmem:[%s5804 + $0xc8] sm:$0xf]
        %v8848 = vld [vmem:[%s3] sm:$0x3]
        %v8897 = vunpack.c.l.b16 %v8800
        %v8898 = vunpack.c.l.b16 %v8801
        %v8899 = vunpack.c.l.b16 %v8802
        %v8900 = vunpack.c.l.b16 %v8803
        %v8901 = vunpack.c.l.b16 %v8804
        %v8902 = vunpack.c.l.b16 %v8805
        %v8903 = vunpack.c.l.b16 %v8806
        %v8904 = vunpack.c.l.b16 %v8807
        %v8905 = vunpack.c.l.b16 %v8808
        %v8906 = vunpack.c.l.b16 %v8809
        %v8907 = vunpack.c.l.b16 %v8810
        %v8908 = vunpack.c.l.b16 %v8811
        %v8909 = vunpack.c.l.b16 %v8812
        %v8910 = vunpack.c.l.b16 %v8813
        %v8911 = vunpack.c.l.b16 %v8814
        %v8912 = vunpack.c.l.b16 %v8815
        %v8913 = vunpack.c.l.b16 %v8816
        %v8914 = vunpack.c.l.b16 %v8817
        %v8915 = vunpack.c.l.b16 %v8818
        %v8916 = vunpack.c.l.b16 %v8819
        %v8917 = vunpack.c.l.b16 %v8820
        %v8918 = vunpack.c.l.b16 %v8821
        %v8919 = vunpack.c.l.b16 %v8822
        %v8920 = vunpack.c.l.b16 %v8823
        %v8921 = vunpack.c.l.b16 %v8824
        %v8922 = vunpack.c.l.b16 %v8825
        %v8923 = vunpack.c.l.b16 %v8826
        %v8924 = vunpack.c.l.b16 %v8827
        %v8925 = vunpack.c.l.b16 %v8828
        %v8926 = vunpack.c.l.b16 %v8829
        %v8927 = vunpack.c.l.b16 %v8830
        %v8928 = vunpack.c.l.b16 %v8831
        %v8929 = vunpack.c.l.b16 %v8832
        %v8930 = vunpack.c.l.b16 %v8833
        %v8931 = vunpack.c.l.b16 %v8834
        %v8932 = vunpack.c.l.b16 %v8835
        %v8933 = vunpack.c.l.b16 %v8836
        %v8934 = vunpack.c.l.b16 %v8837
        %v8935 = vunpack.c.l.b16 %v8838
        %v8936 = vunpack.c.l.b16 %v8839
        %v8937 = vunpack.c.l.b16 %v8840
        %v8938 = vunpack.c.l.b16 %v8841
        %v8939 = vunpack.c.l.b16 %v8842
        %v8940 = vunpack.c.l.b16 %v8843
        %v8941 = vunpack.c.l.b16 %v8844
        %v8942 = vunpack.c.l.b16 %v8845
        %v8943 = vunpack.c.l.b16 %v8846
        %v8944 = vunpack.c.l.b16 %v8847
        %v8945 = vpack.c.b16 %v8898, %v8897
        %v8946 = vpack.c.b16 %v8900, %v8899
        %v8947 = vpack.c.b16 %v8902, %v8901
        %v8948 = vpack.c.b16 %v8904, %v8903
        %v8949 = vpack.c.b16 %v8906, %v8905
        %v8950 = vpack.c.b16 %v8908, %v8907
        %v8951 = vpack.c.b16 %v8910, %v8909
        %v8952 = vpack.c.b16 %v8912, %v8911
        %v8953 = vpack.c.b16 %v8914, %v8913
        %v8954 = vpack.c.b16 %v8916, %v8915
        %v8955 = vpack.c.b16 %v8918, %v8917
        %v8956 = vpack.c.b16 %v8920, %v8919
        %v8957 = vpack.c.b16 %v8922, %v8921
        %v8958 = vpack.c.b16 %v8924, %v8923
        %v8959 = vpack.c.b16 %v8926, %v8925
        %v8960 = vpack.c.b16 %v8928, %v8927
        %v8961 = vpack.c.b16 %v8930, %v8929
        %v8962 = vpack.c.b16 %v8932, %v8931
        %v8963 = vpack.c.b16 %v8934, %v8933
        %v8964 = vpack.c.b16 %v8936, %v8935
        %v8965 = vpack.c.b16 %v8938, %v8937
        %v8966 = vpack.c.b16 %v8940, %v8939
        %v8967 = vpack.c.b16 %v8942, %v8941
        %v8968 = vpack.c.b16 %v8944, %v8943
        %8969 = vrot.lane.b32.xlu0 %v8945, 124
        %v8970 = vpop.permute.xlu0 %8969
        %8971 = vrot.lane.b32.xlu0 %v8946, 124
        %v8972 = vpop.permute.xlu0 %8971
        %8973 = vrot.lane.b32.xlu0 %v8947, 124
        %v8974 = vpop.permute.xlu0 %8973
        %8975 = vrot.lane.b32.xlu0 %v8948, 124
        %v8976 = vpop.permute.xlu0 %8975
        %8977 = vrot.lane.b32.xlu0 %v8949, 124
        %v8978 = vpop.permute.xlu0 %8977
        %8979 = vrot.lane.b32.xlu0 %v8950, 124
        %v8980 = vpop.permute.xlu0 %8979
        %8981 = vrot.lane.b32.xlu0 %v8951, 124
        %v8982 = vpop.permute.xlu0 %8981
        %8983 = vrot.lane.b32.xlu0 %v8952, 124
        %v8984 = vpop.permute.xlu0 %8983
        %8985 = vrot.lane.b32.xlu0 %v8953, 124
        %v8986 = vpop.permute.xlu0 %8985
        %8987 = vrot.lane.b32.xlu0 %v8954, 124
        %v8988 = vpop.permute.xlu0 %8987
        %8989 = vrot.lane.b32.xlu0 %v8955, 124
        %v8990 = vpop.permute.xlu0 %8989
        %8991 = vrot.lane.b32.xlu0 %v8956, 124
        %v8992 = vpop.permute.xlu0 %8991
        %8993 = vrot.lane.b32.xlu0 %v8957, 124
        %v8994 = vpop.permute.xlu0 %8993
        %8995 = vrot.lane.b32.xlu0 %v8958, 124
        %v8996 = vpop.permute.xlu0 %8995
        %8997 = vrot.lane.b32.xlu0 %v8959, 124
        %v8998 = vpop.permute.xlu0 %8997
        %8999 = vrot.lane.b32.xlu0 %v8960, 124
        %v9000 = vpop.permute.xlu0 %8999
        %9001 = vrot.lane.b32.xlu0 %v8961, 124
        %v9002 = vpop.permute.xlu0 %9001
        %9003 = vrot.lane.b32.xlu0 %v8962, 124
        %v9004 = vpop.permute.xlu0 %9003
        %9005 = vrot.lane.b32.xlu0 %v8963, 124
        %v9006 = vpop.permute.xlu0 %9005
        %9007 = vrot.lane.b32.xlu0 %v8964, 124
        %v9008 = vpop.permute.xlu0 %9007
        %9009 = vrot.lane.b32.xlu0 %v8965, 124
        %v9010 = vpop.permute.xlu0 %9009
        %9011 = vrot.lane.b32.xlu0 %v8966, 124
        %v9012 = vpop.permute.xlu0 %9011
        %9013 = vrot.lane.b32.xlu0 %v8967, 124
        %v9014 = vpop.permute.xlu0 %9013
        %9015 = vrot.lane.b32.xlu0 %v8968, 124
        %v9016 = vpop.permute.xlu0 %9015
        %v9018 = vsel %vm5405, %v8970, 0
        %v9021 = vsel %vm5405, %v8972, 0
        %v9024 = vsel %vm5405, %v8974, 0
        %v9027 = vsel %vm5405, %v8976, 0
        %v9030 = vsel %vm5405, %v8978, 0
        %v9033 = vsel %vm5405, %v8980, 0
        %v9036 = vsel %vm5405, %v8982, 0
        %v9039 = vsel %vm5405, %v8984, 0
        %v9042 = vsel %vm5405, %v8986, 0
        %v9045 = vsel %vm5405, %v8988, 0
        %v9048 = vsel %vm5405, %v8990, 0
        %v9051 = vsel %vm5405, %v8992, 0
        %v9054 = vsel %vm5405, %v8994, 0
        %v9057 = vsel %vm5405, %v8996, 0
        %v9060 = vsel %vm5405, %v8998, 0
        %v9063 = vsel %vm5405, %v9000, 0
        %v9066 = vsel %vm5405, %v9002, 0
        %v9069 = vsel %vm5405, %v9004, 0
        %v9072 = vsel %vm5405, %v9006, 0
        %v9075 = vsel %vm5405, %v9008, 0
        %v9078 = vsel %vm5405, %v9010, 0
        %v9081 = vsel %vm5405, %v9012, 0
        %v9084 = vsel %vm5405, %v9014, 0
        %v9087 = vsel %vm5405, %v9016, 0
        %v9090 = vsel %vm5160, %v8848, 0
        %9092 = vmatpush.bf16.msra.mxu0 0
        %9093 = vmatpush.bf16.msra.mxu0 0
        %9094 = vmatpush.bf16.msra.mxu0 0
        %9095 = vmatpush.bf16.msra.mxu0 0
        %9096 = vmatpush.bf16.msra.mxu0 0
        %9097 = vmatpush.bf16.msra.mxu0 0
        %9098 = vmatpush.bf16.msra.mxu0 0
        %9099 = vmatpush.bf16.msra.mxu0 %v9090
        %9100 = vmatmul.bf16.gmra.mxu0 %v9018
        %v9101 = vpop.f32.mrf.mxu0
        %v9102 = vadd.f32 0.0, %v9101
        %v9103 = vpop.f32.mrf.mxu0
        %v9104 = vadd.f32 0.0, %v9103
        %9105 = vmatmul.bf16.gmra.mxu0 %v9021
        %v9106 = vpop.f32.mrf.mxu0
        %v9107 = vpop.f32.mrf.mxu0
        %v9108 = vadd.f32 0.0, %v9107
        %9109 = vmatmul.bf16.gmra.mxu0 %v9024
        %v9110 = vpop.f32.mrf.mxu0
        %v9111 = vadd.f32 0.0, %v9110
        %v9112 = vpop.f32.mrf.mxu0
        %9113 = vmatmul.bf16.gmra.mxu0 %v9027
        %v9114 = vpop.f32.mrf.mxu0
        %v9115 = vadd.f32 0.0, %v9114
        %v9116 = vpop.f32.mrf.mxu0
        %v9117 = vadd.f32 0.0, %v9116
        %9118 = vmatmul.bf16.gmra.mxu0 %v9030
        %v9119 = vpop.f32.mrf.mxu0
        %v9120 = vpop.f32.mrf.mxu0
        %v9121 = vadd.f32 0.0, %v9120
        %9122 = vmatmul.bf16.gmra.mxu0 %v9033
        %v9123 = vpop.f32.mrf.mxu0
        %v9124 = vadd.f32 0.0, %v9123
        %v9125 = vpop.f32.mrf.mxu0
        %9126 = vmatmul.bf16.gmra.mxu0 %v9036
        %v9127 = vpop.f32.mrf.mxu0
        %v9128 = vadd.f32 0.0, %v9127
        %v9129 = vpop.f32.mrf.mxu0
        %v9130 = vadd.f32 0.0, %v9129
        %9131 = vmatmul.bf16.gmra.mxu0 %v9039
        %v9132 = vpop.f32.mrf.mxu0
        %v9133 = vpop.f32.mrf.mxu0
        %v9134 = vadd.f32 0.0, %v9133
        %9135 = vmatmul.bf16.gmra.mxu0 %v9042
        %v9136 = vpop.f32.mrf.mxu0
        %v9137 = vadd.f32 0.0, %v9136
        %v9138 = vpop.f32.mrf.mxu0
        %9139 = vmatmul.bf16.gmra.mxu0 %v9045
        %v9140 = vpop.f32.mrf.mxu0
        %v9141 = vadd.f32 0.0, %v9140
        %v9142 = vpop.f32.mrf.mxu0
        %v9143 = vadd.f32 0.0, %v9142
        %9144 = vmatmul.bf16.gmra.mxu0 %v9048
        %v9145 = vpop.f32.mrf.mxu0
        %v9146 = vpop.f32.mrf.mxu0
        %v9147 = vadd.f32 0.0, %v9146
        %9148 = vmatmul.bf16.gmra.mxu0 %v9051
        %v9149 = vpop.f32.mrf.mxu0
        %v9150 = vadd.f32 0.0, %v9149
        %v9151 = vpop.f32.mrf.mxu0
        %9152 = vmatmul.bf16.gmra.mxu0 %v9054
        %v9153 = vpop.f32.mrf.mxu0
        %v9154 = vadd.f32 0.0, %v9153
        %v9155 = vpop.f32.mrf.mxu0
        %v9156 = vadd.f32 0.0, %v9155
        %9157 = vmatmul.bf16.gmra.mxu0 %v9057
        %v9158 = vpop.f32.mrf.mxu0
        %v9159 = vpop.f32.mrf.mxu0
        %v9160 = vadd.f32 0.0, %v9159
        %9161 = vmatmul.bf16.gmra.mxu0 %v9060
        %v9162 = vpop.f32.mrf.mxu0
        %v9163 = vadd.f32 0.0, %v9162
        %v9164 = vpop.f32.mrf.mxu0
        %9165 = vmatmul.bf16.gmra.mxu0 %v9063
        %v9166 = vpop.f32.mrf.mxu0
        %v9167 = vadd.f32 0.0, %v9166
        %v9168 = vpop.f32.mrf.mxu0
        %v9169 = vadd.f32 0.0, %v9168
        %9170 = vmatmul.bf16.gmra.mxu0 %v9066
        %v9171 = vpop.f32.mrf.mxu0
        %v9172 = vpop.f32.mrf.mxu0
        %v9173 = vadd.f32 0.0, %v9172
        %9174 = vmatmul.bf16.gmra.mxu0 %v9069
        %v9175 = vpop.f32.mrf.mxu0
        %v9176 = vadd.f32 0.0, %v9175
        %v9177 = vpop.f32.mrf.mxu0
        %9178 = vmatmul.bf16.gmra.mxu0 %v9072
        %v9179 = vpop.f32.mrf.mxu0
        %v9180 = vadd.f32 0.0, %v9179
        %v9181 = vpop.f32.mrf.mxu0
        %v9182 = vadd.f32 0.0, %v9181
        %9183 = vmatmul.bf16.gmra.mxu0 %v9075
        %v9184 = vpop.f32.mrf.mxu0
        %v9185 = vpop.f32.mrf.mxu0
        %v9186 = vadd.f32 0.0, %v9185
        %9187 = vmatmul.bf16.gmra.mxu0 %v9078
        %v9188 = vpop.f32.mrf.mxu0
        %v9189 = vadd.f32 0.0, %v9188
        %v9190 = vpop.f32.mrf.mxu0
        %9191 = vmatmul.bf16.gmra.mxu0 %v9081
        %v9192 = vpop.f32.mrf.mxu0
        %v9193 = vadd.f32 0.0, %v9192
        %v9194 = vpop.f32.mrf.mxu0
        %v9195 = vadd.f32 0.0, %v9194
        %9196 = vmatmul.bf16.gmra.mxu0 %v9084
        %v9197 = vpop.f32.mrf.mxu0
        %v9198 = vpop.f32.mrf.mxu0
        %v9199 = vadd.f32 0.0, %v9198
        %9200 = vmatmul.bf16.gmra.mxu0 %v9087
        %v9201 = vpop.f32.mrf.mxu0
        %v9202 = vadd.f32 0.0, %v9201
        %v9203 = vpop.f32.mrf.mxu0
        %9204 = vdwg.mxu0
        %v9205 = vmul.f32 %v9102, %v5594
        %v9206 = vmul.f32 %v9104, %v5594
        %v9207 = vmul.f32 %v9108, %v5594
        %v9208 = vmul.f32 %v9111, %v5594
        %v9209 = vmul.f32 %v9115, %v5594
        %v9210 = vmul.f32 %v9117, %v5594
        %v9211 = vmul.f32 %v9121, %v5594
        %v9212 = vmul.f32 %v9124, %v5594
        %v9213 = vmul.f32 %v9128, %v5594
        %v9214 = vmul.f32 %v9130, %v5594
        %v9215 = vmul.f32 %v9134, %v5594
        %v9216 = vmul.f32 %v9137, %v5594
        %v9217 = vmul.f32 %v9141, %v5594
        %v9218 = vmul.f32 %v9143, %v5594
        %v9219 = vmul.f32 %v9147, %v5594
        %v9220 = vmul.f32 %v9150, %v5594
        %v9221 = vmul.f32 %v9154, %v5594
        %v9222 = vmul.f32 %v9156, %v5594
        %v9223 = vmul.f32 %v9160, %v5594
        %v9224 = vmul.f32 %v9163, %v5594
        %v9225 = vmul.f32 %v9167, %v5594
        %v9226 = vmul.f32 %v9169, %v5594
        %v9227 = vmul.f32 %v9173, %v5594
        %v9228 = vmul.f32 %v9176, %v5594
        %v9229 = vmul.f32 %v9180, %v5594
        %v9230 = vmul.f32 %v9182, %v5594
        %v9231 = vmul.f32 %v9186, %v5594
        %v9232 = vmul.f32 %v9189, %v5594
        %v9233 = vmul.f32 %v9193, %v5594
        %v9234 = vmul.f32 %v9195, %v5594
        %v9235 = vmul.f32 %v9199, %v5594
        %v9236 = vmul.f32 %v9202, %v5594
        %v9237 = vadd.f32 %v9205, %v5627
        %v9238 = vadd.f32 %v9206, %v5627
        %v9239 = vadd.f32 %v9207, %v5627
        %v9240 = vadd.f32 %v9208, %v5627
        %v9241 = vadd.f32 %v9209, %v5627
        %v9242 = vadd.f32 %v9210, %v5627
        %v9243 = vadd.f32 %v9211, %v5627
        %v9244 = vadd.f32 %v9212, %v5627
        %v9245 = vadd.f32 %v9213, %v5627
        %v9246 = vadd.f32 %v9214, %v5627
        %v9247 = vadd.f32 %v9215, %v5627
        %v9248 = vadd.f32 %v9216, %v5627
        %v9249 = vadd.f32 %v9217, %v5627
        %v9250 = vadd.f32 %v9218, %v5627
        %v9251 = vadd.f32 %v9219, %v5627
        %v9252 = vadd.f32 %v9220, %v5627
        %v9253 = vadd.f32 %v9221, %v5627
        %v9254 = vadd.f32 %v9222, %v5627
        %v9255 = vadd.f32 %v9223, %v5627
        %v9256 = vadd.f32 %v9224, %v5627
        %v9257 = vadd.f32 %v9225, %v5627
        %v9258 = vadd.f32 %v9226, %v5627
        %v9259 = vadd.f32 %v9227, %v5627
        %v9260 = vadd.f32 %v9228, %v5627
        %v9261 = vadd.f32 %v9229, %v5627
        %v9262 = vadd.f32 %v9230, %v5627
        %v9263 = vadd.f32 %v9231, %v5627
        %v9264 = vadd.f32 %v9232, %v5627
        %v9265 = vadd.f32 %v9233, %v5627
        %v9266 = vadd.f32 %v9234, %v5627
        %v9267 = vadd.f32 %v9235, %v5627
        %v9268 = vadd.f32 %v9236, %v5627
        %v9269 = vperm.slane %v8799, 0
        %v9270 = vmul.f32 %v8589, %v9269
        %v9271 = vmul.f32 %v8590, %v9269
        %v9272 = vadd.f32 %v9270, %v9237
        %v9273 = vadd.f32 %v9271, %v9238
        %v9274 = vmax.f32 %v9272, 0.0
        %v9275 = vmax.f32 %v9273, 0.0
        %s9276 = scalar_lea.vmem %s328, 256 [#allocation3]
        %9277 = vst.msk [vmem:[%s9276] sm:$0xff] %vm3426, %v9274
        %9278 = vst.msk [vmem:[%s9276 + $0x8] sm:$0xff] %vm3426, %v9275
        %v9279 = vmul.f32 %v8592, %v9269
        %v9280 = vmul.f32 %v8593, %v9269
        %v9281 = vadd.f32 %v9279, %v9239
        %v9282 = vadd.f32 %v9280, %v9240
        %v9283 = vmax.f32 %v9281, 0.0
        %v9284 = vmax.f32 %v9282, 0.0
        %s9285 = scalar_lea.vmem %s328, 272 [#allocation3]
        %9286 = vst.msk [vmem:[%s9285] sm:$0xff] %vm3426, %v9283
        %9287 = vst.msk [vmem:[%s9285 + $0x8] sm:$0xff] %vm3426, %v9284
        %v9288 = vmul.f32 %v8595, %v9269
        %v9289 = vmul.f32 %v8596, %v9269
        %v9290 = vadd.f32 %v9288, %v9241
        %v9291 = vadd.f32 %v9289, %v9242
        %v9292 = vmax.f32 %v9290, 0.0
        %v9293 = vmax.f32 %v9291, 0.0
        %s9294 = scalar_lea.vmem %s328, 288 [#allocation3]
        %9295 = vst.msk [vmem:[%s9294] sm:$0xff] %vm3426, %v9292
        %9296 = vst.msk [vmem:[%s9294 + $0x8] sm:$0xff] %vm3426, %v9293
        %v9297 = vmul.f32 %v8598, %v9269
        %v9298 = vmul.f32 %v8599, %v9269
        %v9299 = vadd.f32 %v9297, %v9243
        %v9300 = vadd.f32 %v9298, %v9244
        %v9301 = vmax.f32 %v9299, 0.0
        %v9302 = vmax.f32 %v9300, 0.0
        %s9303 = scalar_lea.vmem %s328, 304 [#allocation3]
        %9304 = vst.msk [vmem:[%s9303] sm:$0xff] %vm3426, %v9301
        %9305 = vst.msk [vmem:[%s9303 + $0x8] sm:$0xff] %vm3426, %v9302
        %v9306 = vmul.f32 %v8601, %v9269
        %v9307 = vmul.f32 %v8602, %v9269
        %v9308 = vadd.f32 %v9306, %v9245
        %v9309 = vadd.f32 %v9307, %v9246
        %v9310 = vmax.f32 %v9308, 0.0
        %v9311 = vmax.f32 %v9309, 0.0
        %s9312 = scalar_lea.vmem %s328, 320 [#allocation3]
        %9313 = vst.msk [vmem:[%s9312] sm:$0xff] %vm3426, %v9310
        %9314 = vst.msk [vmem:[%s9312 + $0x8] sm:$0xff] %vm3426, %v9311
        %v9315 = vmul.f32 %v8604, %v9269
        %v9316 = vmul.f32 %v8605, %v9269
        %v9317 = vadd.f32 %v9315, %v9247
        %v9318 = vadd.f32 %v9316, %v9248
        %v9319 = vmax.f32 %v9317, 0.0
        %v9320 = vmax.f32 %v9318, 0.0
        %s9321 = scalar_lea.vmem %s328, 336 [#allocation3]
        %9322 = vst.msk [vmem:[%s9321] sm:$0xff] %vm3426, %v9319
        %9323 = vst.msk [vmem:[%s9321 + $0x8] sm:$0xff] %vm3426, %v9320
        %v9324 = vmul.f32 %v8607, %v9269
        %v9325 = vmul.f32 %v8608, %v9269
        %v9326 = vadd.f32 %v9324, %v9249
        %v9327 = vadd.f32 %v9325, %v9250
        %v9328 = vmax.f32 %v9326, 0.0
        %v9329 = vmax.f32 %v9327, 0.0
        %s9330 = scalar_lea.vmem %s328, 352 [#allocation3]
        %9331 = vst.msk [vmem:[%s9330] sm:$0xff] %vm3426, %v9328
        %9332 = vst.msk [vmem:[%s9330 + $0x8] sm:$0xff] %vm3426, %v9329
        %v9333 = vmul.f32 %v8610, %v9269
        %v9334 = vmul.f32 %v8611, %v9269
        %v9335 = vadd.f32 %v9333, %v9251
        %v9336 = vadd.f32 %v9334, %v9252
        %v9337 = vmax.f32 %v9335, 0.0
        %v9338 = vmax.f32 %v9336, 0.0
        %s9339 = scalar_lea.vmem %s328, 368 [#allocation3]
        %9340 = vst.msk [vmem:[%s9339] sm:$0xff] %vm3426, %v9337
        %9341 = vst.msk [vmem:[%s9339 + $0x8] sm:$0xff] %vm3426, %v9338
        %v9342 = vmul.f32 %v8613, %v9269
        %v9343 = vmul.f32 %v8614, %v9269
        %v9344 = vadd.f32 %v9342, %v9253
        %v9345 = vadd.f32 %v9343, %v9254
        %v9346 = vmax.f32 %v9344, 0.0
        %v9347 = vmax.f32 %v9345, 0.0
        %s9348 = scalar_lea.vmem %s328, 384 [#allocation3]
        %9349 = vst.msk [vmem:[%s9348] sm:$0xff] %vm3426, %v9346
        %9350 = vst.msk [vmem:[%s9348 + $0x8] sm:$0xff] %vm3426, %v9347
        %v9351 = vmul.f32 %v8616, %v9269
        %v9352 = vmul.f32 %v8617, %v9269
        %v9353 = vadd.f32 %v9351, %v9255
        %v9354 = vadd.f32 %v9352, %v9256
        %v9355 = vmax.f32 %v9353, 0.0
        %v9356 = vmax.f32 %v9354, 0.0
        %s9357 = scalar_lea.vmem %s328, 400 [#allocation3]
        %9358 = vst.msk [vmem:[%s9357] sm:$0xff] %vm3426, %v9355
        %9359 = vst.msk [vmem:[%s9357 + $0x8] sm:$0xff] %vm3426, %v9356
        %v9360 = vmul.f32 %v8619, %v9269
        %v9361 = vmul.f32 %v8620, %v9269
        %v9362 = vadd.f32 %v9360, %v9257
        %v9363 = vadd.f32 %v9361, %v9258
        %v9364 = vmax.f32 %v9362, 0.0
        %v9365 = vmax.f32 %v9363, 0.0
        %s9366 = scalar_lea.vmem %s328, 416 [#allocation3]
        %9367 = vst.msk [vmem:[%s9366] sm:$0xff] %vm3426, %v9364
        %9368 = vst.msk [vmem:[%s9366 + $0x8] sm:$0xff] %vm3426, %v9365
        %v9369 = vmul.f32 %v8622, %v9269
        %v9370 = vmul.f32 %v8623, %v9269
        %v9371 = vadd.f32 %v9369, %v9259
        %v9372 = vadd.f32 %v9370, %v9260
        %v9373 = vmax.f32 %v9371, 0.0
        %v9374 = vmax.f32 %v9372, 0.0
        %s9375 = scalar_lea.vmem %s328, 432 [#allocation3]
        %9376 = vst.msk [vmem:[%s9375] sm:$0xff] %vm3426, %v9373
        %9377 = vst.msk [vmem:[%s9375 + $0x8] sm:$0xff] %vm3426, %v9374
        %v9378 = vmul.f32 %v8625, %v9269
        %v9379 = vmul.f32 %v8626, %v9269
        %v9380 = vadd.f32 %v9378, %v9261
        %v9381 = vadd.f32 %v9379, %v9262
        %v9382 = vmax.f32 %v9380, 0.0
        %v9383 = vmax.f32 %v9381, 0.0
        %s9384 = scalar_lea.vmem %s328, 448 [#allocation3]
        %9385 = vst.msk [vmem:[%s9384] sm:$0xff] %vm3426, %v9382
        %9386 = vst.msk [vmem:[%s9384 + $0x8] sm:$0xff] %vm3426, %v9383
        %v9387 = vmul.f32 %v8628, %v9269
        %v9388 = vmul.f32 %v8629, %v9269
        %v9389 = vadd.f32 %v9387, %v9263
        %v9390 = vadd.f32 %v9388, %v9264
        %v9391 = vmax.f32 %v9389, 0.0
        %v9392 = vmax.f32 %v9390, 0.0
        %s9393 = scalar_lea.vmem %s328, 464 [#allocation3]
        %9394 = vst.msk [vmem:[%s9393] sm:$0xff] %vm3426, %v9391
        %9395 = vst.msk [vmem:[%s9393 + $0x8] sm:$0xff] %vm3426, %v9392
        %v9396 = vmul.f32 %v8631, %v9269
        %v9397 = vmul.f32 %v8632, %v9269
        %v9398 = vadd.f32 %v9396, %v9265
        %v9399 = vadd.f32 %v9397, %v9266
        %v9400 = vmax.f32 %v9398, 0.0
        %v9401 = vmax.f32 %v9399, 0.0
        %s9402 = scalar_lea.vmem %s328, 480 [#allocation3]
        %9403 = vst.msk [vmem:[%s9402] sm:$0xff] %vm3426, %v9400
        %9404 = vst.msk [vmem:[%s9402 + $0x8] sm:$0xff] %vm3426, %v9401
        %v9405 = vmul.f32 %v8634, %v9269
        %v9406 = vmul.f32 %v8635, %v9269
        %v9407 = vadd.f32 %v9405, %v9267
        %v9408 = vadd.f32 %v9406, %v9268
        %v9409 = vmax.f32 %v9407, 0.0
        %v9410 = vmax.f32 %v9408, 0.0
        %s9411 = scalar_lea.vmem %s328, 496 [#allocation3]
        %9412 = vst.msk [vmem:[%s9411] sm:$0xff] %vm3426, %v9409
        %9413 = vst.msk [vmem:[%s9411 + $0x8] sm:$0xff] %vm3426, %v9410
        %s9414 = sand.u32 %s225, 1
        %s9415 = scalar_lea.sflag [#allocation4], %s9414
        %s9416 = sand.u32 %s225, 1
        %s9417 = smul.addr %s9416, 512
        %s9418 = scalar_lea.vmem [#allocation3], %s9417
        // Predicated region
        $region57: #{tpu_custom_call.1} parent=55 // pred_check
          %p9419 = pneg %p235
        $region58: #{tpu_custom_call.1} parent=55 // pred_check_branch
          %9421 = sbr.rel (%p9419) target = $region60
        $region59: #{tpu_custom_call.1} parent=55 // pred_region
          %s9422 = smul.u32 2, %s23
          %9424 = vsyncadd %s9415, 0
          %s9425 = smul.addr %s9422, 32
          %s9426 = smul.addr %s9425, 8
          %s9427 = scalar_lea.hbm %s9, %s9426
          %s9428 = sshll.u32 %s9418, 4
          %s9429 = int_to_ptr.vmem [resolvable:$true] %s9428
          %s9430 = sshll.u32 %s9427, 4
          %s9431 = int_to_ptr.hbm [resolvable:$true] %s9430
          %9436 = dma.vmem_to_hbm [thread:$0]  %s9429, 8192, %s9431, %s9415, 128, 128, 8
        $region60: #{tpu_custom_call.1} parent=55 // pred_fallthru
          _
      $region56: #{tpu_custom_call.1} parent=5 // pred_fallthru
        _
      %p9437 = scmp.le.s32.totalorder 2, %s18
      // Predicated region
      $region61: #{tpu_custom_call.1} parent=5 // pred_check
        %p9438 = pneg %p9437
      $region62: #{tpu_custom_call.1} parent=5 // pred_check_branch
        %9440 = sbr.rel (%p9438) target = $region64
      $region63: #{tpu_custom_call.1} parent=5 // pred_region
        %s9441 = ssub.s32 %s18, 2
        // Predicated region
        $region65: #{tpu_custom_call.1} parent=63 // pred_check
          %p9442 = pneg %p241
        $region66: #{tpu_custom_call.1} parent=63 // pred_check_branch
          %9444 = sbr.rel (%p9442) target = $region68
        $region67: #{tpu_custom_call.1} parent=63 // pred_region
          %s9445 = sand.u32 %s226, 1
          %s9446 = scalar_lea.sflag [#allocation4], %s9445
          %s9447 = sand.u32 %s226, 1
          %s9448 = smul.addr %s9447, 512
          %s9449 = scalar_lea.vmem [#allocation3], %s9448
          %9451 = dma.done %s9446, 8192
        $region68: #{tpu_custom_call.1} parent=63 // pred_fallthru
          _
      $region64: #{tpu_custom_call.1} parent=5 // pred_fallthru
        _
    $region6: #{tpu_custom_call.1} parent=1 // loop_footer
      %s22 = sadd.s32 1, %s18
    $region7: #{tpu_custom_call.1} parent=1 // loop_footer_branch
      %17 = sbr.rel target = $region3
    $region8: #{tpu_custom_call.1} parent=1 // loop_exit
      _
    %9452 = vsyncpa [#allocation4], 1
    %s9453 = scalar_lea.sflag [#allocation4], 1
    %9454 = vsyncpa %s9453, 1

</llo_original>
